<compile_context>
chip_gen: v7x
topology: tpu7x:2x2x1
jax: 0.10.0
libtpu: 0.0.40
codegen_flags: <defaults>
</compile_context>

<pallas_src>
import functools

import jax
import jax.numpy as jnp
from jax.experimental import pallas as pl
from jax.experimental.pallas import tpu as pltpu


# --------------------------- in-kernel helpers ------------------------------

def _layernorm(x, g, b, eps=1e-5):
    mu = jnp.mean(x, axis=-1, keepdims=True)
    var = jnp.mean((x - mu) ** 2, axis=-1, keepdims=True)
    return (x - mu) * jax.lax.rsqrt(var + eps) * g + b


# ----------------------- fused per-layer GIN+SAB kernel ----------------------

def _gin_sab_layer_kernel(h_ref, src_full_ref, src_tile_ref, adj_ref, eps_ref,
                          ln_in_g_ref, ln_in_b_ref,
                          wqkv_ref, bqkv_ref, seg_ref, segt_ref,
                          wo_ref, bo_ref, ln_ff_g_ref, ln_ff_b_ref,
                          w1_ref, b1_ref, w2_ref, b2_ref,
                          ln2_g_ref, ln2_b_ref,
                          h_out_ref, hr_out_ref,
                          *, first_layer, tokens, num_heads):
    """One fused NestedResidualGIN layer on a (tokens, tile_nodes, D) tile."""
    eps = eps_ref[0, 0]
    adj = adj_ref[...]                                # (Tn, N) bf16, 0/1 exact
    hidden = wo_ref.shape[0]
    dk = hidden // num_heads
    scale = 1.0 / float(dk) ** 0.5

    ln_in_g, ln_in_b = ln_in_g_ref[...], ln_in_b_ref[...]
    wqkv, bqkv = wqkv_ref[...], bqkv_ref[...]          # wqkv already bf16
    seg, segt = seg_ref[...], segt_ref[...]            # 0/1 head-segment mats

    # Phase 1: per-token GIN 'sum' aggregation (contraction over N nodes, no
    # kron expansion) + pre-LN + fused QKV projection.
    aggs, qs, ks, vs = [], [], [], []
    for t in range(tokens):
        agg = (1.0 + eps) * src_tile_ref[t].astype(jnp.float32) + jnp.dot(
            adj, src_full_ref[t], preferred_element_type=jnp.float32)
        xn = _layernorm(agg, ln_in_g, ln_in_b)
        qkv = jnp.dot(xn.astype(jnp.bfloat16), wqkv,
                      preferred_element_type=jnp.float32) + bqkv
        aggs.append(agg)
        qs.append(qkv[:, :hidden])
        ks.append(qkv[:, hidden:2 * hidden])
        vs.append(qkv[:, 2 * hidden:])

    # Phase 2: block-diagonal attention (tokens only attend within their own
    # node) -> streamed softmax (exact reciprocal) -> single Wo projection ->
    # residual rFF -> outer residual -> ReLU + LayerNorm2.
    for t in range(tokens):
        # scores[n, h] for every token pair (t, t2): (q*k) @ seg sums each
        # head's dk lanes -- O(T^2 * tile * hidden), no dense tile^2 softmax.
        s_list = [scale * jnp.dot(qs[t] * ks[t2], seg,
                                  preferred_element_type=jnp.float32)
                  for t2 in range(tokens)]             # each (Tn, heads)
        m = s_list[0]
        for t2 in range(1, tokens):
            m = jnp.maximum(m, s_list[t2])
        p_list = [jnp.exp(s - m) for s in s_list]
        denom = p_list[0]
        for t2 in range(1, tokens):
            denom = denom + p_list[t2]
        inv = 1.0 / denom                              # exact reciprocal

        o = jnp.zeros(vs[0].shape, jnp.float32)        # (Tn, hidden)
        for t2 in range(tokens):
            w_exp = jnp.dot(p_list[t2] * inv, segt,
                            preferred_element_type=jnp.float32)
            o = o + w_exp * vs[t2]
        o = jnp.dot(o.astype(jnp.bfloat16), wo_ref[...],
                    preferred_element_type=jnp.float32) + bo_ref[...]

        h1 = o if first_layer else aggs[t] + o         # SAB token residual
        hn = _layernorm(h1, ln_ff_g_ref[...], ln_ff_b_ref[...])
        ff = jnp.maximum(jnp.dot(hn.astype(jnp.bfloat16), w1_ref[...],
                                 preferred_element_type=jnp.float32)
                         + b1_ref[...], 0.0)
        ff = jnp.dot(ff.astype(jnp.bfloat16), w2_ref[...],
                     preferred_element_type=jnp.float32) + b2_ref[...]
        sab = h1 + ff

        h_new = sab if first_layer else h_ref[t] + sab  # outer GIN residual
        h_out_ref[t] = h_new
        hr_out_ref[t] = _layernorm(jnp.maximum(h_new, 0.0),
                                   ln2_g_ref[...], ln2_b_ref[...]
                                   ).astype(jnp.bfloat16)


def gin_sab_layer(h3, src3, adj_bf16, seg, segt, lp, *, first_layer,
                  num_heads, tokens, tile_nodes):
    _, n_nodes, din = h3.shape
    hidden = lp['wo'].shape[0]
    num_tiles = n_nodes // tile_nodes

    def full(arr):
        nd = arr.ndim
        return pl.BlockSpec(arr.shape, lambda i, _nd=nd: (0,) * _nd)

    def tiled(feat_dim):
        return pl.BlockSpec((tokens, tile_nodes, feat_dim), lambda i: (0, i, 0))

    # Matmul weights pre-cast to bf16 once (outside the kernel); LN / bias f32.
    weights = (lp['ln_in_g'], lp['ln_in_b'],
               lp['wqkv'].astype(jnp.bfloat16), lp['bqkv'],
               seg, segt,
               lp['wo'].astype(jnp.bfloat16), lp['bo'],
               lp['ln_ff_g'], lp['ln_ff_b'],
               lp['w1'].astype(jnp.bfloat16), lp['b1'],
               lp['w2'].astype(jnp.bfloat16), lp['b2'],
               lp['ln2_g'], lp['ln2_b'])

    in_specs = ([tiled(din),                                   # h (residual)
                 full(src3),                                   # resident src
                 tiled(din),                                   # src tile (diag)
                 pl.BlockSpec((tile_nodes, n_nodes), lambda i: (i, 0)),
                 pl.BlockSpec(memory_space=pltpu.MemorySpace.SMEM)]   # eps
                + [full(w) for w in weights])
    out_spec = pl.BlockSpec((tokens, tile_nodes, hidden), lambda i: (0, i, 0))

    kern = functools.partial(_gin_sab_layer_kernel, first_layer=first_layer,
                             tokens=tokens, num_heads=num_heads)
    return pl.pallas_call(
        kern,
        grid=(num_tiles,),
        in_specs=in_specs,
        out_specs=[out_spec, out_spec],
        out_shape=[jax.ShapeDtypeStruct((tokens, n_nodes, hidden), jnp.float32),
                   jax.ShapeDtypeStruct((tokens, n_nodes, hidden), jnp.bfloat16)],
        compiler_params=pltpu.CompilerParams(
            dimension_semantics=("parallel",),        # shard tiles across TCs
            vmem_limit_bytes=48 * 1024 * 1024),       # fits v7x 64 MiB/TC
    )(h3, src3, src3, adj_bf16, lp['eps'], *weights)


# ---------------- hoisted LayerNorm1 prepass (bf16 aggregation source) -------

def _ln1_prepass_kernel(h_ref, g_ref, b_ref, src_ref, *, tokens):
    g, b = g_ref[...], b_ref[...]
    for t in range(tokens):
        src_ref[t] = _layernorm(h_ref[t], g, b).astype(jnp.bfloat16)


def ln1_prepass(h3, g, b, *, tokens, tile_nodes):
    _, n_nodes, hidden = h3.shape
    num_tiles = n_nodes // tile_nodes
    blk = pl.BlockSpec((tokens, tile_nodes, hidden), lambda i: (0, i, 0))
    return pl.pallas_call(
        functools.partial(_ln1_prepass_kernel, tokens=tokens),
        grid=(num_tiles,),
        in_specs=[blk,
                  pl.BlockSpec(g.shape, lambda i: (0, 0)),
                  pl.BlockSpec(b.shape, lambda i: (0, 0))],
        out_specs=blk,
        out_shape=jax.ShapeDtypeStruct((tokens, n_nodes, hidden), jnp.bfloat16),
        compiler_params=pltpu.CompilerParams(dimension_semantics=("parallel",)),
    )(h3, g, b)


# ---------------- fused sum-pooling + batched prediction heads ---------------

def _make_pool_predict_kernel(num_reps, tokens):
    def kernel(*refs):
        pool_ref, b_ref = refs[0], refs[1]
        hr_refs = refs[2:2 + num_reps]
        w_refs = refs[2 + num_reps:2 + 2 * num_reps]
        o_ref = refs[2 + 2 * num_reps]
        pool = pool_ref[...]                       # (G, N) bf16, 0/1 exact
        bias = b_ref[...]                          # (1, out) f32 (sum of biases)
        n_graphs, out_dim = pool.shape[0], bias.shape[1]
        for t in range(tokens):
            acc = jnp.zeros((n_graphs, out_dim), jnp.float32) + bias
            for r in range(num_reps):
                pooled = jnp.dot(pool, hr_refs[r][t],
                                 preferred_element_type=jnp.float32)
                acc = acc + jnp.dot(pooled.astype(jnp.bfloat16), w_refs[r][...],
                                    preferred_element_type=jnp.float32)
            o_ref[t] = acc
    return kernel


def pool_predict(pool_bf16, hidden_reps, pred_ws, bias_sum, *, tokens):
    # TODO(synk): tile (graph rows x node K-tiles) for graphs that do not fit
    # VMEM in one shot.
    n_graphs = pool_bf16.shape[0]
    out_dim = pred_ws[0].shape[1]
    kern = _make_pool_predict_kernel(len(hidden_reps), tokens)
    return pl.pallas_call(
        kern,
        out_shape=jax.ShapeDtypeStruct((tokens, n_graphs, out_dim), jnp.float32),
    )(pool_bf16, bias_sum, *hidden_reps, *pred_ws)


# ------------------------------ model wrapper --------------------------------

def nested_residual_gin_forward(feats, adj, pool_mat, params, *, tile_nodes=None):
    """feats: (N_nodes, T * input_dim) == g.ndata['feat'] (bs_nv, dc)."""
    n_nodes = feats.shape[0]
    input_dim = params['input_dim']
    tokens = feats.shape[1] // input_dim
    num_heads = params['num_heads']
    hidden = params['hidden_dim']

    # Auto-select the node tile: largest sublane-aligned divisor of n_nodes
    # that still yields >= 2 grid tiles (keeps both v7x TensorCores busy),
    # capped so the streamed (tile, N) adjacency slab stays modest.
    if (tile_nodes is None or n_nodes % tile_nodes
            or (tile_nodes % 8 and tile_nodes != n_nodes)):
        tile_nodes = n_nodes
        cand = 8
        while cand * 2 <= n_nodes and cand <= 512:
            if n_nodes % cand == 0:
                tile_nodes = cand
            cand += 8

    # One-time relayout to token-major 3-D (tokens, nodes, feat): keeps the
    # per-token feature dim on the lane axis and the aggregation kron-free.
    h3 = jnp.transpose(feats.reshape(n_nodes, tokens, input_dim), (1, 0, 2))
    adj_bf16 = adj.astype(jnp.bfloat16)            # 0/1 entries: exact in bf16
    pool_bf16 = pool_mat.astype(jnp.bfloat16)

    # 0/1 head-segment matrices: one matmul computes every head's score
    # (sum over its dk lanes) / expands per-head softmax weights to lanes.
    dk = hidden // num_heads
    head_of_lane = jnp.arange(hidden) // dk
    seg = (head_of_lane[:, None] == jnp.arange(num_heads)[None, :]
           ).astype(jnp.float32)                   # (hidden, heads)
    segt = jnp.transpose(seg)                      # (heads, hidden)

    src = h3.astype(jnp.bfloat16)                  # layer-0 aggregation source
    hidden_reps = [src]                            # hidden_rep[0] == features
    h = h3
    for i in range(params['num_layers'] - 1):
        lp = params['gin'][i]
        if i > 0:
            # Hoisted LayerNorm1: once per layer instead of once per grid tile.
            src = ln1_prepass(h, lp['ln1_g'], lp['ln1_b'],
                              tokens=tokens, tile_nodes=tile_nodes)
        h, hr = gin_sab_layer(h, src, adj_bf16, seg, segt, lp,
                              first_layer=(i == 0), num_heads=num_heads,
                              tokens=tokens, tile_nodes=tile_nodes)
        hidden_reps.append(hr)

    # score = sum_i Linear_i(SumPool(hidden_rep[i]))
    # (nn.Dropout(final_dropout) is identity at inference time.)
    pred_ws = [w.astype(jnp.bfloat16) for w in params['pred_w']]
    b_sum = functools.reduce(lambda a, b: a + b, params['pred_b'])
    score = pool_predict(pool_bf16, hidden_reps, pred_ws, b_sum, tokens=tokens)
    return jnp.transpose(score, (1, 0, 2))         # (num_graphs, tokens, out)


# --------------------------- pure-JAX f32 reference --------------------------

def _reference_forward(feats, adj, pool_mat, params):
    n_nodes = feats.shape[0]
    input_dim = params['input_dim']
    tokens = feats.shape[1] // input_dim
    num_heads = params['num_heads']

    def ln(x, g, b):
        mu = jnp.mean(x, axis=-1, keepdims=True)
        var = jnp.mean((x - mu) ** 2, axis=-1, keepdims=True)
        return (x - mu) / jnp.sqrt(var + 1e-5) * g.reshape(-1) + b.reshape(-1)

    def sab(x, lp, add_residual):
        hidden = lp['wo'].shape[0]
        dk = hidden // num_heads
        xn = ln(x, lp['ln_in_g'], lp['ln_in_b'])
        qkv = xn @ lp['wqkv'] + lp['bqkv'].reshape(-1)
        q, k, v = (qkv[..., :hidden], qkv[..., hidden:2 * hidden],
                   qkv[..., 2 * hidden:])
        outs = []
        for hd in range(num_heads):
            sl = slice(hd * dk, (hd + 1) * dk)
            s = jnp.einsum('ntd,nsd->nts', q[..., sl], k[..., sl]) / dk ** 0.5
            p = jax.nn.softmax(s, axis=-1)
            outs.append(jnp.einsum('nts,nsd->ntd', p, v[..., sl]))
        o = jnp.concatenate(outs, axis=-1) @ lp['wo'] + lp['bo'].reshape(-1)
        h1 = x + o if add_residual else o
        hn = ln(h1, lp['ln_ff_g'], lp['ln_ff_b'])
        ff = jax.nn.relu(hn @ lp['w1'] + lp['b1'].reshape(-1)) @ lp['w2'] \
            + lp['b2'].reshape(-1)
        return h1 + ff

    def gin(h, lp, add_residual):
        agg = (1.0 + lp['eps'][0, 0]) * h + jnp.einsum('nm,mtd->ntd', adj, h)
        return sab(agg, lp, add_residual)

    h = feats.reshape(n_nodes, tokens, input_dim)
    hidden_rep = [h]
    for i in range(params['num_layers'] - 1):
        lp = params['gin'][i]
        if i == 0:
            h = gin(h, lp, add_residual=False)
        else:
            h = h + gin(ln(h, lp['ln1_g'], lp['ln1_b']), lp, add_residual=True)
        hidden_rep.append(ln(jax.nn.relu(h), lp['ln2_g'], lp['ln2_b']))

    score = 0.0
    for i, hi in enumerate(hidden_rep):
        pooled = jnp.einsum('gn,ntd->gtd', pool_mat, hi)
        score = score + pooled @ params['pred_w'][i] \
            + params['pred_b'][i].reshape(-1)
    return score


# ------------------------------ parameter init -------------------------------

def init_params(key, num_layers, input_dim, num_heads, dim_per_head, output_dim):
    hidden = num_heads * dim_per_head
    keys = iter(jax.random.split(key, 64))

    def dense(din, dout):
        return jax.random.normal(next(keys), (din, dout), jnp.float32) * 0.1

    params = {'num_layers': num_layers, 'input_dim': input_dim,
              'num_heads': num_heads, 'hidden_dim': hidden}

    gin = []
    for layer in range(num_layers - 1):
        din = input_dim if layer == 0 else hidden
        gin.append({
            'eps': jnp.zeros((1, 1), jnp.float32),
            'ln1_g': jnp.ones((1, din), jnp.float32),   # used for layer > 0
            'ln1_b': jnp.zeros((1, din), jnp.float32),
            'wqkv': dense(din, 3 * hidden),             # fused [Wq|Wk|Wv]
            'bqkv': jnp.zeros((1, 3 * hidden), jnp.float32),
            'ln_in_g': jnp.ones((1, din), jnp.float32),
            'ln_in_b': jnp.zeros((1, din), jnp.float32),
            'wo': dense(hidden, hidden),
            'bo': jnp.zeros((1, hidden), jnp.float32),
            'ln_ff_g': jnp.ones((1, hidden), jnp.float32),
            'ln_ff_b': jnp.zeros((1, hidden), jnp.float32),
            'w1': dense(hidden, hidden),
            'b1': jnp.zeros((1, hidden), jnp.float32),
            'w2': dense(hidden, hidden),
            'b2': jnp.zeros((1, hidden), jnp.float32),
            'ln2_g': jnp.ones((1, hidden), jnp.float32),
            'ln2_b': jnp.zeros((1, hidden), jnp.float32),
        })
    params['gin'] = gin

    pred_w, pred_b = [], []
    for layer in range(num_layers):
        din = input_dim if layer == 0 else hidden
        pred_w.append(dense(din, output_dim))
        pred_b.append(jnp.zeros((1, output_dim), jnp.float32))
    params.update(pred_w=pred_w, pred_b=pred_b)
    return params


# ---------------------------------- main -------------------------------------

if __name__ == "__main__":
    num_layers, input_dim, num_heads, dim_per_head, output_dim = 3, 8, 2, 8, 4
    nodes_per_graph, n_graphs, tokens = 4, 8, 4
    n_nodes = nodes_per_graph * n_graphs            # 32 nodes -> 2 node tiles

    key = jax.random.PRNGKey(0)
    k_feat, k_par = jax.random.split(key)
    feats = jax.random.normal(k_feat, (n_nodes, tokens * input_dim), jnp.float32)

    # Disjoint 4-node ring graphs, dense 0/1 adjacency ('sum' neighbor pooling).
    adj = jnp.zeros((n_nodes, n_nodes), jnp.float32)
    for g in range(n_graphs):
        base = g * nodes_per_graph
        for j in range(nodes_per_graph):
            u, v = base + j, base + (j + 1) % nodes_per_graph
            adj = adj.at[u, v].set(1.0)
            adj = adj.at[v, u].set(1.0)

    # Graph membership matrix for SumPooling: (num_graphs, num_nodes).
    pool_mat = jnp.zeros((n_graphs, n_nodes), jnp.float32)
    for g in range(n_graphs):
        pool_mat = pool_mat.at[g, g * nodes_per_graph:
                               (g + 1) * nodes_per_graph].set(1.0)

    params = init_params(k_par, num_layers, input_dim, num_heads,
                         dim_per_head, output_dim)

    out = nested_residual_gin_forward(feats, adj, pool_mat, params)
    out = jax.block_until_ready(out)
    assert out.shape == (n_graphs, tokens, output_dim), out.shape
    assert bool(jnp.all(jnp.isfinite(out)))

    # Sanity check vs a pure-JAX f32 reference (kernels use bf16 MXU operands
    # and bf16 hidden-rep storage, so allow a small absolute tolerance).
    ref = _reference_forward(feats, adj, pool_mat, params)
    max_err = float(jnp.max(jnp.abs(out - ref)))
    assert max_err < 0.3, max_err

    print("KERNEL_OK")
</pallas_src>

<mosaic_0001>
module attributes {stable_mosaic.version = 11 : i64} {
  func.func @_gin_sab_layer_kernel(%arg0: i32, %arg1: memref<4x16x8xf32, #tpu.memory_space<vmem>>, %arg2: memref<4x32x8xbf16, #tpu.memory_space<vmem>>, %arg3: memref<4x16x8xbf16, #tpu.memory_space<vmem>>, %arg4: memref<16x32xbf16, #tpu.memory_space<vmem>>, %arg5: memref<1x1xf32, #tpu.memory_space<smem>>, %arg6: memref<1x8xf32, #tpu.memory_space<vmem>>, %arg7: memref<1x8xf32, #tpu.memory_space<vmem>>, %arg8: memref<8x48xbf16, #tpu.memory_space<vmem>>, %arg9: memref<1x48xf32, #tpu.memory_space<vmem>>, %arg10: memref<16x2xf32, #tpu.memory_space<vmem>>, %arg11: memref<2x16xf32, #tpu.memory_space<vmem>>, %arg12: memref<16x16xbf16, #tpu.memory_space<vmem>>, %arg13: memref<1x16xf32, #tpu.memory_space<vmem>>, %arg14: memref<1x16xf32, #tpu.memory_space<vmem>>, %arg15: memref<1x16xf32, #tpu.memory_space<vmem>>, %arg16: memref<16x16xbf16, #tpu.memory_space<vmem>>, %arg17: memref<1x16xf32, #tpu.memory_space<vmem>>, %arg18: memref<16x16xbf16, #tpu.memory_space<vmem>>, %arg19: memref<1x16xf32, #tpu.memory_space<vmem>>, %arg20: memref<1x16xf32, #tpu.memory_space<vmem>>, %arg21: memref<1x16xf32, #tpu.memory_space<vmem>>, %arg22: memref<4x16x16xf32, #tpu.memory_space<vmem>>, %arg23: memref<4x16x16xbf16, #tpu.memory_space<vmem>>) attributes {dimension_semantics = [#tpu.dimension_semantics<parallel>], iteration_bounds = array<i64: 2>, scalar_prefetch = 0 : i64, scratch_operands = 0 : i64, tpu.core_type = #tpu.core_type<tc>, window_params = [{transform_indices = @transform_0, window_bounds = array<i64: 4, 16, 8>}, {pipeline_mode = #tpu.pipeline_mode<synchronous>, transform_indices = @transform_1, window_bounds = array<i64: 4, 32, 8>}, {transform_indices = @transform_2, window_bounds = array<i64: 4, 16, 8>}, {transform_indices = @transform_3, window_bounds = array<i64: 16, 32>}, {transform_indices = @transform_4, window_bounds = array<i64: 1, 1>}, {pipeline_mode = #tpu.pipeline_mode<synchronous>, transform_indices = @transform_5, window_bounds = array<i64: 1, 8>}, {pipeline_mode = #tpu.pipeline_mode<synchronous>, transform_indices = @transform_6, window_bounds = array<i64: 1, 8>}, {pipeline_mode = #tpu.pipeline_mode<synchronous>, transform_indices = @transform_7, window_bounds = array<i64: 8, 48>}, {pipeline_mode = #tpu.pipeline_mode<synchronous>, transform_indices = @transform_8, window_bounds = array<i64: 1, 48>}, {pipeline_mode = #tpu.pipeline_mode<synchronous>, transform_indices = @transform_9, window_bounds = array<i64: 16, 2>}, {pipeline_mode = #tpu.pipeline_mode<synchronous>, transform_indices = @transform_10, window_bounds = array<i64: 2, 16>}, {pipeline_mode = #tpu.pipeline_mode<synchronous>, transform_indices = @transform_11, window_bounds = array<i64: 16, 16>}, {pipeline_mode = #tpu.pipeline_mode<synchronous>, transform_indices = @transform_12, window_bounds = array<i64: 1, 16>}, {pipeline_mode = #tpu.pipeline_mode<synchronous>, transform_indices = @transform_13, window_bounds = array<i64: 1, 16>}, {pipeline_mode = #tpu.pipeline_mode<synchronous>, transform_indices = @transform_14, window_bounds = array<i64: 1, 16>}, {pipeline_mode = #tpu.pipeline_mode<synchronous>, transform_indices = @transform_15, window_bounds = array<i64: 16, 16>}, {pipeline_mode = #tpu.pipeline_mode<synchronous>, transform_indices = @transform_16, window_bounds = array<i64: 1, 16>}, {pipeline_mode = #tpu.pipeline_mode<synchronous>, transform_indices = @transform_17, window_bounds = array<i64: 16, 16>}, {pipeline_mode = #tpu.pipeline_mode<synchronous>, transform_indices = @transform_18, window_bounds = array<i64: 1, 16>}, {pipeline_mode = #tpu.pipeline_mode<synchronous>, transform_indices = @transform_19, window_bounds = array<i64: 1, 16>}, {pipeline_mode = #tpu.pipeline_mode<synchronous>, transform_indices = @transform_20, window_bounds = array<i64: 1, 16>}, {transform_indices = @transform_21, window_bounds = array<i64: 4, 16, 16>}, {transform_indices = @transform_22, window_bounds = array<i64: 4, 16, 16>}]} {
    %c0 = arith.constant 0 : index
    %c0_0 = arith.constant 0 : index
    %0 = memref.load %arg5[%c0, %c0_0] : memref<1x1xf32, #tpu.memory_space<smem>>
    %c0_1 = arith.constant 0 : index
    %c0_2 = arith.constant 0 : index
    %1 = vector.load %arg4[%c0_1, %c0_2] : memref<16x32xbf16, #tpu.memory_space<vmem>>, vector<16x32xbf16>
    %c0_3 = arith.constant 0 : index
    %c0_4 = arith.constant 0 : index
    %2 = vector.load %arg6[%c0_3, %c0_4] : memref<1x8xf32, #tpu.memory_space<vmem>>, vector<1x8xf32>
    %c0_5 = arith.constant 0 : index
    %c0_6 = arith.constant 0 : index
    %3 = vector.load %arg7[%c0_5, %c0_6] : memref<1x8xf32, #tpu.memory_space<vmem>>, vector<1x8xf32>
    %c0_7 = arith.constant 0 : index
    %c0_8 = arith.constant 0 : index
    %4 = vector.load %arg8[%c0_7, %c0_8] : memref<8x48xbf16, #tpu.memory_space<vmem>>, vector<8x48xbf16>
    %c0_9 = arith.constant 0 : index
    %c0_10 = arith.constant 0 : index
    %5 = vector.load %arg9[%c0_9, %c0_10] : memref<1x48xf32, #tpu.memory_space<vmem>>, vector<1x48xf32>
    %c0_11 = arith.constant 0 : index
    %c0_12 = arith.constant 0 : index
    %6 = vector.load %arg10[%c0_11, %c0_12] : memref<16x2xf32, #tpu.memory_space<vmem>>, vector<16x2xf32>
    %c0_13 = arith.constant 0 : index
    %c0_14 = arith.constant 0 : index
    %7 = vector.load %arg11[%c0_13, %c0_14] : memref<2x16xf32, #tpu.memory_space<vmem>>, vector<2x16xf32>
    %cst = arith.constant 1.000000e+00 : f32
    %8 = arith.addf %cst, %0 : f32
    %c0_15 = arith.constant 0 : index
    %c0_16 = arith.constant 0 : index
    %c0_17 = arith.constant 0 : index
    %9 = vector.load %arg3[%c0_15, %c0_16, %c0_17] : memref<4x16x8xbf16, #tpu.memory_space<vmem>>, vector<1x16x8xbf16>
    %10 = vector.shape_cast %9 : vector<1x16x8xbf16> to vector<16x8xbf16>
    %11 = arith.extf %10 : vector<16x8xbf16> to vector<16x8xf32>
    %12 = vector.broadcast %8 : f32 to vector<16x8xf32>
    %13 = arith.mulf %12, %11 : vector<16x8xf32>
    %c0_18 = arith.constant 0 : index
    %c0_19 = arith.constant 0 : index
    %c0_20 = arith.constant 0 : index
    %14 = vector.load %arg2[%c0_18, %c0_19, %c0_20] : memref<4x32x8xbf16, #tpu.memory_space<vmem>>, vector<1x32x8xbf16>
    %15 = vector.shape_cast %14 : vector<1x32x8xbf16> to vector<32x8xbf16>
    %cst_21 = arith.constant dense<0.000000e+00> : vector<16x8xf32>
    %16 = tpu.matmul %1, %15, %cst_21 {dimension_numbers = #tpu.dot_dimension_numbers<[1], [0], [0], [1], [0, 0, 1, 1], [], []>} : vector<16x32xbf16>, vector<32x8xbf16>, vector<16x8xf32> -> vector<16x8xf32>
    %17 = arith.addf %13, %16 : vector<16x8xf32>
    %cst_22 = arith.constant dense<0.000000e+00> : vector<16xf32>
    %18 = vector.multi_reduction <add>, %17, %cst_22 [1] : vector<16x8xf32> to vector<16xf32>
    %19 = vector.shape_cast %18 : vector<16xf32> to vector<16x1xf32>
    %cst_23 = arith.constant 8.000000e+00 : f32
    %20 = vector.broadcast %cst_23 : f32 to vector<16x1xf32>
    %21 = arith.divf %19, %20 : vector<16x1xf32>
    %22 = vector.broadcast %21 : vector<16x1xf32> to vector<16x8xf32>
    %23 = arith.subf %17, %22 : vector<16x8xf32>
    %24 = arith.mulf %23, %23 : vector<16x8xf32>
    %cst_24 = arith.constant dense<0.000000e+00> : vector<16xf32>
    %25 = vector.multi_reduction <add>, %24, %cst_24 [1] : vector<16x8xf32> to vector<16xf32>
    %26 = vector.shape_cast %25 : vector<16xf32> to vector<16x1xf32>
    %cst_25 = arith.constant 8.000000e+00 : f32
    %27 = vector.broadcast %cst_25 : f32 to vector<16x1xf32>
    %28 = arith.divf %26, %27 : vector<16x1xf32>
    %29 = vector.broadcast %21 : vector<16x1xf32> to vector<16x8xf32>
    %30 = arith.subf %17, %29 : vector<16x8xf32>
    %cst_26 = arith.constant 9.99999974E-6 : f32
    %31 = vector.broadcast %cst_26 : f32 to vector<16x1xf32>
    %32 = arith.addf %28, %31 : vector<16x1xf32>
    %33 = math.rsqrt %32 : vector<16x1xf32>
    %34 = vector.broadcast %33 : vector<16x1xf32> to vector<16x8xf32>
    %35 = arith.mulf %30, %34 : vector<16x8xf32>
    %36 = vector.broadcast %2 : vector<1x8xf32> to vector<16x8xf32>
    %37 = arith.mulf %35, %36 : vector<16x8xf32>
    %38 = vector.broadcast %3 : vector<1x8xf32> to vector<16x8xf32>
    %39 = arith.addf %37, %38 : vector<16x8xf32>
    %40 = arith.truncf %39 : vector<16x8xf32> to vector<16x8xbf16>
    %cst_27 = arith.constant dense<0.000000e+00> : vector<16x48xf32>
    %41 = tpu.matmul %40, %4, %cst_27 {dimension_numbers = #tpu.dot_dimension_numbers<[1], [0], [0], [1], [0, 0, 1, 1], [], []>} : vector<16x8xbf16>, vector<8x48xbf16>, vector<16x48xf32> -> vector<16x48xf32>
    %42 = vector.broadcast %5 : vector<1x48xf32> to vector<16x48xf32>
    %43 = arith.addf %41, %42 : vector<16x48xf32>
    %44 = vector.extract_strided_slice %43 {offsets = [0, 0], sizes = [16, 16], strides = [1, 1]} : vector<16x48xf32> to vector<16x16xf32>
    %45 = vector.extract_strided_slice %43 {offsets = [0, 16], sizes = [16, 16], strides = [1, 1]} : vector<16x48xf32> to vector<16x16xf32>
    %46 = vector.extract_strided_slice %43 {offsets = [0, 32], sizes = [16, 16], strides = [1, 1]} : vector<16x48xf32> to vector<16x16xf32>
    %cst_28 = arith.constant 1.000000e+00 : f32
    %47 = arith.addf %cst_28, %0 : f32
    %c1 = arith.constant 1 : index
    %c0_29 = arith.constant 0 : index
    %c0_30 = arith.constant 0 : index
    %48 = vector.load %arg3[%c1, %c0_29, %c0_30] : memref<4x16x8xbf16, #tpu.memory_space<vmem>>, vector<1x16x8xbf16>
    %49 = vector.shape_cast %48 : vector<1x16x8xbf16> to vector<16x8xbf16>
    %50 = arith.extf %49 : vector<16x8xbf16> to vector<16x8xf32>
    %51 = vector.broadcast %47 : f32 to vector<16x8xf32>
    %52 = arith.mulf %51, %50 : vector<16x8xf32>
    %c1_31 = arith.constant 1 : index
    %c0_32 = arith.constant 0 : index
    %c0_33 = arith.constant 0 : index
    %53 = vector.load %arg2[%c1_31, %c0_32, %c0_33] : memref<4x32x8xbf16, #tpu.memory_space<vmem>>, vector<1x32x8xbf16>
    %54 = vector.shape_cast %53 : vector<1x32x8xbf16> to vector<32x8xbf16>
    %cst_34 = arith.constant dense<0.000000e+00> : vector<16x8xf32>
    %55 = tpu.matmul %1, %54, %cst_34 {dimension_numbers = #tpu.dot_dimension_numbers<[1], [0], [0], [1], [0, 0, 1, 1], [], []>} : vector<16x32xbf16>, vector<32x8xbf16>, vector<16x8xf32> -> vector<16x8xf32>
    %56 = arith.addf %52, %55 : vector<16x8xf32>
    %cst_35 = arith.constant dense<0.000000e+00> : vector<16xf32>
    %57 = vector.multi_reduction <add>, %56, %cst_35 [1] : vector<16x8xf32> to vector<16xf32>
    %58 = vector.shape_cast %57 : vector<16xf32> to vector<16x1xf32>
    %cst_36 = arith.constant 8.000000e+00 : f32
    %59 = vector.broadcast %cst_36 : f32 to vector<16x1xf32>
    %60 = arith.divf %58, %59 : vector<16x1xf32>
    %61 = vector.broadcast %60 : vector<16x1xf32> to vector<16x8xf32>
    %62 = arith.subf %56, %61 : vector<16x8xf32>
    %63 = arith.mulf %62, %62 : vector<16x8xf32>
    %cst_37 = arith.constant dense<0.000000e+00> : vector<16xf32>
    %64 = vector.multi_reduction <add>, %63, %cst_37 [1] : vector<16x8xf32> to vector<16xf32>
    %65 = vector.shape_cast %64 : vector<16xf32> to vector<16x1xf32>
    %cst_38 = arith.constant 8.000000e+00 : f32
    %66 = vector.broadcast %cst_38 : f32 to vector<16x1xf32>
    %67 = arith.divf %65, %66 : vector<16x1xf32>
    %68 = vector.broadcast %60 : vector<16x1xf32> to vector<16x8xf32>
    %69 = arith.subf %56, %68 : vector<16x8xf32>
    %cst_39 = arith.constant 9.99999974E-6 : f32
    %70 = vector.broadcast %cst_39 : f32 to vector<16x1xf32>
    %71 = arith.addf %67, %70 : vector<16x1xf32>
    %72 = math.rsqrt %71 : vector<16x1xf32>
    %73 = vector.broadcast %72 : vector<16x1xf32> to vector<16x8xf32>
    %74 = arith.mulf %69, %73 : vector<16x8xf32>
    %75 = vector.broadcast %2 : vector<1x8xf32> to vector<16x8xf32>
    %76 = arith.mulf %74, %75 : vector<16x8xf32>
    %77 = vector.broadcast %3 : vector<1x8xf32> to vector<16x8xf32>
    %78 = arith.addf %76, %77 : vector<16x8xf32>
    %79 = arith.truncf %78 : vector<16x8xf32> to vector<16x8xbf16>
    %cst_40 = arith.constant dense<0.000000e+00> : vector<16x48xf32>
    %80 = tpu.matmul %79, %4, %cst_40 {dimension_numbers = #tpu.dot_dimension_numbers<[1], [0], [0], [1], [0, 0, 1, 1], [], []>} : vector<16x8xbf16>, vector<8x48xbf16>, vector<16x48xf32> -> vector<16x48xf32>
    %81 = vector.broadcast %5 : vector<1x48xf32> to vector<16x48xf32>
    %82 = arith.addf %80, %81 : vector<16x48xf32>
    %83 = vector.extract_strided_slice %82 {offsets = [0, 0], sizes = [16, 16], strides = [1, 1]} : vector<16x48xf32> to vector<16x16xf32>
    %84 = vector.extract_strided_slice %82 {offsets = [0, 16], sizes = [16, 16], strides = [1, 1]} : vector<16x48xf32> to vector<16x16xf32>
    %85 = vector.extract_strided_slice %82 {offsets = [0, 32], sizes = [16, 16], strides = [1, 1]} : vector<16x48xf32> to vector<16x16xf32>
    %cst_41 = arith.constant 1.000000e+00 : f32
    %86 = arith.addf %cst_41, %0 : f32
    %c2 = arith.constant 2 : index
    %c0_42 = arith.constant 0 : index
    %c0_43 = arith.constant 0 : index
    %87 = vector.load %arg3[%c2, %c0_42, %c0_43] : memref<4x16x8xbf16, #tpu.memory_space<vmem>>, vector<1x16x8xbf16>
    %88 = vector.shape_cast %87 : vector<1x16x8xbf16> to vector<16x8xbf16>
    %89 = arith.extf %88 : vector<16x8xbf16> to vector<16x8xf32>
    %90 = vector.broadcast %86 : f32 to vector<16x8xf32>
    %91 = arith.mulf %90, %89 : vector<16x8xf32>
    %c2_44 = arith.constant 2 : index
    %c0_45 = arith.constant 0 : index
    %c0_46 = arith.constant 0 : index
    %92 = vector.load %arg2[%c2_44, %c0_45, %c0_46] : memref<4x32x8xbf16, #tpu.memory_space<vmem>>, vector<1x32x8xbf16>
    %93 = vector.shape_cast %92 : vector<1x32x8xbf16> to vector<32x8xbf16>
    %cst_47 = arith.constant dense<0.000000e+00> : vector<16x8xf32>
    %94 = tpu.matmul %1, %93, %cst_47 {dimension_numbers = #tpu.dot_dimension_numbers<[1], [0], [0], [1], [0, 0, 1, 1], [], []>} : vector<16x32xbf16>, vector<32x8xbf16>, vector<16x8xf32> -> vector<16x8xf32>
    %95 = arith.addf %91, %94 : vector<16x8xf32>
    %cst_48 = arith.constant dense<0.000000e+00> : vector<16xf32>
    %96 = vector.multi_reduction <add>, %95, %cst_48 [1] : vector<16x8xf32> to vector<16xf32>
    %97 = vector.shape_cast %96 : vector<16xf32> to vector<16x1xf32>
    %cst_49 = arith.constant 8.000000e+00 : f32
    %98 = vector.broadcast %cst_49 : f32 to vector<16x1xf32>
    %99 = arith.divf %97, %98 : vector<16x1xf32>
    %100 = vector.broadcast %99 : vector<16x1xf32> to vector<16x8xf32>
    %101 = arith.subf %95, %100 : vector<16x8xf32>
    %102 = arith.mulf %101, %101 : vector<16x8xf32>
    %cst_50 = arith.constant dense<0.000000e+00> : vector<16xf32>
    %103 = vector.multi_reduction <add>, %102, %cst_50 [1] : vector<16x8xf32> to vector<16xf32>
    %104 = vector.shape_cast %103 : vector<16xf32> to vector<16x1xf32>
    %cst_51 = arith.constant 8.000000e+00 : f32
    %105 = vector.broadcast %cst_51 : f32 to vector<16x1xf32>
    %106 = arith.divf %104, %105 : vector<16x1xf32>
    %107 = vector.broadcast %99 : vector<16x1xf32> to vector<16x8xf32>
    %108 = arith.subf %95, %107 : vector<16x8xf32>
    %cst_52 = arith.constant 9.99999974E-6 : f32
    %109 = vector.broadcast %cst_52 : f32 to vector<16x1xf32>
    %110 = arith.addf %106, %109 : vector<16x1xf32>
    %111 = math.rsqrt %110 : vector<16x1xf32>
    %112 = vector.broadcast %111 : vector<16x1xf32> to vector<16x8xf32>
    %113 = arith.mulf %108, %112 : vector<16x8xf32>
    %114 = vector.broadcast %2 : vector<1x8xf32> to vector<16x8xf32>
    %115 = arith.mulf %113, %114 : vector<16x8xf32>
    %116 = vector.broadcast %3 : vector<1x8xf32> to vector<16x8xf32>
    %117 = arith.addf %115, %116 : vector<16x8xf32>
    %118 = arith.truncf %117 : vector<16x8xf32> to vector<16x8xbf16>
    %cst_53 = arith.constant dense<0.000000e+00> : vector<16x48xf32>
    %119 = tpu.matmul %118, %4, %cst_53 {dimension_numbers = #tpu.dot_dimension_numbers<[1], [0], [0], [1], [0, 0, 1, 1], [], []>} : vector<16x8xbf16>, vector<8x48xbf16>, vector<16x48xf32> -> vector<16x48xf32>
    %120 = vector.broadcast %5 : vector<1x48xf32> to vector<16x48xf32>
    %121 = arith.addf %119, %120 : vector<16x48xf32>
    %122 = vector.extract_strided_slice %121 {offsets = [0, 0], sizes = [16, 16], strides = [1, 1]} : vector<16x48xf32> to vector<16x16xf32>
    %123 = vector.extract_strided_slice %121 {offsets = [0, 16], sizes = [16, 16], strides = [1, 1]} : vector<16x48xf32> to vector<16x16xf32>
    %124 = vector.extract_strided_slice %121 {offsets = [0, 32], sizes = [16, 16], strides = [1, 1]} : vector<16x48xf32> to vector<16x16xf32>
    %cst_54 = arith.constant 1.000000e+00 : f32
    %125 = arith.addf %cst_54, %0 : f32
    %c3 = arith.constant 3 : index
    %c0_55 = arith.constant 0 : index
    %c0_56 = arith.constant 0 : index
    %126 = vector.load %arg3[%c3, %c0_55, %c0_56] : memref<4x16x8xbf16, #tpu.memory_space<vmem>>, vector<1x16x8xbf16>
    %127 = vector.shape_cast %126 : vector<1x16x8xbf16> to vector<16x8xbf16>
    %128 = arith.extf %127 : vector<16x8xbf16> to vector<16x8xf32>
    %129 = vector.broadcast %125 : f32 to vector<16x8xf32>
    %130 = arith.mulf %129, %128 : vector<16x8xf32>
    %c3_57 = arith.constant 3 : index
    %c0_58 = arith.constant 0 : index
    %c0_59 = arith.constant 0 : index
    %131 = vector.load %arg2[%c3_57, %c0_58, %c0_59] : memref<4x32x8xbf16, #tpu.memory_space<vmem>>, vector<1x32x8xbf16>
    %132 = vector.shape_cast %131 : vector<1x32x8xbf16> to vector<32x8xbf16>
    %cst_60 = arith.constant dense<0.000000e+00> : vector<16x8xf32>
    %133 = tpu.matmul %1, %132, %cst_60 {dimension_numbers = #tpu.dot_dimension_numbers<[1], [0], [0], [1], [0, 0, 1, 1], [], []>} : vector<16x32xbf16>, vector<32x8xbf16>, vector<16x8xf32> -> vector<16x8xf32>
    %134 = arith.addf %130, %133 : vector<16x8xf32>
    %cst_61 = arith.constant dense<0.000000e+00> : vector<16xf32>
    %135 = vector.multi_reduction <add>, %134, %cst_61 [1] : vector<16x8xf32> to vector<16xf32>
    %136 = vector.shape_cast %135 : vector<16xf32> to vector<16x1xf32>
    %cst_62 = arith.constant 8.000000e+00 : f32
    %137 = vector.broadcast %cst_62 : f32 to vector<16x1xf32>
    %138 = arith.divf %136, %137 : vector<16x1xf32>
    %139 = vector.broadcast %138 : vector<16x1xf32> to vector<16x8xf32>
    %140 = arith.subf %134, %139 : vector<16x8xf32>
    %141 = arith.mulf %140, %140 : vector<16x8xf32>
    %cst_63 = arith.constant dense<0.000000e+00> : vector<16xf32>
    %142 = vector.multi_reduction <add>, %141, %cst_63 [1] : vector<16x8xf32> to vector<16xf32>
    %143 = vector.shape_cast %142 : vector<16xf32> to vector<16x1xf32>
    %cst_64 = arith.constant 8.000000e+00 : f32
    %144 = vector.broadcast %cst_64 : f32 to vector<16x1xf32>
    %145 = arith.divf %143, %144 : vector<16x1xf32>
    %146 = vector.broadcast %138 : vector<16x1xf32> to vector<16x8xf32>
    %147 = arith.subf %134, %146 : vector<16x8xf32>
    %cst_65 = arith.constant 9.99999974E-6 : f32
    %148 = vector.broadcast %cst_65 : f32 to vector<16x1xf32>
    %149 = arith.addf %145, %148 : vector<16x1xf32>
    %150 = math.rsqrt %149 : vector<16x1xf32>
    %151 = vector.broadcast %150 : vector<16x1xf32> to vector<16x8xf32>
    %152 = arith.mulf %147, %151 : vector<16x8xf32>
    %153 = vector.broadcast %2 : vector<1x8xf32> to vector<16x8xf32>
    %154 = arith.mulf %152, %153 : vector<16x8xf32>
    %155 = vector.broadcast %3 : vector<1x8xf32> to vector<16x8xf32>
    %156 = arith.addf %154, %155 : vector<16x8xf32>
    %157 = arith.truncf %156 : vector<16x8xf32> to vector<16x8xbf16>
    %cst_66 = arith.constant dense<0.000000e+00> : vector<16x48xf32>
    %158 = tpu.matmul %157, %4, %cst_66 {dimension_numbers = #tpu.dot_dimension_numbers<[1], [0], [0], [1], [0, 0, 1, 1], [], []>} : vector<16x8xbf16>, vector<8x48xbf16>, vector<16x48xf32> -> vector<16x48xf32>
    %159 = vector.broadcast %5 : vector<1x48xf32> to vector<16x48xf32>
    %160 = arith.addf %158, %159 : vector<16x48xf32>
    %161 = vector.extract_strided_slice %160 {offsets = [0, 0], sizes = [16, 16], strides = [1, 1]} : vector<16x48xf32> to vector<16x16xf32>
    %162 = vector.extract_strided_slice %160 {offsets = [0, 16], sizes = [16, 16], strides = [1, 1]} : vector<16x48xf32> to vector<16x16xf32>
    %163 = vector.extract_strided_slice %160 {offsets = [0, 32], sizes = [16, 16], strides = [1, 1]} : vector<16x48xf32> to vector<16x16xf32>
    %164 = arith.mulf %44, %45 : vector<16x16xf32>
    %cst_67 = arith.constant dense<0.000000e+00> : vector<16x2xf32>
    %165 = tpu.matmul %164, %6, %cst_67 {dimension_numbers = #tpu.dot_dimension_numbers<[1], [0], [0], [1], [0, 0, 1, 1], [], []>} : vector<16x16xf32>, vector<16x2xf32>, vector<16x2xf32> -> vector<16x2xf32>
    %cst_68 = arith.constant 0.353553385 : f32
    %166 = vector.broadcast %cst_68 : f32 to vector<16x2xf32>
    %167 = arith.mulf %166, %165 : vector<16x2xf32>
    %168 = arith.mulf %44, %84 : vector<16x16xf32>
    %cst_69 = arith.constant dense<0.000000e+00> : vector<16x2xf32>
    %169 = tpu.matmul %168, %6, %cst_69 {dimension_numbers = #tpu.dot_dimension_numbers<[1], [0], [0], [1], [0, 0, 1, 1], [], []>} : vector<16x16xf32>, vector<16x2xf32>, vector<16x2xf32> -> vector<16x2xf32>
    %cst_70 = arith.constant 0.353553385 : f32
    %170 = vector.broadcast %cst_70 : f32 to vector<16x2xf32>
    %171 = arith.mulf %170, %169 : vector<16x2xf32>
    %172 = arith.mulf %44, %123 : vector<16x16xf32>
    %cst_71 = arith.constant dense<0.000000e+00> : vector<16x2xf32>
    %173 = tpu.matmul %172, %6, %cst_71 {dimension_numbers = #tpu.dot_dimension_numbers<[1], [0], [0], [1], [0, 0, 1, 1], [], []>} : vector<16x16xf32>, vector<16x2xf32>, vector<16x2xf32> -> vector<16x2xf32>
    %cst_72 = arith.constant 0.353553385 : f32
    %174 = vector.broadcast %cst_72 : f32 to vector<16x2xf32>
    %175 = arith.mulf %174, %173 : vector<16x2xf32>
    %176 = arith.mulf %44, %162 : vector<16x16xf32>
    %cst_73 = arith.constant dense<0.000000e+00> : vector<16x2xf32>
    %177 = tpu.matmul %176, %6, %cst_73 {dimension_numbers = #tpu.dot_dimension_numbers<[1], [0], [0], [1], [0, 0, 1, 1], [], []>} : vector<16x16xf32>, vector<16x2xf32>, vector<16x2xf32> -> vector<16x2xf32>
    %cst_74 = arith.constant 0.353553385 : f32
    %178 = vector.broadcast %cst_74 : f32 to vector<16x2xf32>
    %179 = arith.mulf %178, %177 : vector<16x2xf32>
    %180 = arith.maximumf %167, %171 : vector<16x2xf32>
    %181 = arith.maximumf %180, %175 : vector<16x2xf32>
    %182 = arith.maximumf %181, %179 : vector<16x2xf32>
    %183 = arith.subf %167, %182 : vector<16x2xf32>
    %184 = math.exp %183 : vector<16x2xf32>
    %185 = arith.subf %171, %182 : vector<16x2xf32>
    %186 = math.exp %185 : vector<16x2xf32>
    %187 = arith.subf %175, %182 : vector<16x2xf32>
    %188 = math.exp %187 : vector<16x2xf32>
    %189 = arith.subf %179, %182 : vector<16x2xf32>
    %190 = math.exp %189 : vector<16x2xf32>
    %191 = arith.addf %184, %186 : vector<16x2xf32>
    %192 = arith.addf %191, %188 : vector<16x2xf32>
    %193 = arith.addf %192, %190 : vector<16x2xf32>
    %cst_75 = arith.constant 1.000000e+00 : f32
    %194 = vector.broadcast %cst_75 : f32 to vector<16x2xf32>
    %195 = arith.divf %194, %193 : vector<16x2xf32>
    %cst_76 = arith.constant 0.000000e+00 : f32
    %196 = vector.broadcast %cst_76 : f32 to vector<16x16xf32>
    %197 = arith.mulf %184, %195 : vector<16x2xf32>
    %cst_77 = arith.constant dense<0.000000e+00> : vector<16x16xf32>
    %198 = tpu.matmul %197, %7, %cst_77 {dimension_numbers = #tpu.dot_dimension_numbers<[1], [0], [0], [1], [0, 0, 1, 1], [], []>} : vector<16x2xf32>, vector<2x16xf32>, vector<16x16xf32> -> vector<16x16xf32>
    %199 = arith.mulf %198, %46 : vector<16x16xf32>
    %200 = arith.addf %196, %199 : vector<16x16xf32>
    %201 = arith.mulf %186, %195 : vector<16x2xf32>
    %cst_78 = arith.constant dense<0.000000e+00> : vector<16x16xf32>
    %202 = tpu.matmul %201, %7, %cst_78 {dimension_numbers = #tpu.dot_dimension_numbers<[1], [0], [0], [1], [0, 0, 1, 1], [], []>} : vector<16x2xf32>, vector<2x16xf32>, vector<16x16xf32> -> vector<16x16xf32>
    %203 = arith.mulf %202, %85 : vector<16x16xf32>
    %204 = arith.addf %200, %203 : vector<16x16xf32>
    %205 = arith.mulf %188, %195 : vector<16x2xf32>
    %cst_79 = arith.constant dense<0.000000e+00> : vector<16x16xf32>
    %206 = tpu.matmul %205, %7, %cst_79 {dimension_numbers = #tpu.dot_dimension_numbers<[1], [0], [0], [1], [0, 0, 1, 1], [], []>} : vector<16x2xf32>, vector<2x16xf32>, vector<16x16xf32> -> vector<16x16xf32>
    %207 = arith.mulf %206, %124 : vector<16x16xf32>
    %208 = arith.addf %204, %207 : vector<16x16xf32>
    %209 = arith.mulf %190, %195 : vector<16x2xf32>
    %cst_80 = arith.constant dense<0.000000e+00> : vector<16x16xf32>
    %210 = tpu.matmul %209, %7, %cst_80 {dimension_numbers = #tpu.dot_dimension_numbers<[1], [0], [0], [1], [0, 0, 1, 1], [], []>} : vector<16x2xf32>, vector<2x16xf32>, vector<16x16xf32> -> vector<16x16xf32>
    %211 = arith.mulf %210, %163 : vector<16x16xf32>
    %212 = arith.addf %208, %211 : vector<16x16xf32>
    %213 = arith.truncf %212 : vector<16x16xf32> to vector<16x16xbf16>
    %c0_81 = arith.constant 0 : index
    %c0_82 = arith.constant 0 : index
    %214 = vector.load %arg12[%c0_81, %c0_82] : memref<16x16xbf16, #tpu.memory_space<vmem>>, vector<16x16xbf16>
    %cst_83 = arith.constant dense<0.000000e+00> : vector<16x16xf32>
    %215 = tpu.matmul %213, %214, %cst_83 {dimension_numbers = #tpu.dot_dimension_numbers<[1], [0], [0], [1], [0, 0, 1, 1], [], []>} : vector<16x16xbf16>, vector<16x16xbf16>, vector<16x16xf32> -> vector<16x16xf32>
    %c0_84 = arith.constant 0 : index
    %c0_85 = arith.constant 0 : index
    %216 = vector.load %arg13[%c0_84, %c0_85] : memref<1x16xf32, #tpu.memory_space<vmem>>, vector<1x16xf32>
    %217 = vector.broadcast %216 : vector<1x16xf32> to vector<16x16xf32>
    %218 = arith.addf %215, %217 : vector<16x16xf32>
    %c0_86 = arith.constant 0 : index
    %c0_87 = arith.constant 0 : index
    %219 = vector.load %arg14[%c0_86, %c0_87] : memref<1x16xf32, #tpu.memory_space<vmem>>, vector<1x16xf32>
    %c0_88 = arith.constant 0 : index
    %c0_89 = arith.constant 0 : index
    %220 = vector.load %arg15[%c0_88, %c0_89] : memref<1x16xf32, #tpu.memory_space<vmem>>, vector<1x16xf32>
    %cst_90 = arith.constant dense<0.000000e+00> : vector<16xf32>
    %221 = vector.multi_reduction <add>, %218, %cst_90 [1] : vector<16x16xf32> to vector<16xf32>
    %222 = vector.shape_cast %221 : vector<16xf32> to vector<16x1xf32>
    %cst_91 = arith.constant 1.600000e+01 : f32
    %223 = vector.broadcast %cst_91 : f32 to vector<16x1xf32>
    %224 = arith.divf %222, %223 : vector<16x1xf32>
    %225 = vector.broadcast %224 : vector<16x1xf32> to vector<16x16xf32>
    %226 = arith.subf %218, %225 : vector<16x16xf32>
    %227 = arith.mulf %226, %226 : vector<16x16xf32>
    %cst_92 = arith.constant dense<0.000000e+00> : vector<16xf32>
    %228 = vector.multi_reduction <add>, %227, %cst_92 [1] : vector<16x16xf32> to vector<16xf32>
    %229 = vector.shape_cast %228 : vector<16xf32> to vector<16x1xf32>
    %cst_93 = arith.constant 1.600000e+01 : f32
    %230 = vector.broadcast %cst_93 : f32 to vector<16x1xf32>
    %231 = arith.divf %229, %230 : vector<16x1xf32>
    %232 = vector.broadcast %224 : vector<16x1xf32> to vector<16x16xf32>
    %233 = arith.subf %218, %232 : vector<16x16xf32>
    %cst_94 = arith.constant 9.99999974E-6 : f32
    %234 = vector.broadcast %cst_94 : f32 to vector<16x1xf32>
    %235 = arith.addf %231, %234 : vector<16x1xf32>
    %236 = math.rsqrt %235 : vector<16x1xf32>
    %237 = vector.broadcast %236 : vector<16x1xf32> to vector<16x16xf32>
    %238 = arith.mulf %233, %237 : vector<16x16xf32>
    %239 = vector.broadcast %219 : vector<1x16xf32> to vector<16x16xf32>
    %240 = arith.mulf %238, %239 : vector<16x16xf32>
    %241 = vector.broadcast %220 : vector<1x16xf32> to vector<16x16xf32>
    %242 = arith.addf %240, %241 : vector<16x16xf32>
    %243 = arith.truncf %242 : vector<16x16xf32> to vector<16x16xbf16>
    %c0_95 = arith.constant 0 : index
    %c0_96 = arith.constant 0 : index
    %244 = vector.load %arg16[%c0_95, %c0_96] : memref<16x16xbf16, #tpu.memory_space<vmem>>, vector<16x16xbf16>
    %cst_97 = arith.constant dense<0.000000e+00> : vector<16x16xf32>
    %245 = tpu.matmul %243, %244, %cst_97 {dimension_numbers = #tpu.dot_dimension_numbers<[1], [0], [0], [1], [0, 0, 1, 1], [], []>} : vector<16x16xbf16>, vector<16x16xbf16>, vector<16x16xf32> -> vector<16x16xf32>
    %c0_98 = arith.constant 0 : index
    %c0_99 = arith.constant 0 : index
    %246 = vector.load %arg17[%c0_98, %c0_99] : memref<1x16xf32, #tpu.memory_space<vmem>>, vector<1x16xf32>
    %247 = vector.broadcast %246 : vector<1x16xf32> to vector<16x16xf32>
    %248 = arith.addf %245, %247 : vector<16x16xf32>
    %cst_100 = arith.constant 0.000000e+00 : f32
    %249 = vector.broadcast %cst_100 : f32 to vector<16x16xf32>
    %250 = arith.maximumf %248, %249 : vector<16x16xf32>
    %251 = arith.truncf %250 : vector<16x16xf32> to vector<16x16xbf16>
    %c0_101 = arith.constant 0 : index
    %c0_102 = arith.constant 0 : index
    %252 = vector.load %arg18[%c0_101, %c0_102] : memref<16x16xbf16, #tpu.memory_space<vmem>>, vector<16x16xbf16>
    %cst_103 = arith.constant dense<0.000000e+00> : vector<16x16xf32>
    %253 = tpu.matmul %251, %252, %cst_103 {dimension_numbers = #tpu.dot_dimension_numbers<[1], [0], [0], [1], [0, 0, 1, 1], [], []>} : vector<16x16xbf16>, vector<16x16xbf16>, vector<16x16xf32> -> vector<16x16xf32>
    %c0_104 = arith.constant 0 : index
    %c0_105 = arith.constant 0 : index
    %254 = vector.load %arg19[%c0_104, %c0_105] : memref<1x16xf32, #tpu.memory_space<vmem>>, vector<1x16xf32>
    %255 = vector.broadcast %254 : vector<1x16xf32> to vector<16x16xf32>
    %256 = arith.addf %253, %255 : vector<16x16xf32>
    %257 = arith.addf %218, %256 : vector<16x16xf32>
    %c0_106 = arith.constant 0 : index
    %c0_107 = arith.constant 0 : index
    %c0_108 = arith.constant 0 : index
    %258 = vector.load %arg22[%c0_106, %c0_107, %c0_108] : memref<4x16x16xf32, #tpu.memory_space<vmem>>, vector<1x16x16xf32>
    %259 = vector.shape_cast %258 : vector<1x16x16xf32> to vector<16x16xf32>
    %260 = vector.shape_cast %257 : vector<16x16xf32> to vector<1x16x16xf32>
    tpu.vector_store %arg22[%c0_106, %c0_107, %c0_108], %260 {strides = array<i32>} : memref<4x16x16xf32, #tpu.memory_space<vmem>>, vector<1x16x16xf32>,
    %cst_109 = arith.constant 0.000000e+00 : f32
    %261 = vector.broadcast %cst_109 : f32 to vector<16x16xf32>
    %262 = arith.maximumf %257, %261 : vector<16x16xf32>
    %c0_110 = arith.constant 0 : index
    %c0_111 = arith.constant 0 : index
    %263 = vector.load %arg20[%c0_110, %c0_111] : memref<1x16xf32, #tpu.memory_space<vmem>>, vector<1x16xf32>
    %c0_112 = arith.constant 0 : index
    %c0_113 = arith.constant 0 : index
    %264 = vector.load %arg21[%c0_112, %c0_113] : memref<1x16xf32, #tpu.memory_space<vmem>>, vector<1x16xf32>
    %cst_114 = arith.constant dense<0.000000e+00> : vector<16xf32>
    %265 = vector.multi_reduction <add>, %262, %cst_114 [1] : vector<16x16xf32> to vector<16xf32>
    %266 = vector.shape_cast %265 : vector<16xf32> to vector<16x1xf32>
    %cst_115 = arith.constant 1.600000e+01 : f32
    %267 = vector.broadcast %cst_115 : f32 to vector<16x1xf32>
    %268 = arith.divf %266, %267 : vector<16x1xf32>
    %269 = vector.broadcast %268 : vector<16x1xf32> to vector<16x16xf32>
    %270 = arith.subf %262, %269 : vector<16x16xf32>
    %271 = arith.mulf %270, %270 : vector<16x16xf32>
    %cst_116 = arith.constant dense<0.000000e+00> : vector<16xf32>
    %272 = vector.multi_reduction <add>, %271, %cst_116 [1] : vector<16x16xf32> to vector<16xf32>
    %273 = vector.shape_cast %272 : vector<16xf32> to vector<16x1xf32>
    %cst_117 = arith.constant 1.600000e+01 : f32
    %274 = vector.broadcast %cst_117 : f32 to vector<16x1xf32>
    %275 = arith.divf %273, %274 : vector<16x1xf32>
    %276 = vector.broadcast %268 : vector<16x1xf32> to vector<16x16xf32>
    %277 = arith.subf %262, %276 : vector<16x16xf32>
    %cst_118 = arith.constant 9.99999974E-6 : f32
    %278 = vector.broadcast %cst_118 : f32 to vector<16x1xf32>
    %279 = arith.addf %275, %278 : vector<16x1xf32>
    %280 = math.rsqrt %279 : vector<16x1xf32>
    %281 = vector.broadcast %280 : vector<16x1xf32> to vector<16x16xf32>
    %282 = arith.mulf %277, %281 : vector<16x16xf32>
    %283 = vector.broadcast %263 : vector<1x16xf32> to vector<16x16xf32>
    %284 = arith.mulf %282, %283 : vector<16x16xf32>
    %285 = vector.broadcast %264 : vector<1x16xf32> to vector<16x16xf32>
    %286 = arith.addf %284, %285 : vector<16x16xf32>
    %287 = arith.truncf %286 : vector<16x16xf32> to vector<16x16xbf16>
    %c0_119 = arith.constant 0 : index
    %c0_120 = arith.constant 0 : index
    %c0_121 = arith.constant 0 : index
    %288 = vector.load %arg23[%c0_119, %c0_120, %c0_121] : memref<4x16x16xbf16, #tpu.memory_space<vmem>>, vector<1x16x16xbf16>
    %289 = vector.shape_cast %288 : vector<1x16x16xbf16> to vector<16x16xbf16>
    %290 = vector.shape_cast %287 : vector<16x16xbf16> to vector<1x16x16xbf16>
    tpu.vector_store %arg23[%c0_119, %c0_120, %c0_121], %290 {strides = array<i32>} : memref<4x16x16xbf16, #tpu.memory_space<vmem>>, vector<1x16x16xbf16>,
    %291 = arith.mulf %83, %45 : vector<16x16xf32>
    %cst_122 = arith.constant dense<0.000000e+00> : vector<16x2xf32>
    %292 = tpu.matmul %291, %6, %cst_122 {dimension_numbers = #tpu.dot_dimension_numbers<[1], [0], [0], [1], [0, 0, 1, 1], [], []>} : vector<16x16xf32>, vector<16x2xf32>, vector<16x2xf32> -> vector<16x2xf32>
    %cst_123 = arith.constant 0.353553385 : f32
    %293 = vector.broadcast %cst_123 : f32 to vector<16x2xf32>
    %294 = arith.mulf %293, %292 : vector<16x2xf32>
    %295 = arith.mulf %83, %84 : vector<16x16xf32>
    %cst_124 = arith.constant dense<0.000000e+00> : vector<16x2xf32>
    %296 = tpu.matmul %295, %6, %cst_124 {dimension_numbers = #tpu.dot_dimension_numbers<[1], [0], [0], [1], [0, 0, 1, 1], [], []>} : vector<16x16xf32>, vector<16x2xf32>, vector<16x2xf32> -> vector<16x2xf32>
    %cst_125 = arith.constant 0.353553385 : f32
    %297 = vector.broadcast %cst_125 : f32 to vector<16x2xf32>
    %298 = arith.mulf %297, %296 : vector<16x2xf32>
    %299 = arith.mulf %83, %123 : vector<16x16xf32>
    %cst_126 = arith.constant dense<0.000000e+00> : vector<16x2xf32>
    %300 = tpu.matmul %299, %6, %cst_126 {dimension_numbers = #tpu.dot_dimension_numbers<[1], [0], [0], [1], [0, 0, 1, 1], [], []>} : vector<16x16xf32>, vector<16x2xf32>, vector<16x2xf32> -> vector<16x2xf32>
    %cst_127 = arith.constant 0.353553385 : f32
    %301 = vector.broadcast %cst_127 : f32 to vector<16x2xf32>
    %302 = arith.mulf %301, %300 : vector<16x2xf32>
    %303 = arith.mulf %83, %162 : vector<16x16xf32>
    %cst_128 = arith.constant dense<0.000000e+00> : vector<16x2xf32>
    %304 = tpu.matmul %303, %6, %cst_128 {dimension_numbers = #tpu.dot_dimension_numbers<[1], [0], [0], [1], [0, 0, 1, 1], [], []>} : vector<16x16xf32>, vector<16x2xf32>, vector<16x2xf32> -> vector<16x2xf32>
    %cst_129 = arith.constant 0.353553385 : f32
    %305 = vector.broadcast %cst_129 : f32 to vector<16x2xf32>
    %306 = arith.mulf %305, %304 : vector<16x2xf32>
    %307 = arith.maximumf %294, %298 : vector<16x2xf32>
    %308 = arith.maximumf %307, %302 : vector<16x2xf32>
    %309 = arith.maximumf %308, %306 : vector<16x2xf32>
    %310 = arith.subf %294, %309 : vector<16x2xf32>
    %311 = math.exp %310 : vector<16x2xf32>
    %312 = arith.subf %298, %309 : vector<16x2xf32>
    %313 = math.exp %312 : vector<16x2xf32>
    %314 = arith.subf %302, %309 : vector<16x2xf32>
    %315 = math.exp %314 : vector<16x2xf32>
    %316 = arith.subf %306, %309 : vector<16x2xf32>
    %317 = math.exp %316 : vector<16x2xf32>
    %318 = arith.addf %311, %313 : vector<16x2xf32>
    %319 = arith.addf %318, %315 : vector<16x2xf32>
    %320 = arith.addf %319, %317 : vector<16x2xf32>
    %cst_130 = arith.constant 1.000000e+00 : f32
    %321 = vector.broadcast %cst_130 : f32 to vector<16x2xf32>
    %322 = arith.divf %321, %320 : vector<16x2xf32>
    %cst_131 = arith.constant 0.000000e+00 : f32
    %323 = vector.broadcast %cst_131 : f32 to vector<16x16xf32>
    %324 = arith.mulf %311, %322 : vector<16x2xf32>
    %cst_132 = arith.constant dense<0.000000e+00> : vector<16x16xf32>
    %325 = tpu.matmul %324, %7, %cst_132 {dimension_numbers = #tpu.dot_dimension_numbers<[1], [0], [0], [1], [0, 0, 1, 1], [], []>} : vector<16x2xf32>, vector<2x16xf32>, vector<16x16xf32> -> vector<16x16xf32>
    %326 = arith.mulf %325, %46 : vector<16x16xf32>
    %327 = arith.addf %323, %326 : vector<16x16xf32>
    %328 = arith.mulf %313, %322 : vector<16x2xf32>
    %cst_133 = arith.constant dense<0.000000e+00> : vector<16x16xf32>
    %329 = tpu.matmul %328, %7, %cst_133 {dimension_numbers = #tpu.dot_dimension_numbers<[1], [0], [0], [1], [0, 0, 1, 1], [], []>} : vector<16x2xf32>, vector<2x16xf32>, vector<16x16xf32> -> vector<16x16xf32>
    %330 = arith.mulf %329, %85 : vector<16x16xf32>
    %331 = arith.addf %327, %330 : vector<16x16xf32>
    %332 = arith.mulf %315, %322 : vector<16x2xf32>
    %cst_134 = arith.constant dense<0.000000e+00> : vector<16x16xf32>
    %333 = tpu.matmul %332, %7, %cst_134 {dimension_numbers = #tpu.dot_dimension_numbers<[1], [0], [0], [1], [0, 0, 1, 1], [], []>} : vector<16x2xf32>, vector<2x16xf32>, vector<16x16xf32> -> vector<16x16xf32>
    %334 = arith.mulf %333, %124 : vector<16x16xf32>
    %335 = arith.addf %331, %334 : vector<16x16xf32>
    %336 = arith.mulf %317, %322 : vector<16x2xf32>
    %cst_135 = arith.constant dense<0.000000e+00> : vector<16x16xf32>
    %337 = tpu.matmul %336, %7, %cst_135 {dimension_numbers = #tpu.dot_dimension_numbers<[1], [0], [0], [1], [0, 0, 1, 1], [], []>} : vector<16x2xf32>, vector<2x16xf32>, vector<16x16xf32> -> vector<16x16xf32>
    %338 = arith.mulf %337, %163 : vector<16x16xf32>
    %339 = arith.addf %335, %338 : vector<16x16xf32>
    %340 = arith.truncf %339 : vector<16x16xf32> to vector<16x16xbf16>
    %c0_136 = arith.constant 0 : index
    %c0_137 = arith.constant 0 : index
    %341 = vector.load %arg12[%c0_136, %c0_137] : memref<16x16xbf16, #tpu.memory_space<vmem>>, vector<16x16xbf16>
    %cst_138 = arith.constant dense<0.000000e+00> : vector<16x16xf32>
    %342 = tpu.matmul %340, %341, %cst_138 {dimension_numbers = #tpu.dot_dimension_numbers<[1], [0], [0], [1], [0, 0, 1, 1], [], []>} : vector<16x16xbf16>, vector<16x16xbf16>, vector<16x16xf32> -> vector<16x16xf32>
    %c0_139 = arith.constant 0 : index
    %c0_140 = arith.constant 0 : index
    %343 = vector.load %arg13[%c0_139, %c0_140] : memref<1x16xf32, #tpu.memory_space<vmem>>, vector<1x16xf32>
    %344 = vector.broadcast %343 : vector<1x16xf32> to vector<16x16xf32>
    %345 = arith.addf %342, %344 : vector<16x16xf32>
    %c0_141 = arith.constant 0 : index
    %c0_142 = arith.constant 0 : index
    %346 = vector.load %arg14[%c0_141, %c0_142] : memref<1x16xf32, #tpu.memory_space<vmem>>, vector<1x16xf32>
    %c0_143 = arith.constant 0 : index
    %c0_144 = arith.constant 0 : index
    %347 = vector.load %arg15[%c0_143, %c0_144] : memref<1x16xf32, #tpu.memory_space<vmem>>, vector<1x16xf32>
    %cst_145 = arith.constant dense<0.000000e+00> : vector<16xf32>
    %348 = vector.multi_reduction <add>, %345, %cst_145 [1] : vector<16x16xf32> to vector<16xf32>
    %349 = vector.shape_cast %348 : vector<16xf32> to vector<16x1xf32>
    %cst_146 = arith.constant 1.600000e+01 : f32
    %350 = vector.broadcast %cst_146 : f32 to vector<16x1xf32>
    %351 = arith.divf %349, %350 : vector<16x1xf32>
    %352 = vector.broadcast %351 : vector<16x1xf32> to vector<16x16xf32>
    %353 = arith.subf %345, %352 : vector<16x16xf32>
    %354 = arith.mulf %353, %353 : vector<16x16xf32>
    %cst_147 = arith.constant dense<0.000000e+00> : vector<16xf32>
    %355 = vector.multi_reduction <add>, %354, %cst_147 [1] : vector<16x16xf32> to vector<16xf32>
    %356 = vector.shape_cast %355 : vector<16xf32> to vector<16x1xf32>
    %cst_148 = arith.constant 1.600000e+01 : f32
    %357 = vector.broadcast %cst_148 : f32 to vector<16x1xf32>
    %358 = arith.divf %356, %357 : vector<16x1xf32>
    %359 = vector.broadcast %351 : vector<16x1xf32> to vector<16x16xf32>
    %360 = arith.subf %345, %359 : vector<16x16xf32>
    %cst_149 = arith.constant 9.99999974E-6 : f32
    %361 = vector.broadcast %cst_149 : f32 to vector<16x1xf32>
    %362 = arith.addf %358, %361 : vector<16x1xf32>
    %363 = math.rsqrt %362 : vector<16x1xf32>
    %364 = vector.broadcast %363 : vector<16x1xf32> to vector<16x16xf32>
    %365 = arith.mulf %360, %364 : vector<16x16xf32>
    %366 = vector.broadcast %346 : vector<1x16xf32> to vector<16x16xf32>
    %367 = arith.mulf %365, %366 : vector<16x16xf32>
    %368 = vector.broadcast %347 : vector<1x16xf32> to vector<16x16xf32>
    %369 = arith.addf %367, %368 : vector<16x16xf32>
    %370 = arith.truncf %369 : vector<16x16xf32> to vector<16x16xbf16>
    %c0_150 = arith.constant 0 : index
    %c0_151 = arith.constant 0 : index
    %371 = vector.load %arg16[%c0_150, %c0_151] : memref<16x16xbf16, #tpu.memory_space<vmem>>, vector<16x16xbf16>
    %cst_152 = arith.constant dense<0.000000e+00> : vector<16x16xf32>
    %372 = tpu.matmul %370, %371, %cst_152 {dimension_numbers = #tpu.dot_dimension_numbers<[1], [0], [0], [1], [0, 0, 1, 1], [], []>} : vector<16x16xbf16>, vector<16x16xbf16>, vector<16x16xf32> -> vector<16x16xf32>
    %c0_153 = arith.constant 0 : index
    %c0_154 = arith.constant 0 : index
    %373 = vector.load %arg17[%c0_153, %c0_154] : memref<1x16xf32, #tpu.memory_space<vmem>>, vector<1x16xf32>
    %374 = vector.broadcast %373 : vector<1x16xf32> to vector<16x16xf32>
    %375 = arith.addf %372, %374 : vector<16x16xf32>
    %cst_155 = arith.constant 0.000000e+00 : f32
    %376 = vector.broadcast %cst_155 : f32 to vector<16x16xf32>
    %377 = arith.maximumf %375, %376 : vector<16x16xf32>
    %378 = arith.truncf %377 : vector<16x16xf32> to vector<16x16xbf16>
    %c0_156 = arith.constant 0 : index
    %c0_157 = arith.constant 0 : index
    %379 = vector.load %arg18[%c0_156, %c0_157] : memref<16x16xbf16, #tpu.memory_space<vmem>>, vector<16x16xbf16>
    %cst_158 = arith.constant dense<0.000000e+00> : vector<16x16xf32>
    %380 = tpu.matmul %378, %379, %cst_158 {dimension_numbers = #tpu.dot_dimension_numbers<[1], [0], [0], [1], [0, 0, 1, 1], [], []>} : vector<16x16xbf16>, vector<16x16xbf16>, vector<16x16xf32> -> vector<16x16xf32>
    %c0_159 = arith.constant 0 : index
    %c0_160 = arith.constant 0 : index
    %381 = vector.load %arg19[%c0_159, %c0_160] : memref<1x16xf32, #tpu.memory_space<vmem>>, vector<1x16xf32>
    %382 = vector.broadcast %381 : vector<1x16xf32> to vector<16x16xf32>
    %383 = arith.addf %380, %382 : vector<16x16xf32>
    %384 = arith.addf %345, %383 : vector<16x16xf32>
    %c1_161 = arith.constant 1 : index
    %c0_162 = arith.constant 0 : index
    %c0_163 = arith.constant 0 : index
    %385 = vector.load %arg22[%c1_161, %c0_162, %c0_163] : memref<4x16x16xf32, #tpu.memory_space<vmem>>, vector<1x16x16xf32>
    %386 = vector.shape_cast %385 : vector<1x16x16xf32> to vector<16x16xf32>
    %387 = vector.shape_cast %384 : vector<16x16xf32> to vector<1x16x16xf32>
    tpu.vector_store %arg22[%c1_161, %c0_162, %c0_163], %387 {strides = array<i32>} : memref<4x16x16xf32, #tpu.memory_space<vmem>>, vector<1x16x16xf32>,
    %cst_164 = arith.constant 0.000000e+00 : f32
    %388 = vector.broadcast %cst_164 : f32 to vector<16x16xf32>
    %389 = arith.maximumf %384, %388 : vector<16x16xf32>
    %c0_165 = arith.constant 0 : index
    %c0_166 = arith.constant 0 : index
    %390 = vector.load %arg20[%c0_165, %c0_166] : memref<1x16xf32, #tpu.memory_space<vmem>>, vector<1x16xf32>
    %c0_167 = arith.constant 0 : index
    %c0_168 = arith.constant 0 : index
    %391 = vector.load %arg21[%c0_167, %c0_168] : memref<1x16xf32, #tpu.memory_space<vmem>>, vector<1x16xf32>
    %cst_169 = arith.constant dense<0.000000e+00> : vector<16xf32>
    %392 = vector.multi_reduction <add>, %389, %cst_169 [1] : vector<16x16xf32> to vector<16xf32>
    %393 = vector.shape_cast %392 : vector<16xf32> to vector<16x1xf32>
    %cst_170 = arith.constant 1.600000e+01 : f32
    %394 = vector.broadcast %cst_170 : f32 to vector<16x1xf32>
    %395 = arith.divf %393, %394 : vector<16x1xf32>
    %396 = vector.broadcast %395 : vector<16x1xf32> to vector<16x16xf32>
    %397 = arith.subf %389, %396 : vector<16x16xf32>
    %398 = arith.mulf %397, %397 : vector<16x16xf32>
    %cst_171 = arith.constant dense<0.000000e+00> : vector<16xf32>
    %399 = vector.multi_reduction <add>, %398, %cst_171 [1] : vector<16x16xf32> to vector<16xf32>
    %400 = vector.shape_cast %399 : vector<16xf32> to vector<16x1xf32>
    %cst_172 = arith.constant 1.600000e+01 : f32
    %401 = vector.broadcast %cst_172 : f32 to vector<16x1xf32>
    %402 = arith.divf %400, %401 : vector<16x1xf32>
    %403 = vector.broadcast %395 : vector<16x1xf32> to vector<16x16xf32>
    %404 = arith.subf %389, %403 : vector<16x16xf32>
    %cst_173 = arith.constant 9.99999974E-6 : f32
    %405 = vector.broadcast %cst_173 : f32 to vector<16x1xf32>
    %406 = arith.addf %402, %405 : vector<16x1xf32>
    %407 = math.rsqrt %406 : vector<16x1xf32>
    %408 = vector.broadcast %407 : vector<16x1xf32> to vector<16x16xf32>
    %409 = arith.mulf %404, %408 : vector<16x16xf32>
    %410 = vector.broadcast %390 : vector<1x16xf32> to vector<16x16xf32>
    %411 = arith.mulf %409, %410 : vector<16x16xf32>
    %412 = vector.broadcast %391 : vector<1x16xf32> to vector<16x16xf32>
    %413 = arith.addf %411, %412 : vector<16x16xf32>
    %414 = arith.truncf %413 : vector<16x16xf32> to vector<16x16xbf16>
    %c1_174 = arith.constant 1 : index
    %c0_175 = arith.constant 0 : index
    %c0_176 = arith.constant 0 : index
    %415 = vector.load %arg23[%c1_174, %c0_175, %c0_176] : memref<4x16x16xbf16, #tpu.memory_space<vmem>>, vector<1x16x16xbf16>
    %416 = vector.shape_cast %415 : vector<1x16x16xbf16> to vector<16x16xbf16>
    %417 = vector.shape_cast %414 : vector<16x16xbf16> to vector<1x16x16xbf16>
    tpu.vector_store %arg23[%c1_174, %c0_175, %c0_176], %417 {strides = array<i32>} : memref<4x16x16xbf16, #tpu.memory_space<vmem>>, vector<1x16x16xbf16>,
    %418 = arith.mulf %122, %45 : vector<16x16xf32>
    %cst_177 = arith.constant dense<0.000000e+00> : vector<16x2xf32>
    %419 = tpu.matmul %418, %6, %cst_177 {dimension_numbers = #tpu.dot_dimension_numbers<[1], [0], [0], [1], [0, 0, 1, 1], [], []>} : vector<16x16xf32>, vector<16x2xf32>, vector<16x2xf32> -> vector<16x2xf32>
    %cst_178 = arith.constant 0.353553385 : f32
    %420 = vector.broadcast %cst_178 : f32 to vector<16x2xf32>
    %421 = arith.mulf %420, %419 : vector<16x2xf32>
    %422 = arith.mulf %122, %84 : vector<16x16xf32>
    %cst_179 = arith.constant dense<0.000000e+00> : vector<16x2xf32>
    %423 = tpu.matmul %422, %6, %cst_179 {dimension_numbers = #tpu.dot_dimension_numbers<[1], [0], [0], [1], [0, 0, 1, 1], [], []>} : vector<16x16xf32>, vector<16x2xf32>, vector<16x2xf32> -> vector<16x2xf32>
    %cst_180 = arith.constant 0.353553385 : f32
    %424 = vector.broadcast %cst_180 : f32 to vector<16x2xf32>
    %425 = arith.mulf %424, %423 : vector<16x2xf32>
    %426 = arith.mulf %122, %123 : vector<16x16xf32>
    %cst_181 = arith.constant dense<0.000000e+00> : vector<16x2xf32>
    %427 = tpu.matmul %426, %6, %cst_181 {dimension_numbers = #tpu.dot_dimension_numbers<[1], [0], [0], [1], [0, 0, 1, 1], [], []>} : vector<16x16xf32>, vector<16x2xf32>, vector<16x2xf32> -> vector<16x2xf32>
    %cst_182 = arith.constant 0.353553385 : f32
    %428 = vector.broadcast %cst_182 : f32 to vector<16x2xf32>
    %429 = arith.mulf %428, %427 : vector<16x2xf32>
    %430 = arith.mulf %122, %162 : vector<16x16xf32>
    %cst_183 = arith.constant dense<0.000000e+00> : vector<16x2xf32>
    %431 = tpu.matmul %430, %6, %cst_183 {dimension_numbers = #tpu.dot_dimension_numbers<[1], [0], [0], [1], [0, 0, 1, 1], [], []>} : vector<16x16xf32>, vector<16x2xf32>, vector<16x2xf32> -> vector<16x2xf32>
    %cst_184 = arith.constant 0.353553385 : f32
    %432 = vector.broadcast %cst_184 : f32 to vector<16x2xf32>
    %433 = arith.mulf %432, %431 : vector<16x2xf32>
    %434 = arith.maximumf %421, %425 : vector<16x2xf32>
    %435 = arith.maximumf %434, %429 : vector<16x2xf32>
    %436 = arith.maximumf %435, %433 : vector<16x2xf32>
    %437 = arith.subf %421, %436 : vector<16x2xf32>
    %438 = math.exp %437 : vector<16x2xf32>
    %439 = arith.subf %425, %436 : vector<16x2xf32>
    %440 = math.exp %439 : vector<16x2xf32>
    %441 = arith.subf %429, %436 : vector<16x2xf32>
    %442 = math.exp %441 : vector<16x2xf32>
    %443 = arith.subf %433, %436 : vector<16x2xf32>
    %444 = math.exp %443 : vector<16x2xf32>
    %445 = arith.addf %438, %440 : vector<16x2xf32>
    %446 = arith.addf %445, %442 : vector<16x2xf32>
    %447 = arith.addf %446, %444 : vector<16x2xf32>
    %cst_185 = arith.constant 1.000000e+00 : f32
    %448 = vector.broadcast %cst_185 : f32 to vector<16x2xf32>
    %449 = arith.divf %448, %447 : vector<16x2xf32>
    %cst_186 = arith.constant 0.000000e+00 : f32
    %450 = vector.broadcast %cst_186 : f32 to vector<16x16xf32>
    %451 = arith.mulf %438, %449 : vector<16x2xf32>
    %cst_187 = arith.constant dense<0.000000e+00> : vector<16x16xf32>
    %452 = tpu.matmul %451, %7, %cst_187 {dimension_numbers = #tpu.dot_dimension_numbers<[1], [0], [0], [1], [0, 0, 1, 1], [], []>} : vector<16x2xf32>, vector<2x16xf32>, vector<16x16xf32> -> vector<16x16xf32>
    %453 = arith.mulf %452, %46 : vector<16x16xf32>
    %454 = arith.addf %450, %453 : vector<16x16xf32>
    %455 = arith.mulf %440, %449 : vector<16x2xf32>
    %cst_188 = arith.constant dense<0.000000e+00> : vector<16x16xf32>
    %456 = tpu.matmul %455, %7, %cst_188 {dimension_numbers = #tpu.dot_dimension_numbers<[1], [0], [0], [1], [0, 0, 1, 1], [], []>} : vector<16x2xf32>, vector<2x16xf32>, vector<16x16xf32> -> vector<16x16xf32>
    %457 = arith.mulf %456, %85 : vector<16x16xf32>
    %458 = arith.addf %454, %457 : vector<16x16xf32>
    %459 = arith.mulf %442, %449 : vector<16x2xf32>
    %cst_189 = arith.constant dense<0.000000e+00> : vector<16x16xf32>
    %460 = tpu.matmul %459, %7, %cst_189 {dimension_numbers = #tpu.dot_dimension_numbers<[1], [0], [0], [1], [0, 0, 1, 1], [], []>} : vector<16x2xf32>, vector<2x16xf32>, vector<16x16xf32> -> vector<16x16xf32>
    %461 = arith.mulf %460, %124 : vector<16x16xf32>
    %462 = arith.addf %458, %461 : vector<16x16xf32>
    %463 = arith.mulf %444, %449 : vector<16x2xf32>
    %cst_190 = arith.constant dense<0.000000e+00> : vector<16x16xf32>
    %464 = tpu.matmul %463, %7, %cst_190 {dimension_numbers = #tpu.dot_dimension_numbers<[1], [0], [0], [1], [0, 0, 1, 1], [], []>} : vector<16x2xf32>, vector<2x16xf32>, vector<16x16xf32> -> vector<16x16xf32>
    %465 = arith.mulf %464, %163 : vector<16x16xf32>
    %466 = arith.addf %462, %465 : vector<16x16xf32>
    %467 = arith.truncf %466 : vector<16x16xf32> to vector<16x16xbf16>
    %c0_191 = arith.constant 0 : index
    %c0_192 = arith.constant 0 : index
    %468 = vector.load %arg12[%c0_191, %c0_192] : memref<16x16xbf16, #tpu.memory_space<vmem>>, vector<16x16xbf16>
    %cst_193 = arith.constant dense<0.000000e+00> : vector<16x16xf32>
    %469 = tpu.matmul %467, %468, %cst_193 {dimension_numbers = #tpu.dot_dimension_numbers<[1], [0], [0], [1], [0, 0, 1, 1], [], []>} : vector<16x16xbf16>, vector<16x16xbf16>, vector<16x16xf32> -> vector<16x16xf32>
    %c0_194 = arith.constant 0 : index
    %c0_195 = arith.constant 0 : index
    %470 = vector.load %arg13[%c0_194, %c0_195] : memref<1x16xf32, #tpu.memory_space<vmem>>, vector<1x16xf32>
    %471 = vector.broadcast %470 : vector<1x16xf32> to vector<16x16xf32>
    %472 = arith.addf %469, %471 : vector<16x16xf32>
    %c0_196 = arith.constant 0 : index
    %c0_197 = arith.constant 0 : index
    %473 = vector.load %arg14[%c0_196, %c0_197] : memref<1x16xf32, #tpu.memory_space<vmem>>, vector<1x16xf32>
    %c0_198 = arith.constant 0 : index
    %c0_199 = arith.constant 0 : index
    %474 = vector.load %arg15[%c0_198, %c0_199] : memref<1x16xf32, #tpu.memory_space<vmem>>, vector<1x16xf32>
    %cst_200 = arith.constant dense<0.000000e+00> : vector<16xf32>
    %475 = vector.multi_reduction <add>, %472, %cst_200 [1] : vector<16x16xf32> to vector<16xf32>
    %476 = vector.shape_cast %475 : vector<16xf32> to vector<16x1xf32>
    %cst_201 = arith.constant 1.600000e+01 : f32
    %477 = vector.broadcast %cst_201 : f32 to vector<16x1xf32>
    %478 = arith.divf %476, %477 : vector<16x1xf32>
    %479 = vector.broadcast %478 : vector<16x1xf32> to vector<16x16xf32>
    %480 = arith.subf %472, %479 : vector<16x16xf32>
    %481 = arith.mulf %480, %480 : vector<16x16xf32>
    %cst_202 = arith.constant dense<0.000000e+00> : vector<16xf32>
    %482 = vector.multi_reduction <add>, %481, %cst_202 [1] : vector<16x16xf32> to vector<16xf32>
    %483 = vector.shape_cast %482 : vector<16xf32> to vector<16x1xf32>
    %cst_203 = arith.constant 1.600000e+01 : f32
    %484 = vector.broadcast %cst_203 : f32 to vector<16x1xf32>
    %485 = arith.divf %483, %484 : vector<16x1xf32>
    %486 = vector.broadcast %478 : vector<16x1xf32> to vector<16x16xf32>
    %487 = arith.subf %472, %486 : vector<16x16xf32>
    %cst_204 = arith.constant 9.99999974E-6 : f32
    %488 = vector.broadcast %cst_204 : f32 to vector<16x1xf32>
    %489 = arith.addf %485, %488 : vector<16x1xf32>
    %490 = math.rsqrt %489 : vector<16x1xf32>
    %491 = vector.broadcast %490 : vector<16x1xf32> to vector<16x16xf32>
    %492 = arith.mulf %487, %491 : vector<16x16xf32>
    %493 = vector.broadcast %473 : vector<1x16xf32> to vector<16x16xf32>
    %494 = arith.mulf %492, %493 : vector<16x16xf32>
    %495 = vector.broadcast %474 : vector<1x16xf32> to vector<16x16xf32>
    %496 = arith.addf %494, %495 : vector<16x16xf32>
    %497 = arith.truncf %496 : vector<16x16xf32> to vector<16x16xbf16>
    %c0_205 = arith.constant 0 : index
    %c0_206 = arith.constant 0 : index
    %498 = vector.load %arg16[%c0_205, %c0_206] : memref<16x16xbf16, #tpu.memory_space<vmem>>, vector<16x16xbf16>
    %cst_207 = arith.constant dense<0.000000e+00> : vector<16x16xf32>
    %499 = tpu.matmul %497, %498, %cst_207 {dimension_numbers = #tpu.dot_dimension_numbers<[1], [0], [0], [1], [0, 0, 1, 1], [], []>} : vector<16x16xbf16>, vector<16x16xbf16>, vector<16x16xf32> -> vector<16x16xf32>
    %c0_208 = arith.constant 0 : index
    %c0_209 = arith.constant 0 : index
    %500 = vector.load %arg17[%c0_208, %c0_209] : memref<1x16xf32, #tpu.memory_space<vmem>>, vector<1x16xf32>
    %501 = vector.broadcast %500 : vector<1x16xf32> to vector<16x16xf32>
    %502 = arith.addf %499, %501 : vector<16x16xf32>
    %cst_210 = arith.constant 0.000000e+00 : f32
    %503 = vector.broadcast %cst_210 : f32 to vector<16x16xf32>
    %504 = arith.maximumf %502, %503 : vector<16x16xf32>
    %505 = arith.truncf %504 : vector<16x16xf32> to vector<16x16xbf16>
    %c0_211 = arith.constant 0 : index
    %c0_212 = arith.constant 0 : index
    %506 = vector.load %arg18[%c0_211, %c0_212] : memref<16x16xbf16, #tpu.memory_space<vmem>>, vector<16x16xbf16>
    %cst_213 = arith.constant dense<0.000000e+00> : vector<16x16xf32>
    %507 = tpu.matmul %505, %506, %cst_213 {dimension_numbers = #tpu.dot_dimension_numbers<[1], [0], [0], [1], [0, 0, 1, 1], [], []>} : vector<16x16xbf16>, vector<16x16xbf16>, vector<16x16xf32> -> vector<16x16xf32>
    %c0_214 = arith.constant 0 : index
    %c0_215 = arith.constant 0 : index
    %508 = vector.load %arg19[%c0_214, %c0_215] : memref<1x16xf32, #tpu.memory_space<vmem>>, vector<1x16xf32>
    %509 = vector.broadcast %508 : vector<1x16xf32> to vector<16x16xf32>
    %510 = arith.addf %507, %509 : vector<16x16xf32>
    %511 = arith.addf %472, %510 : vector<16x16xf32>
    %c2_216 = arith.constant 2 : index
    %c0_217 = arith.constant 0 : index
    %c0_218 = arith.constant 0 : index
    %512 = vector.load %arg22[%c2_216, %c0_217, %c0_218] : memref<4x16x16xf32, #tpu.memory_space<vmem>>, vector<1x16x16xf32>
    %513 = vector.shape_cast %512 : vector<1x16x16xf32> to vector<16x16xf32>
    %514 = vector.shape_cast %511 : vector<16x16xf32> to vector<1x16x16xf32>
    tpu.vector_store %arg22[%c2_216, %c0_217, %c0_218], %514 {strides = array<i32>} : memref<4x16x16xf32, #tpu.memory_space<vmem>>, vector<1x16x16xf32>,
    %cst_219 = arith.constant 0.000000e+00 : f32
    %515 = vector.broadcast %cst_219 : f32 to vector<16x16xf32>
    %516 = arith.maximumf %511, %515 : vector<16x16xf32>
    %c0_220 = arith.constant 0 : index
    %c0_221 = arith.constant 0 : index
    %517 = vector.load %arg20[%c0_220, %c0_221] : memref<1x16xf32, #tpu.memory_space<vmem>>, vector<1x16xf32>
    %c0_222 = arith.constant 0 : index
    %c0_223 = arith.constant 0 : index
    %518 = vector.load %arg21[%c0_222, %c0_223] : memref<1x16xf32, #tpu.memory_space<vmem>>, vector<1x16xf32>
    %cst_224 = arith.constant dense<0.000000e+00> : vector<16xf32>
    %519 = vector.multi_reduction <add>, %516, %cst_224 [1] : vector<16x16xf32> to vector<16xf32>
    %520 = vector.shape_cast %519 : vector<16xf32> to vector<16x1xf32>
    %cst_225 = arith.constant 1.600000e+01 : f32
    %521 = vector.broadcast %cst_225 : f32 to vector<16x1xf32>
    %522 = arith.divf %520, %521 : vector<16x1xf32>
    %523 = vector.broadcast %522 : vector<16x1xf32> to vector<16x16xf32>
    %524 = arith.subf %516, %523 : vector<16x16xf32>
    %525 = arith.mulf %524, %524 : vector<16x16xf32>
    %cst_226 = arith.constant dense<0.000000e+00> : vector<16xf32>
    %526 = vector.multi_reduction <add>, %525, %cst_226 [1] : vector<16x16xf32> to vector<16xf32>
    %527 = vector.shape_cast %526 : vector<16xf32> to vector<16x1xf32>
    %cst_227 = arith.constant 1.600000e+01 : f32
    %528 = vector.broadcast %cst_227 : f32 to vector<16x1xf32>
    %529 = arith.divf %527, %528 : vector<16x1xf32>
    %530 = vector.broadcast %522 : vector<16x1xf32> to vector<16x16xf32>
    %531 = arith.subf %516, %530 : vector<16x16xf32>
    %cst_228 = arith.constant 9.99999974E-6 : f32
    %532 = vector.broadcast %cst_228 : f32 to vector<16x1xf32>
    %533 = arith.addf %529, %532 : vector<16x1xf32>
    %534 = math.rsqrt %533 : vector<16x1xf32>
    %535 = vector.broadcast %534 : vector<16x1xf32> to vector<16x16xf32>
    %536 = arith.mulf %531, %535 : vector<16x16xf32>
    %537 = vector.broadcast %517 : vector<1x16xf32> to vector<16x16xf32>
    %538 = arith.mulf %536, %537 : vector<16x16xf32>
    %539 = vector.broadcast %518 : vector<1x16xf32> to vector<16x16xf32>
    %540 = arith.addf %538, %539 : vector<16x16xf32>
    %541 = arith.truncf %540 : vector<16x16xf32> to vector<16x16xbf16>
    %c2_229 = arith.constant 2 : index
    %c0_230 = arith.constant 0 : index
    %c0_231 = arith.constant 0 : index
    %542 = vector.load %arg23[%c2_229, %c0_230, %c0_231] : memref<4x16x16xbf16, #tpu.memory_space<vmem>>, vector<1x16x16xbf16>
    %543 = vector.shape_cast %542 : vector<1x16x16xbf16> to vector<16x16xbf16>
    %544 = vector.shape_cast %541 : vector<16x16xbf16> to vector<1x16x16xbf16>
    tpu.vector_store %arg23[%c2_229, %c0_230, %c0_231], %544 {strides = array<i32>} : memref<4x16x16xbf16, #tpu.memory_space<vmem>>, vector<1x16x16xbf16>,
    %545 = arith.mulf %161, %45 : vector<16x16xf32>
    %cst_232 = arith.constant dense<0.000000e+00> : vector<16x2xf32>
    %546 = tpu.matmul %545, %6, %cst_232 {dimension_numbers = #tpu.dot_dimension_numbers<[1], [0], [0], [1], [0, 0, 1, 1], [], []>} : vector<16x16xf32>, vector<16x2xf32>, vector<16x2xf32> -> vector<16x2xf32>
    %cst_233 = arith.constant 0.353553385 : f32
    %547 = vector.broadcast %cst_233 : f32 to vector<16x2xf32>
    %548 = arith.mulf %547, %546 : vector<16x2xf32>
    %549 = arith.mulf %161, %84 : vector<16x16xf32>
    %cst_234 = arith.constant dense<0.000000e+00> : vector<16x2xf32>
    %550 = tpu.matmul %549, %6, %cst_234 {dimension_numbers = #tpu.dot_dimension_numbers<[1], [0], [0], [1], [0, 0, 1, 1], [], []>} : vector<16x16xf32>, vector<16x2xf32>, vector<16x2xf32> -> vector<16x2xf32>
    %cst_235 = arith.constant 0.353553385 : f32
    %551 = vector.broadcast %cst_235 : f32 to vector<16x2xf32>
    %552 = arith.mulf %551, %550 : vector<16x2xf32>
    %553 = arith.mulf %161, %123 : vector<16x16xf32>
    %cst_236 = arith.constant dense<0.000000e+00> : vector<16x2xf32>
    %554 = tpu.matmul %553, %6, %cst_236 {dimension_numbers = #tpu.dot_dimension_numbers<[1], [0], [0], [1], [0, 0, 1, 1], [], []>} : vector<16x16xf32>, vector<16x2xf32>, vector<16x2xf32> -> vector<16x2xf32>
    %cst_237 = arith.constant 0.353553385 : f32
    %555 = vector.broadcast %cst_237 : f32 to vector<16x2xf32>
    %556 = arith.mulf %555, %554 : vector<16x2xf32>
    %557 = arith.mulf %161, %162 : vector<16x16xf32>
    %cst_238 = arith.constant dense<0.000000e+00> : vector<16x2xf32>
    %558 = tpu.matmul %557, %6, %cst_238 {dimension_numbers = #tpu.dot_dimension_numbers<[1], [0], [0], [1], [0, 0, 1, 1], [], []>} : vector<16x16xf32>, vector<16x2xf32>, vector<16x2xf32> -> vector<16x2xf32>
    %cst_239 = arith.constant 0.353553385 : f32
    %559 = vector.broadcast %cst_239 : f32 to vector<16x2xf32>
    %560 = arith.mulf %559, %558 : vector<16x2xf32>
    %561 = arith.maximumf %548, %552 : vector<16x2xf32>
    %562 = arith.maximumf %561, %556 : vector<16x2xf32>
    %563 = arith.maximumf %562, %560 : vector<16x2xf32>
    %564 = arith.subf %548, %563 : vector<16x2xf32>
    %565 = math.exp %564 : vector<16x2xf32>
    %566 = arith.subf %552, %563 : vector<16x2xf32>
    %567 = math.exp %566 : vector<16x2xf32>
    %568 = arith.subf %556, %563 : vector<16x2xf32>
    %569 = math.exp %568 : vector<16x2xf32>
    %570 = arith.subf %560, %563 : vector<16x2xf32>
    %571 = math.exp %570 : vector<16x2xf32>
    %572 = arith.addf %565, %567 : vector<16x2xf32>
    %573 = arith.addf %572, %569 : vector<16x2xf32>
    %574 = arith.addf %573, %571 : vector<16x2xf32>
    %cst_240 = arith.constant 1.000000e+00 : f32
    %575 = vector.broadcast %cst_240 : f32 to vector<16x2xf32>
    %576 = arith.divf %575, %574 : vector<16x2xf32>
    %cst_241 = arith.constant 0.000000e+00 : f32
    %577 = vector.broadcast %cst_241 : f32 to vector<16x16xf32>
    %578 = arith.mulf %565, %576 : vector<16x2xf32>
    %cst_242 = arith.constant dense<0.000000e+00> : vector<16x16xf32>
    %579 = tpu.matmul %578, %7, %cst_242 {dimension_numbers = #tpu.dot_dimension_numbers<[1], [0], [0], [1], [0, 0, 1, 1], [], []>} : vector<16x2xf32>, vector<2x16xf32>, vector<16x16xf32> -> vector<16x16xf32>
    %580 = arith.mulf %579, %46 : vector<16x16xf32>
    %581 = arith.addf %577, %580 : vector<16x16xf32>
    %582 = arith.mulf %567, %576 : vector<16x2xf32>
    %cst_243 = arith.constant dense<0.000000e+00> : vector<16x16xf32>
    %583 = tpu.matmul %582, %7, %cst_243 {dimension_numbers = #tpu.dot_dimension_numbers<[1], [0], [0], [1], [0, 0, 1, 1], [], []>} : vector<16x2xf32>, vector<2x16xf32>, vector<16x16xf32> -> vector<16x16xf32>
    %584 = arith.mulf %583, %85 : vector<16x16xf32>
    %585 = arith.addf %581, %584 : vector<16x16xf32>
    %586 = arith.mulf %569, %576 : vector<16x2xf32>
    %cst_244 = arith.constant dense<0.000000e+00> : vector<16x16xf32>
    %587 = tpu.matmul %586, %7, %cst_244 {dimension_numbers = #tpu.dot_dimension_numbers<[1], [0], [0], [1], [0, 0, 1, 1], [], []>} : vector<16x2xf32>, vector<2x16xf32>, vector<16x16xf32> -> vector<16x16xf32>
    %588 = arith.mulf %587, %124 : vector<16x16xf32>
    %589 = arith.addf %585, %588 : vector<16x16xf32>
    %590 = arith.mulf %571, %576 : vector<16x2xf32>
    %cst_245 = arith.constant dense<0.000000e+00> : vector<16x16xf32>
    %591 = tpu.matmul %590, %7, %cst_245 {dimension_numbers = #tpu.dot_dimension_numbers<[1], [0], [0], [1], [0, 0, 1, 1], [], []>} : vector<16x2xf32>, vector<2x16xf32>, vector<16x16xf32> -> vector<16x16xf32>
    %592 = arith.mulf %591, %163 : vector<16x16xf32>
    %593 = arith.addf %589, %592 : vector<16x16xf32>
    %594 = arith.truncf %593 : vector<16x16xf32> to vector<16x16xbf16>
    %c0_246 = arith.constant 0 : index
    %c0_247 = arith.constant 0 : index
    %595 = vector.load %arg12[%c0_246, %c0_247] : memref<16x16xbf16, #tpu.memory_space<vmem>>, vector<16x16xbf16>
    %cst_248 = arith.constant dense<0.000000e+00> : vector<16x16xf32>
    %596 = tpu.matmul %594, %595, %cst_248 {dimension_numbers = #tpu.dot_dimension_numbers<[1], [0], [0], [1], [0, 0, 1, 1], [], []>} : vector<16x16xbf16>, vector<16x16xbf16>, vector<16x16xf32> -> vector<16x16xf32>
    %c0_249 = arith.constant 0 : index
    %c0_250 = arith.constant 0 : index
    %597 = vector.load %arg13[%c0_249, %c0_250] : memref<1x16xf32, #tpu.memory_space<vmem>>, vector<1x16xf32>
    %598 = vector.broadcast %597 : vector<1x16xf32> to vector<16x16xf32>
    %599 = arith.addf %596, %598 : vector<16x16xf32>
    %c0_251 = arith.constant 0 : index
    %c0_252 = arith.constant 0 : index
    %600 = vector.load %arg14[%c0_251, %c0_252] : memref<1x16xf32, #tpu.memory_space<vmem>>, vector<1x16xf32>
    %c0_253 = arith.constant 0 : index
    %c0_254 = arith.constant 0 : index
    %601 = vector.load %arg15[%c0_253, %c0_254] : memref<1x16xf32, #tpu.memory_space<vmem>>, vector<1x16xf32>
    %cst_255 = arith.constant dense<0.000000e+00> : vector<16xf32>
    %602 = vector.multi_reduction <add>, %599, %cst_255 [1] : vector<16x16xf32> to vector<16xf32>
    %603 = vector.shape_cast %602 : vector<16xf32> to vector<16x1xf32>
    %cst_256 = arith.constant 1.600000e+01 : f32
    %604 = vector.broadcast %cst_256 : f32 to vector<16x1xf32>
    %605 = arith.divf %603, %604 : vector<16x1xf32>
    %606 = vector.broadcast %605 : vector<16x1xf32> to vector<16x16xf32>
    %607 = arith.subf %599, %606 : vector<16x16xf32>
    %608 = arith.mulf %607, %607 : vector<16x16xf32>
    %cst_257 = arith.constant dense<0.000000e+00> : vector<16xf32>
    %609 = vector.multi_reduction <add>, %608, %cst_257 [1] : vector<16x16xf32> to vector<16xf32>
    %610 = vector.shape_cast %609 : vector<16xf32> to vector<16x1xf32>
    %cst_258 = arith.constant 1.600000e+01 : f32
    %611 = vector.broadcast %cst_258 : f32 to vector<16x1xf32>
    %612 = arith.divf %610, %611 : vector<16x1xf32>
    %613 = vector.broadcast %605 : vector<16x1xf32> to vector<16x16xf32>
    %614 = arith.subf %599, %613 : vector<16x16xf32>
    %cst_259 = arith.constant 9.99999974E-6 : f32
    %615 = vector.broadcast %cst_259 : f32 to vector<16x1xf32>
    %616 = arith.addf %612, %615 : vector<16x1xf32>
    %617 = math.rsqrt %616 : vector<16x1xf32>
    %618 = vector.broadcast %617 : vector<16x1xf32> to vector<16x16xf32>
    %619 = arith.mulf %614, %618 : vector<16x16xf32>
    %620 = vector.broadcast %600 : vector<1x16xf32> to vector<16x16xf32>
    %621 = arith.mulf %619, %620 : vector<16x16xf32>
    %622 = vector.broadcast %601 : vector<1x16xf32> to vector<16x16xf32>
    %623 = arith.addf %621, %622 : vector<16x16xf32>
    %624 = arith.truncf %623 : vector<16x16xf32> to vector<16x16xbf16>
    %c0_260 = arith.constant 0 : index
    %c0_261 = arith.constant 0 : index
    %625 = vector.load %arg16[%c0_260, %c0_261] : memref<16x16xbf16, #tpu.memory_space<vmem>>, vector<16x16xbf16>
    %cst_262 = arith.constant dense<0.000000e+00> : vector<16x16xf32>
    %626 = tpu.matmul %624, %625, %cst_262 {dimension_numbers = #tpu.dot_dimension_numbers<[1], [0], [0], [1], [0, 0, 1, 1], [], []>} : vector<16x16xbf16>, vector<16x16xbf16>, vector<16x16xf32> -> vector<16x16xf32>
    %c0_263 = arith.constant 0 : index
    %c0_264 = arith.constant 0 : index
    %627 = vector.load %arg17[%c0_263, %c0_264] : memref<1x16xf32, #tpu.memory_space<vmem>>, vector<1x16xf32>
    %628 = vector.broadcast %627 : vector<1x16xf32> to vector<16x16xf32>
    %629 = arith.addf %626, %628 : vector<16x16xf32>
    %cst_265 = arith.constant 0.000000e+00 : f32
    %630 = vector.broadcast %cst_265 : f32 to vector<16x16xf32>
    %631 = arith.maximumf %629, %630 : vector<16x16xf32>
    %632 = arith.truncf %631 : vector<16x16xf32> to vector<16x16xbf16>
    %c0_266 = arith.constant 0 : index
    %c0_267 = arith.constant 0 : index
    %633 = vector.load %arg18[%c0_266, %c0_267] : memref<16x16xbf16, #tpu.memory_space<vmem>>, vector<16x16xbf16>
    %cst_268 = arith.constant dense<0.000000e+00> : vector<16x16xf32>
    %634 = tpu.matmul %632, %633, %cst_268 {dimension_numbers = #tpu.dot_dimension_numbers<[1], [0], [0], [1], [0, 0, 1, 1], [], []>} : vector<16x16xbf16>, vector<16x16xbf16>, vector<16x16xf32> -> vector<16x16xf32>
    %c0_269 = arith.constant 0 : index
    %c0_270 = arith.constant 0 : index
    %635 = vector.load %arg19[%c0_269, %c0_270] : memref<1x16xf32, #tpu.memory_space<vmem>>, vector<1x16xf32>
    %636 = vector.broadcast %635 : vector<1x16xf32> to vector<16x16xf32>
    %637 = arith.addf %634, %636 : vector<16x16xf32>
    %638 = arith.addf %599, %637 : vector<16x16xf32>
    %c3_271 = arith.constant 3 : index
    %c0_272 = arith.constant 0 : index
    %c0_273 = arith.constant 0 : index
    %639 = vector.load %arg22[%c3_271, %c0_272, %c0_273] : memref<4x16x16xf32, #tpu.memory_space<vmem>>, vector<1x16x16xf32>
    %640 = vector.shape_cast %639 : vector<1x16x16xf32> to vector<16x16xf32>
    %641 = vector.shape_cast %638 : vector<16x16xf32> to vector<1x16x16xf32>
    tpu.vector_store %arg22[%c3_271, %c0_272, %c0_273], %641 {strides = array<i32>} : memref<4x16x16xf32, #tpu.memory_space<vmem>>, vector<1x16x16xf32>,
    %cst_274 = arith.constant 0.000000e+00 : f32
    %642 = vector.broadcast %cst_274 : f32 to vector<16x16xf32>
    %643 = arith.maximumf %638, %642 : vector<16x16xf32>
    %c0_275 = arith.constant 0 : index
    %c0_276 = arith.constant 0 : index
    %644 = vector.load %arg20[%c0_275, %c0_276] : memref<1x16xf32, #tpu.memory_space<vmem>>, vector<1x16xf32>
    %c0_277 = arith.constant 0 : index
    %c0_278 = arith.constant 0 : index
    %645 = vector.load %arg21[%c0_277, %c0_278] : memref<1x16xf32, #tpu.memory_space<vmem>>, vector<1x16xf32>
    %cst_279 = arith.constant dense<0.000000e+00> : vector<16xf32>
    %646 = vector.multi_reduction <add>, %643, %cst_279 [1] : vector<16x16xf32> to vector<16xf32>
    %647 = vector.shape_cast %646 : vector<16xf32> to vector<16x1xf32>
    %cst_280 = arith.constant 1.600000e+01 : f32
    %648 = vector.broadcast %cst_280 : f32 to vector<16x1xf32>
    %649 = arith.divf %647, %648 : vector<16x1xf32>
    %650 = vector.broadcast %649 : vector<16x1xf32> to vector<16x16xf32>
    %651 = arith.subf %643, %650 : vector<16x16xf32>
    %652 = arith.mulf %651, %651 : vector<16x16xf32>
    %cst_281 = arith.constant dense<0.000000e+00> : vector<16xf32>
    %653 = vector.multi_reduction <add>, %652, %cst_281 [1] : vector<16x16xf32> to vector<16xf32>
    %654 = vector.shape_cast %653 : vector<16xf32> to vector<16x1xf32>
    %cst_282 = arith.constant 1.600000e+01 : f32
    %655 = vector.broadcast %cst_282 : f32 to vector<16x1xf32>
    %656 = arith.divf %654, %655 : vector<16x1xf32>
    %657 = vector.broadcast %649 : vector<16x1xf32> to vector<16x16xf32>
    %658 = arith.subf %643, %657 : vector<16x16xf32>
    %cst_283 = arith.constant 9.99999974E-6 : f32
    %659 = vector.broadcast %cst_283 : f32 to vector<16x1xf32>
    %660 = arith.addf %656, %659 : vector<16x1xf32>
    %661 = math.rsqrt %660 : vector<16x1xf32>
    %662 = vector.broadcast %661 : vector<16x1xf32> to vector<16x16xf32>
    %663 = arith.mulf %658, %662 : vector<16x16xf32>
    %664 = vector.broadcast %644 : vector<1x16xf32> to vector<16x16xf32>
    %665 = arith.mulf %663, %664 : vector<16x16xf32>
    %666 = vector.broadcast %645 : vector<1x16xf32> to vector<16x16xf32>
    %667 = arith.addf %665, %666 : vector<16x16xf32>
    %668 = arith.truncf %667 : vector<16x16xf32> to vector<16x16xbf16>
    %c3_284 = arith.constant 3 : index
    %c0_285 = arith.constant 0 : index
    %c0_286 = arith.constant 0 : index
    %669 = vector.load %arg23[%c3_284, %c0_285, %c0_286] : memref<4x16x16xbf16, #tpu.memory_space<vmem>>, vector<1x16x16xbf16>
    %670 = vector.shape_cast %669 : vector<1x16x16xbf16> to vector<16x16xbf16>
    %671 = vector.shape_cast %668 : vector<16x16xbf16> to vector<1x16x16xbf16>
    tpu.vector_store %arg23[%c3_284, %c0_285, %c0_286], %671 {strides = array<i32>} : memref<4x16x16xbf16, #tpu.memory_space<vmem>>, vector<1x16x16xbf16>,
    return
  }
  func.func @transform_0(%arg0: i32) -> (i32, i32, i32) {
    %c0_i32 = arith.constant 0 : i32
    %c0_i32_0 = arith.constant 0 : i32
    %c0_i32_1 = arith.constant 0 : i32
    return %c0_i32, %arg0, %c0_i32_0 : i32, i32, i32
  }
  func.func @transform_1(%arg0: i32) -> (i32, i32, i32) {
    %c0_i32 = arith.constant 0 : i32
    %c0_i32_0 = arith.constant 0 : i32
    %c0_i32_1 = arith.constant 0 : i32
    %c0_i32_2 = arith.constant 0 : i32
    return %c0_i32, %c0_i32_0, %c0_i32_1 : i32, i32, i32
  }
  func.func @transform_2(%arg0: i32) -> (i32, i32, i32) {
    %c0_i32 = arith.constant 0 : i32
    %c0_i32_0 = arith.constant 0 : i32
    %c0_i32_1 = arith.constant 0 : i32
    return %c0_i32, %arg0, %c0_i32_0 : i32, i32, i32
  }
  func.func @transform_3(%arg0: i32) -> (i32, i32) {
    %c0_i32 = arith.constant 0 : i32
    %c0_i32_0 = arith.constant 0 : i32
    return %arg0, %c0_i32 : i32, i32
  }
  func.func @transform_4(%arg0: i32) -> (i32, i32) {
    %c0_i32 = arith.constant 0 : i32
    %c0_i32_0 = arith.constant 0 : i32
    %c0_i32_1 = arith.constant 0 : i32
    return %c0_i32, %c0_i32_0 : i32, i32
  }
  func.func @transform_5(%arg0: i32) -> (i32, i32) {
    %c0_i32 = arith.constant 0 : i32
    %c0_i32_0 = arith.constant 0 : i32
    %c0_i32_1 = arith.constant 0 : i32
    return %c0_i32, %c0_i32_0 : i32, i32
  }
  func.func @transform_6(%arg0: i32) -> (i32, i32) {
    %c0_i32 = arith.constant 0 : i32
    %c0_i32_0 = arith.constant 0 : i32
    %c0_i32_1 = arith.constant 0 : i32
    return %c0_i32, %c0_i32_0 : i32, i32
  }
  func.func @transform_7(%arg0: i32) -> (i32, i32) {
    %c0_i32 = arith.constant 0 : i32
    %c0_i32_0 = arith.constant 0 : i32
    %c0_i32_1 = arith.constant 0 : i32
    return %c0_i32, %c0_i32_0 : i32, i32
  }
  func.func @transform_8(%arg0: i32) -> (i32, i32) {
    %c0_i32 = arith.constant 0 : i32
    %c0_i32_0 = arith.constant 0 : i32
    %c0_i32_1 = arith.constant 0 : i32
    return %c0_i32, %c0_i32_0 : i32, i32
  }
  func.func @transform_9(%arg0: i32) -> (i32, i32) {
    %c0_i32 = arith.constant 0 : i32
    %c0_i32_0 = arith.constant 0 : i32
    %c0_i32_1 = arith.constant 0 : i32
    return %c0_i32, %c0_i32_0 : i32, i32
  }
  func.func @transform_10(%arg0: i32) -> (i32, i32) {
    %c0_i32 = arith.constant 0 : i32
    %c0_i32_0 = arith.constant 0 : i32
    %c0_i32_1 = arith.constant 0 : i32
    return %c0_i32, %c0_i32_0 : i32, i32
  }
  func.func @transform_11(%arg0: i32) -> (i32, i32) {
    %c0_i32 = arith.constant 0 : i32
    %c0_i32_0 = arith.constant 0 : i32
    %c0_i32_1 = arith.constant 0 : i32
    return %c0_i32, %c0_i32_0 : i32, i32
  }
  func.func @transform_12(%arg0: i32) -> (i32, i32) {
    %c0_i32 = arith.constant 0 : i32
    %c0_i32_0 = arith.constant 0 : i32
    %c0_i32_1 = arith.constant 0 : i32
    return %c0_i32, %c0_i32_0 : i32, i32
  }
  func.func @transform_13(%arg0: i32) -> (i32, i32) {
    %c0_i32 = arith.constant 0 : i32
    %c0_i32_0 = arith.constant 0 : i32
    %c0_i32_1 = arith.constant 0 : i32
    return %c0_i32, %c0_i32_0 : i32, i32
  }
  func.func @transform_14(%arg0: i32) -> (i32, i32) {
    %c0_i32 = arith.constant 0 : i32
    %c0_i32_0 = arith.constant 0 : i32
    %c0_i32_1 = arith.constant 0 : i32
    return %c0_i32, %c0_i32_0 : i32, i32
  }
  func.func @transform_15(%arg0: i32) -> (i32, i32) {
    %c0_i32 = arith.constant 0 : i32
    %c0_i32_0 = arith.constant 0 : i32
    %c0_i32_1 = arith.constant 0 : i32
    return %c0_i32, %c0_i32_0 : i32, i32
  }
  func.func @transform_16(%arg0: i32) -> (i32, i32) {
    %c0_i32 = arith.constant 0 : i32
    %c0_i32_0 = arith.constant 0 : i32
    %c0_i32_1 = arith.constant 0 : i32
    return %c0_i32, %c0_i32_0 : i32, i32
  }
  func.func @transform_17(%arg0: i32) -> (i32, i32) {
    %c0_i32 = arith.constant 0 : i32
    %c0_i32_0 = arith.constant 0 : i32
    %c0_i32_1 = arith.constant 0 : i32
    return %c0_i32, %c0_i32_0 : i32, i32
  }
  func.func @transform_18(%arg0: i32) -> (i32, i32) {
    %c0_i32 = arith.constant 0 : i32
    %c0_i32_0 = arith.constant 0 : i32
    %c0_i32_1 = arith.constant 0 : i32
    return %c0_i32, %c0_i32_0 : i32, i32
  }
  func.func @transform_19(%arg0: i32) -> (i32, i32) {
    %c0_i32 = arith.constant 0 : i32
    %c0_i32_0 = arith.constant 0 : i32
    %c0_i32_1 = arith.constant 0 : i32
    return %c0_i32, %c0_i32_0 : i32, i32
  }
  func.func @transform_20(%arg0: i32) -> (i32, i32) {
    %c0_i32 = arith.constant 0 : i32
    %c0_i32_0 = arith.constant 0 : i32
    %c0_i32_1 = arith.constant 0 : i32
    return %c0_i32, %c0_i32_0 : i32, i32
  }
  func.func @transform_21(%arg0: i32) -> (i32, i32, i32) {
    %c0_i32 = arith.constant 0 : i32
    %c0_i32_0 = arith.constant 0 : i32
    %c0_i32_1 = arith.constant 0 : i32
    return %c0_i32, %arg0, %c0_i32_0 : i32, i32, i32
  }
  func.func @transform_22(%arg0: i32) -> (i32, i32, i32) {
    %c0_i32 = arith.constant 0 : i32
    %c0_i32_0 = arith.constant 0 : i32
    %c0_i32_1 = arith.constant 0 : i32
    return %c0_i32, %arg0, %c0_i32_0 : i32, i32, i32
  }
}

</mosaic_0001>

<llo_original>
// kernel: tpu_custom_call.1
$region0: #{tpu_custom_call.1}
  #allocation0 [shape = 'u32[]', space=smem, size = 0x4, offset = 0x4, fixed_abs, tag = 'smem constant byte address 0x4 - core index']
  #allocation1 [shape = 'u32[144,128]{1,0:T(1,128)}', space=vmem, size = 0x12000, scoped, tag = 'internal scratch']
  #allocation2 [shape = 'f32[1,1]{1,0:T(1,128)S(6)}', space=smem, size = 0x200, scoped, tag = 'scoped memory for tpu_custom_call.1']
  %s0 = inlined_call_operand.vmem [shape: f32[4,32,8], index: 0, kind: input, shape index: {}]
  %s1 = inlined_call_operand.vmem [shape: bf16[4,32,8], index: 1, kind: input, shape index: {}]
  %s2 = inlined_call_operand.vmem [shape: bf16[4,32,8], index: 2, kind: input, shape index: {}]
  %s3 = inlined_call_operand.vmem [shape: bf16[32,32], index: 3, kind: input, shape index: {}]
  %s4 = inlined_call_operand.<no memory space> [shape: f32[1,1], index: 4, kind: input, shape index: {}]
  %s5 = inlined_call_operand.vmem [shape: f32[1,8], index: 5, kind: input, shape index: {}]
  %s6 = inlined_call_operand.vmem [shape: f32[1,8], index: 6, kind: input, shape index: {}]
  %s7 = inlined_call_operand.vmem [shape: bf16[8,48], index: 7, kind: input, shape index: {}]
  %s8 = inlined_call_operand.vmem [shape: f32[1,48], index: 8, kind: input, shape index: {}]
  %s9 = inlined_call_operand.vmem [shape: f32[16,2], index: 9, kind: input, shape index: {}]
  %s10 = inlined_call_operand.vmem [shape: f32[2,16], index: 10, kind: input, shape index: {}]
  %s11 = inlined_call_operand.vmem [shape: bf16[16,16], index: 11, kind: input, shape index: {}]
  %s12 = inlined_call_operand.vmem [shape: f32[1,16], index: 12, kind: input, shape index: {}]
  %s13 = inlined_call_operand.vmem [shape: f32[1,16], index: 13, kind: input, shape index: {}]
  %s14 = inlined_call_operand.vmem [shape: f32[1,16], index: 14, kind: input, shape index: {}]
  %s15 = inlined_call_operand.vmem [shape: bf16[16,16], index: 15, kind: input, shape index: {}]
  %s16 = inlined_call_operand.vmem [shape: f32[1,16], index: 16, kind: input, shape index: {}]
  %s17 = inlined_call_operand.vmem [shape: bf16[16,16], index: 17, kind: input, shape index: {}]
  %s18 = inlined_call_operand.vmem [shape: f32[1,16], index: 18, kind: input, shape index: {}]
  %s19 = inlined_call_operand.vmem [shape: f32[1,16], index: 19, kind: input, shape index: {}]
  %s20 = inlined_call_operand.vmem [shape: f32[1,16], index: 20, kind: input, shape index: {}]
  %s21 = inlined_call_operand.vmem [shape: f32[4,32,16], index: 21, kind: output, shape index: {0}]
  %s22 = inlined_call_operand.vmem [shape: bf16[4,32,16], index: 22, kind: output, shape index: {1}]
  %23 = xla_tuple %s21, %s22
  %s24 = sld [smem:[#allocation0]]
  $region275: #{tpu_custom_call.1} parent=0
    _
  %s26 = ssub.s32 1, %s24
  %s27 = scalar_select 0, %s26, %s24
  %28 = sst [smem:[#allocation2]] %s4
  $region1: #{tpu_custom_call.1} parent=0
    #allocation3 [shape = 'u8[65536]{0}', space=vmem, size = 0x10000, scoped, tag = 'input window, operand 0']
    #allocation4 [shape = 'u8[32768]{0}', space=vmem, size = 0x8000, scoped, tag = 'input window, operand 2']
    #allocation5 [shape = 'u8[65536]{0}', space=vmem, size = 0x10000, scoped, tag = 'output window, operand 0']
    #allocation6 [shape = 'u8[32768]{0}', space=vmem, size = 0x8000, scoped, tag = 'output window, operand 1']
    loop: start=0, step=1, limit=4
    $region2: #{tpu_custom_call.1} parent=1 // loop_pre_header
      _
    $region3: #{tpu_custom_call.1} parent=1 // loop_header
      %s30 = sphi 0, %s34
      %p31 = scmp.ge.s32.totalorder %s30, 4
      %s40 = sphi 0, %s42
      %s43 = sphi 0, %s40
      %s44 = sphi 0, %s43
      %s60 = sphi 0, %s44
      %s64 = sphi 0, %s64
      %s66 = sphi 0, %s64
      %s67 = sphi 0, %s66
      %s81 = sphi 0, %s67
      %s87 = sphi 0, %s89
      %s90 = sphi 0, %s87
      %s91 = sphi 0, %s90
      %s107 = sphi 0, %s91
      %s113 = sphi 0, %s115
      %s116 = sphi 0, %s113
      %s117 = sphi 0, %s116
      %s133 = sphi 0, %s117
      %s137 = sphi 0, %s137
      %s139 = sphi 0, %s137
      %s140 = sphi 0, %s139
      %s154 = sphi 0, %s140
      %s158 = sphi 0, %s158
      %s160 = sphi 0, %s158
      %s161 = sphi 0, %s160
      %s175 = sphi 0, %s161
      %s179 = sphi 0, %s179
      %s181 = sphi 0, %s179
      %s182 = sphi 0, %s181
      %s196 = sphi 0, %s182
      %s200 = sphi 0, %s200
      %s202 = sphi 0, %s200
      %s203 = sphi 0, %s202
      %s217 = sphi 0, %s203
      %s221 = sphi 0, %s221
      %s223 = sphi 0, %s221
      %s224 = sphi 0, %s223
      %s238 = sphi 0, %s224
      %s242 = sphi 0, %s242
      %s244 = sphi 0, %s242
      %s245 = sphi 0, %s244
      %s259 = sphi 0, %s245
      %s263 = sphi 0, %s263
      %s265 = sphi 0, %s263
      %s266 = sphi 0, %s265
      %s280 = sphi 0, %s266
      %s284 = sphi 0, %s284
      %s286 = sphi 0, %s284
      %s287 = sphi 0, %s286
      %s301 = sphi 0, %s287
      %s305 = sphi 0, %s305
      %s307 = sphi 0, %s305
      %s308 = sphi 0, %s307
      %s322 = sphi 0, %s308
      %s326 = sphi 0, %s326
      %s328 = sphi 0, %s326
      %s329 = sphi 0, %s328
      %s343 = sphi 0, %s329
      %s347 = sphi 0, %s347
      %s349 = sphi 0, %s347
      %s350 = sphi 0, %s349
      %s364 = sphi 0, %s350
      %s368 = sphi 0, %s368
      %s370 = sphi 0, %s368
      %s371 = sphi 0, %s370
      %s385 = sphi 0, %s371
      %s389 = sphi 0, %s389
      %s391 = sphi 0, %s389
      %s392 = sphi 0, %s391
      %s406 = sphi 0, %s392
      %s410 = sphi 0, %s410
      %s412 = sphi 0, %s410
      %s413 = sphi 0, %s412
      %s427 = sphi 0, %s413
      %s431 = sphi 0, %s431
      %s433 = sphi 0, %s431
      %s434 = sphi 0, %s433
      %s448 = sphi 0, %s434
      %s452 = sphi 0, %s452
      %s454 = sphi 0, %s452
      %s455 = sphi 0, %s454
      %s469 = sphi 0, %s455
      %s473 = sphi 0, %s473
      %s475 = sphi 0, %s473
      %s476 = sphi 0, %s475
      %s490 = sphi 0, %s476
      %s496 = sphi 0, %s498
      %s499 = sphi 0, %s496
      %s500 = sphi 0, %s499
      %s516 = sphi 0, %s500
      %s522 = sphi 0, %s524
      %s525 = sphi 0, %s522
      %s526 = sphi 0, %s525
      %s542 = sphi 0, %s526
    $region4: #{tpu_custom_call.1} parent=1 // loop_header_branch
      %33 = sbr.rel (%p31) target = $region8
    $region5: #{tpu_custom_call.1} parent=1 // loop_body
      %s35 = ssub.s32 %s30, 1
      %s36 = ssub.s32 %s30, 2
      %s37 = sadd.s32 %s30, 1
      %s38 = ssub.s32 %s30, %s37
      %p39 = scmp.eq.s32.totalorder %s38, 0
      %s41 = sadd.s32 %s40, 1
      %s42 = scalar_select %p39, %s40, %s41
      %p45 = pneg %p39
      %p46 = scmp.eq.s32.totalorder %s30, 1
      %p47 = por %p45, %p46
      %p48 = scmp.ne.s32.totalorder %s40, %s43
      %p49 = scmp.eq.s32.totalorder %s30, 0
      %p50 = por %p48, %p49
      %p51 = scmp.ne.s32.totalorder %s40, %s43
      %p52 = scmp.eq.s32.totalorder %s35, 1
      %p53 = por %p51, %p52
      %p54 = scmp.ne.s32.totalorder %s43, %s44
      %p55 = scmp.eq.s32.totalorder %s35, 0
      %p56 = por %p54, %p55
      %p57 = scmp.ne.s32.totalorder %s43, %s44
      %p58 = scmp.eq.s32.totalorder %s36, 1
      %p59 = por %p57, %p58
      %p61 = scmp.ne.s32.totalorder %s44, %s60
      %p62 = scmp.eq.s32.totalorder %s36, 0
      %p63 = por %p61, %p62
      %s65 = sadd.s32 %s64, 1
      %p68 = scmp.eq.s32.totalorder %s30, 1
      %p69 = scmp.ne.s32.totalorder %s64, %s66
      %p70 = scmp.eq.s32.totalorder %s30, 0
      %p71 = por %p69, %p70
      %p72 = scmp.ne.s32.totalorder %s64, %s66
      %p73 = scmp.eq.s32.totalorder %s35, 1
      %p74 = por %p72, %p73
      %p75 = scmp.ne.s32.totalorder %s66, %s67
      %p76 = scmp.eq.s32.totalorder %s35, 0
      %p77 = por %p75, %p76
      %p78 = scmp.ne.s32.totalorder %s66, %s67
      %p79 = scmp.eq.s32.totalorder %s36, 1
      %p80 = por %p78, %p79
      %p82 = scmp.ne.s32.totalorder %s67, %s81
      %p83 = scmp.eq.s32.totalorder %s36, 0
      %p84 = por %p82, %p83
      %s85 = ssub.s32 %s30, %s37
      %p86 = scmp.eq.s32.totalorder %s85, 0
      %s88 = sadd.s32 %s87, 1
      %s89 = scalar_select %p86, %s87, %s88
      %p92 = pneg %p86
      %p93 = scmp.eq.s32.totalorder %s30, 1
      %p94 = por %p92, %p93
      %p95 = scmp.ne.s32.totalorder %s87, %s90
      %p96 = scmp.eq.s32.totalorder %s30, 0
      %p97 = por %p95, %p96
      %p98 = scmp.ne.s32.totalorder %s87, %s90
      %p99 = scmp.eq.s32.totalorder %s35, 1
      %p100 = por %p98, %p99
      %p101 = scmp.ne.s32.totalorder %s90, %s91
      %p102 = scmp.eq.s32.totalorder %s35, 0
      %p103 = por %p101, %p102
      %p104 = scmp.ne.s32.totalorder %s90, %s91
      %p105 = scmp.eq.s32.totalorder %s36, 1
      %p106 = por %p104, %p105
      %p108 = scmp.ne.s32.totalorder %s91, %s107
      %p109 = scmp.eq.s32.totalorder %s36, 0
      %p110 = por %p108, %p109
      %s111 = ssub.s32 %s30, %s37
      %p112 = scmp.eq.s32.totalorder %s111, 0
      %s114 = sadd.s32 %s113, 1
      %s115 = scalar_select %p112, %s113, %s114
      %p118 = pneg %p112
      %p119 = scmp.eq.s32.totalorder %s30, 1
      %p120 = por %p118, %p119
      %p121 = scmp.ne.s32.totalorder %s113, %s116
      %p122 = scmp.eq.s32.totalorder %s30, 0
      %p123 = por %p121, %p122
      %p124 = scmp.ne.s32.totalorder %s113, %s116
      %p125 = scmp.eq.s32.totalorder %s35, 1
      %p126 = por %p124, %p125
      %p127 = scmp.ne.s32.totalorder %s116, %s117
      %p128 = scmp.eq.s32.totalorder %s35, 0
      %p129 = por %p127, %p128
      %p130 = scmp.ne.s32.totalorder %s116, %s117
      %p131 = scmp.eq.s32.totalorder %s36, 1
      %p132 = por %p130, %p131
      %p134 = scmp.ne.s32.totalorder %s117, %s133
      %p135 = scmp.eq.s32.totalorder %s36, 0
      %p136 = por %p134, %p135
      %s138 = sadd.s32 %s137, 1
      %p141 = scmp.eq.s32.totalorder %s30, 1
      %p142 = scmp.ne.s32.totalorder %s137, %s139
      %p143 = scmp.eq.s32.totalorder %s30, 0
      %p144 = por %p142, %p143
      %p145 = scmp.ne.s32.totalorder %s137, %s139
      %p146 = scmp.eq.s32.totalorder %s35, 1
      %p147 = por %p145, %p146
      %p148 = scmp.ne.s32.totalorder %s139, %s140
      %p149 = scmp.eq.s32.totalorder %s35, 0
      %p150 = por %p148, %p149
      %p151 = scmp.ne.s32.totalorder %s139, %s140
      %p152 = scmp.eq.s32.totalorder %s36, 1
      %p153 = por %p151, %p152
      %p155 = scmp.ne.s32.totalorder %s140, %s154
      %p156 = scmp.eq.s32.totalorder %s36, 0
      %p157 = por %p155, %p156
      %s159 = sadd.s32 %s158, 1
      %p162 = scmp.eq.s32.totalorder %s30, 1
      %p163 = scmp.ne.s32.totalorder %s158, %s160
      %p164 = scmp.eq.s32.totalorder %s30, 0
      %p165 = por %p163, %p164
      %p166 = scmp.ne.s32.totalorder %s158, %s160
      %p167 = scmp.eq.s32.totalorder %s35, 1
      %p168 = por %p166, %p167
      %p169 = scmp.ne.s32.totalorder %s160, %s161
      %p170 = scmp.eq.s32.totalorder %s35, 0
      %p171 = por %p169, %p170
      %p172 = scmp.ne.s32.totalorder %s160, %s161
      %p173 = scmp.eq.s32.totalorder %s36, 1
      %p174 = por %p172, %p173
      %p176 = scmp.ne.s32.totalorder %s161, %s175
      %p177 = scmp.eq.s32.totalorder %s36, 0
      %p178 = por %p176, %p177
      %s180 = sadd.s32 %s179, 1
      %p183 = scmp.eq.s32.totalorder %s30, 1
      %p184 = scmp.ne.s32.totalorder %s179, %s181
      %p185 = scmp.eq.s32.totalorder %s30, 0
      %p186 = por %p184, %p185
      %p187 = scmp.ne.s32.totalorder %s179, %s181
      %p188 = scmp.eq.s32.totalorder %s35, 1
      %p189 = por %p187, %p188
      %p190 = scmp.ne.s32.totalorder %s181, %s182
      %p191 = scmp.eq.s32.totalorder %s35, 0
      %p192 = por %p190, %p191
      %p193 = scmp.ne.s32.totalorder %s181, %s182
      %p194 = scmp.eq.s32.totalorder %s36, 1
      %p195 = por %p193, %p194
      %p197 = scmp.ne.s32.totalorder %s182, %s196
      %p198 = scmp.eq.s32.totalorder %s36, 0
      %p199 = por %p197, %p198
      %s201 = sadd.s32 %s200, 1
      %p204 = scmp.eq.s32.totalorder %s30, 1
      %p205 = scmp.ne.s32.totalorder %s200, %s202
      %p206 = scmp.eq.s32.totalorder %s30, 0
      %p207 = por %p205, %p206
      %p208 = scmp.ne.s32.totalorder %s200, %s202
      %p209 = scmp.eq.s32.totalorder %s35, 1
      %p210 = por %p208, %p209
      %p211 = scmp.ne.s32.totalorder %s202, %s203
      %p212 = scmp.eq.s32.totalorder %s35, 0
      %p213 = por %p211, %p212
      %p214 = scmp.ne.s32.totalorder %s202, %s203
      %p215 = scmp.eq.s32.totalorder %s36, 1
      %p216 = por %p214, %p215
      %p218 = scmp.ne.s32.totalorder %s203, %s217
      %p219 = scmp.eq.s32.totalorder %s36, 0
      %p220 = por %p218, %p219
      %s222 = sadd.s32 %s221, 1
      %p225 = scmp.eq.s32.totalorder %s30, 1
      %p226 = scmp.ne.s32.totalorder %s221, %s223
      %p227 = scmp.eq.s32.totalorder %s30, 0
      %p228 = por %p226, %p227
      %p229 = scmp.ne.s32.totalorder %s221, %s223
      %p230 = scmp.eq.s32.totalorder %s35, 1
      %p231 = por %p229, %p230
      %p232 = scmp.ne.s32.totalorder %s223, %s224
      %p233 = scmp.eq.s32.totalorder %s35, 0
      %p234 = por %p232, %p233
      %p235 = scmp.ne.s32.totalorder %s223, %s224
      %p236 = scmp.eq.s32.totalorder %s36, 1
      %p237 = por %p235, %p236
      %p239 = scmp.ne.s32.totalorder %s224, %s238
      %p240 = scmp.eq.s32.totalorder %s36, 0
      %p241 = por %p239, %p240
      %s243 = sadd.s32 %s242, 1
      %p246 = scmp.eq.s32.totalorder %s30, 1
      %p247 = scmp.ne.s32.totalorder %s242, %s244
      %p248 = scmp.eq.s32.totalorder %s30, 0
      %p249 = por %p247, %p248
      %p250 = scmp.ne.s32.totalorder %s242, %s244
      %p251 = scmp.eq.s32.totalorder %s35, 1
      %p252 = por %p250, %p251
      %p253 = scmp.ne.s32.totalorder %s244, %s245
      %p254 = scmp.eq.s32.totalorder %s35, 0
      %p255 = por %p253, %p254
      %p256 = scmp.ne.s32.totalorder %s244, %s245
      %p257 = scmp.eq.s32.totalorder %s36, 1
      %p258 = por %p256, %p257
      %p260 = scmp.ne.s32.totalorder %s245, %s259
      %p261 = scmp.eq.s32.totalorder %s36, 0
      %p262 = por %p260, %p261
      %s264 = sadd.s32 %s263, 1
      %p267 = scmp.eq.s32.totalorder %s30, 1
      %p268 = scmp.ne.s32.totalorder %s263, %s265
      %p269 = scmp.eq.s32.totalorder %s30, 0
      %p270 = por %p268, %p269
      %p271 = scmp.ne.s32.totalorder %s263, %s265
      %p272 = scmp.eq.s32.totalorder %s35, 1
      %p273 = por %p271, %p272
      %p274 = scmp.ne.s32.totalorder %s265, %s266
      %p275 = scmp.eq.s32.totalorder %s35, 0
      %p276 = por %p274, %p275
      %p277 = scmp.ne.s32.totalorder %s265, %s266
      %p278 = scmp.eq.s32.totalorder %s36, 1
      %p279 = por %p277, %p278
      %p281 = scmp.ne.s32.totalorder %s266, %s280
      %p282 = scmp.eq.s32.totalorder %s36, 0
      %p283 = por %p281, %p282
      %s285 = sadd.s32 %s284, 1
      %p288 = scmp.eq.s32.totalorder %s30, 1
      %p289 = scmp.ne.s32.totalorder %s284, %s286
      %p290 = scmp.eq.s32.totalorder %s30, 0
      %p291 = por %p289, %p290
      %p292 = scmp.ne.s32.totalorder %s284, %s286
      %p293 = scmp.eq.s32.totalorder %s35, 1
      %p294 = por %p292, %p293
      %p295 = scmp.ne.s32.totalorder %s286, %s287
      %p296 = scmp.eq.s32.totalorder %s35, 0
      %p297 = por %p295, %p296
      %p298 = scmp.ne.s32.totalorder %s286, %s287
      %p299 = scmp.eq.s32.totalorder %s36, 1
      %p300 = por %p298, %p299
      %p302 = scmp.ne.s32.totalorder %s287, %s301
      %p303 = scmp.eq.s32.totalorder %s36, 0
      %p304 = por %p302, %p303
      %s306 = sadd.s32 %s305, 1
      %p309 = scmp.eq.s32.totalorder %s30, 1
      %p310 = scmp.ne.s32.totalorder %s305, %s307
      %p311 = scmp.eq.s32.totalorder %s30, 0
      %p312 = por %p310, %p311
      %p313 = scmp.ne.s32.totalorder %s305, %s307
      %p314 = scmp.eq.s32.totalorder %s35, 1
      %p315 = por %p313, %p314
      %p316 = scmp.ne.s32.totalorder %s307, %s308
      %p317 = scmp.eq.s32.totalorder %s35, 0
      %p318 = por %p316, %p317
      %p319 = scmp.ne.s32.totalorder %s307, %s308
      %p320 = scmp.eq.s32.totalorder %s36, 1
      %p321 = por %p319, %p320
      %p323 = scmp.ne.s32.totalorder %s308, %s322
      %p324 = scmp.eq.s32.totalorder %s36, 0
      %p325 = por %p323, %p324
      %s327 = sadd.s32 %s326, 1
      %p330 = scmp.eq.s32.totalorder %s30, 1
      %p331 = scmp.ne.s32.totalorder %s326, %s328
      %p332 = scmp.eq.s32.totalorder %s30, 0
      %p333 = por %p331, %p332
      %p334 = scmp.ne.s32.totalorder %s326, %s328
      %p335 = scmp.eq.s32.totalorder %s35, 1
      %p336 = por %p334, %p335
      %p337 = scmp.ne.s32.totalorder %s328, %s329
      %p338 = scmp.eq.s32.totalorder %s35, 0
      %p339 = por %p337, %p338
      %p340 = scmp.ne.s32.totalorder %s328, %s329
      %p341 = scmp.eq.s32.totalorder %s36, 1
      %p342 = por %p340, %p341
      %p344 = scmp.ne.s32.totalorder %s329, %s343
      %p345 = scmp.eq.s32.totalorder %s36, 0
      %p346 = por %p344, %p345
      %s348 = sadd.s32 %s347, 1
      %p351 = scmp.eq.s32.totalorder %s30, 1
      %p352 = scmp.ne.s32.totalorder %s347, %s349
      %p353 = scmp.eq.s32.totalorder %s30, 0
      %p354 = por %p352, %p353
      %p355 = scmp.ne.s32.totalorder %s347, %s349
      %p356 = scmp.eq.s32.totalorder %s35, 1
      %p357 = por %p355, %p356
      %p358 = scmp.ne.s32.totalorder %s349, %s350
      %p359 = scmp.eq.s32.totalorder %s35, 0
      %p360 = por %p358, %p359
      %p361 = scmp.ne.s32.totalorder %s349, %s350
      %p362 = scmp.eq.s32.totalorder %s36, 1
      %p363 = por %p361, %p362
      %p365 = scmp.ne.s32.totalorder %s350, %s364
      %p366 = scmp.eq.s32.totalorder %s36, 0
      %p367 = por %p365, %p366
      %s369 = sadd.s32 %s368, 1
      %p372 = scmp.eq.s32.totalorder %s30, 1
      %p373 = scmp.ne.s32.totalorder %s368, %s370
      %p374 = scmp.eq.s32.totalorder %s30, 0
      %p375 = por %p373, %p374
      %p376 = scmp.ne.s32.totalorder %s368, %s370
      %p377 = scmp.eq.s32.totalorder %s35, 1
      %p378 = por %p376, %p377
      %p379 = scmp.ne.s32.totalorder %s370, %s371
      %p380 = scmp.eq.s32.totalorder %s35, 0
      %p381 = por %p379, %p380
      %p382 = scmp.ne.s32.totalorder %s370, %s371
      %p383 = scmp.eq.s32.totalorder %s36, 1
      %p384 = por %p382, %p383
      %p386 = scmp.ne.s32.totalorder %s371, %s385
      %p387 = scmp.eq.s32.totalorder %s36, 0
      %p388 = por %p386, %p387
      %s390 = sadd.s32 %s389, 1
      %p393 = scmp.eq.s32.totalorder %s30, 1
      %p394 = scmp.ne.s32.totalorder %s389, %s391
      %p395 = scmp.eq.s32.totalorder %s30, 0
      %p396 = por %p394, %p395
      %p397 = scmp.ne.s32.totalorder %s389, %s391
      %p398 = scmp.eq.s32.totalorder %s35, 1
      %p399 = por %p397, %p398
      %p400 = scmp.ne.s32.totalorder %s391, %s392
      %p401 = scmp.eq.s32.totalorder %s35, 0
      %p402 = por %p400, %p401
      %p403 = scmp.ne.s32.totalorder %s391, %s392
      %p404 = scmp.eq.s32.totalorder %s36, 1
      %p405 = por %p403, %p404
      %p407 = scmp.ne.s32.totalorder %s392, %s406
      %p408 = scmp.eq.s32.totalorder %s36, 0
      %p409 = por %p407, %p408
      %s411 = sadd.s32 %s410, 1
      %p414 = scmp.eq.s32.totalorder %s30, 1
      %p415 = scmp.ne.s32.totalorder %s410, %s412
      %p416 = scmp.eq.s32.totalorder %s30, 0
      %p417 = por %p415, %p416
      %p418 = scmp.ne.s32.totalorder %s410, %s412
      %p419 = scmp.eq.s32.totalorder %s35, 1
      %p420 = por %p418, %p419
      %p421 = scmp.ne.s32.totalorder %s412, %s413
      %p422 = scmp.eq.s32.totalorder %s35, 0
      %p423 = por %p421, %p422
      %p424 = scmp.ne.s32.totalorder %s412, %s413
      %p425 = scmp.eq.s32.totalorder %s36, 1
      %p426 = por %p424, %p425
      %p428 = scmp.ne.s32.totalorder %s413, %s427
      %p429 = scmp.eq.s32.totalorder %s36, 0
      %p430 = por %p428, %p429
      %s432 = sadd.s32 %s431, 1
      %p435 = scmp.eq.s32.totalorder %s30, 1
      %p436 = scmp.ne.s32.totalorder %s431, %s433
      %p437 = scmp.eq.s32.totalorder %s30, 0
      %p438 = por %p436, %p437
      %p439 = scmp.ne.s32.totalorder %s431, %s433
      %p440 = scmp.eq.s32.totalorder %s35, 1
      %p441 = por %p439, %p440
      %p442 = scmp.ne.s32.totalorder %s433, %s434
      %p443 = scmp.eq.s32.totalorder %s35, 0
      %p444 = por %p442, %p443
      %p445 = scmp.ne.s32.totalorder %s433, %s434
      %p446 = scmp.eq.s32.totalorder %s36, 1
      %p447 = por %p445, %p446
      %p449 = scmp.ne.s32.totalorder %s434, %s448
      %p450 = scmp.eq.s32.totalorder %s36, 0
      %p451 = por %p449, %p450
      %s453 = sadd.s32 %s452, 1
      %p456 = scmp.eq.s32.totalorder %s30, 1
      %p457 = scmp.ne.s32.totalorder %s452, %s454
      %p458 = scmp.eq.s32.totalorder %s30, 0
      %p459 = por %p457, %p458
      %p460 = scmp.ne.s32.totalorder %s452, %s454
      %p461 = scmp.eq.s32.totalorder %s35, 1
      %p462 = por %p460, %p461
      %p463 = scmp.ne.s32.totalorder %s454, %s455
      %p464 = scmp.eq.s32.totalorder %s35, 0
      %p465 = por %p463, %p464
      %p466 = scmp.ne.s32.totalorder %s454, %s455
      %p467 = scmp.eq.s32.totalorder %s36, 1
      %p468 = por %p466, %p467
      %p470 = scmp.ne.s32.totalorder %s455, %s469
      %p471 = scmp.eq.s32.totalorder %s36, 0
      %p472 = por %p470, %p471
      %s474 = sadd.s32 %s473, 1
      %p477 = scmp.eq.s32.totalorder %s30, 1
      %p478 = scmp.ne.s32.totalorder %s473, %s475
      %p479 = scmp.eq.s32.totalorder %s30, 0
      %p480 = por %p478, %p479
      %p481 = scmp.ne.s32.totalorder %s473, %s475
      %p482 = scmp.eq.s32.totalorder %s35, 1
      %p483 = por %p481, %p482
      %p484 = scmp.ne.s32.totalorder %s475, %s476
      %p485 = scmp.eq.s32.totalorder %s35, 0
      %p486 = por %p484, %p485
      %p487 = scmp.ne.s32.totalorder %s475, %s476
      %p488 = scmp.eq.s32.totalorder %s36, 1
      %p489 = por %p487, %p488
      %p491 = scmp.ne.s32.totalorder %s476, %s490
      %p492 = scmp.eq.s32.totalorder %s36, 0
      %p493 = por %p491, %p492
      %s494 = ssub.s32 %s30, %s37
      %p495 = scmp.eq.s32.totalorder %s494, 0
      %s497 = sadd.s32 %s496, 1
      %s498 = scalar_select %p495, %s496, %s497
      %p501 = pneg %p495
      %p502 = scmp.eq.s32.totalorder %s30, 1
      %p503 = por %p501, %p502
      %p504 = scmp.ne.s32.totalorder %s496, %s499
      %p505 = scmp.eq.s32.totalorder %s30, 0
      %p506 = por %p504, %p505
      %p507 = scmp.ne.s32.totalorder %s496, %s499
      %p508 = scmp.eq.s32.totalorder %s35, 1
      %p509 = por %p507, %p508
      %p510 = scmp.ne.s32.totalorder %s499, %s500
      %p511 = scmp.eq.s32.totalorder %s35, 0
      %p512 = por %p510, %p511
      %p513 = scmp.ne.s32.totalorder %s499, %s500
      %p514 = scmp.eq.s32.totalorder %s36, 1
      %p515 = por %p513, %p514
      %p517 = scmp.ne.s32.totalorder %s500, %s516
      %p518 = scmp.eq.s32.totalorder %s36, 0
      %p519 = por %p517, %p518
      %s520 = ssub.s32 %s30, %s37
      %p521 = scmp.eq.s32.totalorder %s520, 0
      %s523 = sadd.s32 %s522, 1
      %s524 = scalar_select %p521, %s522, %s523
      %p527 = pneg %p521
      %p528 = scmp.eq.s32.totalorder %s30, 1
      %p529 = por %p527, %p528
      %p530 = scmp.ne.s32.totalorder %s522, %s525
      %p531 = scmp.eq.s32.totalorder %s30, 0
      %p532 = por %p530, %p531
      %p533 = scmp.ne.s32.totalorder %s522, %s525
      %p534 = scmp.eq.s32.totalorder %s35, 1
      %p535 = por %p533, %p534
      %p536 = scmp.ne.s32.totalorder %s525, %s526
      %p537 = scmp.eq.s32.totalorder %s35, 0
      %p538 = por %p536, %p537
      %p539 = scmp.ne.s32.totalorder %s525, %s526
      %p540 = scmp.eq.s32.totalorder %s36, 1
      %p541 = por %p539, %p540
      %p543 = scmp.ne.s32.totalorder %s526, %s542
      %p544 = scmp.eq.s32.totalorder %s36, 0
      %p545 = por %p543, %p544
      %p546 = scmp.le.s32.totalorder 1, %s30
      %p547 = scmp.lt.s32.totalorder %s30, 3
      %p548 = pnand %p546, %p547
      %p549 = pneg %p548
      // Predicated region
      $region9: #{tpu_custom_call.1} parent=5 // pred_check
        _
      $region10: #{tpu_custom_call.1} parent=5 // pred_check_branch
        %551 = sbr.rel (%p548) target = $region12
      $region11: #{tpu_custom_call.1} parent=5 // pred_region
        %s552 = ssub.s32 %s30, 1
        // Predicated region
        $region13: #{tpu_custom_call.1} parent=11 // pred_check
          %p553 = pneg %p77
        $region14: #{tpu_custom_call.1} parent=11 // pred_check_branch
          %555 = sbr.rel (%p553) target = $region16
        $region15: #{tpu_custom_call.1} parent=11 // pred_region
          _
        $region16: #{tpu_custom_call.1} parent=11 // pred_fallthru
          _
        // Predicated region
        $region17: #{tpu_custom_call.1} parent=11 // pred_check
          %p556 = pneg %p150
        $region18: #{tpu_custom_call.1} parent=11 // pred_check_branch
          %558 = sbr.rel (%p556) target = $region20
        $region19: #{tpu_custom_call.1} parent=11 // pred_region
          _
        $region20: #{tpu_custom_call.1} parent=11 // pred_fallthru
          _
        // Predicated region
        $region21: #{tpu_custom_call.1} parent=11 // pred_check
          %p559 = pneg %p171
        $region22: #{tpu_custom_call.1} parent=11 // pred_check_branch
          %561 = sbr.rel (%p559) target = $region24
        $region23: #{tpu_custom_call.1} parent=11 // pred_region
          _
        $region24: #{tpu_custom_call.1} parent=11 // pred_fallthru
          _
        // Predicated region
        $region25: #{tpu_custom_call.1} parent=11 // pred_check
          %p562 = pneg %p192
        $region26: #{tpu_custom_call.1} parent=11 // pred_check_branch
          %564 = sbr.rel (%p562) target = $region28
        $region27: #{tpu_custom_call.1} parent=11 // pred_region
          _
        $region28: #{tpu_custom_call.1} parent=11 // pred_fallthru
          _
        // Predicated region
        $region29: #{tpu_custom_call.1} parent=11 // pred_check
          %p565 = pneg %p213
        $region30: #{tpu_custom_call.1} parent=11 // pred_check_branch
          %567 = sbr.rel (%p565) target = $region32
        $region31: #{tpu_custom_call.1} parent=11 // pred_region
          _
        $region32: #{tpu_custom_call.1} parent=11 // pred_fallthru
          _
        // Predicated region
        $region33: #{tpu_custom_call.1} parent=11 // pred_check
          %p568 = pneg %p234
        $region34: #{tpu_custom_call.1} parent=11 // pred_check_branch
          %570 = sbr.rel (%p568) target = $region36
        $region35: #{tpu_custom_call.1} parent=11 // pred_region
          _
        $region36: #{tpu_custom_call.1} parent=11 // pred_fallthru
          _
        // Predicated region
        $region37: #{tpu_custom_call.1} parent=11 // pred_check
          %p571 = pneg %p255
        $region38: #{tpu_custom_call.1} parent=11 // pred_check_branch
          %573 = sbr.rel (%p571) target = $region40
        $region39: #{tpu_custom_call.1} parent=11 // pred_region
          _
        $region40: #{tpu_custom_call.1} parent=11 // pred_fallthru
          _
        // Predicated region
        $region41: #{tpu_custom_call.1} parent=11 // pred_check
          %p574 = pneg %p276
        $region42: #{tpu_custom_call.1} parent=11 // pred_check_branch
          %576 = sbr.rel (%p574) target = $region44
        $region43: #{tpu_custom_call.1} parent=11 // pred_region
          _
        $region44: #{tpu_custom_call.1} parent=11 // pred_fallthru
          _
        // Predicated region
        $region45: #{tpu_custom_call.1} parent=11 // pred_check
          %p577 = pneg %p297
        $region46: #{tpu_custom_call.1} parent=11 // pred_check_branch
          %579 = sbr.rel (%p577) target = $region48
        $region47: #{tpu_custom_call.1} parent=11 // pred_region
          _
        $region48: #{tpu_custom_call.1} parent=11 // pred_fallthru
          _
        // Predicated region
        $region49: #{tpu_custom_call.1} parent=11 // pred_check
          %p580 = pneg %p318
        $region50: #{tpu_custom_call.1} parent=11 // pred_check_branch
          %582 = sbr.rel (%p580) target = $region52
        $region51: #{tpu_custom_call.1} parent=11 // pred_region
          _
        $region52: #{tpu_custom_call.1} parent=11 // pred_fallthru
          _
        // Predicated region
        $region53: #{tpu_custom_call.1} parent=11 // pred_check
          %p583 = pneg %p339
        $region54: #{tpu_custom_call.1} parent=11 // pred_check_branch
          %585 = sbr.rel (%p583) target = $region56
        $region55: #{tpu_custom_call.1} parent=11 // pred_region
          _
        $region56: #{tpu_custom_call.1} parent=11 // pred_fallthru
          _
        // Predicated region
        $region57: #{tpu_custom_call.1} parent=11 // pred_check
          %p586 = pneg %p360
        $region58: #{tpu_custom_call.1} parent=11 // pred_check_branch
          %588 = sbr.rel (%p586) target = $region60
        $region59: #{tpu_custom_call.1} parent=11 // pred_region
          _
        $region60: #{tpu_custom_call.1} parent=11 // pred_fallthru
          _
        // Predicated region
        $region61: #{tpu_custom_call.1} parent=11 // pred_check
          %p589 = pneg %p381
        $region62: #{tpu_custom_call.1} parent=11 // pred_check_branch
          %591 = sbr.rel (%p589) target = $region64
        $region63: #{tpu_custom_call.1} parent=11 // pred_region
          _
        $region64: #{tpu_custom_call.1} parent=11 // pred_fallthru
          _
        // Predicated region
        $region65: #{tpu_custom_call.1} parent=11 // pred_check
          %p592 = pneg %p402
        $region66: #{tpu_custom_call.1} parent=11 // pred_check_branch
          %594 = sbr.rel (%p592) target = $region68
        $region67: #{tpu_custom_call.1} parent=11 // pred_region
          _
        $region68: #{tpu_custom_call.1} parent=11 // pred_fallthru
          _
        // Predicated region
        $region69: #{tpu_custom_call.1} parent=11 // pred_check
          %p595 = pneg %p423
        $region70: #{tpu_custom_call.1} parent=11 // pred_check_branch
          %597 = sbr.rel (%p595) target = $region72
        $region71: #{tpu_custom_call.1} parent=11 // pred_region
          _
        $region72: #{tpu_custom_call.1} parent=11 // pred_fallthru
          _
        // Predicated region
        $region73: #{tpu_custom_call.1} parent=11 // pred_check
          %p598 = pneg %p444
        $region74: #{tpu_custom_call.1} parent=11 // pred_check_branch
          %600 = sbr.rel (%p598) target = $region76
        $region75: #{tpu_custom_call.1} parent=11 // pred_region
          _
        $region76: #{tpu_custom_call.1} parent=11 // pred_fallthru
          _
        // Predicated region
        $region77: #{tpu_custom_call.1} parent=11 // pred_check
          %p601 = pneg %p465
        $region78: #{tpu_custom_call.1} parent=11 // pred_check_branch
          %603 = sbr.rel (%p601) target = $region80
        $region79: #{tpu_custom_call.1} parent=11 // pred_region
          _
        $region80: #{tpu_custom_call.1} parent=11 // pred_fallthru
          _
        // Predicated region
        $region81: #{tpu_custom_call.1} parent=11 // pred_check
          %p604 = pneg %p486
        $region82: #{tpu_custom_call.1} parent=11 // pred_check_branch
          %606 = sbr.rel (%p604) target = $region84
        $region83: #{tpu_custom_call.1} parent=11 // pred_region
          _
        $region84: #{tpu_custom_call.1} parent=11 // pred_fallthru
          _
      $region12: #{tpu_custom_call.1} parent=5 // pred_fallthru
        _
      %p607 = scmp.lt.s32.totalorder %s30, 2
      // Predicated region
      $region85: #{tpu_custom_call.1} parent=5 // pred_check
        %p608 = pneg %p607
      $region86: #{tpu_custom_call.1} parent=5 // pred_check_branch
        %610 = sbr.rel (%p608) target = $region88
      $region87: #{tpu_custom_call.1} parent=5 // pred_region
        // Predicated region
        $region89: #{tpu_custom_call.1} parent=87 // pred_check
          %p611 = pneg %p50
        $region90: #{tpu_custom_call.1} parent=87 // pred_check_branch
          %613 = sbr.rel (%p611) target = $region92
        $region91: #{tpu_custom_call.1} parent=87 // pred_region
          %s614 = sand.u32 %s40, 1
          %s615 = sand.u32 %s40, 1
          %s616 = smul.addr %s615, 64
          %s617 = scalar_lea.vmem [#allocation3], %s616
          %s618 = smul.u32 2, %s30
          %s619 = smul.addr %s618, 8
          %s620 = scalar_lea.vmem %s0, %s619
          // Predicated region
          $region93: #{tpu_custom_call.1} parent=91 // pred_check
            _
          $region94: #{tpu_custom_call.1} parent=91 // pred_check_branch
            %622 = sbr.rel (0) target = $region96
          $region95: #{tpu_custom_call.1} parent=91 // pred_region
            // Predicated region
            $region97: #{tpu_custom_call.1} parent=95 // pred_check
              _
            $region98: #{tpu_custom_call.1} parent=95 // pred_check_branch
              %624 = sbr.rel (0) target = $region100
            $region99: #{tpu_custom_call.1} parent=95 // pred_region
              // Predicated region
              $region112: #{tpu_custom_call.1} parent=99 // pred_check
                _
              $region113: #{tpu_custom_call.1} parent=99 // pred_check_branch
                %653 = sbr.rel (0) target = $region115
              $region114: #{tpu_custom_call.1} parent=99 // pred_region
                loop: start=0, step=1, limit=1
                $region116: #{tpu_custom_call.1} parent=114 // loop_pre_header
                  _
                $region117: #{tpu_custom_call.1} parent=114 // loop_header
                  %s655 = sphi 0, %s659
                  %p656 = scmp.ge.s32.totalorder %s655, 1
                  %s660 = sphi %s620, %s620
                  %s661 = sphi %s617, %s617
                $region118: #{tpu_custom_call.1} parent=114 // loop_header_branch
                  %658 = sbr.rel (%p656) target = $region122
                $region119: #{tpu_custom_call.1} parent=114 // loop_body
                  %v662 = vld [vmem:[%s660] sm:$0xff]
                  %663 = vst [vmem:[%s661] sm:$0xff] %v662
                  %v664 = vld [vmem:[%s660 + $0x8] sm:$0xff]
                  %665 = vst [vmem:[%s661 + $0x8] sm:$0xff] %v664
                  %v666 = vld [vmem:[%s660 + $0x20] sm:$0xff]
                  %667 = vst [vmem:[%s661 + $0x10] sm:$0xff] %v666
                  %v668 = vld [vmem:[%s660 + $0x28] sm:$0xff]
                  %669 = vst [vmem:[%s661 + $0x18] sm:$0xff] %v668
                  %v670 = vld [vmem:[%s660 + $0x40] sm:$0xff]
                  %671 = vst [vmem:[%s661 + $0x20] sm:$0xff] %v670
                  %v672 = vld [vmem:[%s660 + $0x48] sm:$0xff]
                  %673 = vst [vmem:[%s661 + $0x28] sm:$0xff] %v672
                  %v674 = vld [vmem:[%s660 + $0x60] sm:$0xff]
                  %675 = vst [vmem:[%s661 + $0x30] sm:$0xff] %v674
                  %v676 = vld [vmem:[%s660 + $0x68] sm:$0xff]
                  %677 = vst [vmem:[%s661 + $0x38] sm:$0xff] %v676
                $region120: #{tpu_custom_call.1} parent=114 // loop_footer
                  %s659 = sadd.s32 1, %s655
                $region121: #{tpu_custom_call.1} parent=114 // loop_footer_branch
                  %654 = sbr.rel target = $region117
                $region122: #{tpu_custom_call.1} parent=114 // loop_exit
                  _
              $region115: #{tpu_custom_call.1} parent=99 // pred_fallthru
                _
              // Predicated region
              $region123: #{tpu_custom_call.1} parent=99 // pred_check
                _
              $region124: #{tpu_custom_call.1} parent=99 // pred_check_branch
                %679 = sbr.rel target = $region126
              $region125: #{tpu_custom_call.1} parent=99 // pred_region
                _
              $region126: #{tpu_custom_call.1} parent=99 // pred_fallthru
                _
            $region100: #{tpu_custom_call.1} parent=95 // pred_fallthru
              _
            // Predicated region
            $region101: #{tpu_custom_call.1} parent=95 // pred_check
              _
            $region102: #{tpu_custom_call.1} parent=95 // pred_check_branch
              %626 = sbr.rel target = $region104
            $region103: #{tpu_custom_call.1} parent=95 // pred_region
              loop: start=0, step=1, limit=1
              $region105: #{tpu_custom_call.1} parent=103 // loop_pre_header
                _
              $region106: #{tpu_custom_call.1} parent=103 // loop_header
                %s629 = sphi 0, %s633
                %p630 = scmp.ge.s32.totalorder %s629, 1
                %s634 = sphi %s620, %s620
                %s635 = sphi %s617, %s617
              $region107: #{tpu_custom_call.1} parent=103 // loop_header_branch
                %632 = sbr.rel (%p630) target = $region111
              $region108: #{tpu_custom_call.1} parent=103 // loop_body
                %v636 = vld [vmem:[%s634] sm:$0xff]
                %637 = vst [vmem:[%s635] sm:$0xff] %v636
                %v638 = vld [vmem:[%s634 + $0x8] sm:$0xff]
                %639 = vst [vmem:[%s635 + $0x8] sm:$0xff] %v638
                %v640 = vld [vmem:[%s634 + $0x20] sm:$0xff]
                %641 = vst [vmem:[%s635 + $0x10] sm:$0xff] %v640
                %v642 = vld [vmem:[%s634 + $0x28] sm:$0xff]
                %643 = vst [vmem:[%s635 + $0x18] sm:$0xff] %v642
                %v644 = vld [vmem:[%s634 + $0x40] sm:$0xff]
                %645 = vst [vmem:[%s635 + $0x20] sm:$0xff] %v644
                %v646 = vld [vmem:[%s634 + $0x48] sm:$0xff]
                %647 = vst [vmem:[%s635 + $0x28] sm:$0xff] %v646
                %v648 = vld [vmem:[%s634 + $0x60] sm:$0xff]
                %649 = vst [vmem:[%s635 + $0x30] sm:$0xff] %v648
                %v650 = vld [vmem:[%s634 + $0x68] sm:$0xff]
                %651 = vst [vmem:[%s635 + $0x38] sm:$0xff] %v650
              $region109: #{tpu_custom_call.1} parent=103 // loop_footer
                %s633 = sadd.s32 1, %s629
              $region110: #{tpu_custom_call.1} parent=103 // loop_footer_branch
                %628 = sbr.rel target = $region106
              $region111: #{tpu_custom_call.1} parent=103 // loop_exit
                _
            $region104: #{tpu_custom_call.1} parent=95 // pred_fallthru
              _
          $region96: #{tpu_custom_call.1} parent=91 // pred_fallthru
            _
          %680 = vnop
        $region92: #{tpu_custom_call.1} parent=87 // pred_fallthru
          _
        // Predicated region
        $region127: #{tpu_custom_call.1} parent=87 // pred_check
          %p681 = pneg %p97
        $region128: #{tpu_custom_call.1} parent=87 // pred_check_branch
          %683 = sbr.rel (%p681) target = $region130
        $region129: #{tpu_custom_call.1} parent=87 // pred_region
          %s684 = sand.u32 %s87, 1
          %s685 = sand.u32 %s87, 1
          %s686 = smul.addr %s685, 32
          %s687 = scalar_lea.vmem [#allocation4], %s686
          %s688 = smul.u32 2, %s30
          %s689 = smul.addr %s688, 4
          %s690 = scalar_lea.vmem %s2, %s689
          // Predicated region
          $region131: #{tpu_custom_call.1} parent=129 // pred_check
            _
          $region132: #{tpu_custom_call.1} parent=129 // pred_check_branch
            %692 = sbr.rel (0) target = $region134
          $region133: #{tpu_custom_call.1} parent=129 // pred_region
            // Predicated region
            $region135: #{tpu_custom_call.1} parent=133 // pred_check
              _
            $region136: #{tpu_custom_call.1} parent=133 // pred_check_branch
              %694 = sbr.rel target = $region138
            $region137: #{tpu_custom_call.1} parent=133 // pred_region
              // Predicated region
              $region150: #{tpu_custom_call.1} parent=137 // pred_check
                _
              $region151: #{tpu_custom_call.1} parent=137 // pred_check_branch
                %723 = sbr.rel (0) target = $region153
              $region152: #{tpu_custom_call.1} parent=137 // pred_region
                loop: start=0, step=1, limit=1
                $region154: #{tpu_custom_call.1} parent=152 // loop_pre_header
                  _
                $region155: #{tpu_custom_call.1} parent=152 // loop_header
                  %s725 = sphi 0, %s729
                  %p726 = scmp.ge.s32.totalorder %s725, 1
                  %s730 = sphi %s690, %s690
                  %s731 = sphi %s687, %s687
                $region156: #{tpu_custom_call.1} parent=152 // loop_header_branch
                  %728 = sbr.rel (%p726) target = $region160
                $region157: #{tpu_custom_call.1} parent=152 // loop_body
                  _
                $region158: #{tpu_custom_call.1} parent=152 // loop_footer
                  %s729 = sadd.s32 1, %s725
                $region159: #{tpu_custom_call.1} parent=152 // loop_footer_branch
                  %724 = sbr.rel target = $region155
                $region160: #{tpu_custom_call.1} parent=152 // loop_exit
                  _
                loop: start=0, step=1, limit=1
                $region161: #{tpu_custom_call.1} parent=152 // loop_pre_header
                  _
                $region162: #{tpu_custom_call.1} parent=152 // loop_header
                  %s734 = sphi 0, %s738
                  %p735 = scmp.ge.s32.totalorder %s734, 1
                  %s739 = sphi %s690, %s690
                  %s740 = sphi %s687, %s687
                $region163: #{tpu_custom_call.1} parent=152 // loop_header_branch
                  %737 = sbr.rel (%p735) target = $region167
                $region164: #{tpu_custom_call.1} parent=152 // loop_body
                  %v741 = vld [vmem:[%s739] sm:$0xf]
                  %742 = vst [vmem:[%s740] sm:$0xf] %v741
                  %v743 = vld [vmem:[%s739 + $0x4] sm:$0xf]
                  %744 = vst [vmem:[%s740 + $0x4] sm:$0xf] %v743
                  %v745 = vld [vmem:[%s739 + $0x10] sm:$0xf]
                  %746 = vst [vmem:[%s740 + $0x8] sm:$0xf] %v745
                  %v747 = vld [vmem:[%s739 + $0x14] sm:$0xf]
                  %748 = vst [vmem:[%s740 + $0xc] sm:$0xf] %v747
                  %v749 = vld [vmem:[%s739 + $0x20] sm:$0xf]
                  %750 = vst [vmem:[%s740 + $0x10] sm:$0xf] %v749
                  %v751 = vld [vmem:[%s739 + $0x24] sm:$0xf]
                  %752 = vst [vmem:[%s740 + $0x14] sm:$0xf] %v751
                  %v753 = vld [vmem:[%s739 + $0x30] sm:$0xf]
                  %754 = vst [vmem:[%s740 + $0x18] sm:$0xf] %v753
                  %v755 = vld [vmem:[%s739 + $0x34] sm:$0xf]
                  %756 = vst [vmem:[%s740 + $0x1c] sm:$0xf] %v755
                $region165: #{tpu_custom_call.1} parent=152 // loop_footer
                  %s738 = sadd.s32 1, %s734
                $region166: #{tpu_custom_call.1} parent=152 // loop_footer_branch
                  %733 = sbr.rel target = $region162
                $region167: #{tpu_custom_call.1} parent=152 // loop_exit
                  _
              $region153: #{tpu_custom_call.1} parent=137 // pred_fallthru
                _
            $region138: #{tpu_custom_call.1} parent=133 // pred_fallthru
              _
            // Predicated region
            $region139: #{tpu_custom_call.1} parent=133 // pred_check
              _
            $region140: #{tpu_custom_call.1} parent=133 // pred_check_branch
              %696 = sbr.rel (0) target = $region142
            $region141: #{tpu_custom_call.1} parent=133 // pred_region
              loop: start=0, step=1, limit=1
              $region143: #{tpu_custom_call.1} parent=141 // loop_pre_header
                _
              $region144: #{tpu_custom_call.1} parent=141 // loop_header
                %s699 = sphi 0, %s703
                %p700 = scmp.ge.s32.totalorder %s699, 1
                %s704 = sphi %s690, %s690
                %s705 = sphi %s687, %s687
              $region145: #{tpu_custom_call.1} parent=141 // loop_header_branch
                %702 = sbr.rel (%p700) target = $region149
              $region146: #{tpu_custom_call.1} parent=141 // loop_body
                %v706 = vld [vmem:[%s704] sm:$0xf]
                %707 = vst [vmem:[%s705] sm:$0xf] %v706
                %v708 = vld [vmem:[%s704 + $0x4] sm:$0xf]
                %709 = vst [vmem:[%s705 + $0x4] sm:$0xf] %v708
                %v710 = vld [vmem:[%s704 + $0x10] sm:$0xf]
                %711 = vst [vmem:[%s705 + $0x8] sm:$0xf] %v710
                %v712 = vld [vmem:[%s704 + $0x14] sm:$0xf]
                %713 = vst [vmem:[%s705 + $0xc] sm:$0xf] %v712
                %v714 = vld [vmem:[%s704 + $0x20] sm:$0xf]
                %715 = vst [vmem:[%s705 + $0x10] sm:$0xf] %v714
                %v716 = vld [vmem:[%s704 + $0x24] sm:$0xf]
                %717 = vst [vmem:[%s705 + $0x14] sm:$0xf] %v716
                %v718 = vld [vmem:[%s704 + $0x30] sm:$0xf]
                %719 = vst [vmem:[%s705 + $0x18] sm:$0xf] %v718
                %v720 = vld [vmem:[%s704 + $0x34] sm:$0xf]
                %721 = vst [vmem:[%s705 + $0x1c] sm:$0xf] %v720
              $region147: #{tpu_custom_call.1} parent=141 // loop_footer
                %s703 = sadd.s32 1, %s699
              $region148: #{tpu_custom_call.1} parent=141 // loop_footer_branch
                %698 = sbr.rel target = $region144
              $region149: #{tpu_custom_call.1} parent=141 // loop_exit
                _
            $region142: #{tpu_custom_call.1} parent=133 // pred_fallthru
              _
          $region134: #{tpu_custom_call.1} parent=129 // pred_fallthru
            _
          %757 = vnop
        $region130: #{tpu_custom_call.1} parent=87 // pred_fallthru
          _
        // Predicated region
        $region168: #{tpu_custom_call.1} parent=87 // pred_check
          %p758 = pneg %p123
        $region169: #{tpu_custom_call.1} parent=87 // pred_check_branch
          %760 = sbr.rel (%p758) target = $region171
        $region170: #{tpu_custom_call.1} parent=87 // pred_region
          %s761 = smul.u32 2, %s30
          %p762 = scmp.lt.s32.totalorder %s761, 3
          %s763 = scalar_select %p762, %s761, 3
          %s764 = smul.addr %s763, 4
          %s765 = scalar_lea.vmem %s3, %s764
          %s766 = smul.u32 2, %s30
        $region171: #{tpu_custom_call.1} parent=87 // pred_fallthru
          _
      $region88: #{tpu_custom_call.1} parent=5 // pred_fallthru
        _
      %p767 = scmp.le.s32.totalorder 1, %s30
      %p768 = scmp.lt.s32.totalorder %s30, 3
      %p769 = pnand %p767, %p768
      %p770 = pneg %p769
      // Predicated region
      $region172: #{tpu_custom_call.1} parent=5 // pred_check
        _
      $region173: #{tpu_custom_call.1} parent=5 // pred_check_branch
        %772 = sbr.rel (%p769) target = $region175
      $region174: #{tpu_custom_call.1} parent=5 // pred_region
        %s773 = ssub.s32 %s30, 1
        %s774 = sand.u32 %s43, 1
        %s775 = sand.u32 %s43, 1
        %s776 = smul.addr %s775, 64
        %s777 = scalar_lea.vmem [#allocation3], %s776
        // Predicated region
        $region176: #{tpu_custom_call.1} parent=174 // pred_check
          %p778 = pneg %p56
        $region177: #{tpu_custom_call.1} parent=174 // pred_check_branch
          %780 = sbr.rel (%p778) target = $region179
        $region178: #{tpu_custom_call.1} parent=174 // pred_region
          _
        $region179: #{tpu_custom_call.1} parent=174 // pred_fallthru
          _
        %s781 = sand.u32 %s90, 1
        %s782 = sand.u32 %s90, 1
        %s783 = smul.addr %s782, 32
        %s784 = scalar_lea.vmem [#allocation4], %s783
        // Predicated region
        $region180: #{tpu_custom_call.1} parent=174 // pred_check
          %p785 = pneg %p103
        $region181: #{tpu_custom_call.1} parent=174 // pred_check_branch
          %787 = sbr.rel (%p785) target = $region183
        $region182: #{tpu_custom_call.1} parent=174 // pred_region
          _
        $region183: #{tpu_custom_call.1} parent=174 // pred_fallthru
          _
        %s788 = sand.u32 %s43, 1
        %s789 = sand.u32 %s43, 1
        %s790 = smul.addr %s789, 64
        %s791 = scalar_lea.vmem [#allocation3], %s790
        %p792 = pneg %p56
        %p793 = pneg %p53
        %p794 = pneg %p77
        %p795 = pneg %p74
        %s796 = sand.u32 %s90, 1
        %s797 = sand.u32 %s90, 1
        %s798 = smul.addr %s797, 32
        %s799 = scalar_lea.vmem [#allocation4], %s798
        %p800 = pneg %p103
        %p801 = pneg %p100
        %s802 = smul.u32 2, %s35
        %p803 = scmp.lt.s32.totalorder %s802, 3
        %s804 = scalar_select %p803, %s802, 3
        %s805 = smul.addr %s804, 4
        %s806 = scalar_lea.vmem %s3, %s805
        %p807 = pneg %p129
        %p808 = pneg %p126
        %p809 = pneg %p150
        %p810 = pneg %p147
        %p811 = pneg %p171
        %p812 = pneg %p168
        %p813 = pneg %p192
        %p814 = pneg %p189
        %p815 = pneg %p213
        %p816 = pneg %p210
        %p817 = pneg %p234
        %p818 = pneg %p231
        %p819 = pneg %p255
        %p820 = pneg %p252
        %p821 = pneg %p276
        %p822 = pneg %p273
        %p823 = pneg %p297
        %p824 = pneg %p294
        %p825 = pneg %p318
        %p826 = pneg %p315
        %p827 = pneg %p339
        %p828 = pneg %p336
        %p829 = pneg %p360
        %p830 = pneg %p357
        %p831 = pneg %p381
        %p832 = pneg %p378
        %p833 = pneg %p402
        %p834 = pneg %p399
        %p835 = pneg %p423
        %p836 = pneg %p420
        %p837 = pneg %p444
        %p838 = pneg %p441
        %p839 = pneg %p465
        %p840 = pneg %p462
        %p841 = pneg %p486
        %p842 = pneg %p483
        %p843 = pneg %p512
        %p844 = pneg %p509
        %s845 = sand.u32 %s499, 1
        %s846 = sand.u32 %s499, 1
        %s847 = smul.addr %s846, 64
        %s848 = scalar_lea.vmem [#allocation5], %s847
        %p849 = pneg %p538
        %p850 = pneg %p535
        %s851 = sand.u32 %s525, 1
        %s852 = sand.u32 %s525, 1
        %s853 = smul.addr %s852, 32
        %s854 = scalar_lea.vmem [#allocation6], %s853
        %s855 = smul.u32 2, %s35
        %s856 = smul.u32 2, %s35
        %s857 = smul.u32 2, %s35
        %p858 = scmp.lt.s32.totalorder %s857, 3
        %s859 = scalar_select %p858, %s857, 3
        %s860 = smul.addr %s859, 4
        %s861 = scalar_lea.vmem %s3, %s860
        %s862 = smul.u32 2, %s35
        %s863 = smul.u32 2, %s35
        %s864 = smul.u32 2, %s35
        %s866 = sld [smem:[#allocation2]]
        %v867 = vld [vmem:[%s861] sm:$0xf]
        %v868 = vld [vmem:[%s861 + $0x4] sm:$0xf]
        %v869 = vld [vmem:[%s5] sm:$0x1]
        %v870 = vld [vmem:[%s6] sm:$0x1]
        %v871 = vld [vmem:[%s7] sm:$0xf]
        %v872 = vld [vmem:[%s8] sm:$0x1]
        %v873 = vld [vmem:[%s9] sm:$0xff]
        %v874 = vld [vmem:[%s9 + $0x8] sm:$0xff]
        %v875 = vld [vmem:[%s10] sm:$0x3]
        %s876 = sadd.f32 %s866, 1.0
        %v877 = vld [vmem:[%s784] sm:$0xf]
        %v878 = vld [vmem:[%s784 + $0x4] sm:$0xf]
        %v879 = vunpack.c.l.bf16 %v877
        %v880 = vunpack.c.l.bf16 %v878
        %v881 = vstv %s876
        %v882 = vmul.f32 %v881, %v879
        %v883 = vmul.f32 %v881, %v880
        %v884 = vld [vmem:[%s1] sm:$0xf]
        %v885 = vld [vmem:[%s1 + $0x4] sm:$0xf]
        %v886 = vld [vmem:[%s1 + $0x8] sm:$0xf]
        %v887 = vld [vmem:[%s1 + $0xc] sm:$0xf]
        %v890 = vunpack.c.l.b16 %v867
        %v891 = vunpack.c.l.b16 %v868
        %v892 = vpack.c.b16 %v891, %v890
        %v897 = vunpack.c.l.b16 %v884
        %v898 = vunpack.c.l.b16 %v885
        %v899 = vunpack.c.l.b16 %v886
        %v900 = vunpack.c.l.b16 %v887
        %v901 = vpack.c.b16 %v898, %v897
        %v902 = vpack.c.b16 %v900, %v899
        %vm905 = vcmask 261120
        %v907 = vsel %vm905, %v892, 0
        %909 = vmatprep.subr.bf16.mxu0 0
        %910 = vmatpush1.bf16.msra.mxu0 %v901
        %911 = vmatprep.subr.bf16.mxu0 0
        %912 = vmatpush1.bf16.msra.mxu0 %v902
        %913 = vmatprep.subr.bf16.mxu0 0
        %914 = vmatpush1.bf16.msra.mxu0 0
        %915 = vmatprep.subr.bf16.mxu0 0
        %916 = vmatpush1.bf16.msra.mxu0 0
        %917 = vmatprep.subr.bf16.mxu0 0
        %918 = vmatpush1.bf16.msra.mxu0 0
        %919 = vmatprep.subr.bf16.mxu0 0
        %920 = vmatpush1.bf16.msra.mxu0 0
        %921 = vmatprep.subr.bf16.mxu0 0
        %922 = vmatpush1.bf16.msra.mxu0 0
        %923 = vmatprep.subr.bf16.mxu0 0
        %924 = vmatpush1.bf16.msra.mxu0 0
        %925 = vmatprep.subr.bf16.mxu0 0
        %926 = vmatpush1.bf16.msra.mxu0 0
        %927 = vmatprep.subr.bf16.mxu0 0
        %928 = vmatpush1.bf16.msra.mxu0 0
        %929 = vmatprep.subr.bf16.mxu0 0
        %930 = vmatpush1.bf16.msra.mxu0 0
        %931 = vmatprep.subr.bf16.mxu0 0
        %932 = vmatpush1.bf16.msra.mxu0 0
        %933 = vmatprep.subr.bf16.mxu0 0
        %934 = vmatpush1.bf16.msra.mxu0 0
        %935 = vmatprep.subr.bf16.mxu0 0
        %936 = vmatpush1.bf16.msra.mxu0 0
        %937 = vmatprep.subr.bf16.mxu0 0
        %938 = vmatpush1.bf16.msra.mxu0 0
        %939 = vmatprep.subr.bf16.mxu0 0
        %940 = vmatpush1.bf16.msra.mxu0 0
        %941 = vmatprep.mubr.bf16.mxu0 0
        %942 = vmatmul.mubr.bf16.gmra.mrb[0].mxu0 %v907
        %v943 = vpop.f32.mrb[0].mxu0
        %v944 = vadd.f32 0.0, %v943
        %v945 = vpop.f32.mrb[0].mxu0
        %v946 = vpop.f32.mrb[0].mxu0
        %v947 = vadd.f32 0.0, %v946
        %v948 = vpop.f32.mrb[0].mxu0
        %949 = vdwg.mxu0
        %v950 = vadd.f32 %v882, %v944
        %v951 = vadd.f32 %v883, %v947
        %vm952 = vcmask 64512
        %v953 = vsel %vm952, %v950, 0.0
        %954 = vadd.xlane.f32.xlu0 %v953
        %v955 = vpop.xlane.xlu0 %954
        %v956 = vsel %vm952, %v951, 0.0
        %957 = vadd.xlane.f32.xlu0 %v956
        %v958 = vpop.xlane.xlu0 %957
        %v959 = vrcp.pop 8.0
        %v960 = vmul.f32 %v955, %v959
        %v961 = vmul.f32 %v958, %v959
        %v962 = vsub.f32 %v950, %v960
        %v963 = vsub.f32 %v951, %v961
        %v964 = vmul.f32 %v962, %v962
        %v965 = vmul.f32 %v963, %v963
        %v966 = vsel %vm952, %v964, 0.0
        %967 = vadd.xlane.f32.xlu0 %v966
        %v968 = vpop.xlane.xlu0 %967
        %v969 = vsel %vm952, %v965, 0.0
        %970 = vadd.xlane.f32.xlu0 %v969
        %v971 = vpop.xlane.xlu0 %970
        %v972 = vmul.f32 %v968, %v959
        %v973 = vmul.f32 %v971, %v959
        %v974 = vadd.f32 %v972, 1e-05
        %v975 = vadd.f32 %v973, 1e-05
        %v976 = vrsqrt.pop %v974
        %v977 = vrsqrt.pop %v975
        %v978 = vmul.f32 %v962, %v976
        %v979 = vmul.f32 %v963, %v977
        %v981 = vlaneseq
        %v982 = vshrl.u32 %v981, 7
        %v983 = vsub.s32 0, %v982
        %v984 = vrot.slane %v869, %v983
        %v986 = vmul.f32 %v978, %v984
        %v987 = vmul.f32 %v979, %v984
        %v989 = vlaneseq
        %v990 = vshrl.u32 %v989, 7
        %v991 = vsub.s32 0, %v990
        %v992 = vrot.slane %v870, %v991
        %v994 = vadd.f32 %v986, %v992
        %v995 = vadd.f32 %v987, %v992
        %v996 = vpack.c.bf16 %v995, %v994
        %v998 = vlaneseq
        %v999 = vshrl.u32 %v998, 7
        %v1000 = vsub.s32 0, %v999
        %v1001 = vrot.slane %v872, %v1000
        %v1004 = vsel %vm952, %v996, 0
        %vm1006 = vcmask 1043456
        %v1008 = vsel %vm1006, %v871, 0
        %1010 = vmatprep.subr.bf16.mxu0 0
        %1011 = vmatpush1.bf16.msra.mxu0 %v1008
        %1012 = vmatprep.subr.bf16.mxu0 0
        %1013 = vmatpush1.bf16.msra.mxu0 0
        %1014 = vmatprep.subr.bf16.mxu0 0
        %1015 = vmatpush1.bf16.msra.mxu0 0
        %1016 = vmatprep.subr.bf16.mxu0 0
        %1017 = vmatpush1.bf16.msra.mxu0 0
        %1018 = vmatprep.subr.bf16.mxu0 0
        %1019 = vmatpush1.bf16.msra.mxu0 0
        %1020 = vmatprep.subr.bf16.mxu0 0
        %1021 = vmatpush1.bf16.msra.mxu0 0
        %1022 = vmatprep.subr.bf16.mxu0 0
        %1023 = vmatpush1.bf16.msra.mxu0 0
        %1024 = vmatprep.subr.bf16.mxu0 0
        %1025 = vmatpush1.bf16.msra.mxu0 0
        %1026 = vmatprep.subr.bf16.mxu0 0
        %1027 = vmatpush1.bf16.msra.mxu0 0
        %1028 = vmatprep.subr.bf16.mxu0 0
        %1029 = vmatpush1.bf16.msra.mxu0 0
        %1030 = vmatprep.subr.bf16.mxu0 0
        %1031 = vmatpush1.bf16.msra.mxu0 0
        %1032 = vmatprep.subr.bf16.mxu0 0
        %1033 = vmatpush1.bf16.msra.mxu0 0
        %1034 = vmatprep.subr.bf16.mxu0 0
        %1035 = vmatpush1.bf16.msra.mxu0 0
        %1036 = vmatprep.subr.bf16.mxu0 0
        %1037 = vmatpush1.bf16.msra.mxu0 0
        %1038 = vmatprep.subr.bf16.mxu0 0
        %1039 = vmatpush1.bf16.msra.mxu0 0
        %1040 = vmatprep.subr.bf16.mxu0 0
        %1041 = vmatpush1.bf16.msra.mxu0 0
        %1042 = vmatprep.mubr.bf16.mxu0 0
        %1043 = vmatmul.mubr.bf16.gmra.mrb[0].mxu0 %v1004
        %v1044 = vpop.f32.mrb[0].mxu0
        %v1045 = vadd.f32 %v1001, %v1044
        %v1046 = vpop.f32.mrb[0].mxu0
        %v1047 = vpop.f32.mrb[0].mxu0
        %v1048 = vadd.f32 %v1001, %v1047
        %v1049 = vpop.f32.mrb[0].mxu0
        %1050 = vdwg.mxu0
        %s1051 = scalar_lea.vmem %s784, 8 [#allocation4]
        %v1052 = vld [vmem:[%s1051] sm:$0xf]
        %v1053 = vld [vmem:[%s1051 + $0x4] sm:$0xf]
        %v1054 = vunpack.c.l.bf16 %v1052
        %v1055 = vunpack.c.l.bf16 %v1053
        %v1056 = vmul.f32 %v881, %v1054
        %v1057 = vmul.f32 %v881, %v1055
        %s1058 = scalar_lea.vmem %s1, 16
        %v1059 = vld [vmem:[%s1058] sm:$0xf]
        %v1060 = vld [vmem:[%s1058 + $0x4] sm:$0xf]
        %v1061 = vld [vmem:[%s1058 + $0x8] sm:$0xf]
        %v1062 = vld [vmem:[%s1058 + $0xc] sm:$0xf]
        %v1067 = vunpack.c.l.b16 %v1059
        %v1068 = vunpack.c.l.b16 %v1060
        %v1069 = vunpack.c.l.b16 %v1061
        %v1070 = vunpack.c.l.b16 %v1062
        %v1071 = vpack.c.b16 %v1068, %v1067
        %v1072 = vpack.c.b16 %v1070, %v1069
        %1075 = vmatprep.subr.bf16.mxu0 0
        %1076 = vmatpush1.bf16.msra.mxu0 %v1071
        %1077 = vmatprep.subr.bf16.mxu0 0
        %1078 = vmatpush1.bf16.msra.mxu0 %v1072
        %1079 = vmatprep.subr.bf16.mxu0 0
        %1080 = vmatpush1.bf16.msra.mxu0 0
        %1081 = vmatprep.subr.bf16.mxu0 0
        %1082 = vmatpush1.bf16.msra.mxu0 0
        %1083 = vmatprep.subr.bf16.mxu0 0
        %1084 = vmatpush1.bf16.msra.mxu0 0
        %1085 = vmatprep.subr.bf16.mxu0 0
        %1086 = vmatpush1.bf16.msra.mxu0 0
        %1087 = vmatprep.subr.bf16.mxu0 0
        %1088 = vmatpush1.bf16.msra.mxu0 0
        %1089 = vmatprep.subr.bf16.mxu0 0
        %1090 = vmatpush1.bf16.msra.mxu0 0
        %1091 = vmatprep.subr.bf16.mxu0 0
        %1092 = vmatpush1.bf16.msra.mxu0 0
        %1093 = vmatprep.subr.bf16.mxu0 0
        %1094 = vmatpush1.bf16.msra.mxu0 0
        %1095 = vmatprep.subr.bf16.mxu0 0
        %1096 = vmatpush1.bf16.msra.mxu0 0
        %1097 = vmatprep.subr.bf16.mxu0 0
        %1098 = vmatpush1.bf16.msra.mxu0 0
        %1099 = vmatprep.subr.bf16.mxu0 0
        %1100 = vmatpush1.bf16.msra.mxu0 0
        %1101 = vmatprep.subr.bf16.mxu0 0
        %1102 = vmatpush1.bf16.msra.mxu0 0
        %1103 = vmatprep.subr.bf16.mxu0 0
        %1104 = vmatpush1.bf16.msra.mxu0 0
        %1105 = vmatprep.subr.bf16.mxu0 0
        %1106 = vmatpush1.bf16.msra.mxu0 0
        %1107 = vmatprep.mubr.bf16.mxu0 0
        %1108 = vmatmul.mubr.bf16.gmra.mrb[0].mxu0 %v907
        %v1109 = vpop.f32.mrb[0].mxu0
        %v1110 = vadd.f32 0.0, %v1109
        %v1111 = vpop.f32.mrb[0].mxu0
        %v1112 = vpop.f32.mrb[0].mxu0
        %v1113 = vadd.f32 0.0, %v1112
        %v1114 = vpop.f32.mrb[0].mxu0
        %1115 = vdwg.mxu0
        %v1116 = vadd.f32 %v1056, %v1110
        %v1117 = vadd.f32 %v1057, %v1113
        %v1118 = vsel %vm952, %v1116, 0.0
        %1119 = vadd.xlane.f32.xlu0 %v1118
        %v1120 = vpop.xlane.xlu0 %1119
        %v1121 = vsel %vm952, %v1117, 0.0
        %1122 = vadd.xlane.f32.xlu0 %v1121
        %v1123 = vpop.xlane.xlu0 %1122
        %v1124 = vmul.f32 %v1120, %v959
        %v1125 = vmul.f32 %v1123, %v959
        %v1126 = vsub.f32 %v1116, %v1124
        %v1127 = vsub.f32 %v1117, %v1125
        %v1128 = vmul.f32 %v1126, %v1126
        %v1129 = vmul.f32 %v1127, %v1127
        %v1130 = vsel %vm952, %v1128, 0.0
        %1131 = vadd.xlane.f32.xlu0 %v1130
        %v1132 = vpop.xlane.xlu0 %1131
        %v1133 = vsel %vm952, %v1129, 0.0
        %1134 = vadd.xlane.f32.xlu0 %v1133
        %v1135 = vpop.xlane.xlu0 %1134
        %v1136 = vmul.f32 %v1132, %v959
        %v1137 = vmul.f32 %v1135, %v959
        %v1138 = vadd.f32 %v1136, 1e-05
        %v1139 = vadd.f32 %v1137, 1e-05
        %v1140 = vrsqrt.pop %v1138
        %v1141 = vrsqrt.pop %v1139
        %v1142 = vmul.f32 %v1126, %v1140
        %v1143 = vmul.f32 %v1127, %v1141
        %v1144 = vmul.f32 %v1142, %v984
        %v1145 = vmul.f32 %v1143, %v984
        %v1146 = vadd.f32 %v1144, %v992
        %v1147 = vadd.f32 %v1145, %v992
        %v1148 = vpack.c.bf16 %v1147, %v1146
        %v1150 = vsel %vm952, %v1148, 0
        %1152 = vmatprep.subr.bf16.mxu0 0
        %1153 = vmatpush1.bf16.msra.mxu0 %v1008
        %1154 = vmatprep.subr.bf16.mxu0 0
        %1155 = vmatpush1.bf16.msra.mxu0 0
        %1156 = vmatprep.subr.bf16.mxu0 0
        %1157 = vmatpush1.bf16.msra.mxu0 0
        %1158 = vmatprep.subr.bf16.mxu0 0
        %1159 = vmatpush1.bf16.msra.mxu0 0
        %1160 = vmatprep.subr.bf16.mxu0 0
        %1161 = vmatpush1.bf16.msra.mxu0 0
        %1162 = vmatprep.subr.bf16.mxu0 0
        %1163 = vmatpush1.bf16.msra.mxu0 0
        %1164 = vmatprep.subr.bf16.mxu0 0
        %1165 = vmatpush1.bf16.msra.mxu0 0
        %1166 = vmatprep.subr.bf16.mxu0 0
        %1167 = vmatpush1.bf16.msra.mxu0 0
        %1168 = vmatprep.subr.bf16.mxu0 0
        %1169 = vmatpush1.bf16.msra.mxu0 0
        %1170 = vmatprep.subr.bf16.mxu0 0
        %1171 = vmatpush1.bf16.msra.mxu0 0
        %1172 = vmatprep.subr.bf16.mxu0 0
        %1173 = vmatpush1.bf16.msra.mxu0 0
        %1174 = vmatprep.subr.bf16.mxu0 0
        %1175 = vmatpush1.bf16.msra.mxu0 0
        %1176 = vmatprep.subr.bf16.mxu0 0
        %1177 = vmatpush1.bf16.msra.mxu0 0
        %1178 = vmatprep.subr.bf16.mxu0 0
        %1179 = vmatpush1.bf16.msra.mxu0 0
        %1180 = vmatprep.subr.bf16.mxu0 0
        %1181 = vmatpush1.bf16.msra.mxu0 0
        %1182 = vmatprep.subr.bf16.mxu0 0
        %1183 = vmatpush1.bf16.msra.mxu0 0
        %1184 = vmatprep.mubr.bf16.mxu0 0
        %1185 = vmatmul.mubr.bf16.gmra.mrb[0].mxu0 %v1150
        %v1186 = vpop.f32.mrb[0].mxu0
        %v1187 = vadd.f32 %v1001, %v1186
        %v1188 = vpop.f32.mrb[0].mxu0
        %v1189 = vpop.f32.mrb[0].mxu0
        %v1190 = vadd.f32 %v1001, %v1189
        %v1191 = vpop.f32.mrb[0].mxu0
        %1192 = vdwg.mxu0
        %s1193 = scalar_lea.vmem %s784, 16 [#allocation4]
        %v1194 = vld [vmem:[%s1193] sm:$0xf]
        %v1195 = vld [vmem:[%s1193 + $0x4] sm:$0xf]
        %v1196 = vunpack.c.l.bf16 %v1194
        %v1197 = vunpack.c.l.bf16 %v1195
        %v1198 = vmul.f32 %v881, %v1196
        %v1199 = vmul.f32 %v881, %v1197
        %s1200 = scalar_lea.vmem %s1, 32
        %v1201 = vld [vmem:[%s1200] sm:$0xf]
        %v1202 = vld [vmem:[%s1200 + $0x4] sm:$0xf]
        %v1203 = vld [vmem:[%s1200 + $0x8] sm:$0xf]
        %v1204 = vld [vmem:[%s1200 + $0xc] sm:$0xf]
        %v1209 = vunpack.c.l.b16 %v1201
        %v1210 = vunpack.c.l.b16 %v1202
        %v1211 = vunpack.c.l.b16 %v1203
        %v1212 = vunpack.c.l.b16 %v1204
        %v1213 = vpack.c.b16 %v1210, %v1209
        %v1214 = vpack.c.b16 %v1212, %v1211
        %1217 = vmatprep.subr.bf16.mxu0 0
        %1218 = vmatpush1.bf16.msra.mxu0 %v1213
        %1219 = vmatprep.subr.bf16.mxu0 0
        %1220 = vmatpush1.bf16.msra.mxu0 %v1214
        %1221 = vmatprep.subr.bf16.mxu0 0
        %1222 = vmatpush1.bf16.msra.mxu0 0
        %1223 = vmatprep.subr.bf16.mxu0 0
        %1224 = vmatpush1.bf16.msra.mxu0 0
        %1225 = vmatprep.subr.bf16.mxu0 0
        %1226 = vmatpush1.bf16.msra.mxu0 0
        %1227 = vmatprep.subr.bf16.mxu0 0
        %1228 = vmatpush1.bf16.msra.mxu0 0
        %1229 = vmatprep.subr.bf16.mxu0 0
        %1230 = vmatpush1.bf16.msra.mxu0 0
        %1231 = vmatprep.subr.bf16.mxu0 0
        %1232 = vmatpush1.bf16.msra.mxu0 0
        %1233 = vmatprep.subr.bf16.mxu0 0
        %1234 = vmatpush1.bf16.msra.mxu0 0
        %1235 = vmatprep.subr.bf16.mxu0 0
        %1236 = vmatpush1.bf16.msra.mxu0 0
        %1237 = vmatprep.subr.bf16.mxu0 0
        %1238 = vmatpush1.bf16.msra.mxu0 0
        %1239 = vmatprep.subr.bf16.mxu0 0
        %1240 = vmatpush1.bf16.msra.mxu0 0
        %1241 = vmatprep.subr.bf16.mxu0 0
        %1242 = vmatpush1.bf16.msra.mxu0 0
        %1243 = vmatprep.subr.bf16.mxu0 0
        %1244 = vmatpush1.bf16.msra.mxu0 0
        %1245 = vmatprep.subr.bf16.mxu0 0
        %1246 = vmatpush1.bf16.msra.mxu0 0
        %1247 = vmatprep.subr.bf16.mxu0 0
        %1248 = vmatpush1.bf16.msra.mxu0 0
        %1249 = vmatprep.mubr.bf16.mxu0 0
        %1250 = vmatmul.mubr.bf16.gmra.mrb[0].mxu0 %v907
        %v1251 = vpop.f32.mrb[0].mxu0
        %v1252 = vadd.f32 0.0, %v1251
        %v1253 = vpop.f32.mrb[0].mxu0
        %v1254 = vpop.f32.mrb[0].mxu0
        %v1255 = vadd.f32 0.0, %v1254
        %v1256 = vpop.f32.mrb[0].mxu0
        %1257 = vdwg.mxu0
        %v1258 = vadd.f32 %v1198, %v1252
        %v1259 = vadd.f32 %v1199, %v1255
        %v1260 = vsel %vm952, %v1258, 0.0
        %1261 = vadd.xlane.f32.xlu0 %v1260
        %v1262 = vpop.xlane.xlu0 %1261
        %v1263 = vsel %vm952, %v1259, 0.0
        %1264 = vadd.xlane.f32.xlu0 %v1263
        %v1265 = vpop.xlane.xlu0 %1264
        %v1266 = vmul.f32 %v1262, %v959
        %v1267 = vmul.f32 %v1265, %v959
        %v1268 = vsub.f32 %v1258, %v1266
        %v1269 = vsub.f32 %v1259, %v1267
        %v1270 = vmul.f32 %v1268, %v1268
        %v1271 = vmul.f32 %v1269, %v1269
        %v1272 = vsel %vm952, %v1270, 0.0
        %1273 = vadd.xlane.f32.xlu0 %v1272
        %v1274 = vpop.xlane.xlu0 %1273
        %v1275 = vsel %vm952, %v1271, 0.0
        %1276 = vadd.xlane.f32.xlu0 %v1275
        %v1277 = vpop.xlane.xlu0 %1276
        %v1278 = vmul.f32 %v1274, %v959
        %v1279 = vmul.f32 %v1277, %v959
        %v1280 = vadd.f32 %v1278, 1e-05
        %v1281 = vadd.f32 %v1279, 1e-05
        %v1282 = vrsqrt.pop %v1280
        %v1283 = vrsqrt.pop %v1281
        %v1284 = vmul.f32 %v1268, %v1282
        %v1285 = vmul.f32 %v1269, %v1283
        %v1286 = vmul.f32 %v1284, %v984
        %v1287 = vmul.f32 %v1285, %v984
        %v1288 = vadd.f32 %v1286, %v992
        %v1289 = vadd.f32 %v1287, %v992
        %v1290 = vpack.c.bf16 %v1289, %v1288
        %v1292 = vsel %vm952, %v1290, 0
        %1294 = vmatprep.subr.bf16.mxu0 0
        %1295 = vmatpush1.bf16.msra.mxu0 %v1008
        %1296 = vmatprep.subr.bf16.mxu0 0
        %1297 = vmatpush1.bf16.msra.mxu0 0
        %1298 = vmatprep.subr.bf16.mxu0 0
        %1299 = vmatpush1.bf16.msra.mxu0 0
        %1300 = vmatprep.subr.bf16.mxu0 0
        %1301 = vmatpush1.bf16.msra.mxu0 0
        %1302 = vmatprep.subr.bf16.mxu0 0
        %1303 = vmatpush1.bf16.msra.mxu0 0
        %1304 = vmatprep.subr.bf16.mxu0 0
        %1305 = vmatpush1.bf16.msra.mxu0 0
        %1306 = vmatprep.subr.bf16.mxu0 0
        %1307 = vmatpush1.bf16.msra.mxu0 0
        %1308 = vmatprep.subr.bf16.mxu0 0
        %1309 = vmatpush1.bf16.msra.mxu0 0
        %1310 = vmatprep.subr.bf16.mxu0 0
        %1311 = vmatpush1.bf16.msra.mxu0 0
        %1312 = vmatprep.subr.bf16.mxu0 0
        %1313 = vmatpush1.bf16.msra.mxu0 0
        %1314 = vmatprep.subr.bf16.mxu0 0
        %1315 = vmatpush1.bf16.msra.mxu0 0
        %1316 = vmatprep.subr.bf16.mxu0 0
        %1317 = vmatpush1.bf16.msra.mxu0 0
        %1318 = vmatprep.subr.bf16.mxu0 0
        %1319 = vmatpush1.bf16.msra.mxu0 0
        %1320 = vmatprep.subr.bf16.mxu0 0
        %1321 = vmatpush1.bf16.msra.mxu0 0
        %1322 = vmatprep.subr.bf16.mxu0 0
        %1323 = vmatpush1.bf16.msra.mxu0 0
        %1324 = vmatprep.subr.bf16.mxu0 0
        %1325 = vmatpush1.bf16.msra.mxu0 0
        %1326 = vmatprep.mubr.bf16.mxu0 0
        %1327 = vmatmul.mubr.bf16.gmra.mrb[0].mxu0 %v1292
        %v1328 = vpop.f32.mrb[0].mxu0
        %v1329 = vadd.f32 %v1001, %v1328
        %v1330 = vpop.f32.mrb[0].mxu0
        %v1331 = vpop.f32.mrb[0].mxu0
        %v1332 = vadd.f32 %v1001, %v1331
        %v1333 = vpop.f32.mrb[0].mxu0
        %1334 = vdwg.mxu0
        %s1335 = scalar_lea.vmem %s784, 24 [#allocation4]
        %v1336 = vld [vmem:[%s1335] sm:$0xf]
        %v1337 = vld [vmem:[%s1335 + $0x4] sm:$0xf]
        %v1338 = vunpack.c.l.bf16 %v1336
        %v1339 = vunpack.c.l.bf16 %v1337
        %v1340 = vmul.f32 %v881, %v1338
        %v1341 = vmul.f32 %v881, %v1339
        %s1342 = scalar_lea.vmem %s1, 48
        %v1343 = vld [vmem:[%s1342] sm:$0xf]
        %v1344 = vld [vmem:[%s1342 + $0x4] sm:$0xf]
        %v1345 = vld [vmem:[%s1342 + $0x8] sm:$0xf]
        %v1346 = vld [vmem:[%s1342 + $0xc] sm:$0xf]
        %v1351 = vunpack.c.l.b16 %v1343
        %v1352 = vunpack.c.l.b16 %v1344
        %v1353 = vunpack.c.l.b16 %v1345
        %v1354 = vunpack.c.l.b16 %v1346
        %v1355 = vpack.c.b16 %v1352, %v1351
        %v1356 = vpack.c.b16 %v1354, %v1353
        %1359 = vmatprep.subr.bf16.mxu0 0
        %1360 = vmatpush1.bf16.msra.mxu0 %v1355
        %1361 = vmatprep.subr.bf16.mxu0 0
        %1362 = vmatpush1.bf16.msra.mxu0 %v1356
        %1363 = vmatprep.subr.bf16.mxu0 0
        %1364 = vmatpush1.bf16.msra.mxu0 0
        %1365 = vmatprep.subr.bf16.mxu0 0
        %1366 = vmatpush1.bf16.msra.mxu0 0
        %1367 = vmatprep.subr.bf16.mxu0 0
        %1368 = vmatpush1.bf16.msra.mxu0 0
        %1369 = vmatprep.subr.bf16.mxu0 0
        %1370 = vmatpush1.bf16.msra.mxu0 0
        %1371 = vmatprep.subr.bf16.mxu0 0
        %1372 = vmatpush1.bf16.msra.mxu0 0
        %1373 = vmatprep.subr.bf16.mxu0 0
        %1374 = vmatpush1.bf16.msra.mxu0 0
        %1375 = vmatprep.subr.bf16.mxu0 0
        %1376 = vmatpush1.bf16.msra.mxu0 0
        %1377 = vmatprep.subr.bf16.mxu0 0
        %1378 = vmatpush1.bf16.msra.mxu0 0
        %1379 = vmatprep.subr.bf16.mxu0 0
        %1380 = vmatpush1.bf16.msra.mxu0 0
        %1381 = vmatprep.subr.bf16.mxu0 0
        %1382 = vmatpush1.bf16.msra.mxu0 0
        %1383 = vmatprep.subr.bf16.mxu0 0
        %1384 = vmatpush1.bf16.msra.mxu0 0
        %1385 = vmatprep.subr.bf16.mxu0 0
        %1386 = vmatpush1.bf16.msra.mxu0 0
        %1387 = vmatprep.subr.bf16.mxu0 0
        %1388 = vmatpush1.bf16.msra.mxu0 0
        %1389 = vmatprep.subr.bf16.mxu0 0
        %1390 = vmatpush1.bf16.msra.mxu0 0
        %1391 = vmatprep.mubr.bf16.mxu0 0
        %1392 = vmatmul.mubr.bf16.gmra.mrb[0].mxu0 %v907
        %v1393 = vpop.f32.mrb[0].mxu0
        %v1394 = vadd.f32 0.0, %v1393
        %v1395 = vpop.f32.mrb[0].mxu0
        %v1396 = vpop.f32.mrb[0].mxu0
        %v1397 = vadd.f32 0.0, %v1396
        %v1398 = vpop.f32.mrb[0].mxu0
        %1399 = vdwg.mxu0
        %v1400 = vadd.f32 %v1340, %v1394
        %v1401 = vadd.f32 %v1341, %v1397
        %v1402 = vsel %vm952, %v1400, 0.0
        %1403 = vadd.xlane.f32.xlu0 %v1402
        %v1404 = vpop.xlane.xlu0 %1403
        %v1405 = vsel %vm952, %v1401, 0.0
        %1406 = vadd.xlane.f32.xlu0 %v1405
        %v1407 = vpop.xlane.xlu0 %1406
        %v1408 = vmul.f32 %v1404, %v959
        %v1409 = vmul.f32 %v1407, %v959
        %v1410 = vsub.f32 %v1400, %v1408
        %v1411 = vsub.f32 %v1401, %v1409
        %v1412 = vmul.f32 %v1410, %v1410
        %v1413 = vmul.f32 %v1411, %v1411
        %v1414 = vsel %vm952, %v1412, 0.0
        %1415 = vadd.xlane.f32.xlu0 %v1414
        %v1416 = vpop.xlane.xlu0 %1415
        %v1417 = vsel %vm952, %v1413, 0.0
        %1418 = vadd.xlane.f32.xlu0 %v1417
        %v1419 = vpop.xlane.xlu0 %1418
        %v1420 = vmul.f32 %v1416, %v959
        %v1421 = vmul.f32 %v1419, %v959
        %v1422 = vadd.f32 %v1420, 1e-05
        %v1423 = vadd.f32 %v1421, 1e-05
        %v1424 = vrsqrt.pop %v1422
        %v1425 = vrsqrt.pop %v1423
        %v1426 = vmul.f32 %v1410, %v1424
        %v1427 = vmul.f32 %v1411, %v1425
        %v1428 = vmul.f32 %v1426, %v984
        %v1429 = vmul.f32 %v1427, %v984
        %v1430 = vadd.f32 %v1428, %v992
        %v1431 = vadd.f32 %v1429, %v992
        %v1432 = vpack.c.bf16 %v1431, %v1430
        %v1434 = vsel %vm952, %v1432, 0
        %1436 = vmatprep.subr.bf16.mxu0 0
        %1437 = vmatpush1.bf16.msra.mxu0 %v1008
        %1438 = vmatprep.subr.bf16.mxu0 0
        %1439 = vmatpush1.bf16.msra.mxu0 0
        %1440 = vmatprep.subr.bf16.mxu0 0
        %1441 = vmatpush1.bf16.msra.mxu0 0
        %1442 = vmatprep.subr.bf16.mxu0 0
        %1443 = vmatpush1.bf16.msra.mxu0 0
        %1444 = vmatprep.subr.bf16.mxu0 0
        %1445 = vmatpush1.bf16.msra.mxu0 0
        %1446 = vmatprep.subr.bf16.mxu0 0
        %1447 = vmatpush1.bf16.msra.mxu0 0
        %1448 = vmatprep.subr.bf16.mxu0 0
        %1449 = vmatpush1.bf16.msra.mxu0 0
        %1450 = vmatprep.subr.bf16.mxu0 0
        %1451 = vmatpush1.bf16.msra.mxu0 0
        %1452 = vmatprep.subr.bf16.mxu0 0
        %1453 = vmatpush1.bf16.msra.mxu0 0
        %1454 = vmatprep.subr.bf16.mxu0 0
        %1455 = vmatpush1.bf16.msra.mxu0 0
        %1456 = vmatprep.subr.bf16.mxu0 0
        %1457 = vmatpush1.bf16.msra.mxu0 0
        %1458 = vmatprep.subr.bf16.mxu0 0
        %1459 = vmatpush1.bf16.msra.mxu0 0
        %1460 = vmatprep.subr.bf16.mxu0 0
        %1461 = vmatpush1.bf16.msra.mxu0 0
        %1462 = vmatprep.subr.bf16.mxu0 0
        %1463 = vmatpush1.bf16.msra.mxu0 0
        %1464 = vmatprep.subr.bf16.mxu0 0
        %1465 = vmatpush1.bf16.msra.mxu0 0
        %1466 = vmatprep.subr.bf16.mxu0 0
        %1467 = vmatpush1.bf16.msra.mxu0 0
        %1468 = vmatprep.mubr.bf16.mxu0 0
        %1469 = vmatmul.mubr.bf16.gmra.mrb[0].mxu0 %v1434
        %v1470 = vpop.f32.mrb[0].mxu0
        %v1471 = vadd.f32 %v1001, %v1470
        %v1472 = vpop.f32.mrb[0].mxu0
        %v1473 = vpop.f32.mrb[0].mxu0
        %v1474 = vadd.f32 %v1001, %v1473
        %v1475 = vpop.f32.mrb[0].mxu0
        %1476 = vdwg.mxu0
        %1479 = vrot.lane.b32.xlu0 %v1045, 112
        %v1480 = vpop.permute.xlu0 %1479
        %1481 = vrot.lane.b32.xlu0 %v1048, 112
        %v1482 = vpop.permute.xlu0 %1481
        %v1485 = vmul.f32 %v1045, %v1480
        %v1486 = vmul.f32 %v1048, %v1482
        %vm1487 = vcmask 130048
        %v1489 = vsel %vm1487, %v1485, 0
        %v1492 = vsel %vm1487, %v1486, 0
        %1494 = vmatprep.subr.mxu0 0.0
        %1495 = vmatpush1.msra.mxu0 %v873
        %1496 = vmatprep.subr.mxu0 0.0
        %1497 = vmatpush1.msra.mxu0 %v874
        %1498 = vmatprep.subr.mxu0 0.0
        %1499 = vmatpush1.msra.mxu0 0.0
        %1500 = vmatprep.subr.mxu0 0.0
        %1501 = vmatpush1.msra.mxu0 0.0
        %1502 = vmatprep.subr.mxu0 0.0
        %1503 = vmatpush1.msra.mxu0 0.0
        %1504 = vmatprep.subr.mxu0 0.0
        %1505 = vmatpush1.msra.mxu0 0.0
        %1506 = vmatprep.subr.mxu0 0.0
        %1507 = vmatpush1.msra.mxu0 0.0
        %1508 = vmatprep.subr.mxu0 0.0
        %1509 = vmatpush1.msra.mxu0 0.0
        %1510 = vmatprep.subr.mxu0 0.0
        %1511 = vmatpush1.msra.mxu0 0.0
        %1512 = vmatprep.subr.mxu0 0.0
        %1513 = vmatpush1.msra.mxu0 0.0
        %1514 = vmatprep.subr.mxu0 0.0
        %1515 = vmatpush1.msra.mxu0 0.0
        %1516 = vmatprep.subr.mxu0 0.0
        %1517 = vmatpush1.msra.mxu0 0.0
        %1518 = vmatprep.subr.mxu0 0.0
        %1519 = vmatpush1.msra.mxu0 0.0
        %1520 = vmatprep.subr.mxu0 0.0
        %1521 = vmatpush1.msra.mxu0 0.0
        %1522 = vmatprep.subr.mxu0 0.0
        %1523 = vmatpush1.msra.mxu0 0.0
        %1524 = vmatprep.subr.mxu0 0.0
        %1525 = vmatpush1.msra.mxu0 0.0
        %1526 = vmatprep.subr.mxu0 0.0
        %1527 = vmatpush1.msra.mxu0 0.0
        %1528 = vmatprep.subr.mxu0 0.0
        %1529 = vmatpush1.msra.mxu0 0.0
        %1530 = vmatprep.subr.mxu0 0.0
        %1531 = vmatpush1.msra.mxu0 0.0
        %1532 = vmatprep.subr.mxu0 0.0
        %1533 = vmatpush1.msra.mxu0 0.0
        %1534 = vmatprep.subr.mxu0 0.0
        %1535 = vmatpush1.msra.mxu0 0.0
        %1536 = vmatprep.subr.mxu0 0.0
        %1537 = vmatpush1.msra.mxu0 0.0
        %1538 = vmatprep.subr.mxu0 0.0
        %1539 = vmatpush1.msra.mxu0 0.0
        %1540 = vmatprep.subr.mxu0 0.0
        %1541 = vmatpush1.msra.mxu0 0.0
        %1542 = vmatprep.subr.mxu0 0.0
        %1543 = vmatpush1.msra.mxu0 0.0
        %1544 = vmatprep.subr.mxu0 0.0
        %1545 = vmatpush1.msra.mxu0 0.0
        %1546 = vmatprep.subr.mxu0 0.0
        %1547 = vmatpush1.msra.mxu0 0.0
        %1548 = vmatprep.subr.mxu0 0.0
        %1549 = vmatpush1.msra.mxu0 0.0
        %1550 = vmatprep.subr.mxu0 0.0
        %1551 = vmatpush1.msra.mxu0 0.0
        %1552 = vmatprep.subr.mxu0 0.0
        %1553 = vmatpush1.msra.mxu0 0.0
        %1554 = vmatprep.subr.mxu0 0.0
        %1555 = vmatpush1.msra.mxu0 0.0
        %1556 = vmatprep.subr.mxu0 0.0
        %1557 = vmatpush1.msra.mxu0 0.0
        %1558 = vmatprep.mubr.f32.mxu0 0.0
        %1559 = vmatmul.mubr.f32.gmra.mrb[0].mxu0 %v1489
        %v1560 = vpop.f32.mrb[0].mxu0
        %v1561 = vadd.f32 0.0, %v1560
        %v1562 = vpop.f32.mrb[0].mxu0
        %1563 = vmatprep.mubr.f32.mxu0 0.0
        %1564 = vmatmul.mubr.f32.gmra.mrb[0].mxu0 %v1492
        %v1565 = vpop.f32.mrb[0].mxu0
        %v1566 = vadd.f32 0.0, %v1565
        %v1567 = vpop.f32.mrb[0].mxu0
        %1568 = vdwg.mxu0
        %v1569 = vmul.f32 %v1561, 0.35355338
        %v1570 = vmul.f32 %v1566, 0.35355338
        %1573 = vrot.lane.b32.xlu0 %v1187, 112
        %v1574 = vpop.permute.xlu0 %1573
        %1575 = vrot.lane.b32.xlu0 %v1190, 112
        %v1576 = vpop.permute.xlu0 %1575
        %v1579 = vmul.f32 %v1045, %v1574
        %v1580 = vmul.f32 %v1048, %v1576
        %v1582 = vsel %vm1487, %v1579, 0
        %v1585 = vsel %vm1487, %v1580, 0
        %1587 = vmatprep.subr.mxu0 0.0
        %1588 = vmatpush1.msra.mxu0 %v873
        %1589 = vmatprep.subr.mxu0 0.0
        %1590 = vmatpush1.msra.mxu0 %v874
        %1591 = vmatprep.subr.mxu0 0.0
        %1592 = vmatpush1.msra.mxu0 0.0
        %1593 = vmatprep.subr.mxu0 0.0
        %1594 = vmatpush1.msra.mxu0 0.0
        %1595 = vmatprep.subr.mxu0 0.0
        %1596 = vmatpush1.msra.mxu0 0.0
        %1597 = vmatprep.subr.mxu0 0.0
        %1598 = vmatpush1.msra.mxu0 0.0
        %1599 = vmatprep.subr.mxu0 0.0
        %1600 = vmatpush1.msra.mxu0 0.0
        %1601 = vmatprep.subr.mxu0 0.0
        %1602 = vmatpush1.msra.mxu0 0.0
        %1603 = vmatprep.subr.mxu0 0.0
        %1604 = vmatpush1.msra.mxu0 0.0
        %1605 = vmatprep.subr.mxu0 0.0
        %1606 = vmatpush1.msra.mxu0 0.0
        %1607 = vmatprep.subr.mxu0 0.0
        %1608 = vmatpush1.msra.mxu0 0.0
        %1609 = vmatprep.subr.mxu0 0.0
        %1610 = vmatpush1.msra.mxu0 0.0
        %1611 = vmatprep.subr.mxu0 0.0
        %1612 = vmatpush1.msra.mxu0 0.0
        %1613 = vmatprep.subr.mxu0 0.0
        %1614 = vmatpush1.msra.mxu0 0.0
        %1615 = vmatprep.subr.mxu0 0.0
        %1616 = vmatpush1.msra.mxu0 0.0
        %1617 = vmatprep.subr.mxu0 0.0
        %1618 = vmatpush1.msra.mxu0 0.0
        %1619 = vmatprep.subr.mxu0 0.0
        %1620 = vmatpush1.msra.mxu0 0.0
        %1621 = vmatprep.subr.mxu0 0.0
        %1622 = vmatpush1.msra.mxu0 0.0
        %1623 = vmatprep.subr.mxu0 0.0
        %1624 = vmatpush1.msra.mxu0 0.0
        %1625 = vmatprep.subr.mxu0 0.0
        %1626 = vmatpush1.msra.mxu0 0.0
        %1627 = vmatprep.subr.mxu0 0.0
        %1628 = vmatpush1.msra.mxu0 0.0
        %1629 = vmatprep.subr.mxu0 0.0
        %1630 = vmatpush1.msra.mxu0 0.0
        %1631 = vmatprep.subr.mxu0 0.0
        %1632 = vmatpush1.msra.mxu0 0.0
        %1633 = vmatprep.subr.mxu0 0.0
        %1634 = vmatpush1.msra.mxu0 0.0
        %1635 = vmatprep.subr.mxu0 0.0
        %1636 = vmatpush1.msra.mxu0 0.0
        %1637 = vmatprep.subr.mxu0 0.0
        %1638 = vmatpush1.msra.mxu0 0.0
        %1639 = vmatprep.subr.mxu0 0.0
        %1640 = vmatpush1.msra.mxu0 0.0
        %1641 = vmatprep.subr.mxu0 0.0
        %1642 = vmatpush1.msra.mxu0 0.0
        %1643 = vmatprep.subr.mxu0 0.0
        %1644 = vmatpush1.msra.mxu0 0.0
        %1645 = vmatprep.subr.mxu0 0.0
        %1646 = vmatpush1.msra.mxu0 0.0
        %1647 = vmatprep.subr.mxu0 0.0
        %1648 = vmatpush1.msra.mxu0 0.0
        %1649 = vmatprep.subr.mxu0 0.0
        %1650 = vmatpush1.msra.mxu0 0.0
        %1651 = vmatprep.mubr.f32.mxu0 0.0
        %1652 = vmatmul.mubr.f32.gmra.mrb[0].mxu0 %v1582
        %v1653 = vpop.f32.mrb[0].mxu0
        %v1654 = vadd.f32 0.0, %v1653
        %v1655 = vpop.f32.mrb[0].mxu0
        %1656 = vmatprep.mubr.f32.mxu0 0.0
        %1657 = vmatmul.mubr.f32.gmra.mrb[0].mxu0 %v1585
        %v1658 = vpop.f32.mrb[0].mxu0
        %v1659 = vadd.f32 0.0, %v1658
        %v1660 = vpop.f32.mrb[0].mxu0
        %1661 = vdwg.mxu0
        %v1662 = vmul.f32 %v1654, 0.35355338
        %v1663 = vmul.f32 %v1659, 0.35355338
        %1666 = vrot.lane.b32.xlu0 %v1329, 112
        %v1667 = vpop.permute.xlu0 %1666
        %1668 = vrot.lane.b32.xlu0 %v1332, 112
        %v1669 = vpop.permute.xlu0 %1668
        %v1672 = vmul.f32 %v1045, %v1667
        %v1673 = vmul.f32 %v1048, %v1669
        %v1675 = vsel %vm1487, %v1672, 0
        %v1678 = vsel %vm1487, %v1673, 0
        %1680 = vmatprep.subr.mxu0 0.0
        %1681 = vmatpush1.msra.mxu0 %v873
        %1682 = vmatprep.subr.mxu0 0.0
        %1683 = vmatpush1.msra.mxu0 %v874
        %1684 = vmatprep.subr.mxu0 0.0
        %1685 = vmatpush1.msra.mxu0 0.0
        %1686 = vmatprep.subr.mxu0 0.0
        %1687 = vmatpush1.msra.mxu0 0.0
        %1688 = vmatprep.subr.mxu0 0.0
        %1689 = vmatpush1.msra.mxu0 0.0
        %1690 = vmatprep.subr.mxu0 0.0
        %1691 = vmatpush1.msra.mxu0 0.0
        %1692 = vmatprep.subr.mxu0 0.0
        %1693 = vmatpush1.msra.mxu0 0.0
        %1694 = vmatprep.subr.mxu0 0.0
        %1695 = vmatpush1.msra.mxu0 0.0
        %1696 = vmatprep.subr.mxu0 0.0
        %1697 = vmatpush1.msra.mxu0 0.0
        %1698 = vmatprep.subr.mxu0 0.0
        %1699 = vmatpush1.msra.mxu0 0.0
        %1700 = vmatprep.subr.mxu0 0.0
        %1701 = vmatpush1.msra.mxu0 0.0
        %1702 = vmatprep.subr.mxu0 0.0
        %1703 = vmatpush1.msra.mxu0 0.0
        %1704 = vmatprep.subr.mxu0 0.0
        %1705 = vmatpush1.msra.mxu0 0.0
        %1706 = vmatprep.subr.mxu0 0.0
        %1707 = vmatpush1.msra.mxu0 0.0
        %1708 = vmatprep.subr.mxu0 0.0
        %1709 = vmatpush1.msra.mxu0 0.0
        %1710 = vmatprep.subr.mxu0 0.0
        %1711 = vmatpush1.msra.mxu0 0.0
        %1712 = vmatprep.subr.mxu0 0.0
        %1713 = vmatpush1.msra.mxu0 0.0
        %1714 = vmatprep.subr.mxu0 0.0
        %1715 = vmatpush1.msra.mxu0 0.0
        %1716 = vmatprep.subr.mxu0 0.0
        %1717 = vmatpush1.msra.mxu0 0.0
        %1718 = vmatprep.subr.mxu0 0.0
        %1719 = vmatpush1.msra.mxu0 0.0
        %1720 = vmatprep.subr.mxu0 0.0
        %1721 = vmatpush1.msra.mxu0 0.0
        %1722 = vmatprep.subr.mxu0 0.0
        %1723 = vmatpush1.msra.mxu0 0.0
        %1724 = vmatprep.subr.mxu0 0.0
        %1725 = vmatpush1.msra.mxu0 0.0
        %1726 = vmatprep.subr.mxu0 0.0
        %1727 = vmatpush1.msra.mxu0 0.0
        %1728 = vmatprep.subr.mxu0 0.0
        %1729 = vmatpush1.msra.mxu0 0.0
        %1730 = vmatprep.subr.mxu0 0.0
        %1731 = vmatpush1.msra.mxu0 0.0
        %1732 = vmatprep.subr.mxu0 0.0
        %1733 = vmatpush1.msra.mxu0 0.0
        %1734 = vmatprep.subr.mxu0 0.0
        %1735 = vmatpush1.msra.mxu0 0.0
        %1736 = vmatprep.subr.mxu0 0.0
        %1737 = vmatpush1.msra.mxu0 0.0
        %1738 = vmatprep.subr.mxu0 0.0
        %1739 = vmatpush1.msra.mxu0 0.0
        %1740 = vmatprep.subr.mxu0 0.0
        %1741 = vmatpush1.msra.mxu0 0.0
        %1742 = vmatprep.subr.mxu0 0.0
        %1743 = vmatpush1.msra.mxu0 0.0
        %1744 = vmatprep.mubr.f32.mxu0 0.0
        %1745 = vmatmul.mubr.f32.gmra.mrb[0].mxu0 %v1675
        %v1746 = vpop.f32.mrb[0].mxu0
        %v1747 = vadd.f32 0.0, %v1746
        %v1748 = vpop.f32.mrb[0].mxu0
        %1749 = vmatprep.mubr.f32.mxu0 0.0
        %1750 = vmatmul.mubr.f32.gmra.mrb[0].mxu0 %v1678
        %v1751 = vpop.f32.mrb[0].mxu0
        %v1752 = vadd.f32 0.0, %v1751
        %v1753 = vpop.f32.mrb[0].mxu0
        %1754 = vdwg.mxu0
        %v1755 = vmul.f32 %v1747, 0.35355338
        %v1756 = vmul.f32 %v1752, 0.35355338
        %1759 = vrot.lane.b32.xlu0 %v1471, 112
        %v1760 = vpop.permute.xlu0 %1759
        %1761 = vrot.lane.b32.xlu0 %v1474, 112
        %v1762 = vpop.permute.xlu0 %1761
        %v1765 = vmul.f32 %v1045, %v1760
        %v1766 = vmul.f32 %v1048, %v1762
        %v1768 = vsel %vm1487, %v1765, 0
        %v1771 = vsel %vm1487, %v1766, 0
        %1773 = vmatprep.subr.mxu0 0.0
        %1774 = vmatpush1.msra.mxu0 %v873
        %1775 = vmatprep.subr.mxu0 0.0
        %1776 = vmatpush1.msra.mxu0 %v874
        %1777 = vmatprep.subr.mxu0 0.0
        %1778 = vmatpush1.msra.mxu0 0.0
        %1779 = vmatprep.subr.mxu0 0.0
        %1780 = vmatpush1.msra.mxu0 0.0
        %1781 = vmatprep.subr.mxu0 0.0
        %1782 = vmatpush1.msra.mxu0 0.0
        %1783 = vmatprep.subr.mxu0 0.0
        %1784 = vmatpush1.msra.mxu0 0.0
        %1785 = vmatprep.subr.mxu0 0.0
        %1786 = vmatpush1.msra.mxu0 0.0
        %1787 = vmatprep.subr.mxu0 0.0
        %1788 = vmatpush1.msra.mxu0 0.0
        %1789 = vmatprep.subr.mxu0 0.0
        %1790 = vmatpush1.msra.mxu0 0.0
        %1791 = vmatprep.subr.mxu0 0.0
        %1792 = vmatpush1.msra.mxu0 0.0
        %1793 = vmatprep.subr.mxu0 0.0
        %1794 = vmatpush1.msra.mxu0 0.0
        %1795 = vmatprep.subr.mxu0 0.0
        %1796 = vmatpush1.msra.mxu0 0.0
        %1797 = vmatprep.subr.mxu0 0.0
        %1798 = vmatpush1.msra.mxu0 0.0
        %1799 = vmatprep.subr.mxu0 0.0
        %1800 = vmatpush1.msra.mxu0 0.0
        %1801 = vmatprep.subr.mxu0 0.0
        %1802 = vmatpush1.msra.mxu0 0.0
        %1803 = vmatprep.subr.mxu0 0.0
        %1804 = vmatpush1.msra.mxu0 0.0
        %1805 = vmatprep.subr.mxu0 0.0
        %1806 = vmatpush1.msra.mxu0 0.0
        %1807 = vmatprep.subr.mxu0 0.0
        %1808 = vmatpush1.msra.mxu0 0.0
        %1809 = vmatprep.subr.mxu0 0.0
        %1810 = vmatpush1.msra.mxu0 0.0
        %1811 = vmatprep.subr.mxu0 0.0
        %1812 = vmatpush1.msra.mxu0 0.0
        %1813 = vmatprep.subr.mxu0 0.0
        %1814 = vmatpush1.msra.mxu0 0.0
        %1815 = vmatprep.subr.mxu0 0.0
        %1816 = vmatpush1.msra.mxu0 0.0
        %1817 = vmatprep.subr.mxu0 0.0
        %1818 = vmatpush1.msra.mxu0 0.0
        %1819 = vmatprep.subr.mxu0 0.0
        %1820 = vmatpush1.msra.mxu0 0.0
        %1821 = vmatprep.subr.mxu0 0.0
        %1822 = vmatpush1.msra.mxu0 0.0
        %1823 = vmatprep.subr.mxu0 0.0
        %1824 = vmatpush1.msra.mxu0 0.0
        %1825 = vmatprep.subr.mxu0 0.0
        %1826 = vmatpush1.msra.mxu0 0.0
        %1827 = vmatprep.subr.mxu0 0.0
        %1828 = vmatpush1.msra.mxu0 0.0
        %1829 = vmatprep.subr.mxu0 0.0
        %1830 = vmatpush1.msra.mxu0 0.0
        %1831 = vmatprep.subr.mxu0 0.0
        %1832 = vmatpush1.msra.mxu0 0.0
        %1833 = vmatprep.subr.mxu0 0.0
        %1834 = vmatpush1.msra.mxu0 0.0
        %1835 = vmatprep.subr.mxu0 0.0
        %1836 = vmatpush1.msra.mxu0 0.0
        %1837 = vmatprep.mubr.f32.mxu0 0.0
        %1838 = vmatmul.mubr.f32.gmra.mrb[0].mxu0 %v1768
        %v1839 = vpop.f32.mrb[0].mxu0
        %v1840 = vadd.f32 0.0, %v1839
        %v1841 = vpop.f32.mrb[0].mxu0
        %1842 = vmatprep.mubr.f32.mxu0 0.0
        %1843 = vmatmul.mubr.f32.gmra.mrb[0].mxu0 %v1771
        %v1844 = vpop.f32.mrb[0].mxu0
        %v1845 = vadd.f32 0.0, %v1844
        %v1846 = vpop.f32.mrb[0].mxu0
        %1847 = vdwg.mxu0
        %v1848 = vmul.f32 %v1840, 0.35355338
        %v1849 = vmul.f32 %v1845, 0.35355338
        %v1850 = vmax.f32 %v1569, %v1662
        %v1851 = vmax.f32 %v1570, %v1663
        %v1852 = vmax.f32 %v1850, %v1755
        %v1853 = vmax.f32 %v1851, %v1756
        %v1854 = vmax.f32 %v1852, %v1848
        %v1855 = vmax.f32 %v1853, %v1849
        %v1856 = vsub.f32 %v1569, %v1854
        %v1857 = vsub.f32 %v1570, %v1855
        %v1858 = vmul.f32 %v1856, 1.442695
        %v1859 = vpow.pop %v1858
        %v1860 = vmul.f32 %v1857, 1.442695
        %v1861 = vpow.pop %v1860
        %v1862 = vsub.f32 %v1662, %v1854
        %v1863 = vsub.f32 %v1663, %v1855
        %v1864 = vmul.f32 %v1862, 1.442695
        %v1865 = vpow.pop %v1864
        %v1866 = vmul.f32 %v1863, 1.442695
        %v1867 = vpow.pop %v1866
        %v1868 = vsub.f32 %v1755, %v1854
        %v1869 = vsub.f32 %v1756, %v1855
        %v1870 = vmul.f32 %v1868, 1.442695
        %v1871 = vpow.pop %v1870
        %v1872 = vmul.f32 %v1869, 1.442695
        %v1873 = vpow.pop %v1872
        %v1874 = vsub.f32 %v1848, %v1854
        %v1875 = vsub.f32 %v1849, %v1855
        %v1876 = vmul.f32 %v1874, 1.442695
        %v1877 = vpow.pop %v1876
        %v1878 = vmul.f32 %v1875, 1.442695
        %v1879 = vpow.pop %v1878
        %v1880 = vadd.f32 %v1859, %v1865
        %v1881 = vadd.f32 %v1861, %v1867
        %v1882 = vadd.f32 %v1880, %v1871
        %v1883 = vadd.f32 %v1881, %v1873
        %v1884 = vadd.f32 %v1882, %v1877
        %v1885 = vadd.f32 %v1883, %v1879
        %v1886 = vrcp.pop %v1884
        %v1887 = vmul.f32 1.0, %v1886
        %v1888 = vrcp.pop %v1885
        %v1889 = vmul.f32 1.0, %v1888
        %v1890 = vmul.f32 %v1859, %v1887
        %v1891 = vmul.f32 %v1861, %v1889
        %vm1892 = vcmask 15360
        %v1894 = vsel %vm1892, %v1890, 0
        %v1897 = vsel %vm1892, %v1891, 0
        %vm1899 = vcmask 1041408
        %v1901 = vsel %vm1899, %v875, 0
        %1903 = vmatprep.subr.mxu0 0.0
        %1904 = vmatpush1.msra.mxu0 %v1901
        %1905 = vmatprep.subr.mxu0 0.0
        %1906 = vmatpush1.msra.mxu0 0.0
        %1907 = vmatprep.subr.mxu0 0.0
        %1908 = vmatpush1.msra.mxu0 0.0
        %1909 = vmatprep.subr.mxu0 0.0
        %1910 = vmatpush1.msra.mxu0 0.0
        %1911 = vmatprep.subr.mxu0 0.0
        %1912 = vmatpush1.msra.mxu0 0.0
        %1913 = vmatprep.subr.mxu0 0.0
        %1914 = vmatpush1.msra.mxu0 0.0
        %1915 = vmatprep.subr.mxu0 0.0
        %1916 = vmatpush1.msra.mxu0 0.0
        %1917 = vmatprep.subr.mxu0 0.0
        %1918 = vmatpush1.msra.mxu0 0.0
        %1919 = vmatprep.subr.mxu0 0.0
        %1920 = vmatpush1.msra.mxu0 0.0
        %1921 = vmatprep.subr.mxu0 0.0
        %1922 = vmatpush1.msra.mxu0 0.0
        %1923 = vmatprep.subr.mxu0 0.0
        %1924 = vmatpush1.msra.mxu0 0.0
        %1925 = vmatprep.subr.mxu0 0.0
        %1926 = vmatpush1.msra.mxu0 0.0
        %1927 = vmatprep.subr.mxu0 0.0
        %1928 = vmatpush1.msra.mxu0 0.0
        %1929 = vmatprep.subr.mxu0 0.0
        %1930 = vmatpush1.msra.mxu0 0.0
        %1931 = vmatprep.subr.mxu0 0.0
        %1932 = vmatpush1.msra.mxu0 0.0
        %1933 = vmatprep.subr.mxu0 0.0
        %1934 = vmatpush1.msra.mxu0 0.0
        %1935 = vmatprep.subr.mxu0 0.0
        %1936 = vmatpush1.msra.mxu0 0.0
        %1937 = vmatprep.subr.mxu0 0.0
        %1938 = vmatpush1.msra.mxu0 0.0
        %1939 = vmatprep.subr.mxu0 0.0
        %1940 = vmatpush1.msra.mxu0 0.0
        %1941 = vmatprep.subr.mxu0 0.0
        %1942 = vmatpush1.msra.mxu0 0.0
        %1943 = vmatprep.subr.mxu0 0.0
        %1944 = vmatpush1.msra.mxu0 0.0
        %1945 = vmatprep.subr.mxu0 0.0
        %1946 = vmatpush1.msra.mxu0 0.0
        %1947 = vmatprep.subr.mxu0 0.0
        %1948 = vmatpush1.msra.mxu0 0.0
        %1949 = vmatprep.subr.mxu0 0.0
        %1950 = vmatpush1.msra.mxu0 0.0
        %1951 = vmatprep.subr.mxu0 0.0
        %1952 = vmatpush1.msra.mxu0 0.0
        %1953 = vmatprep.subr.mxu0 0.0
        %1954 = vmatpush1.msra.mxu0 0.0
        %1955 = vmatprep.subr.mxu0 0.0
        %1956 = vmatpush1.msra.mxu0 0.0
        %1957 = vmatprep.subr.mxu0 0.0
        %1958 = vmatpush1.msra.mxu0 0.0
        %1959 = vmatprep.subr.mxu0 0.0
        %1960 = vmatpush1.msra.mxu0 0.0
        %1961 = vmatprep.subr.mxu0 0.0
        %1962 = vmatpush1.msra.mxu0 0.0
        %1963 = vmatprep.subr.mxu0 0.0
        %1964 = vmatpush1.msra.mxu0 0.0
        %1965 = vmatprep.subr.mxu0 0.0
        %1966 = vmatpush1.msra.mxu0 0.0
        %1967 = vmatprep.mubr.f32.mxu0 0.0
        %1968 = vmatmul.mubr.f32.gmra.mrb[0].mxu0 %v1894
        %v1969 = vpop.f32.mrb[0].mxu0
        %v1970 = vadd.f32 0.0, %v1969
        %v1971 = vpop.f32.mrb[0].mxu0
        %1972 = vmatprep.mubr.f32.mxu0 0.0
        %1973 = vmatmul.mubr.f32.gmra.mrb[0].mxu0 %v1897
        %v1974 = vpop.f32.mrb[0].mxu0
        %v1975 = vadd.f32 0.0, %v1974
        %v1976 = vpop.f32.mrb[0].mxu0
        %1977 = vdwg.mxu0
        %1978 = vrot.lane.b32.xlu0 %v1045, 96
        %v1979 = vpop.permute.xlu0 %1978
        %1980 = vrot.lane.b32.xlu0 %v1048, 96
        %v1981 = vpop.permute.xlu0 %1980
        %v1984 = vmul.f32 %v1970, %v1979
        %v1985 = vmul.f32 %v1975, %v1981
        %v1986 = vadd.f32 %v1984, 0.0
        %v1987 = vadd.f32 %v1985, 0.0
        %v1988 = vmul.f32 %v1865, %v1887
        %v1989 = vmul.f32 %v1867, %v1889
        %v1991 = vsel %vm1892, %v1988, 0
        %v1994 = vsel %vm1892, %v1989, 0
        %1996 = vmatprep.subr.mxu0 0.0
        %1997 = vmatpush1.msra.mxu0 %v1901
        %1998 = vmatprep.subr.mxu0 0.0
        %1999 = vmatpush1.msra.mxu0 0.0
        %2000 = vmatprep.subr.mxu0 0.0
        %2001 = vmatpush1.msra.mxu0 0.0
        %2002 = vmatprep.subr.mxu0 0.0
        %2003 = vmatpush1.msra.mxu0 0.0
        %2004 = vmatprep.subr.mxu0 0.0
        %2005 = vmatpush1.msra.mxu0 0.0
        %2006 = vmatprep.subr.mxu0 0.0
        %2007 = vmatpush1.msra.mxu0 0.0
        %2008 = vmatprep.subr.mxu0 0.0
        %2009 = vmatpush1.msra.mxu0 0.0
        %2010 = vmatprep.subr.mxu0 0.0
        %2011 = vmatpush1.msra.mxu0 0.0
        %2012 = vmatprep.subr.mxu0 0.0
        %2013 = vmatpush1.msra.mxu0 0.0
        %2014 = vmatprep.subr.mxu0 0.0
        %2015 = vmatpush1.msra.mxu0 0.0
        %2016 = vmatprep.subr.mxu0 0.0
        %2017 = vmatpush1.msra.mxu0 0.0
        %2018 = vmatprep.subr.mxu0 0.0
        %2019 = vmatpush1.msra.mxu0 0.0
        %2020 = vmatprep.subr.mxu0 0.0
        %2021 = vmatpush1.msra.mxu0 0.0
        %2022 = vmatprep.subr.mxu0 0.0
        %2023 = vmatpush1.msra.mxu0 0.0
        %2024 = vmatprep.subr.mxu0 0.0
        %2025 = vmatpush1.msra.mxu0 0.0
        %2026 = vmatprep.subr.mxu0 0.0
        %2027 = vmatpush1.msra.mxu0 0.0
        %2028 = vmatprep.subr.mxu0 0.0
        %2029 = vmatpush1.msra.mxu0 0.0
        %2030 = vmatprep.subr.mxu0 0.0
        %2031 = vmatpush1.msra.mxu0 0.0
        %2032 = vmatprep.subr.mxu0 0.0
        %2033 = vmatpush1.msra.mxu0 0.0
        %2034 = vmatprep.subr.mxu0 0.0
        %2035 = vmatpush1.msra.mxu0 0.0
        %2036 = vmatprep.subr.mxu0 0.0
        %2037 = vmatpush1.msra.mxu0 0.0
        %2038 = vmatprep.subr.mxu0 0.0
        %2039 = vmatpush1.msra.mxu0 0.0
        %2040 = vmatprep.subr.mxu0 0.0
        %2041 = vmatpush1.msra.mxu0 0.0
        %2042 = vmatprep.subr.mxu0 0.0
        %2043 = vmatpush1.msra.mxu0 0.0
        %2044 = vmatprep.subr.mxu0 0.0
        %2045 = vmatpush1.msra.mxu0 0.0
        %2046 = vmatprep.subr.mxu0 0.0
        %2047 = vmatpush1.msra.mxu0 0.0
        %2048 = vmatprep.subr.mxu0 0.0
        %2049 = vmatpush1.msra.mxu0 0.0
        %2050 = vmatprep.subr.mxu0 0.0
        %2051 = vmatpush1.msra.mxu0 0.0
        %2052 = vmatprep.subr.mxu0 0.0
        %2053 = vmatpush1.msra.mxu0 0.0
        %2054 = vmatprep.subr.mxu0 0.0
        %2055 = vmatpush1.msra.mxu0 0.0
        %2056 = vmatprep.subr.mxu0 0.0
        %2057 = vmatpush1.msra.mxu0 0.0
        %2058 = vmatprep.subr.mxu0 0.0
        %2059 = vmatpush1.msra.mxu0 0.0
        %2060 = vmatprep.mubr.f32.mxu0 0.0
        %2061 = vmatmul.mubr.f32.gmra.mrb[0].mxu0 %v1991
        %v2062 = vpop.f32.mrb[0].mxu0
        %v2063 = vadd.f32 0.0, %v2062
        %v2064 = vpop.f32.mrb[0].mxu0
        %2065 = vmatprep.mubr.f32.mxu0 0.0
        %2066 = vmatmul.mubr.f32.gmra.mrb[0].mxu0 %v1994
        %v2067 = vpop.f32.mrb[0].mxu0
        %v2068 = vadd.f32 0.0, %v2067
        %v2069 = vpop.f32.mrb[0].mxu0
        %2070 = vdwg.mxu0
        %2071 = vrot.lane.b32.xlu0 %v1187, 96
        %v2072 = vpop.permute.xlu0 %2071
        %2073 = vrot.lane.b32.xlu0 %v1190, 96
        %v2074 = vpop.permute.xlu0 %2073
        %v2077 = vmul.f32 %v2063, %v2072
        %v2078 = vmul.f32 %v2068, %v2074
        %v2079 = vadd.f32 %v1986, %v2077
        %v2080 = vadd.f32 %v1987, %v2078
        %v2081 = vmul.f32 %v1871, %v1887
        %v2082 = vmul.f32 %v1873, %v1889
        %v2084 = vsel %vm1892, %v2081, 0
        %v2087 = vsel %vm1892, %v2082, 0
        %2089 = vmatprep.subr.mxu0 0.0
        %2090 = vmatpush1.msra.mxu0 %v1901
        %2091 = vmatprep.subr.mxu0 0.0
        %2092 = vmatpush1.msra.mxu0 0.0
        %2093 = vmatprep.subr.mxu0 0.0
        %2094 = vmatpush1.msra.mxu0 0.0
        %2095 = vmatprep.subr.mxu0 0.0
        %2096 = vmatpush1.msra.mxu0 0.0
        %2097 = vmatprep.subr.mxu0 0.0
        %2098 = vmatpush1.msra.mxu0 0.0
        %2099 = vmatprep.subr.mxu0 0.0
        %2100 = vmatpush1.msra.mxu0 0.0
        %2101 = vmatprep.subr.mxu0 0.0
        %2102 = vmatpush1.msra.mxu0 0.0
        %2103 = vmatprep.subr.mxu0 0.0
        %2104 = vmatpush1.msra.mxu0 0.0
        %2105 = vmatprep.subr.mxu0 0.0
        %2106 = vmatpush1.msra.mxu0 0.0
        %2107 = vmatprep.subr.mxu0 0.0
        %2108 = vmatpush1.msra.mxu0 0.0
        %2109 = vmatprep.subr.mxu0 0.0
        %2110 = vmatpush1.msra.mxu0 0.0
        %2111 = vmatprep.subr.mxu0 0.0
        %2112 = vmatpush1.msra.mxu0 0.0
        %2113 = vmatprep.subr.mxu0 0.0
        %2114 = vmatpush1.msra.mxu0 0.0
        %2115 = vmatprep.subr.mxu0 0.0
        %2116 = vmatpush1.msra.mxu0 0.0
        %2117 = vmatprep.subr.mxu0 0.0
        %2118 = vmatpush1.msra.mxu0 0.0
        %2119 = vmatprep.subr.mxu0 0.0
        %2120 = vmatpush1.msra.mxu0 0.0
        %2121 = vmatprep.subr.mxu0 0.0
        %2122 = vmatpush1.msra.mxu0 0.0
        %2123 = vmatprep.subr.mxu0 0.0
        %2124 = vmatpush1.msra.mxu0 0.0
        %2125 = vmatprep.subr.mxu0 0.0
        %2126 = vmatpush1.msra.mxu0 0.0
        %2127 = vmatprep.subr.mxu0 0.0
        %2128 = vmatpush1.msra.mxu0 0.0
        %2129 = vmatprep.subr.mxu0 0.0
        %2130 = vmatpush1.msra.mxu0 0.0
        %2131 = vmatprep.subr.mxu0 0.0
        %2132 = vmatpush1.msra.mxu0 0.0
        %2133 = vmatprep.subr.mxu0 0.0
        %2134 = vmatpush1.msra.mxu0 0.0
        %2135 = vmatprep.subr.mxu0 0.0
        %2136 = vmatpush1.msra.mxu0 0.0
        %2137 = vmatprep.subr.mxu0 0.0
        %2138 = vmatpush1.msra.mxu0 0.0
        %2139 = vmatprep.subr.mxu0 0.0
        %2140 = vmatpush1.msra.mxu0 0.0
        %2141 = vmatprep.subr.mxu0 0.0
        %2142 = vmatpush1.msra.mxu0 0.0
        %2143 = vmatprep.subr.mxu0 0.0
        %2144 = vmatpush1.msra.mxu0 0.0
        %2145 = vmatprep.subr.mxu0 0.0
        %2146 = vmatpush1.msra.mxu0 0.0
        %2147 = vmatprep.subr.mxu0 0.0
        %2148 = vmatpush1.msra.mxu0 0.0
        %2149 = vmatprep.subr.mxu0 0.0
        %2150 = vmatpush1.msra.mxu0 0.0
        %2151 = vmatprep.subr.mxu0 0.0
        %2152 = vmatpush1.msra.mxu0 0.0
        %2153 = vmatprep.mubr.f32.mxu0 0.0
        %2154 = vmatmul.mubr.f32.gmra.mrb[0].mxu0 %v2084
        %v2155 = vpop.f32.mrb[0].mxu0
        %v2156 = vadd.f32 0.0, %v2155
        %v2157 = vpop.f32.mrb[0].mxu0
        %2158 = vmatprep.mubr.f32.mxu0 0.0
        %2159 = vmatmul.mubr.f32.gmra.mrb[0].mxu0 %v2087
        %v2160 = vpop.f32.mrb[0].mxu0
        %v2161 = vadd.f32 0.0, %v2160
        %v2162 = vpop.f32.mrb[0].mxu0
        %2163 = vdwg.mxu0
        %2164 = vrot.lane.b32.xlu0 %v1329, 96
        %v2165 = vpop.permute.xlu0 %2164
        %2166 = vrot.lane.b32.xlu0 %v1332, 96
        %v2167 = vpop.permute.xlu0 %2166
        %v2170 = vmul.f32 %v2156, %v2165
        %v2171 = vmul.f32 %v2161, %v2167
        %v2172 = vadd.f32 %v2079, %v2170
        %v2173 = vadd.f32 %v2080, %v2171
        %v2174 = vmul.f32 %v1877, %v1887
        %v2175 = vmul.f32 %v1879, %v1889
        %v2177 = vsel %vm1892, %v2174, 0
        %v2180 = vsel %vm1892, %v2175, 0
        %2182 = vmatprep.subr.mxu0 0.0
        %2183 = vmatpush1.msra.mxu0 %v1901
        %2184 = vmatprep.subr.mxu0 0.0
        %2185 = vmatpush1.msra.mxu0 0.0
        %2186 = vmatprep.subr.mxu0 0.0
        %2187 = vmatpush1.msra.mxu0 0.0
        %2188 = vmatprep.subr.mxu0 0.0
        %2189 = vmatpush1.msra.mxu0 0.0
        %2190 = vmatprep.subr.mxu0 0.0
        %2191 = vmatpush1.msra.mxu0 0.0
        %2192 = vmatprep.subr.mxu0 0.0
        %2193 = vmatpush1.msra.mxu0 0.0
        %2194 = vmatprep.subr.mxu0 0.0
        %2195 = vmatpush1.msra.mxu0 0.0
        %2196 = vmatprep.subr.mxu0 0.0
        %2197 = vmatpush1.msra.mxu0 0.0
        %2198 = vmatprep.subr.mxu0 0.0
        %2199 = vmatpush1.msra.mxu0 0.0
        %2200 = vmatprep.subr.mxu0 0.0
        %2201 = vmatpush1.msra.mxu0 0.0
        %2202 = vmatprep.subr.mxu0 0.0
        %2203 = vmatpush1.msra.mxu0 0.0
        %2204 = vmatprep.subr.mxu0 0.0
        %2205 = vmatpush1.msra.mxu0 0.0
        %2206 = vmatprep.subr.mxu0 0.0
        %2207 = vmatpush1.msra.mxu0 0.0
        %2208 = vmatprep.subr.mxu0 0.0
        %2209 = vmatpush1.msra.mxu0 0.0
        %2210 = vmatprep.subr.mxu0 0.0
        %2211 = vmatpush1.msra.mxu0 0.0
        %2212 = vmatprep.subr.mxu0 0.0
        %2213 = vmatpush1.msra.mxu0 0.0
        %2214 = vmatprep.subr.mxu0 0.0
        %2215 = vmatpush1.msra.mxu0 0.0
        %2216 = vmatprep.subr.mxu0 0.0
        %2217 = vmatpush1.msra.mxu0 0.0
        %2218 = vmatprep.subr.mxu0 0.0
        %2219 = vmatpush1.msra.mxu0 0.0
        %2220 = vmatprep.subr.mxu0 0.0
        %2221 = vmatpush1.msra.mxu0 0.0
        %2222 = vmatprep.subr.mxu0 0.0
        %2223 = vmatpush1.msra.mxu0 0.0
        %2224 = vmatprep.subr.mxu0 0.0
        %2225 = vmatpush1.msra.mxu0 0.0
        %2226 = vmatprep.subr.mxu0 0.0
        %2227 = vmatpush1.msra.mxu0 0.0
        %2228 = vmatprep.subr.mxu0 0.0
        %2229 = vmatpush1.msra.mxu0 0.0
        %2230 = vmatprep.subr.mxu0 0.0
        %2231 = vmatpush1.msra.mxu0 0.0
        %2232 = vmatprep.subr.mxu0 0.0
        %2233 = vmatpush1.msra.mxu0 0.0
        %2234 = vmatprep.subr.mxu0 0.0
        %2235 = vmatpush1.msra.mxu0 0.0
        %2236 = vmatprep.subr.mxu0 0.0
        %2237 = vmatpush1.msra.mxu0 0.0
        %2238 = vmatprep.subr.mxu0 0.0
        %2239 = vmatpush1.msra.mxu0 0.0
        %2240 = vmatprep.subr.mxu0 0.0
        %2241 = vmatpush1.msra.mxu0 0.0
        %2242 = vmatprep.subr.mxu0 0.0
        %2243 = vmatpush1.msra.mxu0 0.0
        %2244 = vmatprep.subr.mxu0 0.0
        %2245 = vmatpush1.msra.mxu0 0.0
        %2246 = vmatprep.mubr.f32.mxu0 0.0
        %2247 = vmatmul.mubr.f32.gmra.mrb[0].mxu0 %v2177
        %v2248 = vpop.f32.mrb[0].mxu0
        %v2249 = vadd.f32 0.0, %v2248
        %v2250 = vpop.f32.mrb[0].mxu0
        %2251 = vmatprep.mubr.f32.mxu0 0.0
        %2252 = vmatmul.mubr.f32.gmra.mrb[0].mxu0 %v2180
        %v2253 = vpop.f32.mrb[0].mxu0
        %v2254 = vadd.f32 0.0, %v2253
        %v2255 = vpop.f32.mrb[0].mxu0
        %2256 = vdwg.mxu0
        %2257 = vrot.lane.b32.xlu0 %v1471, 96
        %v2258 = vpop.permute.xlu0 %2257
        %2259 = vrot.lane.b32.xlu0 %v1474, 96
        %v2260 = vpop.permute.xlu0 %2259
        %v2263 = vmul.f32 %v2249, %v2258
        %v2264 = vmul.f32 %v2254, %v2260
        %v2265 = vadd.f32 %v2172, %v2263
        %v2266 = vadd.f32 %v2173, %v2264
        %v2267 = vpack.c.bf16 %v2266, %v2265
        %v2268 = vld [vmem:[%s11] sm:$0xf]
        %v2269 = vld [vmem:[%s11 + $0x4] sm:$0xf]
        %v2270 = vld [vmem:[%s12] sm:$0x1]
        %v2272 = vlaneseq
        %v2273 = vshrl.u32 %v2272, 7
        %v2274 = vsub.s32 0, %v2273
        %v2275 = vrot.slane %v2270, %v2274
        %v2279 = vunpack.c.l.b16 %v2268
        %v2280 = vunpack.c.l.b16 %v2269
        %v2281 = vpack.c.b16 %v2280, %v2279
        %v2284 = vsel %vm1487, %v2267, 0
        %2286 = vmatprep.subr.bf16.mxu0 0
        %2287 = vmatpush1.bf16.msra.mxu0 %v2281
        %2288 = vmatprep.subr.bf16.mxu0 0
        %2289 = vmatpush1.bf16.msra.mxu0 0
        %2290 = vmatprep.subr.bf16.mxu0 0
        %2291 = vmatpush1.bf16.msra.mxu0 0
        %2292 = vmatprep.subr.bf16.mxu0 0
        %2293 = vmatpush1.bf16.msra.mxu0 0
        %2294 = vmatprep.subr.bf16.mxu0 0
        %2295 = vmatpush1.bf16.msra.mxu0 0
        %2296 = vmatprep.subr.bf16.mxu0 0
        %2297 = vmatpush1.bf16.msra.mxu0 0
        %2298 = vmatprep.subr.bf16.mxu0 0
        %2299 = vmatpush1.bf16.msra.mxu0 0
        %2300 = vmatprep.subr.bf16.mxu0 0
        %2301 = vmatpush1.bf16.msra.mxu0 0
        %2302 = vmatprep.subr.bf16.mxu0 0
        %2303 = vmatpush1.bf16.msra.mxu0 0
        %2304 = vmatprep.subr.bf16.mxu0 0
        %2305 = vmatpush1.bf16.msra.mxu0 0
        %2306 = vmatprep.subr.bf16.mxu0 0
        %2307 = vmatpush1.bf16.msra.mxu0 0
        %2308 = vmatprep.subr.bf16.mxu0 0
        %2309 = vmatpush1.bf16.msra.mxu0 0
        %2310 = vmatprep.subr.bf16.mxu0 0
        %2311 = vmatpush1.bf16.msra.mxu0 0
        %2312 = vmatprep.subr.bf16.mxu0 0
        %2313 = vmatpush1.bf16.msra.mxu0 0
        %2314 = vmatprep.subr.bf16.mxu0 0
        %2315 = vmatpush1.bf16.msra.mxu0 0
        %2316 = vmatprep.subr.bf16.mxu0 0
        %2317 = vmatpush1.bf16.msra.mxu0 0
        %2318 = vmatprep.mubr.bf16.mxu0 0
        %2319 = vmatmul.mubr.bf16.gmra.mrb[0].mxu0 %v2284
        %v2320 = vpop.f32.mrb[0].mxu0
        %v2321 = vadd.f32 %v2275, %v2320
        %v2322 = vpop.f32.mrb[0].mxu0
        %v2323 = vpop.f32.mrb[0].mxu0
        %v2324 = vadd.f32 %v2275, %v2323
        %v2325 = vpop.f32.mrb[0].mxu0
        %2326 = vdwg.mxu0
        %v2327 = vld [vmem:[%s13] sm:$0x1]
        %v2328 = vld [vmem:[%s14] sm:$0x1]
        %v2329 = vsel %vm1487, %v2321, 0.0
        %2330 = vadd.xlane.f32.xlu0 %v2329
        %v2331 = vpop.xlane.xlu0 %2330
        %v2332 = vsel %vm1487, %v2324, 0.0
        %2333 = vadd.xlane.f32.xlu0 %v2332
        %v2334 = vpop.xlane.xlu0 %2333
        %v2335 = vrcp.pop 16.0
        %v2336 = vmul.f32 %v2331, %v2335
        %v2337 = vmul.f32 %v2334, %v2335
        %v2338 = vsub.f32 %v2321, %v2336
        %v2339 = vsub.f32 %v2324, %v2337
        %v2340 = vmul.f32 %v2338, %v2338
        %v2341 = vmul.f32 %v2339, %v2339
        %v2342 = vsel %vm1487, %v2340, 0.0
        %2343 = vadd.xlane.f32.xlu0 %v2342
        %v2344 = vpop.xlane.xlu0 %2343
        %v2345 = vsel %vm1487, %v2341, 0.0
        %2346 = vadd.xlane.f32.xlu0 %v2345
        %v2347 = vpop.xlane.xlu0 %2346
        %v2348 = vmul.f32 %v2344, %v2335
        %v2349 = vmul.f32 %v2347, %v2335
        %v2350 = vadd.f32 %v2348, 1e-05
        %v2351 = vadd.f32 %v2349, 1e-05
        %v2352 = vrsqrt.pop %v2350
        %v2353 = vrsqrt.pop %v2351
        %v2354 = vmul.f32 %v2338, %v2352
        %v2355 = vmul.f32 %v2339, %v2353
        %v2357 = vlaneseq
        %v2358 = vshrl.u32 %v2357, 7
        %v2359 = vsub.s32 0, %v2358
        %v2360 = vrot.slane %v2327, %v2359
        %v2362 = vmul.f32 %v2354, %v2360
        %v2363 = vmul.f32 %v2355, %v2360
        %v2365 = vlaneseq
        %v2366 = vshrl.u32 %v2365, 7
        %v2367 = vsub.s32 0, %v2366
        %v2368 = vrot.slane %v2328, %v2367
        %v2370 = vadd.f32 %v2362, %v2368
        %v2371 = vadd.f32 %v2363, %v2368
        %v2372 = vpack.c.bf16 %v2371, %v2370
        %v2373 = vld [vmem:[%s15] sm:$0xf]
        %v2374 = vld [vmem:[%s15 + $0x4] sm:$0xf]
        %v2375 = vld [vmem:[%s16] sm:$0x1]
        %v2377 = vlaneseq
        %v2378 = vshrl.u32 %v2377, 7
        %v2379 = vsub.s32 0, %v2378
        %v2380 = vrot.slane %v2375, %v2379
        %v2384 = vunpack.c.l.b16 %v2373
        %v2385 = vunpack.c.l.b16 %v2374
        %v2386 = vpack.c.b16 %v2385, %v2384
        %v2389 = vsel %vm1487, %v2372, 0
        %2391 = vmatprep.subr.bf16.mxu0 0
        %2392 = vmatpush1.bf16.msra.mxu0 %v2386
        %2393 = vmatprep.subr.bf16.mxu0 0
        %2394 = vmatpush1.bf16.msra.mxu0 0
        %2395 = vmatprep.subr.bf16.mxu0 0
        %2396 = vmatpush1.bf16.msra.mxu0 0
        %2397 = vmatprep.subr.bf16.mxu0 0
        %2398 = vmatpush1.bf16.msra.mxu0 0
        %2399 = vmatprep.subr.bf16.mxu0 0
        %2400 = vmatpush1.bf16.msra.mxu0 0
        %2401 = vmatprep.subr.bf16.mxu0 0
        %2402 = vmatpush1.bf16.msra.mxu0 0
        %2403 = vmatprep.subr.bf16.mxu0 0
        %2404 = vmatpush1.bf16.msra.mxu0 0
        %2405 = vmatprep.subr.bf16.mxu0 0
        %2406 = vmatpush1.bf16.msra.mxu0 0
        %2407 = vmatprep.subr.bf16.mxu0 0
        %2408 = vmatpush1.bf16.msra.mxu0 0
        %2409 = vmatprep.subr.bf16.mxu0 0
        %2410 = vmatpush1.bf16.msra.mxu0 0
        %2411 = vmatprep.subr.bf16.mxu0 0
        %2412 = vmatpush1.bf16.msra.mxu0 0
        %2413 = vmatprep.subr.bf16.mxu0 0
        %2414 = vmatpush1.bf16.msra.mxu0 0
        %2415 = vmatprep.subr.bf16.mxu0 0
        %2416 = vmatpush1.bf16.msra.mxu0 0
        %2417 = vmatprep.subr.bf16.mxu0 0
        %2418 = vmatpush1.bf16.msra.mxu0 0
        %2419 = vmatprep.subr.bf16.mxu0 0
        %2420 = vmatpush1.bf16.msra.mxu0 0
        %2421 = vmatprep.subr.bf16.mxu0 0
        %2422 = vmatpush1.bf16.msra.mxu0 0
        %2423 = vmatprep.mubr.bf16.mxu0 0
        %2424 = vmatmul.mubr.bf16.gmra.mrb[0].mxu0 %v2389
        %v2425 = vpop.f32.mrb[0].mxu0
        %v2426 = vadd.f32 %v2380, %v2425
        %v2427 = vpop.f32.mrb[0].mxu0
        %v2428 = vpop.f32.mrb[0].mxu0
        %v2429 = vadd.f32 %v2380, %v2428
        %v2430 = vpop.f32.mrb[0].mxu0
        %2431 = vdwg.mxu0
        %v2432 = vmax.f32 %v2426, 0.0
        %v2433 = vmax.f32 %v2429, 0.0
        %v2434 = vpack.c.bf16 %v2433, %v2432
        %v2435 = vld [vmem:[%s17] sm:$0xf]
        %v2436 = vld [vmem:[%s17 + $0x4] sm:$0xf]
        %v2437 = vld [vmem:[%s18] sm:$0x1]
        %v2439 = vlaneseq
        %v2440 = vshrl.u32 %v2439, 7
        %v2441 = vsub.s32 0, %v2440
        %v2442 = vrot.slane %v2437, %v2441
        %v2446 = vunpack.c.l.b16 %v2435
        %v2447 = vunpack.c.l.b16 %v2436
        %v2448 = vpack.c.b16 %v2447, %v2446
        %v2451 = vsel %vm1487, %v2434, 0
        %2453 = vmatprep.subr.bf16.mxu0 0
        %2454 = vmatpush1.bf16.msra.mxu0 %v2448
        %2455 = vmatprep.subr.bf16.mxu0 0
        %2456 = vmatpush1.bf16.msra.mxu0 0
        %2457 = vmatprep.subr.bf16.mxu0 0
        %2458 = vmatpush1.bf16.msra.mxu0 0
        %2459 = vmatprep.subr.bf16.mxu0 0
        %2460 = vmatpush1.bf16.msra.mxu0 0
        %2461 = vmatprep.subr.bf16.mxu0 0
        %2462 = vmatpush1.bf16.msra.mxu0 0
        %2463 = vmatprep.subr.bf16.mxu0 0
        %2464 = vmatpush1.bf16.msra.mxu0 0
        %2465 = vmatprep.subr.bf16.mxu0 0
        %2466 = vmatpush1.bf16.msra.mxu0 0
        %2467 = vmatprep.subr.bf16.mxu0 0
        %2468 = vmatpush1.bf16.msra.mxu0 0
        %2469 = vmatprep.subr.bf16.mxu0 0
        %2470 = vmatpush1.bf16.msra.mxu0 0
        %2471 = vmatprep.subr.bf16.mxu0 0
        %2472 = vmatpush1.bf16.msra.mxu0 0
        %2473 = vmatprep.subr.bf16.mxu0 0
        %2474 = vmatpush1.bf16.msra.mxu0 0
        %2475 = vmatprep.subr.bf16.mxu0 0
        %2476 = vmatpush1.bf16.msra.mxu0 0
        %2477 = vmatprep.subr.bf16.mxu0 0
        %2478 = vmatpush1.bf16.msra.mxu0 0
        %2479 = vmatprep.subr.bf16.mxu0 0
        %2480 = vmatpush1.bf16.msra.mxu0 0
        %2481 = vmatprep.subr.bf16.mxu0 0
        %2482 = vmatpush1.bf16.msra.mxu0 0
        %2483 = vmatprep.subr.bf16.mxu0 0
        %2484 = vmatpush1.bf16.msra.mxu0 0
        %2485 = vmatprep.mubr.bf16.mxu0 0
        %2486 = vmatmul.mubr.bf16.gmra.mrb[0].mxu0 %v2451
        %v2487 = vpop.f32.mrb[0].mxu0
        %v2488 = vadd.f32 %v2442, %v2487
        %v2489 = vpop.f32.mrb[0].mxu0
        %v2490 = vpop.f32.mrb[0].mxu0
        %v2491 = vadd.f32 %v2442, %v2490
        %v2492 = vpop.f32.mrb[0].mxu0
        %2493 = vdwg.mxu0
        %v2494 = vadd.f32 %v2321, %v2488
        %v2495 = vadd.f32 %v2324, %v2491
        %2496 = vst.msk [vmem:[%s848] sm:$0xff] %vm1487, %v2494
        %2497 = vst.msk [vmem:[%s848 + $0x8] sm:$0xff] %vm1487, %v2495
        %v2498 = vmax.f32 %v2494, 0.0
        %v2499 = vmax.f32 %v2495, 0.0
        %v2500 = vld [vmem:[%s19] sm:$0x1]
        %v2501 = vld [vmem:[%s20] sm:$0x1]
        %v2502 = vsel %vm1487, %v2498, 0.0
        %2503 = vadd.xlane.f32.xlu0 %v2502
        %v2504 = vpop.xlane.xlu0 %2503
        %v2505 = vsel %vm1487, %v2499, 0.0
        %2506 = vadd.xlane.f32.xlu0 %v2505
        %v2507 = vpop.xlane.xlu0 %2506
        %v2508 = vmul.f32 %v2504, %v2335
        %v2509 = vmul.f32 %v2507, %v2335
        %v2510 = vsub.f32 %v2498, %v2508
        %v2511 = vsub.f32 %v2499, %v2509
        %v2512 = vmul.f32 %v2510, %v2510
        %v2513 = vmul.f32 %v2511, %v2511
        %v2514 = vsel %vm1487, %v2512, 0.0
        %2515 = vadd.xlane.f32.xlu0 %v2514
        %v2516 = vpop.xlane.xlu0 %2515
        %v2517 = vsel %vm1487, %v2513, 0.0
        %2518 = vadd.xlane.f32.xlu0 %v2517
        %v2519 = vpop.xlane.xlu0 %2518
        %v2520 = vmul.f32 %v2516, %v2335
        %v2521 = vmul.f32 %v2519, %v2335
        %v2522 = vadd.f32 %v2520, 1e-05
        %v2523 = vadd.f32 %v2521, 1e-05
        %v2524 = vrsqrt.pop %v2522
        %v2525 = vrsqrt.pop %v2523
        %v2526 = vmul.f32 %v2510, %v2524
        %v2527 = vmul.f32 %v2511, %v2525
        %v2529 = vlaneseq
        %v2530 = vshrl.u32 %v2529, 7
        %v2531 = vsub.s32 0, %v2530
        %v2532 = vrot.slane %v2500, %v2531
        %v2534 = vmul.f32 %v2526, %v2532
        %v2535 = vmul.f32 %v2527, %v2532
        %v2537 = vlaneseq
        %v2538 = vshrl.u32 %v2537, 7
        %v2539 = vsub.s32 0, %v2538
        %v2540 = vrot.slane %v2501, %v2539
        %v2542 = vadd.f32 %v2534, %v2540
        %v2543 = vadd.f32 %v2535, %v2540
        %v2544 = vpack.c.bf16 %v2543, %v2542
        %v2546 = vunpack.c.l.b16 %v2544
        %v2547 = vunpack.c.h.b16 %v2544
        %v2548 = vpack.c.b16 %v2546, %v2546
        %v2549 = vpack.c.b16 %v2547, %v2547
        %vm2552 = vcmask 125952
        %2553 = vst.msk [vmem:[%s854] sm:$0xf] %vm2552, %v2548
        %2554 = vst.msk [vmem:[%s854 + $0x4] sm:$0xf] %vm2552, %v2549
        %v2555 = vmul.f32 %v1187, %v1480
        %v2556 = vmul.f32 %v1190, %v1482
        %v2558 = vsel %vm1487, %v2555, 0
        %v2561 = vsel %vm1487, %v2556, 0
        %2563 = vmatprep.subr.mxu0 0.0
        %2564 = vmatpush1.msra.mxu0 %v873
        %2565 = vmatprep.subr.mxu0 0.0
        %2566 = vmatpush1.msra.mxu0 %v874
        %2567 = vmatprep.subr.mxu0 0.0
        %2568 = vmatpush1.msra.mxu0 0.0
        %2569 = vmatprep.subr.mxu0 0.0
        %2570 = vmatpush1.msra.mxu0 0.0
        %2571 = vmatprep.subr.mxu0 0.0
        %2572 = vmatpush1.msra.mxu0 0.0
        %2573 = vmatprep.subr.mxu0 0.0
        %2574 = vmatpush1.msra.mxu0 0.0
        %2575 = vmatprep.subr.mxu0 0.0
        %2576 = vmatpush1.msra.mxu0 0.0
        %2577 = vmatprep.subr.mxu0 0.0
        %2578 = vmatpush1.msra.mxu0 0.0
        %2579 = vmatprep.subr.mxu0 0.0
        %2580 = vmatpush1.msra.mxu0 0.0
        %2581 = vmatprep.subr.mxu0 0.0
        %2582 = vmatpush1.msra.mxu0 0.0
        %2583 = vmatprep.subr.mxu0 0.0
        %2584 = vmatpush1.msra.mxu0 0.0
        %2585 = vmatprep.subr.mxu0 0.0
        %2586 = vmatpush1.msra.mxu0 0.0
        %2587 = vmatprep.subr.mxu0 0.0
        %2588 = vmatpush1.msra.mxu0 0.0
        %2589 = vmatprep.subr.mxu0 0.0
        %2590 = vmatpush1.msra.mxu0 0.0
        %2591 = vmatprep.subr.mxu0 0.0
        %2592 = vmatpush1.msra.mxu0 0.0
        %2593 = vmatprep.subr.mxu0 0.0
        %2594 = vmatpush1.msra.mxu0 0.0
        %2595 = vmatprep.subr.mxu0 0.0
        %2596 = vmatpush1.msra.mxu0 0.0
        %2597 = vmatprep.subr.mxu0 0.0
        %2598 = vmatpush1.msra.mxu0 0.0
        %2599 = vmatprep.subr.mxu0 0.0
        %2600 = vmatpush1.msra.mxu0 0.0
        %2601 = vmatprep.subr.mxu0 0.0
        %2602 = vmatpush1.msra.mxu0 0.0
        %2603 = vmatprep.subr.mxu0 0.0
        %2604 = vmatpush1.msra.mxu0 0.0
        %2605 = vmatprep.subr.mxu0 0.0
        %2606 = vmatpush1.msra.mxu0 0.0
        %2607 = vmatprep.subr.mxu0 0.0
        %2608 = vmatpush1.msra.mxu0 0.0
        %2609 = vmatprep.subr.mxu0 0.0
        %2610 = vmatpush1.msra.mxu0 0.0
        %2611 = vmatprep.subr.mxu0 0.0
        %2612 = vmatpush1.msra.mxu0 0.0
        %2613 = vmatprep.subr.mxu0 0.0
        %2614 = vmatpush1.msra.mxu0 0.0
        %2615 = vmatprep.subr.mxu0 0.0
        %2616 = vmatpush1.msra.mxu0 0.0
        %2617 = vmatprep.subr.mxu0 0.0
        %2618 = vmatpush1.msra.mxu0 0.0
        %2619 = vmatprep.subr.mxu0 0.0
        %2620 = vmatpush1.msra.mxu0 0.0
        %2621 = vmatprep.subr.mxu0 0.0
        %2622 = vmatpush1.msra.mxu0 0.0
        %2623 = vmatprep.subr.mxu0 0.0
        %2624 = vmatpush1.msra.mxu0 0.0
        %2625 = vmatprep.subr.mxu0 0.0
        %2626 = vmatpush1.msra.mxu0 0.0
        %2627 = vmatprep.mubr.f32.mxu0 0.0
        %2628 = vmatmul.mubr.f32.gmra.mrb[0].mxu0 %v2558
        %v2629 = vpop.f32.mrb[0].mxu0
        %v2630 = vadd.f32 0.0, %v2629
        %v2631 = vpop.f32.mrb[0].mxu0
        %2632 = vmatprep.mubr.f32.mxu0 0.0
        %2633 = vmatmul.mubr.f32.gmra.mrb[0].mxu0 %v2561
        %v2634 = vpop.f32.mrb[0].mxu0
        %v2635 = vadd.f32 0.0, %v2634
        %v2636 = vpop.f32.mrb[0].mxu0
        %2637 = vdwg.mxu0
        %v2638 = vmul.f32 %v2630, 0.35355338
        %v2639 = vmul.f32 %v2635, 0.35355338
        %v2640 = vmul.f32 %v1187, %v1574
        %v2641 = vmul.f32 %v1190, %v1576
        %v2643 = vsel %vm1487, %v2640, 0
        %v2646 = vsel %vm1487, %v2641, 0
        %2648 = vmatprep.subr.mxu0 0.0
        %2649 = vmatpush1.msra.mxu0 %v873
        %2650 = vmatprep.subr.mxu0 0.0
        %2651 = vmatpush1.msra.mxu0 %v874
        %2652 = vmatprep.subr.mxu0 0.0
        %2653 = vmatpush1.msra.mxu0 0.0
        %2654 = vmatprep.subr.mxu0 0.0
        %2655 = vmatpush1.msra.mxu0 0.0
        %2656 = vmatprep.subr.mxu0 0.0
        %2657 = vmatpush1.msra.mxu0 0.0
        %2658 = vmatprep.subr.mxu0 0.0
        %2659 = vmatpush1.msra.mxu0 0.0
        %2660 = vmatprep.subr.mxu0 0.0
        %2661 = vmatpush1.msra.mxu0 0.0
        %2662 = vmatprep.subr.mxu0 0.0
        %2663 = vmatpush1.msra.mxu0 0.0
        %2664 = vmatprep.subr.mxu0 0.0
        %2665 = vmatpush1.msra.mxu0 0.0
        %2666 = vmatprep.subr.mxu0 0.0
        %2667 = vmatpush1.msra.mxu0 0.0
        %2668 = vmatprep.subr.mxu0 0.0
        %2669 = vmatpush1.msra.mxu0 0.0
        %2670 = vmatprep.subr.mxu0 0.0
        %2671 = vmatpush1.msra.mxu0 0.0
        %2672 = vmatprep.subr.mxu0 0.0
        %2673 = vmatpush1.msra.mxu0 0.0
        %2674 = vmatprep.subr.mxu0 0.0
        %2675 = vmatpush1.msra.mxu0 0.0
        %2676 = vmatprep.subr.mxu0 0.0
        %2677 = vmatpush1.msra.mxu0 0.0
        %2678 = vmatprep.subr.mxu0 0.0
        %2679 = vmatpush1.msra.mxu0 0.0
        %2680 = vmatprep.subr.mxu0 0.0
        %2681 = vmatpush1.msra.mxu0 0.0
        %2682 = vmatprep.subr.mxu0 0.0
        %2683 = vmatpush1.msra.mxu0 0.0
        %2684 = vmatprep.subr.mxu0 0.0
        %2685 = vmatpush1.msra.mxu0 0.0
        %2686 = vmatprep.subr.mxu0 0.0
        %2687 = vmatpush1.msra.mxu0 0.0
        %2688 = vmatprep.subr.mxu0 0.0
        %2689 = vmatpush1.msra.mxu0 0.0
        %2690 = vmatprep.subr.mxu0 0.0
        %2691 = vmatpush1.msra.mxu0 0.0
        %2692 = vmatprep.subr.mxu0 0.0
        %2693 = vmatpush1.msra.mxu0 0.0
        %2694 = vmatprep.subr.mxu0 0.0
        %2695 = vmatpush1.msra.mxu0 0.0
        %2696 = vmatprep.subr.mxu0 0.0
        %2697 = vmatpush1.msra.mxu0 0.0
        %2698 = vmatprep.subr.mxu0 0.0
        %2699 = vmatpush1.msra.mxu0 0.0
        %2700 = vmatprep.subr.mxu0 0.0
        %2701 = vmatpush1.msra.mxu0 0.0
        %2702 = vmatprep.subr.mxu0 0.0
        %2703 = vmatpush1.msra.mxu0 0.0
        %2704 = vmatprep.subr.mxu0 0.0
        %2705 = vmatpush1.msra.mxu0 0.0
        %2706 = vmatprep.subr.mxu0 0.0
        %2707 = vmatpush1.msra.mxu0 0.0
        %2708 = vmatprep.subr.mxu0 0.0
        %2709 = vmatpush1.msra.mxu0 0.0
        %2710 = vmatprep.subr.mxu0 0.0
        %2711 = vmatpush1.msra.mxu0 0.0
        %2712 = vmatprep.mubr.f32.mxu0 0.0
        %2713 = vmatmul.mubr.f32.gmra.mrb[0].mxu0 %v2643
        %v2714 = vpop.f32.mrb[0].mxu0
        %v2715 = vadd.f32 0.0, %v2714
        %v2716 = vpop.f32.mrb[0].mxu0
        %2717 = vmatprep.mubr.f32.mxu0 0.0
        %2718 = vmatmul.mubr.f32.gmra.mrb[0].mxu0 %v2646
        %v2719 = vpop.f32.mrb[0].mxu0
        %v2720 = vadd.f32 0.0, %v2719
        %v2721 = vpop.f32.mrb[0].mxu0
        %2722 = vdwg.mxu0
        %v2723 = vmul.f32 %v2715, 0.35355338
        %v2724 = vmul.f32 %v2720, 0.35355338
        %v2725 = vmul.f32 %v1187, %v1667
        %v2726 = vmul.f32 %v1190, %v1669
        %v2728 = vsel %vm1487, %v2725, 0
        %v2731 = vsel %vm1487, %v2726, 0
        %2733 = vmatprep.subr.mxu0 0.0
        %2734 = vmatpush1.msra.mxu0 %v873
        %2735 = vmatprep.subr.mxu0 0.0
        %2736 = vmatpush1.msra.mxu0 %v874
        %2737 = vmatprep.subr.mxu0 0.0
        %2738 = vmatpush1.msra.mxu0 0.0
        %2739 = vmatprep.subr.mxu0 0.0
        %2740 = vmatpush1.msra.mxu0 0.0
        %2741 = vmatprep.subr.mxu0 0.0
        %2742 = vmatpush1.msra.mxu0 0.0
        %2743 = vmatprep.subr.mxu0 0.0
        %2744 = vmatpush1.msra.mxu0 0.0
        %2745 = vmatprep.subr.mxu0 0.0
        %2746 = vmatpush1.msra.mxu0 0.0
        %2747 = vmatprep.subr.mxu0 0.0
        %2748 = vmatpush1.msra.mxu0 0.0
        %2749 = vmatprep.subr.mxu0 0.0
        %2750 = vmatpush1.msra.mxu0 0.0
        %2751 = vmatprep.subr.mxu0 0.0
        %2752 = vmatpush1.msra.mxu0 0.0
        %2753 = vmatprep.subr.mxu0 0.0
        %2754 = vmatpush1.msra.mxu0 0.0
        %2755 = vmatprep.subr.mxu0 0.0
        %2756 = vmatpush1.msra.mxu0 0.0
        %2757 = vmatprep.subr.mxu0 0.0
        %2758 = vmatpush1.msra.mxu0 0.0
        %2759 = vmatprep.subr.mxu0 0.0
        %2760 = vmatpush1.msra.mxu0 0.0
        %2761 = vmatprep.subr.mxu0 0.0
        %2762 = vmatpush1.msra.mxu0 0.0
        %2763 = vmatprep.subr.mxu0 0.0
        %2764 = vmatpush1.msra.mxu0 0.0
        %2765 = vmatprep.subr.mxu0 0.0
        %2766 = vmatpush1.msra.mxu0 0.0
        %2767 = vmatprep.subr.mxu0 0.0
        %2768 = vmatpush1.msra.mxu0 0.0
        %2769 = vmatprep.subr.mxu0 0.0
        %2770 = vmatpush1.msra.mxu0 0.0
        %2771 = vmatprep.subr.mxu0 0.0
        %2772 = vmatpush1.msra.mxu0 0.0
        %2773 = vmatprep.subr.mxu0 0.0
        %2774 = vmatpush1.msra.mxu0 0.0
        %2775 = vmatprep.subr.mxu0 0.0
        %2776 = vmatpush1.msra.mxu0 0.0
        %2777 = vmatprep.subr.mxu0 0.0
        %2778 = vmatpush1.msra.mxu0 0.0
        %2779 = vmatprep.subr.mxu0 0.0
        %2780 = vmatpush1.msra.mxu0 0.0
        %2781 = vmatprep.subr.mxu0 0.0
        %2782 = vmatpush1.msra.mxu0 0.0
        %2783 = vmatprep.subr.mxu0 0.0
        %2784 = vmatpush1.msra.mxu0 0.0
        %2785 = vmatprep.subr.mxu0 0.0
        %2786 = vmatpush1.msra.mxu0 0.0
        %2787 = vmatprep.subr.mxu0 0.0
        %2788 = vmatpush1.msra.mxu0 0.0
        %2789 = vmatprep.subr.mxu0 0.0
        %2790 = vmatpush1.msra.mxu0 0.0
        %2791 = vmatprep.subr.mxu0 0.0
        %2792 = vmatpush1.msra.mxu0 0.0
        %2793 = vmatprep.subr.mxu0 0.0
        %2794 = vmatpush1.msra.mxu0 0.0
        %2795 = vmatprep.subr.mxu0 0.0
        %2796 = vmatpush1.msra.mxu0 0.0
        %2797 = vmatprep.mubr.f32.mxu0 0.0
        %2798 = vmatmul.mubr.f32.gmra.mrb[0].mxu0 %v2728
        %v2799 = vpop.f32.mrb[0].mxu0
        %v2800 = vadd.f32 0.0, %v2799
        %v2801 = vpop.f32.mrb[0].mxu0
        %2802 = vmatprep.mubr.f32.mxu0 0.0
        %2803 = vmatmul.mubr.f32.gmra.mrb[0].mxu0 %v2731
        %v2804 = vpop.f32.mrb[0].mxu0
        %v2805 = vadd.f32 0.0, %v2804
        %v2806 = vpop.f32.mrb[0].mxu0
        %2807 = vdwg.mxu0
        %v2808 = vmul.f32 %v2800, 0.35355338
        %v2809 = vmul.f32 %v2805, 0.35355338
        %v2810 = vmul.f32 %v1187, %v1760
        %v2811 = vmul.f32 %v1190, %v1762
        %v2813 = vsel %vm1487, %v2810, 0
        %v2816 = vsel %vm1487, %v2811, 0
        %2818 = vmatprep.subr.mxu0 0.0
        %2819 = vmatpush1.msra.mxu0 %v873
        %2820 = vmatprep.subr.mxu0 0.0
        %2821 = vmatpush1.msra.mxu0 %v874
        %2822 = vmatprep.subr.mxu0 0.0
        %2823 = vmatpush1.msra.mxu0 0.0
        %2824 = vmatprep.subr.mxu0 0.0
        %2825 = vmatpush1.msra.mxu0 0.0
        %2826 = vmatprep.subr.mxu0 0.0
        %2827 = vmatpush1.msra.mxu0 0.0
        %2828 = vmatprep.subr.mxu0 0.0
        %2829 = vmatpush1.msra.mxu0 0.0
        %2830 = vmatprep.subr.mxu0 0.0
        %2831 = vmatpush1.msra.mxu0 0.0
        %2832 = vmatprep.subr.mxu0 0.0
        %2833 = vmatpush1.msra.mxu0 0.0
        %2834 = vmatprep.subr.mxu0 0.0
        %2835 = vmatpush1.msra.mxu0 0.0
        %2836 = vmatprep.subr.mxu0 0.0
        %2837 = vmatpush1.msra.mxu0 0.0
        %2838 = vmatprep.subr.mxu0 0.0
        %2839 = vmatpush1.msra.mxu0 0.0
        %2840 = vmatprep.subr.mxu0 0.0
        %2841 = vmatpush1.msra.mxu0 0.0
        %2842 = vmatprep.subr.mxu0 0.0
        %2843 = vmatpush1.msra.mxu0 0.0
        %2844 = vmatprep.subr.mxu0 0.0
        %2845 = vmatpush1.msra.mxu0 0.0
        %2846 = vmatprep.subr.mxu0 0.0
        %2847 = vmatpush1.msra.mxu0 0.0
        %2848 = vmatprep.subr.mxu0 0.0
        %2849 = vmatpush1.msra.mxu0 0.0
        %2850 = vmatprep.subr.mxu0 0.0
        %2851 = vmatpush1.msra.mxu0 0.0
        %2852 = vmatprep.subr.mxu0 0.0
        %2853 = vmatpush1.msra.mxu0 0.0
        %2854 = vmatprep.subr.mxu0 0.0
        %2855 = vmatpush1.msra.mxu0 0.0
        %2856 = vmatprep.subr.mxu0 0.0
        %2857 = vmatpush1.msra.mxu0 0.0
        %2858 = vmatprep.subr.mxu0 0.0
        %2859 = vmatpush1.msra.mxu0 0.0
        %2860 = vmatprep.subr.mxu0 0.0
        %2861 = vmatpush1.msra.mxu0 0.0
        %2862 = vmatprep.subr.mxu0 0.0
        %2863 = vmatpush1.msra.mxu0 0.0
        %2864 = vmatprep.subr.mxu0 0.0
        %2865 = vmatpush1.msra.mxu0 0.0
        %2866 = vmatprep.subr.mxu0 0.0
        %2867 = vmatpush1.msra.mxu0 0.0
        %2868 = vmatprep.subr.mxu0 0.0
        %2869 = vmatpush1.msra.mxu0 0.0
        %2870 = vmatprep.subr.mxu0 0.0
        %2871 = vmatpush1.msra.mxu0 0.0
        %2872 = vmatprep.subr.mxu0 0.0
        %2873 = vmatpush1.msra.mxu0 0.0
        %2874 = vmatprep.subr.mxu0 0.0
        %2875 = vmatpush1.msra.mxu0 0.0
        %2876 = vmatprep.subr.mxu0 0.0
        %2877 = vmatpush1.msra.mxu0 0.0
        %2878 = vmatprep.subr.mxu0 0.0
        %2879 = vmatpush1.msra.mxu0 0.0
        %2880 = vmatprep.subr.mxu0 0.0
        %2881 = vmatpush1.msra.mxu0 0.0
        %2882 = vmatprep.mubr.f32.mxu0 0.0
        %2883 = vmatmul.mubr.f32.gmra.mrb[0].mxu0 %v2813
        %v2884 = vpop.f32.mrb[0].mxu0
        %v2885 = vadd.f32 0.0, %v2884
        %v2886 = vpop.f32.mrb[0].mxu0
        %2887 = vmatprep.mubr.f32.mxu0 0.0
        %2888 = vmatmul.mubr.f32.gmra.mrb[0].mxu0 %v2816
        %v2889 = vpop.f32.mrb[0].mxu0
        %v2890 = vadd.f32 0.0, %v2889
        %v2891 = vpop.f32.mrb[0].mxu0
        %2892 = vdwg.mxu0
        %v2893 = vmul.f32 %v2885, 0.35355338
        %v2894 = vmul.f32 %v2890, 0.35355338
        %v2895 = vmax.f32 %v2638, %v2723
        %v2896 = vmax.f32 %v2639, %v2724
        %v2897 = vmax.f32 %v2895, %v2808
        %v2898 = vmax.f32 %v2896, %v2809
        %v2899 = vmax.f32 %v2897, %v2893
        %v2900 = vmax.f32 %v2898, %v2894
        %v2901 = vsub.f32 %v2638, %v2899
        %v2902 = vsub.f32 %v2639, %v2900
        %v2903 = vmul.f32 %v2901, 1.442695
        %v2904 = vpow.pop %v2903
        %v2905 = vmul.f32 %v2902, 1.442695
        %v2906 = vpow.pop %v2905
        %v2907 = vsub.f32 %v2723, %v2899
        %v2908 = vsub.f32 %v2724, %v2900
        %v2909 = vmul.f32 %v2907, 1.442695
        %v2910 = vpow.pop %v2909
        %v2911 = vmul.f32 %v2908, 1.442695
        %v2912 = vpow.pop %v2911
        %v2913 = vsub.f32 %v2808, %v2899
        %v2914 = vsub.f32 %v2809, %v2900
        %v2915 = vmul.f32 %v2913, 1.442695
        %v2916 = vpow.pop %v2915
        %v2917 = vmul.f32 %v2914, 1.442695
        %v2918 = vpow.pop %v2917
        %v2919 = vsub.f32 %v2893, %v2899
        %v2920 = vsub.f32 %v2894, %v2900
        %v2921 = vmul.f32 %v2919, 1.442695
        %v2922 = vpow.pop %v2921
        %v2923 = vmul.f32 %v2920, 1.442695
        %v2924 = vpow.pop %v2923
        %v2925 = vadd.f32 %v2904, %v2910
        %v2926 = vadd.f32 %v2906, %v2912
        %v2927 = vadd.f32 %v2925, %v2916
        %v2928 = vadd.f32 %v2926, %v2918
        %v2929 = vadd.f32 %v2927, %v2922
        %v2930 = vadd.f32 %v2928, %v2924
        %v2931 = vrcp.pop %v2929
        %v2932 = vmul.f32 1.0, %v2931
        %v2933 = vrcp.pop %v2930
        %v2934 = vmul.f32 1.0, %v2933
        %v2935 = vmul.f32 %v2904, %v2932
        %v2936 = vmul.f32 %v2906, %v2934
        %v2938 = vsel %vm1892, %v2935, 0
        %v2941 = vsel %vm1892, %v2936, 0
        %2943 = vmatprep.subr.mxu0 0.0
        %2944 = vmatpush1.msra.mxu0 %v1901
        %2945 = vmatprep.subr.mxu0 0.0
        %2946 = vmatpush1.msra.mxu0 0.0
        %2947 = vmatprep.subr.mxu0 0.0
        %2948 = vmatpush1.msra.mxu0 0.0
        %2949 = vmatprep.subr.mxu0 0.0
        %2950 = vmatpush1.msra.mxu0 0.0
        %2951 = vmatprep.subr.mxu0 0.0
        %2952 = vmatpush1.msra.mxu0 0.0
        %2953 = vmatprep.subr.mxu0 0.0
        %2954 = vmatpush1.msra.mxu0 0.0
        %2955 = vmatprep.subr.mxu0 0.0
        %2956 = vmatpush1.msra.mxu0 0.0
        %2957 = vmatprep.subr.mxu0 0.0
        %2958 = vmatpush1.msra.mxu0 0.0
        %2959 = vmatprep.subr.mxu0 0.0
        %2960 = vmatpush1.msra.mxu0 0.0
        %2961 = vmatprep.subr.mxu0 0.0
        %2962 = vmatpush1.msra.mxu0 0.0
        %2963 = vmatprep.subr.mxu0 0.0
        %2964 = vmatpush1.msra.mxu0 0.0
        %2965 = vmatprep.subr.mxu0 0.0
        %2966 = vmatpush1.msra.mxu0 0.0
        %2967 = vmatprep.subr.mxu0 0.0
        %2968 = vmatpush1.msra.mxu0 0.0
        %2969 = vmatprep.subr.mxu0 0.0
        %2970 = vmatpush1.msra.mxu0 0.0
        %2971 = vmatprep.subr.mxu0 0.0
        %2972 = vmatpush1.msra.mxu0 0.0
        %2973 = vmatprep.subr.mxu0 0.0
        %2974 = vmatpush1.msra.mxu0 0.0
        %2975 = vmatprep.subr.mxu0 0.0
        %2976 = vmatpush1.msra.mxu0 0.0
        %2977 = vmatprep.subr.mxu0 0.0
        %2978 = vmatpush1.msra.mxu0 0.0
        %2979 = vmatprep.subr.mxu0 0.0
        %2980 = vmatpush1.msra.mxu0 0.0
        %2981 = vmatprep.subr.mxu0 0.0
        %2982 = vmatpush1.msra.mxu0 0.0
        %2983 = vmatprep.subr.mxu0 0.0
        %2984 = vmatpush1.msra.mxu0 0.0
        %2985 = vmatprep.subr.mxu0 0.0
        %2986 = vmatpush1.msra.mxu0 0.0
        %2987 = vmatprep.subr.mxu0 0.0
        %2988 = vmatpush1.msra.mxu0 0.0
        %2989 = vmatprep.subr.mxu0 0.0
        %2990 = vmatpush1.msra.mxu0 0.0
        %2991 = vmatprep.subr.mxu0 0.0
        %2992 = vmatpush1.msra.mxu0 0.0
        %2993 = vmatprep.subr.mxu0 0.0
        %2994 = vmatpush1.msra.mxu0 0.0
        %2995 = vmatprep.subr.mxu0 0.0
        %2996 = vmatpush1.msra.mxu0 0.0
        %2997 = vmatprep.subr.mxu0 0.0
        %2998 = vmatpush1.msra.mxu0 0.0
        %2999 = vmatprep.subr.mxu0 0.0
        %3000 = vmatpush1.msra.mxu0 0.0
        %3001 = vmatprep.subr.mxu0 0.0
        %3002 = vmatpush1.msra.mxu0 0.0
        %3003 = vmatprep.subr.mxu0 0.0
        %3004 = vmatpush1.msra.mxu0 0.0
        %3005 = vmatprep.subr.mxu0 0.0
        %3006 = vmatpush1.msra.mxu0 0.0
        %3007 = vmatprep.mubr.f32.mxu0 0.0
        %3008 = vmatmul.mubr.f32.gmra.mrb[0].mxu0 %v2938
        %v3009 = vpop.f32.mrb[0].mxu0
        %v3010 = vadd.f32 0.0, %v3009
        %v3011 = vpop.f32.mrb[0].mxu0
        %3012 = vmatprep.mubr.f32.mxu0 0.0
        %3013 = vmatmul.mubr.f32.gmra.mrb[0].mxu0 %v2941
        %v3014 = vpop.f32.mrb[0].mxu0
        %v3015 = vadd.f32 0.0, %v3014
        %v3016 = vpop.f32.mrb[0].mxu0
        %3017 = vdwg.mxu0
        %v3018 = vmul.f32 %v3010, %v1979
        %v3019 = vmul.f32 %v3015, %v1981
        %v3020 = vadd.f32 %v3018, 0.0
        %v3021 = vadd.f32 %v3019, 0.0
        %v3022 = vmul.f32 %v2910, %v2932
        %v3023 = vmul.f32 %v2912, %v2934
        %v3025 = vsel %vm1892, %v3022, 0
        %v3028 = vsel %vm1892, %v3023, 0
        %3030 = vmatprep.subr.mxu0 0.0
        %3031 = vmatpush1.msra.mxu0 %v1901
        %3032 = vmatprep.subr.mxu0 0.0
        %3033 = vmatpush1.msra.mxu0 0.0
        %3034 = vmatprep.subr.mxu0 0.0
        %3035 = vmatpush1.msra.mxu0 0.0
        %3036 = vmatprep.subr.mxu0 0.0
        %3037 = vmatpush1.msra.mxu0 0.0
        %3038 = vmatprep.subr.mxu0 0.0
        %3039 = vmatpush1.msra.mxu0 0.0
        %3040 = vmatprep.subr.mxu0 0.0
        %3041 = vmatpush1.msra.mxu0 0.0
        %3042 = vmatprep.subr.mxu0 0.0
        %3043 = vmatpush1.msra.mxu0 0.0
        %3044 = vmatprep.subr.mxu0 0.0
        %3045 = vmatpush1.msra.mxu0 0.0
        %3046 = vmatprep.subr.mxu0 0.0
        %3047 = vmatpush1.msra.mxu0 0.0
        %3048 = vmatprep.subr.mxu0 0.0
        %3049 = vmatpush1.msra.mxu0 0.0
        %3050 = vmatprep.subr.mxu0 0.0
        %3051 = vmatpush1.msra.mxu0 0.0
        %3052 = vmatprep.subr.mxu0 0.0
        %3053 = vmatpush1.msra.mxu0 0.0
        %3054 = vmatprep.subr.mxu0 0.0
        %3055 = vmatpush1.msra.mxu0 0.0
        %3056 = vmatprep.subr.mxu0 0.0
        %3057 = vmatpush1.msra.mxu0 0.0
        %3058 = vmatprep.subr.mxu0 0.0
        %3059 = vmatpush1.msra.mxu0 0.0
        %3060 = vmatprep.subr.mxu0 0.0
        %3061 = vmatpush1.msra.mxu0 0.0
        %3062 = vmatprep.subr.mxu0 0.0
        %3063 = vmatpush1.msra.mxu0 0.0
        %3064 = vmatprep.subr.mxu0 0.0
        %3065 = vmatpush1.msra.mxu0 0.0
        %3066 = vmatprep.subr.mxu0 0.0
        %3067 = vmatpush1.msra.mxu0 0.0
        %3068 = vmatprep.subr.mxu0 0.0
        %3069 = vmatpush1.msra.mxu0 0.0
        %3070 = vmatprep.subr.mxu0 0.0
        %3071 = vmatpush1.msra.mxu0 0.0
        %3072 = vmatprep.subr.mxu0 0.0
        %3073 = vmatpush1.msra.mxu0 0.0
        %3074 = vmatprep.subr.mxu0 0.0
        %3075 = vmatpush1.msra.mxu0 0.0
        %3076 = vmatprep.subr.mxu0 0.0
        %3077 = vmatpush1.msra.mxu0 0.0
        %3078 = vmatprep.subr.mxu0 0.0
        %3079 = vmatpush1.msra.mxu0 0.0
        %3080 = vmatprep.subr.mxu0 0.0
        %3081 = vmatpush1.msra.mxu0 0.0
        %3082 = vmatprep.subr.mxu0 0.0
        %3083 = vmatpush1.msra.mxu0 0.0
        %3084 = vmatprep.subr.mxu0 0.0
        %3085 = vmatpush1.msra.mxu0 0.0
        %3086 = vmatprep.subr.mxu0 0.0
        %3087 = vmatpush1.msra.mxu0 0.0
        %3088 = vmatprep.subr.mxu0 0.0
        %3089 = vmatpush1.msra.mxu0 0.0
        %3090 = vmatprep.subr.mxu0 0.0
        %3091 = vmatpush1.msra.mxu0 0.0
        %3092 = vmatprep.subr.mxu0 0.0
        %3093 = vmatpush1.msra.mxu0 0.0
        %3094 = vmatprep.mubr.f32.mxu0 0.0
        %3095 = vmatmul.mubr.f32.gmra.mrb[0].mxu0 %v3025
        %v3096 = vpop.f32.mrb[0].mxu0
        %v3097 = vadd.f32 0.0, %v3096
        %v3098 = vpop.f32.mrb[0].mxu0
        %3099 = vmatprep.mubr.f32.mxu0 0.0
        %3100 = vmatmul.mubr.f32.gmra.mrb[0].mxu0 %v3028
        %v3101 = vpop.f32.mrb[0].mxu0
        %v3102 = vadd.f32 0.0, %v3101
        %v3103 = vpop.f32.mrb[0].mxu0
        %3104 = vdwg.mxu0
        %v3105 = vmul.f32 %v3097, %v2072
        %v3106 = vmul.f32 %v3102, %v2074
        %v3107 = vadd.f32 %v3020, %v3105
        %v3108 = vadd.f32 %v3021, %v3106
        %v3109 = vmul.f32 %v2916, %v2932
        %v3110 = vmul.f32 %v2918, %v2934
        %v3112 = vsel %vm1892, %v3109, 0
        %v3115 = vsel %vm1892, %v3110, 0
        %3117 = vmatprep.subr.mxu0 0.0
        %3118 = vmatpush1.msra.mxu0 %v1901
        %3119 = vmatprep.subr.mxu0 0.0
        %3120 = vmatpush1.msra.mxu0 0.0
        %3121 = vmatprep.subr.mxu0 0.0
        %3122 = vmatpush1.msra.mxu0 0.0
        %3123 = vmatprep.subr.mxu0 0.0
        %3124 = vmatpush1.msra.mxu0 0.0
        %3125 = vmatprep.subr.mxu0 0.0
        %3126 = vmatpush1.msra.mxu0 0.0
        %3127 = vmatprep.subr.mxu0 0.0
        %3128 = vmatpush1.msra.mxu0 0.0
        %3129 = vmatprep.subr.mxu0 0.0
        %3130 = vmatpush1.msra.mxu0 0.0
        %3131 = vmatprep.subr.mxu0 0.0
        %3132 = vmatpush1.msra.mxu0 0.0
        %3133 = vmatprep.subr.mxu0 0.0
        %3134 = vmatpush1.msra.mxu0 0.0
        %3135 = vmatprep.subr.mxu0 0.0
        %3136 = vmatpush1.msra.mxu0 0.0
        %3137 = vmatprep.subr.mxu0 0.0
        %3138 = vmatpush1.msra.mxu0 0.0
        %3139 = vmatprep.subr.mxu0 0.0
        %3140 = vmatpush1.msra.mxu0 0.0
        %3141 = vmatprep.subr.mxu0 0.0
        %3142 = vmatpush1.msra.mxu0 0.0
        %3143 = vmatprep.subr.mxu0 0.0
        %3144 = vmatpush1.msra.mxu0 0.0
        %3145 = vmatprep.subr.mxu0 0.0
        %3146 = vmatpush1.msra.mxu0 0.0
        %3147 = vmatprep.subr.mxu0 0.0
        %3148 = vmatpush1.msra.mxu0 0.0
        %3149 = vmatprep.subr.mxu0 0.0
        %3150 = vmatpush1.msra.mxu0 0.0
        %3151 = vmatprep.subr.mxu0 0.0
        %3152 = vmatpush1.msra.mxu0 0.0
        %3153 = vmatprep.subr.mxu0 0.0
        %3154 = vmatpush1.msra.mxu0 0.0
        %3155 = vmatprep.subr.mxu0 0.0
        %3156 = vmatpush1.msra.mxu0 0.0
        %3157 = vmatprep.subr.mxu0 0.0
        %3158 = vmatpush1.msra.mxu0 0.0
        %3159 = vmatprep.subr.mxu0 0.0
        %3160 = vmatpush1.msra.mxu0 0.0
        %3161 = vmatprep.subr.mxu0 0.0
        %3162 = vmatpush1.msra.mxu0 0.0
        %3163 = vmatprep.subr.mxu0 0.0
        %3164 = vmatpush1.msra.mxu0 0.0
        %3165 = vmatprep.subr.mxu0 0.0
        %3166 = vmatpush1.msra.mxu0 0.0
        %3167 = vmatprep.subr.mxu0 0.0
        %3168 = vmatpush1.msra.mxu0 0.0
        %3169 = vmatprep.subr.mxu0 0.0
        %3170 = vmatpush1.msra.mxu0 0.0
        %3171 = vmatprep.subr.mxu0 0.0
        %3172 = vmatpush1.msra.mxu0 0.0
        %3173 = vmatprep.subr.mxu0 0.0
        %3174 = vmatpush1.msra.mxu0 0.0
        %3175 = vmatprep.subr.mxu0 0.0
        %3176 = vmatpush1.msra.mxu0 0.0
        %3177 = vmatprep.subr.mxu0 0.0
        %3178 = vmatpush1.msra.mxu0 0.0
        %3179 = vmatprep.subr.mxu0 0.0
        %3180 = vmatpush1.msra.mxu0 0.0
        %3181 = vmatprep.mubr.f32.mxu0 0.0
        %3182 = vmatmul.mubr.f32.gmra.mrb[0].mxu0 %v3112
        %v3183 = vpop.f32.mrb[0].mxu0
        %v3184 = vadd.f32 0.0, %v3183
        %v3185 = vpop.f32.mrb[0].mxu0
        %3186 = vmatprep.mubr.f32.mxu0 0.0
        %3187 = vmatmul.mubr.f32.gmra.mrb[0].mxu0 %v3115
        %v3188 = vpop.f32.mrb[0].mxu0
        %v3189 = vadd.f32 0.0, %v3188
        %v3190 = vpop.f32.mrb[0].mxu0
        %3191 = vdwg.mxu0
        %v3192 = vmul.f32 %v3184, %v2165
        %v3193 = vmul.f32 %v3189, %v2167
        %v3194 = vadd.f32 %v3107, %v3192
        %v3195 = vadd.f32 %v3108, %v3193
        %v3196 = vmul.f32 %v2922, %v2932
        %v3197 = vmul.f32 %v2924, %v2934
        %v3199 = vsel %vm1892, %v3196, 0
        %v3202 = vsel %vm1892, %v3197, 0
        %3204 = vmatprep.subr.mxu0 0.0
        %3205 = vmatpush1.msra.mxu0 %v1901
        %3206 = vmatprep.subr.mxu0 0.0
        %3207 = vmatpush1.msra.mxu0 0.0
        %3208 = vmatprep.subr.mxu0 0.0
        %3209 = vmatpush1.msra.mxu0 0.0
        %3210 = vmatprep.subr.mxu0 0.0
        %3211 = vmatpush1.msra.mxu0 0.0
        %3212 = vmatprep.subr.mxu0 0.0
        %3213 = vmatpush1.msra.mxu0 0.0
        %3214 = vmatprep.subr.mxu0 0.0
        %3215 = vmatpush1.msra.mxu0 0.0
        %3216 = vmatprep.subr.mxu0 0.0
        %3217 = vmatpush1.msra.mxu0 0.0
        %3218 = vmatprep.subr.mxu0 0.0
        %3219 = vmatpush1.msra.mxu0 0.0
        %3220 = vmatprep.subr.mxu0 0.0
        %3221 = vmatpush1.msra.mxu0 0.0
        %3222 = vmatprep.subr.mxu0 0.0
        %3223 = vmatpush1.msra.mxu0 0.0
        %3224 = vmatprep.subr.mxu0 0.0
        %3225 = vmatpush1.msra.mxu0 0.0
        %3226 = vmatprep.subr.mxu0 0.0
        %3227 = vmatpush1.msra.mxu0 0.0
        %3228 = vmatprep.subr.mxu0 0.0
        %3229 = vmatpush1.msra.mxu0 0.0
        %3230 = vmatprep.subr.mxu0 0.0
        %3231 = vmatpush1.msra.mxu0 0.0
        %3232 = vmatprep.subr.mxu0 0.0
        %3233 = vmatpush1.msra.mxu0 0.0
        %3234 = vmatprep.subr.mxu0 0.0
        %3235 = vmatpush1.msra.mxu0 0.0
        %3236 = vmatprep.subr.mxu0 0.0
        %3237 = vmatpush1.msra.mxu0 0.0
        %3238 = vmatprep.subr.mxu0 0.0
        %3239 = vmatpush1.msra.mxu0 0.0
        %3240 = vmatprep.subr.mxu0 0.0
        %3241 = vmatpush1.msra.mxu0 0.0
        %3242 = vmatprep.subr.mxu0 0.0
        %3243 = vmatpush1.msra.mxu0 0.0
        %3244 = vmatprep.subr.mxu0 0.0
        %3245 = vmatpush1.msra.mxu0 0.0
        %3246 = vmatprep.subr.mxu0 0.0
        %3247 = vmatpush1.msra.mxu0 0.0
        %3248 = vmatprep.subr.mxu0 0.0
        %3249 = vmatpush1.msra.mxu0 0.0
        %3250 = vmatprep.subr.mxu0 0.0
        %3251 = vmatpush1.msra.mxu0 0.0
        %3252 = vmatprep.subr.mxu0 0.0
        %3253 = vmatpush1.msra.mxu0 0.0
        %3254 = vmatprep.subr.mxu0 0.0
        %3255 = vmatpush1.msra.mxu0 0.0
        %3256 = vmatprep.subr.mxu0 0.0
        %3257 = vmatpush1.msra.mxu0 0.0
        %3258 = vmatprep.subr.mxu0 0.0
        %3259 = vmatpush1.msra.mxu0 0.0
        %3260 = vmatprep.subr.mxu0 0.0
        %3261 = vmatpush1.msra.mxu0 0.0
        %3262 = vmatprep.subr.mxu0 0.0
        %3263 = vmatpush1.msra.mxu0 0.0
        %3264 = vmatprep.subr.mxu0 0.0
        %3265 = vmatpush1.msra.mxu0 0.0
        %3266 = vmatprep.subr.mxu0 0.0
        %3267 = vmatpush1.msra.mxu0 0.0
        %3268 = vmatprep.mubr.f32.mxu0 0.0
        %3269 = vmatmul.mubr.f32.gmra.mrb[0].mxu0 %v3199
        %v3270 = vpop.f32.mrb[0].mxu0
        %v3271 = vadd.f32 0.0, %v3270
        %v3272 = vpop.f32.mrb[0].mxu0
        %3273 = vmatprep.mubr.f32.mxu0 0.0
        %3274 = vmatmul.mubr.f32.gmra.mrb[0].mxu0 %v3202
        %v3275 = vpop.f32.mrb[0].mxu0
        %v3276 = vadd.f32 0.0, %v3275
        %v3277 = vpop.f32.mrb[0].mxu0
        %3278 = vdwg.mxu0
        %v3279 = vmul.f32 %v3271, %v2258
        %v3280 = vmul.f32 %v3276, %v2260
        %v3281 = vadd.f32 %v3194, %v3279
        %v3282 = vadd.f32 %v3195, %v3280
        %v3283 = vpack.c.bf16 %v3282, %v3281
        %v3284 = vld [vmem:[%s11] sm:$0xf]
        %v3285 = vld [vmem:[%s11 + $0x4] sm:$0xf]
        %v3286 = vld [vmem:[%s12] sm:$0x1]
        %v3288 = vlaneseq
        %v3289 = vshrl.u32 %v3288, 7
        %v3290 = vsub.s32 0, %v3289
        %v3291 = vrot.slane %v3286, %v3290
        %v3295 = vunpack.c.l.b16 %v3284
        %v3296 = vunpack.c.l.b16 %v3285
        %v3297 = vpack.c.b16 %v3296, %v3295
        %v3300 = vsel %vm1487, %v3283, 0
        %3302 = vmatprep.subr.bf16.mxu0 0
        %3303 = vmatpush1.bf16.msra.mxu0 %v3297
        %3304 = vmatprep.subr.bf16.mxu0 0
        %3305 = vmatpush1.bf16.msra.mxu0 0
        %3306 = vmatprep.subr.bf16.mxu0 0
        %3307 = vmatpush1.bf16.msra.mxu0 0
        %3308 = vmatprep.subr.bf16.mxu0 0
        %3309 = vmatpush1.bf16.msra.mxu0 0
        %3310 = vmatprep.subr.bf16.mxu0 0
        %3311 = vmatpush1.bf16.msra.mxu0 0
        %3312 = vmatprep.subr.bf16.mxu0 0
        %3313 = vmatpush1.bf16.msra.mxu0 0
        %3314 = vmatprep.subr.bf16.mxu0 0
        %3315 = vmatpush1.bf16.msra.mxu0 0
        %3316 = vmatprep.subr.bf16.mxu0 0
        %3317 = vmatpush1.bf16.msra.mxu0 0
        %3318 = vmatprep.subr.bf16.mxu0 0
        %3319 = vmatpush1.bf16.msra.mxu0 0
        %3320 = vmatprep.subr.bf16.mxu0 0
        %3321 = vmatpush1.bf16.msra.mxu0 0
        %3322 = vmatprep.subr.bf16.mxu0 0
        %3323 = vmatpush1.bf16.msra.mxu0 0
        %3324 = vmatprep.subr.bf16.mxu0 0
        %3325 = vmatpush1.bf16.msra.mxu0 0
        %3326 = vmatprep.subr.bf16.mxu0 0
        %3327 = vmatpush1.bf16.msra.mxu0 0
        %3328 = vmatprep.subr.bf16.mxu0 0
        %3329 = vmatpush1.bf16.msra.mxu0 0
        %3330 = vmatprep.subr.bf16.mxu0 0
        %3331 = vmatpush1.bf16.msra.mxu0 0
        %3332 = vmatprep.subr.bf16.mxu0 0
        %3333 = vmatpush1.bf16.msra.mxu0 0
        %3334 = vmatprep.mubr.bf16.mxu0 0
        %3335 = vmatmul.mubr.bf16.gmra.mrb[0].mxu0 %v3300
        %v3336 = vpop.f32.mrb[0].mxu0
        %v3337 = vadd.f32 %v3291, %v3336
        %v3338 = vpop.f32.mrb[0].mxu0
        %v3339 = vpop.f32.mrb[0].mxu0
        %v3340 = vadd.f32 %v3291, %v3339
        %v3341 = vpop.f32.mrb[0].mxu0
        %3342 = vdwg.mxu0
        %v3343 = vld [vmem:[%s13] sm:$0x1]
        %v3344 = vld [vmem:[%s14] sm:$0x1]
        %v3345 = vsel %vm1487, %v3337, 0.0
        %3346 = vadd.xlane.f32.xlu0 %v3345
        %v3347 = vpop.xlane.xlu0 %3346
        %v3348 = vsel %vm1487, %v3340, 0.0
        %3349 = vadd.xlane.f32.xlu0 %v3348
        %v3350 = vpop.xlane.xlu0 %3349
        %v3351 = vmul.f32 %v3347, %v2335
        %v3352 = vmul.f32 %v3350, %v2335
        %v3353 = vsub.f32 %v3337, %v3351
        %v3354 = vsub.f32 %v3340, %v3352
        %v3355 = vmul.f32 %v3353, %v3353
        %v3356 = vmul.f32 %v3354, %v3354
        %v3357 = vsel %vm1487, %v3355, 0.0
        %3358 = vadd.xlane.f32.xlu0 %v3357
        %v3359 = vpop.xlane.xlu0 %3358
        %v3360 = vsel %vm1487, %v3356, 0.0
        %3361 = vadd.xlane.f32.xlu0 %v3360
        %v3362 = vpop.xlane.xlu0 %3361
        %v3363 = vmul.f32 %v3359, %v2335
        %v3364 = vmul.f32 %v3362, %v2335
        %v3365 = vadd.f32 %v3363, 1e-05
        %v3366 = vadd.f32 %v3364, 1e-05
        %v3367 = vrsqrt.pop %v3365
        %v3368 = vrsqrt.pop %v3366
        %v3369 = vmul.f32 %v3353, %v3367
        %v3370 = vmul.f32 %v3354, %v3368
        %v3372 = vlaneseq
        %v3373 = vshrl.u32 %v3372, 7
        %v3374 = vsub.s32 0, %v3373
        %v3375 = vrot.slane %v3343, %v3374
        %v3377 = vmul.f32 %v3369, %v3375
        %v3378 = vmul.f32 %v3370, %v3375
        %v3380 = vlaneseq
        %v3381 = vshrl.u32 %v3380, 7
        %v3382 = vsub.s32 0, %v3381
        %v3383 = vrot.slane %v3344, %v3382
        %v3385 = vadd.f32 %v3377, %v3383
        %v3386 = vadd.f32 %v3378, %v3383
        %v3387 = vpack.c.bf16 %v3386, %v3385
        %v3388 = vld [vmem:[%s15] sm:$0xf]
        %v3389 = vld [vmem:[%s15 + $0x4] sm:$0xf]
        %v3390 = vld [vmem:[%s16] sm:$0x1]
        %v3392 = vlaneseq
        %v3393 = vshrl.u32 %v3392, 7
        %v3394 = vsub.s32 0, %v3393
        %v3395 = vrot.slane %v3390, %v3394
        %v3399 = vunpack.c.l.b16 %v3388
        %v3400 = vunpack.c.l.b16 %v3389
        %v3401 = vpack.c.b16 %v3400, %v3399
        %v3404 = vsel %vm1487, %v3387, 0
        %3406 = vmatprep.subr.bf16.mxu0 0
        %3407 = vmatpush1.bf16.msra.mxu0 %v3401
        %3408 = vmatprep.subr.bf16.mxu0 0
        %3409 = vmatpush1.bf16.msra.mxu0 0
        %3410 = vmatprep.subr.bf16.mxu0 0
        %3411 = vmatpush1.bf16.msra.mxu0 0
        %3412 = vmatprep.subr.bf16.mxu0 0
        %3413 = vmatpush1.bf16.msra.mxu0 0
        %3414 = vmatprep.subr.bf16.mxu0 0
        %3415 = vmatpush1.bf16.msra.mxu0 0
        %3416 = vmatprep.subr.bf16.mxu0 0
        %3417 = vmatpush1.bf16.msra.mxu0 0
        %3418 = vmatprep.subr.bf16.mxu0 0
        %3419 = vmatpush1.bf16.msra.mxu0 0
        %3420 = vmatprep.subr.bf16.mxu0 0
        %3421 = vmatpush1.bf16.msra.mxu0 0
        %3422 = vmatprep.subr.bf16.mxu0 0
        %3423 = vmatpush1.bf16.msra.mxu0 0
        %3424 = vmatprep.subr.bf16.mxu0 0
        %3425 = vmatpush1.bf16.msra.mxu0 0
        %3426 = vmatprep.subr.bf16.mxu0 0
        %3427 = vmatpush1.bf16.msra.mxu0 0
        %3428 = vmatprep.subr.bf16.mxu0 0
        %3429 = vmatpush1.bf16.msra.mxu0 0
        %3430 = vmatprep.subr.bf16.mxu0 0
        %3431 = vmatpush1.bf16.msra.mxu0 0
        %3432 = vmatprep.subr.bf16.mxu0 0
        %3433 = vmatpush1.bf16.msra.mxu0 0
        %3434 = vmatprep.subr.bf16.mxu0 0
        %3435 = vmatpush1.bf16.msra.mxu0 0
        %3436 = vmatprep.subr.bf16.mxu0 0
        %3437 = vmatpush1.bf16.msra.mxu0 0
        %3438 = vmatprep.mubr.bf16.mxu0 0
        %3439 = vmatmul.mubr.bf16.gmra.mrb[0].mxu0 %v3404
        %v3440 = vpop.f32.mrb[0].mxu0
        %v3441 = vadd.f32 %v3395, %v3440
        %v3442 = vpop.f32.mrb[0].mxu0
        %v3443 = vpop.f32.mrb[0].mxu0
        %v3444 = vadd.f32 %v3395, %v3443
        %v3445 = vpop.f32.mrb[0].mxu0
        %3446 = vdwg.mxu0
        %v3447 = vmax.f32 %v3441, 0.0
        %v3448 = vmax.f32 %v3444, 0.0
        %v3449 = vpack.c.bf16 %v3448, %v3447
        %v3450 = vld [vmem:[%s17] sm:$0xf]
        %v3451 = vld [vmem:[%s17 + $0x4] sm:$0xf]
        %v3452 = vld [vmem:[%s18] sm:$0x1]
        %v3454 = vlaneseq
        %v3455 = vshrl.u32 %v3454, 7
        %v3456 = vsub.s32 0, %v3455
        %v3457 = vrot.slane %v3452, %v3456
        %v3461 = vunpack.c.l.b16 %v3450
        %v3462 = vunpack.c.l.b16 %v3451
        %v3463 = vpack.c.b16 %v3462, %v3461
        %v3466 = vsel %vm1487, %v3449, 0
        %3468 = vmatprep.subr.bf16.mxu0 0
        %3469 = vmatpush1.bf16.msra.mxu0 %v3463
        %3470 = vmatprep.subr.bf16.mxu0 0
        %3471 = vmatpush1.bf16.msra.mxu0 0
        %3472 = vmatprep.subr.bf16.mxu0 0
        %3473 = vmatpush1.bf16.msra.mxu0 0
        %3474 = vmatprep.subr.bf16.mxu0 0
        %3475 = vmatpush1.bf16.msra.mxu0 0
        %3476 = vmatprep.subr.bf16.mxu0 0
        %3477 = vmatpush1.bf16.msra.mxu0 0
        %3478 = vmatprep.subr.bf16.mxu0 0
        %3479 = vmatpush1.bf16.msra.mxu0 0
        %3480 = vmatprep.subr.bf16.mxu0 0
        %3481 = vmatpush1.bf16.msra.mxu0 0
        %3482 = vmatprep.subr.bf16.mxu0 0
        %3483 = vmatpush1.bf16.msra.mxu0 0
        %3484 = vmatprep.subr.bf16.mxu0 0
        %3485 = vmatpush1.bf16.msra.mxu0 0
        %3486 = vmatprep.subr.bf16.mxu0 0
        %3487 = vmatpush1.bf16.msra.mxu0 0
        %3488 = vmatprep.subr.bf16.mxu0 0
        %3489 = vmatpush1.bf16.msra.mxu0 0
        %3490 = vmatprep.subr.bf16.mxu0 0
        %3491 = vmatpush1.bf16.msra.mxu0 0
        %3492 = vmatprep.subr.bf16.mxu0 0
        %3493 = vmatpush1.bf16.msra.mxu0 0
        %3494 = vmatprep.subr.bf16.mxu0 0
        %3495 = vmatpush1.bf16.msra.mxu0 0
        %3496 = vmatprep.subr.bf16.mxu0 0
        %3497 = vmatpush1.bf16.msra.mxu0 0
        %3498 = vmatprep.subr.bf16.mxu0 0
        %3499 = vmatpush1.bf16.msra.mxu0 0
        %3500 = vmatprep.mubr.bf16.mxu0 0
        %3501 = vmatmul.mubr.bf16.gmra.mrb[0].mxu0 %v3466
        %v3502 = vpop.f32.mrb[0].mxu0
        %v3503 = vadd.f32 %v3457, %v3502
        %v3504 = vpop.f32.mrb[0].mxu0
        %v3505 = vpop.f32.mrb[0].mxu0
        %v3506 = vadd.f32 %v3457, %v3505
        %v3507 = vpop.f32.mrb[0].mxu0
        %3508 = vdwg.mxu0
        %v3509 = vadd.f32 %v3337, %v3503
        %v3510 = vadd.f32 %v3340, %v3506
        %s3511 = scalar_lea.vmem %s848, 16 [#allocation5]
        %3512 = vst.msk [vmem:[%s3511] sm:$0xff] %vm1487, %v3509
        %3513 = vst.msk [vmem:[%s3511 + $0x8] sm:$0xff] %vm1487, %v3510
        %v3514 = vmax.f32 %v3509, 0.0
        %v3515 = vmax.f32 %v3510, 0.0
        %v3516 = vld [vmem:[%s19] sm:$0x1]
        %v3517 = vld [vmem:[%s20] sm:$0x1]
        %v3518 = vsel %vm1487, %v3514, 0.0
        %3519 = vadd.xlane.f32.xlu0 %v3518
        %v3520 = vpop.xlane.xlu0 %3519
        %v3521 = vsel %vm1487, %v3515, 0.0
        %3522 = vadd.xlane.f32.xlu0 %v3521
        %v3523 = vpop.xlane.xlu0 %3522
        %v3524 = vmul.f32 %v3520, %v2335
        %v3525 = vmul.f32 %v3523, %v2335
        %v3526 = vsub.f32 %v3514, %v3524
        %v3527 = vsub.f32 %v3515, %v3525
        %v3528 = vmul.f32 %v3526, %v3526
        %v3529 = vmul.f32 %v3527, %v3527
        %v3530 = vsel %vm1487, %v3528, 0.0
        %3531 = vadd.xlane.f32.xlu0 %v3530
        %v3532 = vpop.xlane.xlu0 %3531
        %v3533 = vsel %vm1487, %v3529, 0.0
        %3534 = vadd.xlane.f32.xlu0 %v3533
        %v3535 = vpop.xlane.xlu0 %3534
        %v3536 = vmul.f32 %v3532, %v2335
        %v3537 = vmul.f32 %v3535, %v2335
        %v3538 = vadd.f32 %v3536, 1e-05
        %v3539 = vadd.f32 %v3537, 1e-05
        %v3540 = vrsqrt.pop %v3538
        %v3541 = vrsqrt.pop %v3539
        %v3542 = vmul.f32 %v3526, %v3540
        %v3543 = vmul.f32 %v3527, %v3541
        %v3545 = vlaneseq
        %v3546 = vshrl.u32 %v3545, 7
        %v3547 = vsub.s32 0, %v3546
        %v3548 = vrot.slane %v3516, %v3547
        %v3550 = vmul.f32 %v3542, %v3548
        %v3551 = vmul.f32 %v3543, %v3548
        %v3553 = vlaneseq
        %v3554 = vshrl.u32 %v3553, 7
        %v3555 = vsub.s32 0, %v3554
        %v3556 = vrot.slane %v3517, %v3555
        %v3558 = vadd.f32 %v3550, %v3556
        %v3559 = vadd.f32 %v3551, %v3556
        %v3560 = vpack.c.bf16 %v3559, %v3558
        %v3562 = vunpack.c.l.b16 %v3560
        %v3563 = vunpack.c.h.b16 %v3560
        %v3564 = vpack.c.b16 %v3562, %v3562
        %v3565 = vpack.c.b16 %v3563, %v3563
        %s3568 = scalar_lea.vmem %s854, 8 [#allocation6]
        %3569 = vst.msk [vmem:[%s3568] sm:$0xf] %vm2552, %v3564
        %3570 = vst.msk [vmem:[%s3568 + $0x4] sm:$0xf] %vm2552, %v3565
        %v3571 = vmul.f32 %v1329, %v1480
        %v3572 = vmul.f32 %v1332, %v1482
        %v3574 = vsel %vm1487, %v3571, 0
        %v3577 = vsel %vm1487, %v3572, 0
        %3579 = vmatprep.subr.mxu0 0.0
        %3580 = vmatpush1.msra.mxu0 %v873
        %3581 = vmatprep.subr.mxu0 0.0
        %3582 = vmatpush1.msra.mxu0 %v874
        %3583 = vmatprep.subr.mxu0 0.0
        %3584 = vmatpush1.msra.mxu0 0.0
        %3585 = vmatprep.subr.mxu0 0.0
        %3586 = vmatpush1.msra.mxu0 0.0
        %3587 = vmatprep.subr.mxu0 0.0
        %3588 = vmatpush1.msra.mxu0 0.0
        %3589 = vmatprep.subr.mxu0 0.0
        %3590 = vmatpush1.msra.mxu0 0.0
        %3591 = vmatprep.subr.mxu0 0.0
        %3592 = vmatpush1.msra.mxu0 0.0
        %3593 = vmatprep.subr.mxu0 0.0
        %3594 = vmatpush1.msra.mxu0 0.0
        %3595 = vmatprep.subr.mxu0 0.0
        %3596 = vmatpush1.msra.mxu0 0.0
        %3597 = vmatprep.subr.mxu0 0.0
        %3598 = vmatpush1.msra.mxu0 0.0
        %3599 = vmatprep.subr.mxu0 0.0
        %3600 = vmatpush1.msra.mxu0 0.0
        %3601 = vmatprep.subr.mxu0 0.0
        %3602 = vmatpush1.msra.mxu0 0.0
        %3603 = vmatprep.subr.mxu0 0.0
        %3604 = vmatpush1.msra.mxu0 0.0
        %3605 = vmatprep.subr.mxu0 0.0
        %3606 = vmatpush1.msra.mxu0 0.0
        %3607 = vmatprep.subr.mxu0 0.0
        %3608 = vmatpush1.msra.mxu0 0.0
        %3609 = vmatprep.subr.mxu0 0.0
        %3610 = vmatpush1.msra.mxu0 0.0
        %3611 = vmatprep.subr.mxu0 0.0
        %3612 = vmatpush1.msra.mxu0 0.0
        %3613 = vmatprep.subr.mxu0 0.0
        %3614 = vmatpush1.msra.mxu0 0.0
        %3615 = vmatprep.subr.mxu0 0.0
        %3616 = vmatpush1.msra.mxu0 0.0
        %3617 = vmatprep.subr.mxu0 0.0
        %3618 = vmatpush1.msra.mxu0 0.0
        %3619 = vmatprep.subr.mxu0 0.0
        %3620 = vmatpush1.msra.mxu0 0.0
        %3621 = vmatprep.subr.mxu0 0.0
        %3622 = vmatpush1.msra.mxu0 0.0
        %3623 = vmatprep.subr.mxu0 0.0
        %3624 = vmatpush1.msra.mxu0 0.0
        %3625 = vmatprep.subr.mxu0 0.0
        %3626 = vmatpush1.msra.mxu0 0.0
        %3627 = vmatprep.subr.mxu0 0.0
        %3628 = vmatpush1.msra.mxu0 0.0
        %3629 = vmatprep.subr.mxu0 0.0
        %3630 = vmatpush1.msra.mxu0 0.0
        %3631 = vmatprep.subr.mxu0 0.0
        %3632 = vmatpush1.msra.mxu0 0.0
        %3633 = vmatprep.subr.mxu0 0.0
        %3634 = vmatpush1.msra.mxu0 0.0
        %3635 = vmatprep.subr.mxu0 0.0
        %3636 = vmatpush1.msra.mxu0 0.0
        %3637 = vmatprep.subr.mxu0 0.0
        %3638 = vmatpush1.msra.mxu0 0.0
        %3639 = vmatprep.subr.mxu0 0.0
        %3640 = vmatpush1.msra.mxu0 0.0
        %3641 = vmatprep.subr.mxu0 0.0
        %3642 = vmatpush1.msra.mxu0 0.0
        %3643 = vmatprep.mubr.f32.mxu0 0.0
        %3644 = vmatmul.mubr.f32.gmra.mrb[0].mxu0 %v3574
        %v3645 = vpop.f32.mrb[0].mxu0
        %v3646 = vadd.f32 0.0, %v3645
        %v3647 = vpop.f32.mrb[0].mxu0
        %3648 = vmatprep.mubr.f32.mxu0 0.0
        %3649 = vmatmul.mubr.f32.gmra.mrb[0].mxu0 %v3577
        %v3650 = vpop.f32.mrb[0].mxu0
        %v3651 = vadd.f32 0.0, %v3650
        %v3652 = vpop.f32.mrb[0].mxu0
        %3653 = vdwg.mxu0
        %v3654 = vmul.f32 %v3646, 0.35355338
        %v3655 = vmul.f32 %v3651, 0.35355338
        %v3656 = vmul.f32 %v1329, %v1574
        %v3657 = vmul.f32 %v1332, %v1576
        %v3659 = vsel %vm1487, %v3656, 0
        %v3662 = vsel %vm1487, %v3657, 0
        %3664 = vmatprep.subr.mxu0 0.0
        %3665 = vmatpush1.msra.mxu0 %v873
        %3666 = vmatprep.subr.mxu0 0.0
        %3667 = vmatpush1.msra.mxu0 %v874
        %3668 = vmatprep.subr.mxu0 0.0
        %3669 = vmatpush1.msra.mxu0 0.0
        %3670 = vmatprep.subr.mxu0 0.0
        %3671 = vmatpush1.msra.mxu0 0.0
        %3672 = vmatprep.subr.mxu0 0.0
        %3673 = vmatpush1.msra.mxu0 0.0
        %3674 = vmatprep.subr.mxu0 0.0
        %3675 = vmatpush1.msra.mxu0 0.0
        %3676 = vmatprep.subr.mxu0 0.0
        %3677 = vmatpush1.msra.mxu0 0.0
        %3678 = vmatprep.subr.mxu0 0.0
        %3679 = vmatpush1.msra.mxu0 0.0
        %3680 = vmatprep.subr.mxu0 0.0
        %3681 = vmatpush1.msra.mxu0 0.0
        %3682 = vmatprep.subr.mxu0 0.0
        %3683 = vmatpush1.msra.mxu0 0.0
        %3684 = vmatprep.subr.mxu0 0.0
        %3685 = vmatpush1.msra.mxu0 0.0
        %3686 = vmatprep.subr.mxu0 0.0
        %3687 = vmatpush1.msra.mxu0 0.0
        %3688 = vmatprep.subr.mxu0 0.0
        %3689 = vmatpush1.msra.mxu0 0.0
        %3690 = vmatprep.subr.mxu0 0.0
        %3691 = vmatpush1.msra.mxu0 0.0
        %3692 = vmatprep.subr.mxu0 0.0
        %3693 = vmatpush1.msra.mxu0 0.0
        %3694 = vmatprep.subr.mxu0 0.0
        %3695 = vmatpush1.msra.mxu0 0.0
        %3696 = vmatprep.subr.mxu0 0.0
        %3697 = vmatpush1.msra.mxu0 0.0
        %3698 = vmatprep.subr.mxu0 0.0
        %3699 = vmatpush1.msra.mxu0 0.0
        %3700 = vmatprep.subr.mxu0 0.0
        %3701 = vmatpush1.msra.mxu0 0.0
        %3702 = vmatprep.subr.mxu0 0.0
        %3703 = vmatpush1.msra.mxu0 0.0
        %3704 = vmatprep.subr.mxu0 0.0
        %3705 = vmatpush1.msra.mxu0 0.0
        %3706 = vmatprep.subr.mxu0 0.0
        %3707 = vmatpush1.msra.mxu0 0.0
        %3708 = vmatprep.subr.mxu0 0.0
        %3709 = vmatpush1.msra.mxu0 0.0
        %3710 = vmatprep.subr.mxu0 0.0
        %3711 = vmatpush1.msra.mxu0 0.0
        %3712 = vmatprep.subr.mxu0 0.0
        %3713 = vmatpush1.msra.mxu0 0.0
        %3714 = vmatprep.subr.mxu0 0.0
        %3715 = vmatpush1.msra.mxu0 0.0
        %3716 = vmatprep.subr.mxu0 0.0
        %3717 = vmatpush1.msra.mxu0 0.0
        %3718 = vmatprep.subr.mxu0 0.0
        %3719 = vmatpush1.msra.mxu0 0.0
        %3720 = vmatprep.subr.mxu0 0.0
        %3721 = vmatpush1.msra.mxu0 0.0
        %3722 = vmatprep.subr.mxu0 0.0
        %3723 = vmatpush1.msra.mxu0 0.0
        %3724 = vmatprep.subr.mxu0 0.0
        %3725 = vmatpush1.msra.mxu0 0.0
        %3726 = vmatprep.subr.mxu0 0.0
        %3727 = vmatpush1.msra.mxu0 0.0
        %3728 = vmatprep.mubr.f32.mxu0 0.0
        %3729 = vmatmul.mubr.f32.gmra.mrb[0].mxu0 %v3659
        %v3730 = vpop.f32.mrb[0].mxu0
        %v3731 = vadd.f32 0.0, %v3730
        %v3732 = vpop.f32.mrb[0].mxu0
        %3733 = vmatprep.mubr.f32.mxu0 0.0
        %3734 = vmatmul.mubr.f32.gmra.mrb[0].mxu0 %v3662
        %v3735 = vpop.f32.mrb[0].mxu0
        %v3736 = vadd.f32 0.0, %v3735
        %v3737 = vpop.f32.mrb[0].mxu0
        %3738 = vdwg.mxu0
        %v3739 = vmul.f32 %v3731, 0.35355338
        %v3740 = vmul.f32 %v3736, 0.35355338
        %v3741 = vmul.f32 %v1329, %v1667
        %v3742 = vmul.f32 %v1332, %v1669
        %v3744 = vsel %vm1487, %v3741, 0
        %v3747 = vsel %vm1487, %v3742, 0
        %3749 = vmatprep.subr.mxu0 0.0
        %3750 = vmatpush1.msra.mxu0 %v873
        %3751 = vmatprep.subr.mxu0 0.0
        %3752 = vmatpush1.msra.mxu0 %v874
        %3753 = vmatprep.subr.mxu0 0.0
        %3754 = vmatpush1.msra.mxu0 0.0
        %3755 = vmatprep.subr.mxu0 0.0
        %3756 = vmatpush1.msra.mxu0 0.0
        %3757 = vmatprep.subr.mxu0 0.0
        %3758 = vmatpush1.msra.mxu0 0.0
        %3759 = vmatprep.subr.mxu0 0.0
        %3760 = vmatpush1.msra.mxu0 0.0
        %3761 = vmatprep.subr.mxu0 0.0
        %3762 = vmatpush1.msra.mxu0 0.0
        %3763 = vmatprep.subr.mxu0 0.0
        %3764 = vmatpush1.msra.mxu0 0.0
        %3765 = vmatprep.subr.mxu0 0.0
        %3766 = vmatpush1.msra.mxu0 0.0
        %3767 = vmatprep.subr.mxu0 0.0
        %3768 = vmatpush1.msra.mxu0 0.0
        %3769 = vmatprep.subr.mxu0 0.0
        %3770 = vmatpush1.msra.mxu0 0.0
        %3771 = vmatprep.subr.mxu0 0.0
        %3772 = vmatpush1.msra.mxu0 0.0
        %3773 = vmatprep.subr.mxu0 0.0
        %3774 = vmatpush1.msra.mxu0 0.0
        %3775 = vmatprep.subr.mxu0 0.0
        %3776 = vmatpush1.msra.mxu0 0.0
        %3777 = vmatprep.subr.mxu0 0.0
        %3778 = vmatpush1.msra.mxu0 0.0
        %3779 = vmatprep.subr.mxu0 0.0
        %3780 = vmatpush1.msra.mxu0 0.0
        %3781 = vmatprep.subr.mxu0 0.0
        %3782 = vmatpush1.msra.mxu0 0.0
        %3783 = vmatprep.subr.mxu0 0.0
        %3784 = vmatpush1.msra.mxu0 0.0
        %3785 = vmatprep.subr.mxu0 0.0
        %3786 = vmatpush1.msra.mxu0 0.0
        %3787 = vmatprep.subr.mxu0 0.0
        %3788 = vmatpush1.msra.mxu0 0.0
        %3789 = vmatprep.subr.mxu0 0.0
        %3790 = vmatpush1.msra.mxu0 0.0
        %3791 = vmatprep.subr.mxu0 0.0
        %3792 = vmatpush1.msra.mxu0 0.0
        %3793 = vmatprep.subr.mxu0 0.0
        %3794 = vmatpush1.msra.mxu0 0.0
        %3795 = vmatprep.subr.mxu0 0.0
        %3796 = vmatpush1.msra.mxu0 0.0
        %3797 = vmatprep.subr.mxu0 0.0
        %3798 = vmatpush1.msra.mxu0 0.0
        %3799 = vmatprep.subr.mxu0 0.0
        %3800 = vmatpush1.msra.mxu0 0.0
        %3801 = vmatprep.subr.mxu0 0.0
        %3802 = vmatpush1.msra.mxu0 0.0
        %3803 = vmatprep.subr.mxu0 0.0
        %3804 = vmatpush1.msra.mxu0 0.0
        %3805 = vmatprep.subr.mxu0 0.0
        %3806 = vmatpush1.msra.mxu0 0.0
        %3807 = vmatprep.subr.mxu0 0.0
        %3808 = vmatpush1.msra.mxu0 0.0
        %3809 = vmatprep.subr.mxu0 0.0
        %3810 = vmatpush1.msra.mxu0 0.0
        %3811 = vmatprep.subr.mxu0 0.0
        %3812 = vmatpush1.msra.mxu0 0.0
        %3813 = vmatprep.mubr.f32.mxu0 0.0
        %3814 = vmatmul.mubr.f32.gmra.mrb[0].mxu0 %v3744
        %v3815 = vpop.f32.mrb[0].mxu0
        %v3816 = vadd.f32 0.0, %v3815
        %v3817 = vpop.f32.mrb[0].mxu0
        %3818 = vmatprep.mubr.f32.mxu0 0.0
        %3819 = vmatmul.mubr.f32.gmra.mrb[0].mxu0 %v3747
        %v3820 = vpop.f32.mrb[0].mxu0
        %v3821 = vadd.f32 0.0, %v3820
        %v3822 = vpop.f32.mrb[0].mxu0
        %3823 = vdwg.mxu0
        %v3824 = vmul.f32 %v3816, 0.35355338
        %v3825 = vmul.f32 %v3821, 0.35355338
        %v3826 = vmul.f32 %v1329, %v1760
        %v3827 = vmul.f32 %v1332, %v1762
        %v3829 = vsel %vm1487, %v3826, 0
        %v3832 = vsel %vm1487, %v3827, 0
        %3834 = vmatprep.subr.mxu0 0.0
        %3835 = vmatpush1.msra.mxu0 %v873
        %3836 = vmatprep.subr.mxu0 0.0
        %3837 = vmatpush1.msra.mxu0 %v874
        %3838 = vmatprep.subr.mxu0 0.0
        %3839 = vmatpush1.msra.mxu0 0.0
        %3840 = vmatprep.subr.mxu0 0.0
        %3841 = vmatpush1.msra.mxu0 0.0
        %3842 = vmatprep.subr.mxu0 0.0
        %3843 = vmatpush1.msra.mxu0 0.0
        %3844 = vmatprep.subr.mxu0 0.0
        %3845 = vmatpush1.msra.mxu0 0.0
        %3846 = vmatprep.subr.mxu0 0.0
        %3847 = vmatpush1.msra.mxu0 0.0
        %3848 = vmatprep.subr.mxu0 0.0
        %3849 = vmatpush1.msra.mxu0 0.0
        %3850 = vmatprep.subr.mxu0 0.0
        %3851 = vmatpush1.msra.mxu0 0.0
        %3852 = vmatprep.subr.mxu0 0.0
        %3853 = vmatpush1.msra.mxu0 0.0
        %3854 = vmatprep.subr.mxu0 0.0
        %3855 = vmatpush1.msra.mxu0 0.0
        %3856 = vmatprep.subr.mxu0 0.0
        %3857 = vmatpush1.msra.mxu0 0.0
        %3858 = vmatprep.subr.mxu0 0.0
        %3859 = vmatpush1.msra.mxu0 0.0
        %3860 = vmatprep.subr.mxu0 0.0
        %3861 = vmatpush1.msra.mxu0 0.0
        %3862 = vmatprep.subr.mxu0 0.0
        %3863 = vmatpush1.msra.mxu0 0.0
        %3864 = vmatprep.subr.mxu0 0.0
        %3865 = vmatpush1.msra.mxu0 0.0
        %3866 = vmatprep.subr.mxu0 0.0
        %3867 = vmatpush1.msra.mxu0 0.0
        %3868 = vmatprep.subr.mxu0 0.0
        %3869 = vmatpush1.msra.mxu0 0.0
        %3870 = vmatprep.subr.mxu0 0.0
        %3871 = vmatpush1.msra.mxu0 0.0
        %3872 = vmatprep.subr.mxu0 0.0
        %3873 = vmatpush1.msra.mxu0 0.0
        %3874 = vmatprep.subr.mxu0 0.0
        %3875 = vmatpush1.msra.mxu0 0.0
        %3876 = vmatprep.subr.mxu0 0.0
        %3877 = vmatpush1.msra.mxu0 0.0
        %3878 = vmatprep.subr.mxu0 0.0
        %3879 = vmatpush1.msra.mxu0 0.0
        %3880 = vmatprep.subr.mxu0 0.0
        %3881 = vmatpush1.msra.mxu0 0.0
        %3882 = vmatprep.subr.mxu0 0.0
        %3883 = vmatpush1.msra.mxu0 0.0
        %3884 = vmatprep.subr.mxu0 0.0
        %3885 = vmatpush1.msra.mxu0 0.0
        %3886 = vmatprep.subr.mxu0 0.0
        %3887 = vmatpush1.msra.mxu0 0.0
        %3888 = vmatprep.subr.mxu0 0.0
        %3889 = vmatpush1.msra.mxu0 0.0
        %3890 = vmatprep.subr.mxu0 0.0
        %3891 = vmatpush1.msra.mxu0 0.0
        %3892 = vmatprep.subr.mxu0 0.0
        %3893 = vmatpush1.msra.mxu0 0.0
        %3894 = vmatprep.subr.mxu0 0.0
        %3895 = vmatpush1.msra.mxu0 0.0
        %3896 = vmatprep.subr.mxu0 0.0
        %3897 = vmatpush1.msra.mxu0 0.0
        %3898 = vmatprep.mubr.f32.mxu0 0.0
        %3899 = vmatmul.mubr.f32.gmra.mrb[0].mxu0 %v3829
        %v3900 = vpop.f32.mrb[0].mxu0
        %v3901 = vadd.f32 0.0, %v3900
        %v3902 = vpop.f32.mrb[0].mxu0
        %3903 = vmatprep.mubr.f32.mxu0 0.0
        %3904 = vmatmul.mubr.f32.gmra.mrb[0].mxu0 %v3832
        %v3905 = vpop.f32.mrb[0].mxu0
        %v3906 = vadd.f32 0.0, %v3905
        %v3907 = vpop.f32.mrb[0].mxu0
        %3908 = vdwg.mxu0
        %v3909 = vmul.f32 %v3901, 0.35355338
        %v3910 = vmul.f32 %v3906, 0.35355338
        %v3911 = vmax.f32 %v3654, %v3739
        %v3912 = vmax.f32 %v3655, %v3740
        %v3913 = vmax.f32 %v3911, %v3824
        %v3914 = vmax.f32 %v3912, %v3825
        %v3915 = vmax.f32 %v3913, %v3909
        %v3916 = vmax.f32 %v3914, %v3910
        %v3917 = vsub.f32 %v3654, %v3915
        %v3918 = vsub.f32 %v3655, %v3916
        %v3919 = vmul.f32 %v3917, 1.442695
        %v3920 = vpow.pop %v3919
        %v3921 = vmul.f32 %v3918, 1.442695
        %v3922 = vpow.pop %v3921
        %v3923 = vsub.f32 %v3739, %v3915
        %v3924 = vsub.f32 %v3740, %v3916
        %v3925 = vmul.f32 %v3923, 1.442695
        %v3926 = vpow.pop %v3925
        %v3927 = vmul.f32 %v3924, 1.442695
        %v3928 = vpow.pop %v3927
        %v3929 = vsub.f32 %v3824, %v3915
        %v3930 = vsub.f32 %v3825, %v3916
        %v3931 = vmul.f32 %v3929, 1.442695
        %v3932 = vpow.pop %v3931
        %v3933 = vmul.f32 %v3930, 1.442695
        %v3934 = vpow.pop %v3933
        %v3935 = vsub.f32 %v3909, %v3915
        %v3936 = vsub.f32 %v3910, %v3916
        %v3937 = vmul.f32 %v3935, 1.442695
        %v3938 = vpow.pop %v3937
        %v3939 = vmul.f32 %v3936, 1.442695
        %v3940 = vpow.pop %v3939
        %v3941 = vadd.f32 %v3920, %v3926
        %v3942 = vadd.f32 %v3922, %v3928
        %v3943 = vadd.f32 %v3941, %v3932
        %v3944 = vadd.f32 %v3942, %v3934
        %v3945 = vadd.f32 %v3943, %v3938
        %v3946 = vadd.f32 %v3944, %v3940
        %v3947 = vrcp.pop %v3945
        %v3948 = vmul.f32 1.0, %v3947
        %v3949 = vrcp.pop %v3946
        %v3950 = vmul.f32 1.0, %v3949
        %v3951 = vmul.f32 %v3920, %v3948
        %v3952 = vmul.f32 %v3922, %v3950
        %v3954 = vsel %vm1892, %v3951, 0
        %v3957 = vsel %vm1892, %v3952, 0
        %3959 = vmatprep.subr.mxu0 0.0
        %3960 = vmatpush1.msra.mxu0 %v1901
        %3961 = vmatprep.subr.mxu0 0.0
        %3962 = vmatpush1.msra.mxu0 0.0
        %3963 = vmatprep.subr.mxu0 0.0
        %3964 = vmatpush1.msra.mxu0 0.0
        %3965 = vmatprep.subr.mxu0 0.0
        %3966 = vmatpush1.msra.mxu0 0.0
        %3967 = vmatprep.subr.mxu0 0.0
        %3968 = vmatpush1.msra.mxu0 0.0
        %3969 = vmatprep.subr.mxu0 0.0
        %3970 = vmatpush1.msra.mxu0 0.0
        %3971 = vmatprep.subr.mxu0 0.0
        %3972 = vmatpush1.msra.mxu0 0.0
        %3973 = vmatprep.subr.mxu0 0.0
        %3974 = vmatpush1.msra.mxu0 0.0
        %3975 = vmatprep.subr.mxu0 0.0
        %3976 = vmatpush1.msra.mxu0 0.0
        %3977 = vmatprep.subr.mxu0 0.0
        %3978 = vmatpush1.msra.mxu0 0.0
        %3979 = vmatprep.subr.mxu0 0.0
        %3980 = vmatpush1.msra.mxu0 0.0
        %3981 = vmatprep.subr.mxu0 0.0
        %3982 = vmatpush1.msra.mxu0 0.0
        %3983 = vmatprep.subr.mxu0 0.0
        %3984 = vmatpush1.msra.mxu0 0.0
        %3985 = vmatprep.subr.mxu0 0.0
        %3986 = vmatpush1.msra.mxu0 0.0
        %3987 = vmatprep.subr.mxu0 0.0
        %3988 = vmatpush1.msra.mxu0 0.0
        %3989 = vmatprep.subr.mxu0 0.0
        %3990 = vmatpush1.msra.mxu0 0.0
        %3991 = vmatprep.subr.mxu0 0.0
        %3992 = vmatpush1.msra.mxu0 0.0
        %3993 = vmatprep.subr.mxu0 0.0
        %3994 = vmatpush1.msra.mxu0 0.0
        %3995 = vmatprep.subr.mxu0 0.0
        %3996 = vmatpush1.msra.mxu0 0.0
        %3997 = vmatprep.subr.mxu0 0.0
        %3998 = vmatpush1.msra.mxu0 0.0
        %3999 = vmatprep.subr.mxu0 0.0
        %4000 = vmatpush1.msra.mxu0 0.0
        %4001 = vmatprep.subr.mxu0 0.0
        %4002 = vmatpush1.msra.mxu0 0.0
        %4003 = vmatprep.subr.mxu0 0.0
        %4004 = vmatpush1.msra.mxu0 0.0
        %4005 = vmatprep.subr.mxu0 0.0
        %4006 = vmatpush1.msra.mxu0 0.0
        %4007 = vmatprep.subr.mxu0 0.0
        %4008 = vmatpush1.msra.mxu0 0.0
        %4009 = vmatprep.subr.mxu0 0.0
        %4010 = vmatpush1.msra.mxu0 0.0
        %4011 = vmatprep.subr.mxu0 0.0
        %4012 = vmatpush1.msra.mxu0 0.0
        %4013 = vmatprep.subr.mxu0 0.0
        %4014 = vmatpush1.msra.mxu0 0.0
        %4015 = vmatprep.subr.mxu0 0.0
        %4016 = vmatpush1.msra.mxu0 0.0
        %4017 = vmatprep.subr.mxu0 0.0
        %4018 = vmatpush1.msra.mxu0 0.0
        %4019 = vmatprep.subr.mxu0 0.0
        %4020 = vmatpush1.msra.mxu0 0.0
        %4021 = vmatprep.subr.mxu0 0.0
        %4022 = vmatpush1.msra.mxu0 0.0
        %4023 = vmatprep.mubr.f32.mxu0 0.0
        %4024 = vmatmul.mubr.f32.gmra.mrb[0].mxu0 %v3954
        %v4025 = vpop.f32.mrb[0].mxu0
        %v4026 = vadd.f32 0.0, %v4025
        %v4027 = vpop.f32.mrb[0].mxu0
        %4028 = vmatprep.mubr.f32.mxu0 0.0
        %4029 = vmatmul.mubr.f32.gmra.mrb[0].mxu0 %v3957
        %v4030 = vpop.f32.mrb[0].mxu0
        %v4031 = vadd.f32 0.0, %v4030
        %v4032 = vpop.f32.mrb[0].mxu0
        %4033 = vdwg.mxu0
        %v4034 = vmul.f32 %v4026, %v1979
        %v4035 = vmul.f32 %v4031, %v1981
        %v4036 = vadd.f32 %v4034, 0.0
        %v4037 = vadd.f32 %v4035, 0.0
        %v4038 = vmul.f32 %v3926, %v3948
        %v4039 = vmul.f32 %v3928, %v3950
        %v4041 = vsel %vm1892, %v4038, 0
        %v4044 = vsel %vm1892, %v4039, 0
        %4046 = vmatprep.subr.mxu0 0.0
        %4047 = vmatpush1.msra.mxu0 %v1901
        %4048 = vmatprep.subr.mxu0 0.0
        %4049 = vmatpush1.msra.mxu0 0.0
        %4050 = vmatprep.subr.mxu0 0.0
        %4051 = vmatpush1.msra.mxu0 0.0
        %4052 = vmatprep.subr.mxu0 0.0
        %4053 = vmatpush1.msra.mxu0 0.0
        %4054 = vmatprep.subr.mxu0 0.0
        %4055 = vmatpush1.msra.mxu0 0.0
        %4056 = vmatprep.subr.mxu0 0.0
        %4057 = vmatpush1.msra.mxu0 0.0
        %4058 = vmatprep.subr.mxu0 0.0
        %4059 = vmatpush1.msra.mxu0 0.0
        %4060 = vmatprep.subr.mxu0 0.0
        %4061 = vmatpush1.msra.mxu0 0.0
        %4062 = vmatprep.subr.mxu0 0.0
        %4063 = vmatpush1.msra.mxu0 0.0
        %4064 = vmatprep.subr.mxu0 0.0
        %4065 = vmatpush1.msra.mxu0 0.0
        %4066 = vmatprep.subr.mxu0 0.0
        %4067 = vmatpush1.msra.mxu0 0.0
        %4068 = vmatprep.subr.mxu0 0.0
        %4069 = vmatpush1.msra.mxu0 0.0
        %4070 = vmatprep.subr.mxu0 0.0
        %4071 = vmatpush1.msra.mxu0 0.0
        %4072 = vmatprep.subr.mxu0 0.0
        %4073 = vmatpush1.msra.mxu0 0.0
        %4074 = vmatprep.subr.mxu0 0.0
        %4075 = vmatpush1.msra.mxu0 0.0
        %4076 = vmatprep.subr.mxu0 0.0
        %4077 = vmatpush1.msra.mxu0 0.0
        %4078 = vmatprep.subr.mxu0 0.0
        %4079 = vmatpush1.msra.mxu0 0.0
        %4080 = vmatprep.subr.mxu0 0.0
        %4081 = vmatpush1.msra.mxu0 0.0
        %4082 = vmatprep.subr.mxu0 0.0
        %4083 = vmatpush1.msra.mxu0 0.0
        %4084 = vmatprep.subr.mxu0 0.0
        %4085 = vmatpush1.msra.mxu0 0.0
        %4086 = vmatprep.subr.mxu0 0.0
        %4087 = vmatpush1.msra.mxu0 0.0
        %4088 = vmatprep.subr.mxu0 0.0
        %4089 = vmatpush1.msra.mxu0 0.0
        %4090 = vmatprep.subr.mxu0 0.0
        %4091 = vmatpush1.msra.mxu0 0.0
        %4092 = vmatprep.subr.mxu0 0.0
        %4093 = vmatpush1.msra.mxu0 0.0
        %4094 = vmatprep.subr.mxu0 0.0
        %4095 = vmatpush1.msra.mxu0 0.0
        %4096 = vmatprep.subr.mxu0 0.0
        %4097 = vmatpush1.msra.mxu0 0.0
        %4098 = vmatprep.subr.mxu0 0.0
        %4099 = vmatpush1.msra.mxu0 0.0
        %4100 = vmatprep.subr.mxu0 0.0
        %4101 = vmatpush1.msra.mxu0 0.0
        %4102 = vmatprep.subr.mxu0 0.0
        %4103 = vmatpush1.msra.mxu0 0.0
        %4104 = vmatprep.subr.mxu0 0.0
        %4105 = vmatpush1.msra.mxu0 0.0
        %4106 = vmatprep.subr.mxu0 0.0
        %4107 = vmatpush1.msra.mxu0 0.0
        %4108 = vmatprep.subr.mxu0 0.0
        %4109 = vmatpush1.msra.mxu0 0.0
        %4110 = vmatprep.mubr.f32.mxu0 0.0
        %4111 = vmatmul.mubr.f32.gmra.mrb[0].mxu0 %v4041
        %v4112 = vpop.f32.mrb[0].mxu0
        %v4113 = vadd.f32 0.0, %v4112
        %v4114 = vpop.f32.mrb[0].mxu0
        %4115 = vmatprep.mubr.f32.mxu0 0.0
        %4116 = vmatmul.mubr.f32.gmra.mrb[0].mxu0 %v4044
        %v4117 = vpop.f32.mrb[0].mxu0
        %v4118 = vadd.f32 0.0, %v4117
        %v4119 = vpop.f32.mrb[0].mxu0
        %4120 = vdwg.mxu0
        %v4121 = vmul.f32 %v4113, %v2072
        %v4122 = vmul.f32 %v4118, %v2074
        %v4123 = vadd.f32 %v4036, %v4121
        %v4124 = vadd.f32 %v4037, %v4122
        %v4125 = vmul.f32 %v3932, %v3948
        %v4126 = vmul.f32 %v3934, %v3950
        %v4128 = vsel %vm1892, %v4125, 0
        %v4131 = vsel %vm1892, %v4126, 0
        %4133 = vmatprep.subr.mxu0 0.0
        %4134 = vmatpush1.msra.mxu0 %v1901
        %4135 = vmatprep.subr.mxu0 0.0
        %4136 = vmatpush1.msra.mxu0 0.0
        %4137 = vmatprep.subr.mxu0 0.0
        %4138 = vmatpush1.msra.mxu0 0.0
        %4139 = vmatprep.subr.mxu0 0.0
        %4140 = vmatpush1.msra.mxu0 0.0
        %4141 = vmatprep.subr.mxu0 0.0
        %4142 = vmatpush1.msra.mxu0 0.0
        %4143 = vmatprep.subr.mxu0 0.0
        %4144 = vmatpush1.msra.mxu0 0.0
        %4145 = vmatprep.subr.mxu0 0.0
        %4146 = vmatpush1.msra.mxu0 0.0
        %4147 = vmatprep.subr.mxu0 0.0
        %4148 = vmatpush1.msra.mxu0 0.0
        %4149 = vmatprep.subr.mxu0 0.0
        %4150 = vmatpush1.msra.mxu0 0.0
        %4151 = vmatprep.subr.mxu0 0.0
        %4152 = vmatpush1.msra.mxu0 0.0
        %4153 = vmatprep.subr.mxu0 0.0
        %4154 = vmatpush1.msra.mxu0 0.0
        %4155 = vmatprep.subr.mxu0 0.0
        %4156 = vmatpush1.msra.mxu0 0.0
        %4157 = vmatprep.subr.mxu0 0.0
        %4158 = vmatpush1.msra.mxu0 0.0
        %4159 = vmatprep.subr.mxu0 0.0
        %4160 = vmatpush1.msra.mxu0 0.0
        %4161 = vmatprep.subr.mxu0 0.0
        %4162 = vmatpush1.msra.mxu0 0.0
        %4163 = vmatprep.subr.mxu0 0.0
        %4164 = vmatpush1.msra.mxu0 0.0
        %4165 = vmatprep.subr.mxu0 0.0
        %4166 = vmatpush1.msra.mxu0 0.0
        %4167 = vmatprep.subr.mxu0 0.0
        %4168 = vmatpush1.msra.mxu0 0.0
        %4169 = vmatprep.subr.mxu0 0.0
        %4170 = vmatpush1.msra.mxu0 0.0
        %4171 = vmatprep.subr.mxu0 0.0
        %4172 = vmatpush1.msra.mxu0 0.0
        %4173 = vmatprep.subr.mxu0 0.0
        %4174 = vmatpush1.msra.mxu0 0.0
        %4175 = vmatprep.subr.mxu0 0.0
        %4176 = vmatpush1.msra.mxu0 0.0
        %4177 = vmatprep.subr.mxu0 0.0
        %4178 = vmatpush1.msra.mxu0 0.0
        %4179 = vmatprep.subr.mxu0 0.0
        %4180 = vmatpush1.msra.mxu0 0.0
        %4181 = vmatprep.subr.mxu0 0.0
        %4182 = vmatpush1.msra.mxu0 0.0
        %4183 = vmatprep.subr.mxu0 0.0
        %4184 = vmatpush1.msra.mxu0 0.0
        %4185 = vmatprep.subr.mxu0 0.0
        %4186 = vmatpush1.msra.mxu0 0.0
        %4187 = vmatprep.subr.mxu0 0.0
        %4188 = vmatpush1.msra.mxu0 0.0
        %4189 = vmatprep.subr.mxu0 0.0
        %4190 = vmatpush1.msra.mxu0 0.0
        %4191 = vmatprep.subr.mxu0 0.0
        %4192 = vmatpush1.msra.mxu0 0.0
        %4193 = vmatprep.subr.mxu0 0.0
        %4194 = vmatpush1.msra.mxu0 0.0
        %4195 = vmatprep.subr.mxu0 0.0
        %4196 = vmatpush1.msra.mxu0 0.0
        %4197 = vmatprep.mubr.f32.mxu0 0.0
        %4198 = vmatmul.mubr.f32.gmra.mrb[0].mxu0 %v4128
        %v4199 = vpop.f32.mrb[0].mxu0
        %v4200 = vadd.f32 0.0, %v4199
        %v4201 = vpop.f32.mrb[0].mxu0
        %4202 = vmatprep.mubr.f32.mxu0 0.0
        %4203 = vmatmul.mubr.f32.gmra.mrb[0].mxu0 %v4131
        %v4204 = vpop.f32.mrb[0].mxu0
        %v4205 = vadd.f32 0.0, %v4204
        %v4206 = vpop.f32.mrb[0].mxu0
        %4207 = vdwg.mxu0
        %v4208 = vmul.f32 %v4200, %v2165
        %v4209 = vmul.f32 %v4205, %v2167
        %v4210 = vadd.f32 %v4123, %v4208
        %v4211 = vadd.f32 %v4124, %v4209
        %v4212 = vmul.f32 %v3938, %v3948
        %v4213 = vmul.f32 %v3940, %v3950
        %v4215 = vsel %vm1892, %v4212, 0
        %v4218 = vsel %vm1892, %v4213, 0
        %4220 = vmatprep.subr.mxu0 0.0
        %4221 = vmatpush1.msra.mxu0 %v1901
        %4222 = vmatprep.subr.mxu0 0.0
        %4223 = vmatpush1.msra.mxu0 0.0
        %4224 = vmatprep.subr.mxu0 0.0
        %4225 = vmatpush1.msra.mxu0 0.0
        %4226 = vmatprep.subr.mxu0 0.0
        %4227 = vmatpush1.msra.mxu0 0.0
        %4228 = vmatprep.subr.mxu0 0.0
        %4229 = vmatpush1.msra.mxu0 0.0
        %4230 = vmatprep.subr.mxu0 0.0
        %4231 = vmatpush1.msra.mxu0 0.0
        %4232 = vmatprep.subr.mxu0 0.0
        %4233 = vmatpush1.msra.mxu0 0.0
        %4234 = vmatprep.subr.mxu0 0.0
        %4235 = vmatpush1.msra.mxu0 0.0
        %4236 = vmatprep.subr.mxu0 0.0
        %4237 = vmatpush1.msra.mxu0 0.0
        %4238 = vmatprep.subr.mxu0 0.0
        %4239 = vmatpush1.msra.mxu0 0.0
        %4240 = vmatprep.subr.mxu0 0.0
        %4241 = vmatpush1.msra.mxu0 0.0
        %4242 = vmatprep.subr.mxu0 0.0
        %4243 = vmatpush1.msra.mxu0 0.0
        %4244 = vmatprep.subr.mxu0 0.0
        %4245 = vmatpush1.msra.mxu0 0.0
        %4246 = vmatprep.subr.mxu0 0.0
        %4247 = vmatpush1.msra.mxu0 0.0
        %4248 = vmatprep.subr.mxu0 0.0
        %4249 = vmatpush1.msra.mxu0 0.0
        %4250 = vmatprep.subr.mxu0 0.0
        %4251 = vmatpush1.msra.mxu0 0.0
        %4252 = vmatprep.subr.mxu0 0.0
        %4253 = vmatpush1.msra.mxu0 0.0
        %4254 = vmatprep.subr.mxu0 0.0
        %4255 = vmatpush1.msra.mxu0 0.0
        %4256 = vmatprep.subr.mxu0 0.0
        %4257 = vmatpush1.msra.mxu0 0.0
        %4258 = vmatprep.subr.mxu0 0.0
        %4259 = vmatpush1.msra.mxu0 0.0
        %4260 = vmatprep.subr.mxu0 0.0
        %4261 = vmatpush1.msra.mxu0 0.0
        %4262 = vmatprep.subr.mxu0 0.0
        %4263 = vmatpush1.msra.mxu0 0.0
        %4264 = vmatprep.subr.mxu0 0.0
        %4265 = vmatpush1.msra.mxu0 0.0
        %4266 = vmatprep.subr.mxu0 0.0
        %4267 = vmatpush1.msra.mxu0 0.0
        %4268 = vmatprep.subr.mxu0 0.0
        %4269 = vmatpush1.msra.mxu0 0.0
        %4270 = vmatprep.subr.mxu0 0.0
        %4271 = vmatpush1.msra.mxu0 0.0
        %4272 = vmatprep.subr.mxu0 0.0
        %4273 = vmatpush1.msra.mxu0 0.0
        %4274 = vmatprep.subr.mxu0 0.0
        %4275 = vmatpush1.msra.mxu0 0.0
        %4276 = vmatprep.subr.mxu0 0.0
        %4277 = vmatpush1.msra.mxu0 0.0
        %4278 = vmatprep.subr.mxu0 0.0
        %4279 = vmatpush1.msra.mxu0 0.0
        %4280 = vmatprep.subr.mxu0 0.0
        %4281 = vmatpush1.msra.mxu0 0.0
        %4282 = vmatprep.subr.mxu0 0.0
        %4283 = vmatpush1.msra.mxu0 0.0
        %4284 = vmatprep.mubr.f32.mxu0 0.0
        %4285 = vmatmul.mubr.f32.gmra.mrb[0].mxu0 %v4215
        %v4286 = vpop.f32.mrb[0].mxu0
        %v4287 = vadd.f32 0.0, %v4286
        %v4288 = vpop.f32.mrb[0].mxu0
        %4289 = vmatprep.mubr.f32.mxu0 0.0
        %4290 = vmatmul.mubr.f32.gmra.mrb[0].mxu0 %v4218
        %v4291 = vpop.f32.mrb[0].mxu0
        %v4292 = vadd.f32 0.0, %v4291
        %v4293 = vpop.f32.mrb[0].mxu0
        %4294 = vdwg.mxu0
        %v4295 = vmul.f32 %v4287, %v2258
        %v4296 = vmul.f32 %v4292, %v2260
        %v4297 = vadd.f32 %v4210, %v4295
        %v4298 = vadd.f32 %v4211, %v4296
        %v4299 = vpack.c.bf16 %v4298, %v4297
        %v4300 = vld [vmem:[%s11] sm:$0xf]
        %v4301 = vld [vmem:[%s11 + $0x4] sm:$0xf]
        %v4302 = vld [vmem:[%s12] sm:$0x1]
        %v4304 = vlaneseq
        %v4305 = vshrl.u32 %v4304, 7
        %v4306 = vsub.s32 0, %v4305
        %v4307 = vrot.slane %v4302, %v4306
        %v4311 = vunpack.c.l.b16 %v4300
        %v4312 = vunpack.c.l.b16 %v4301
        %v4313 = vpack.c.b16 %v4312, %v4311
        %v4316 = vsel %vm1487, %v4299, 0
        %4318 = vmatprep.subr.bf16.mxu0 0
        %4319 = vmatpush1.bf16.msra.mxu0 %v4313
        %4320 = vmatprep.subr.bf16.mxu0 0
        %4321 = vmatpush1.bf16.msra.mxu0 0
        %4322 = vmatprep.subr.bf16.mxu0 0
        %4323 = vmatpush1.bf16.msra.mxu0 0
        %4324 = vmatprep.subr.bf16.mxu0 0
        %4325 = vmatpush1.bf16.msra.mxu0 0
        %4326 = vmatprep.subr.bf16.mxu0 0
        %4327 = vmatpush1.bf16.msra.mxu0 0
        %4328 = vmatprep.subr.bf16.mxu0 0
        %4329 = vmatpush1.bf16.msra.mxu0 0
        %4330 = vmatprep.subr.bf16.mxu0 0
        %4331 = vmatpush1.bf16.msra.mxu0 0
        %4332 = vmatprep.subr.bf16.mxu0 0
        %4333 = vmatpush1.bf16.msra.mxu0 0
        %4334 = vmatprep.subr.bf16.mxu0 0
        %4335 = vmatpush1.bf16.msra.mxu0 0
        %4336 = vmatprep.subr.bf16.mxu0 0
        %4337 = vmatpush1.bf16.msra.mxu0 0
        %4338 = vmatprep.subr.bf16.mxu0 0
        %4339 = vmatpush1.bf16.msra.mxu0 0
        %4340 = vmatprep.subr.bf16.mxu0 0
        %4341 = vmatpush1.bf16.msra.mxu0 0
        %4342 = vmatprep.subr.bf16.mxu0 0
        %4343 = vmatpush1.bf16.msra.mxu0 0
        %4344 = vmatprep.subr.bf16.mxu0 0
        %4345 = vmatpush1.bf16.msra.mxu0 0
        %4346 = vmatprep.subr.bf16.mxu0 0
        %4347 = vmatpush1.bf16.msra.mxu0 0
        %4348 = vmatprep.subr.bf16.mxu0 0
        %4349 = vmatpush1.bf16.msra.mxu0 0
        %4350 = vmatprep.mubr.bf16.mxu0 0
        %4351 = vmatmul.mubr.bf16.gmra.mrb[0].mxu0 %v4316
        %v4352 = vpop.f32.mrb[0].mxu0
        %v4353 = vadd.f32 %v4307, %v4352
        %v4354 = vpop.f32.mrb[0].mxu0
        %v4355 = vpop.f32.mrb[0].mxu0
        %v4356 = vadd.f32 %v4307, %v4355
        %v4357 = vpop.f32.mrb[0].mxu0
        %4358 = vdwg.mxu0
        %v4359 = vld [vmem:[%s13] sm:$0x1]
        %v4360 = vld [vmem:[%s14] sm:$0x1]
        %v4361 = vsel %vm1487, %v4353, 0.0
        %4362 = vadd.xlane.f32.xlu0 %v4361
        %v4363 = vpop.xlane.xlu0 %4362
        %v4364 = vsel %vm1487, %v4356, 0.0
        %4365 = vadd.xlane.f32.xlu0 %v4364
        %v4366 = vpop.xlane.xlu0 %4365
        %v4367 = vmul.f32 %v4363, %v2335
        %v4368 = vmul.f32 %v4366, %v2335
        %v4369 = vsub.f32 %v4353, %v4367
        %v4370 = vsub.f32 %v4356, %v4368
        %v4371 = vmul.f32 %v4369, %v4369
        %v4372 = vmul.f32 %v4370, %v4370
        %v4373 = vsel %vm1487, %v4371, 0.0
        %4374 = vadd.xlane.f32.xlu0 %v4373
        %v4375 = vpop.xlane.xlu0 %4374
        %v4376 = vsel %vm1487, %v4372, 0.0
        %4377 = vadd.xlane.f32.xlu0 %v4376
        %v4378 = vpop.xlane.xlu0 %4377
        %v4379 = vmul.f32 %v4375, %v2335
        %v4380 = vmul.f32 %v4378, %v2335
        %v4381 = vadd.f32 %v4379, 1e-05
        %v4382 = vadd.f32 %v4380, 1e-05
        %v4383 = vrsqrt.pop %v4381
        %v4384 = vrsqrt.pop %v4382
        %v4385 = vmul.f32 %v4369, %v4383
        %v4386 = vmul.f32 %v4370, %v4384
        %v4388 = vlaneseq
        %v4389 = vshrl.u32 %v4388, 7
        %v4390 = vsub.s32 0, %v4389
        %v4391 = vrot.slane %v4359, %v4390
        %v4393 = vmul.f32 %v4385, %v4391
        %v4394 = vmul.f32 %v4386, %v4391
        %v4396 = vlaneseq
        %v4397 = vshrl.u32 %v4396, 7
        %v4398 = vsub.s32 0, %v4397
        %v4399 = vrot.slane %v4360, %v4398
        %v4401 = vadd.f32 %v4393, %v4399
        %v4402 = vadd.f32 %v4394, %v4399
        %v4403 = vpack.c.bf16 %v4402, %v4401
        %v4404 = vld [vmem:[%s15] sm:$0xf]
        %v4405 = vld [vmem:[%s15 + $0x4] sm:$0xf]
        %v4406 = vld [vmem:[%s16] sm:$0x1]
        %v4408 = vlaneseq
        %v4409 = vshrl.u32 %v4408, 7
        %v4410 = vsub.s32 0, %v4409
        %v4411 = vrot.slane %v4406, %v4410
        %v4415 = vunpack.c.l.b16 %v4404
        %v4416 = vunpack.c.l.b16 %v4405
        %v4417 = vpack.c.b16 %v4416, %v4415
        %v4420 = vsel %vm1487, %v4403, 0
        %4422 = vmatprep.subr.bf16.mxu0 0
        %4423 = vmatpush1.bf16.msra.mxu0 %v4417
        %4424 = vmatprep.subr.bf16.mxu0 0
        %4425 = vmatpush1.bf16.msra.mxu0 0
        %4426 = vmatprep.subr.bf16.mxu0 0
        %4427 = vmatpush1.bf16.msra.mxu0 0
        %4428 = vmatprep.subr.bf16.mxu0 0
        %4429 = vmatpush1.bf16.msra.mxu0 0
        %4430 = vmatprep.subr.bf16.mxu0 0
        %4431 = vmatpush1.bf16.msra.mxu0 0
        %4432 = vmatprep.subr.bf16.mxu0 0
        %4433 = vmatpush1.bf16.msra.mxu0 0
        %4434 = vmatprep.subr.bf16.mxu0 0
        %4435 = vmatpush1.bf16.msra.mxu0 0
        %4436 = vmatprep.subr.bf16.mxu0 0
        %4437 = vmatpush1.bf16.msra.mxu0 0
        %4438 = vmatprep.subr.bf16.mxu0 0
        %4439 = vmatpush1.bf16.msra.mxu0 0
        %4440 = vmatprep.subr.bf16.mxu0 0
        %4441 = vmatpush1.bf16.msra.mxu0 0
        %4442 = vmatprep.subr.bf16.mxu0 0
        %4443 = vmatpush1.bf16.msra.mxu0 0
        %4444 = vmatprep.subr.bf16.mxu0 0
        %4445 = vmatpush1.bf16.msra.mxu0 0
        %4446 = vmatprep.subr.bf16.mxu0 0
        %4447 = vmatpush1.bf16.msra.mxu0 0
        %4448 = vmatprep.subr.bf16.mxu0 0
        %4449 = vmatpush1.bf16.msra.mxu0 0
        %4450 = vmatprep.subr.bf16.mxu0 0
        %4451 = vmatpush1.bf16.msra.mxu0 0
        %4452 = vmatprep.subr.bf16.mxu0 0
        %4453 = vmatpush1.bf16.msra.mxu0 0
        %4454 = vmatprep.mubr.bf16.mxu0 0
        %4455 = vmatmul.mubr.bf16.gmra.mrb[0].mxu0 %v4420
        %v4456 = vpop.f32.mrb[0].mxu0
        %v4457 = vadd.f32 %v4411, %v4456
        %v4458 = vpop.f32.mrb[0].mxu0
        %v4459 = vpop.f32.mrb[0].mxu0
        %v4460 = vadd.f32 %v4411, %v4459
        %v4461 = vpop.f32.mrb[0].mxu0
        %4462 = vdwg.mxu0
        %v4463 = vmax.f32 %v4457, 0.0
        %v4464 = vmax.f32 %v4460, 0.0
        %v4465 = vpack.c.bf16 %v4464, %v4463
        %v4466 = vld [vmem:[%s17] sm:$0xf]
        %v4467 = vld [vmem:[%s17 + $0x4] sm:$0xf]
        %v4468 = vld [vmem:[%s18] sm:$0x1]
        %v4470 = vlaneseq
        %v4471 = vshrl.u32 %v4470, 7
        %v4472 = vsub.s32 0, %v4471
        %v4473 = vrot.slane %v4468, %v4472
        %v4477 = vunpack.c.l.b16 %v4466
        %v4478 = vunpack.c.l.b16 %v4467
        %v4479 = vpack.c.b16 %v4478, %v4477
        %v4482 = vsel %vm1487, %v4465, 0
        %4484 = vmatprep.subr.bf16.mxu0 0
        %4485 = vmatpush1.bf16.msra.mxu0 %v4479
        %4486 = vmatprep.subr.bf16.mxu0 0
        %4487 = vmatpush1.bf16.msra.mxu0 0
        %4488 = vmatprep.subr.bf16.mxu0 0
        %4489 = vmatpush1.bf16.msra.mxu0 0
        %4490 = vmatprep.subr.bf16.mxu0 0
        %4491 = vmatpush1.bf16.msra.mxu0 0
        %4492 = vmatprep.subr.bf16.mxu0 0
        %4493 = vmatpush1.bf16.msra.mxu0 0
        %4494 = vmatprep.subr.bf16.mxu0 0
        %4495 = vmatpush1.bf16.msra.mxu0 0
        %4496 = vmatprep.subr.bf16.mxu0 0
        %4497 = vmatpush1.bf16.msra.mxu0 0
        %4498 = vmatprep.subr.bf16.mxu0 0
        %4499 = vmatpush1.bf16.msra.mxu0 0
        %4500 = vmatprep.subr.bf16.mxu0 0
        %4501 = vmatpush1.bf16.msra.mxu0 0
        %4502 = vmatprep.subr.bf16.mxu0 0
        %4503 = vmatpush1.bf16.msra.mxu0 0
        %4504 = vmatprep.subr.bf16.mxu0 0
        %4505 = vmatpush1.bf16.msra.mxu0 0
        %4506 = vmatprep.subr.bf16.mxu0 0
        %4507 = vmatpush1.bf16.msra.mxu0 0
        %4508 = vmatprep.subr.bf16.mxu0 0
        %4509 = vmatpush1.bf16.msra.mxu0 0
        %4510 = vmatprep.subr.bf16.mxu0 0
        %4511 = vmatpush1.bf16.msra.mxu0 0
        %4512 = vmatprep.subr.bf16.mxu0 0
        %4513 = vmatpush1.bf16.msra.mxu0 0
        %4514 = vmatprep.subr.bf16.mxu0 0
        %4515 = vmatpush1.bf16.msra.mxu0 0
        %4516 = vmatprep.mubr.bf16.mxu0 0
        %4517 = vmatmul.mubr.bf16.gmra.mrb[0].mxu0 %v4482
        %v4518 = vpop.f32.mrb[0].mxu0
        %v4519 = vadd.f32 %v4473, %v4518
        %v4520 = vpop.f32.mrb[0].mxu0
        %v4521 = vpop.f32.mrb[0].mxu0
        %v4522 = vadd.f32 %v4473, %v4521
        %v4523 = vpop.f32.mrb[0].mxu0
        %4524 = vdwg.mxu0
        %v4525 = vadd.f32 %v4353, %v4519
        %v4526 = vadd.f32 %v4356, %v4522
        %s4527 = scalar_lea.vmem %s848, 32 [#allocation5]
        %4528 = vst.msk [vmem:[%s4527] sm:$0xff] %vm1487, %v4525
        %4529 = vst.msk [vmem:[%s4527 + $0x8] sm:$0xff] %vm1487, %v4526
        %v4530 = vmax.f32 %v4525, 0.0
        %v4531 = vmax.f32 %v4526, 0.0
        %v4532 = vld [vmem:[%s19] sm:$0x1]
        %v4533 = vld [vmem:[%s20] sm:$0x1]
        %v4534 = vsel %vm1487, %v4530, 0.0
        %4535 = vadd.xlane.f32.xlu0 %v4534
        %v4536 = vpop.xlane.xlu0 %4535
        %v4537 = vsel %vm1487, %v4531, 0.0
        %4538 = vadd.xlane.f32.xlu0 %v4537
        %v4539 = vpop.xlane.xlu0 %4538
        %v4540 = vmul.f32 %v4536, %v2335
        %v4541 = vmul.f32 %v4539, %v2335
        %v4542 = vsub.f32 %v4530, %v4540
        %v4543 = vsub.f32 %v4531, %v4541
        %v4544 = vmul.f32 %v4542, %v4542
        %v4545 = vmul.f32 %v4543, %v4543
        %v4546 = vsel %vm1487, %v4544, 0.0
        %4547 = vadd.xlane.f32.xlu0 %v4546
        %v4548 = vpop.xlane.xlu0 %4547
        %v4549 = vsel %vm1487, %v4545, 0.0
        %4550 = vadd.xlane.f32.xlu0 %v4549
        %v4551 = vpop.xlane.xlu0 %4550
        %v4552 = vmul.f32 %v4548, %v2335
        %v4553 = vmul.f32 %v4551, %v2335
        %v4554 = vadd.f32 %v4552, 1e-05
        %v4555 = vadd.f32 %v4553, 1e-05
        %v4556 = vrsqrt.pop %v4554
        %v4557 = vrsqrt.pop %v4555
        %v4558 = vmul.f32 %v4542, %v4556
        %v4559 = vmul.f32 %v4543, %v4557
        %v4561 = vlaneseq
        %v4562 = vshrl.u32 %v4561, 7
        %v4563 = vsub.s32 0, %v4562
        %v4564 = vrot.slane %v4532, %v4563
        %v4566 = vmul.f32 %v4558, %v4564
        %v4567 = vmul.f32 %v4559, %v4564
        %v4569 = vlaneseq
        %v4570 = vshrl.u32 %v4569, 7
        %v4571 = vsub.s32 0, %v4570
        %v4572 = vrot.slane %v4533, %v4571
        %v4574 = vadd.f32 %v4566, %v4572
        %v4575 = vadd.f32 %v4567, %v4572
        %v4576 = vpack.c.bf16 %v4575, %v4574
        %v4578 = vunpack.c.l.b16 %v4576
        %v4579 = vunpack.c.h.b16 %v4576
        %v4580 = vpack.c.b16 %v4578, %v4578
        %v4581 = vpack.c.b16 %v4579, %v4579
        %s4584 = scalar_lea.vmem %s854, 16 [#allocation6]
        %4585 = vst.msk [vmem:[%s4584] sm:$0xf] %vm2552, %v4580
        %4586 = vst.msk [vmem:[%s4584 + $0x4] sm:$0xf] %vm2552, %v4581
        %v4587 = vmul.f32 %v1471, %v1480
        %v4588 = vmul.f32 %v1474, %v1482
        %v4590 = vsel %vm1487, %v4587, 0
        %v4593 = vsel %vm1487, %v4588, 0
        %4595 = vmatprep.subr.mxu0 0.0
        %4596 = vmatpush1.msra.mxu0 %v873
        %4597 = vmatprep.subr.mxu0 0.0
        %4598 = vmatpush1.msra.mxu0 %v874
        %4599 = vmatprep.subr.mxu0 0.0
        %4600 = vmatpush1.msra.mxu0 0.0
        %4601 = vmatprep.subr.mxu0 0.0
        %4602 = vmatpush1.msra.mxu0 0.0
        %4603 = vmatprep.subr.mxu0 0.0
        %4604 = vmatpush1.msra.mxu0 0.0
        %4605 = vmatprep.subr.mxu0 0.0
        %4606 = vmatpush1.msra.mxu0 0.0
        %4607 = vmatprep.subr.mxu0 0.0
        %4608 = vmatpush1.msra.mxu0 0.0
        %4609 = vmatprep.subr.mxu0 0.0
        %4610 = vmatpush1.msra.mxu0 0.0
        %4611 = vmatprep.subr.mxu0 0.0
        %4612 = vmatpush1.msra.mxu0 0.0
        %4613 = vmatprep.subr.mxu0 0.0
        %4614 = vmatpush1.msra.mxu0 0.0
        %4615 = vmatprep.subr.mxu0 0.0
        %4616 = vmatpush1.msra.mxu0 0.0
        %4617 = vmatprep.subr.mxu0 0.0
        %4618 = vmatpush1.msra.mxu0 0.0
        %4619 = vmatprep.subr.mxu0 0.0
        %4620 = vmatpush1.msra.mxu0 0.0
        %4621 = vmatprep.subr.mxu0 0.0
        %4622 = vmatpush1.msra.mxu0 0.0
        %4623 = vmatprep.subr.mxu0 0.0
        %4624 = vmatpush1.msra.mxu0 0.0
        %4625 = vmatprep.subr.mxu0 0.0
        %4626 = vmatpush1.msra.mxu0 0.0
        %4627 = vmatprep.subr.mxu0 0.0
        %4628 = vmatpush1.msra.mxu0 0.0
        %4629 = vmatprep.subr.mxu0 0.0
        %4630 = vmatpush1.msra.mxu0 0.0
        %4631 = vmatprep.subr.mxu0 0.0
        %4632 = vmatpush1.msra.mxu0 0.0
        %4633 = vmatprep.subr.mxu0 0.0
        %4634 = vmatpush1.msra.mxu0 0.0
        %4635 = vmatprep.subr.mxu0 0.0
        %4636 = vmatpush1.msra.mxu0 0.0
        %4637 = vmatprep.subr.mxu0 0.0
        %4638 = vmatpush1.msra.mxu0 0.0
        %4639 = vmatprep.subr.mxu0 0.0
        %4640 = vmatpush1.msra.mxu0 0.0
        %4641 = vmatprep.subr.mxu0 0.0
        %4642 = vmatpush1.msra.mxu0 0.0
        %4643 = vmatprep.subr.mxu0 0.0
        %4644 = vmatpush1.msra.mxu0 0.0
        %4645 = vmatprep.subr.mxu0 0.0
        %4646 = vmatpush1.msra.mxu0 0.0
        %4647 = vmatprep.subr.mxu0 0.0
        %4648 = vmatpush1.msra.mxu0 0.0
        %4649 = vmatprep.subr.mxu0 0.0
        %4650 = vmatpush1.msra.mxu0 0.0
        %4651 = vmatprep.subr.mxu0 0.0
        %4652 = vmatpush1.msra.mxu0 0.0
        %4653 = vmatprep.subr.mxu0 0.0
        %4654 = vmatpush1.msra.mxu0 0.0
        %4655 = vmatprep.subr.mxu0 0.0
        %4656 = vmatpush1.msra.mxu0 0.0
        %4657 = vmatprep.subr.mxu0 0.0
        %4658 = vmatpush1.msra.mxu0 0.0
        %4659 = vmatprep.mubr.f32.mxu0 0.0
        %4660 = vmatmul.mubr.f32.gmra.mrb[0].mxu0 %v4590
        %v4661 = vpop.f32.mrb[0].mxu0
        %v4662 = vadd.f32 0.0, %v4661
        %v4663 = vpop.f32.mrb[0].mxu0
        %4664 = vmatprep.mubr.f32.mxu0 0.0
        %4665 = vmatmul.mubr.f32.gmra.mrb[0].mxu0 %v4593
        %v4666 = vpop.f32.mrb[0].mxu0
        %v4667 = vadd.f32 0.0, %v4666
        %v4668 = vpop.f32.mrb[0].mxu0
        %4669 = vdwg.mxu0
        %v4670 = vmul.f32 %v4662, 0.35355338
        %v4671 = vmul.f32 %v4667, 0.35355338
        %v4672 = vmul.f32 %v1471, %v1574
        %v4673 = vmul.f32 %v1474, %v1576
        %v4675 = vsel %vm1487, %v4672, 0
        %v4678 = vsel %vm1487, %v4673, 0
        %4680 = vmatprep.subr.mxu0 0.0
        %4681 = vmatpush1.msra.mxu0 %v873
        %4682 = vmatprep.subr.mxu0 0.0
        %4683 = vmatpush1.msra.mxu0 %v874
        %4684 = vmatprep.subr.mxu0 0.0
        %4685 = vmatpush1.msra.mxu0 0.0
        %4686 = vmatprep.subr.mxu0 0.0
        %4687 = vmatpush1.msra.mxu0 0.0
        %4688 = vmatprep.subr.mxu0 0.0
        %4689 = vmatpush1.msra.mxu0 0.0
        %4690 = vmatprep.subr.mxu0 0.0
        %4691 = vmatpush1.msra.mxu0 0.0
        %4692 = vmatprep.subr.mxu0 0.0
        %4693 = vmatpush1.msra.mxu0 0.0
        %4694 = vmatprep.subr.mxu0 0.0
        %4695 = vmatpush1.msra.mxu0 0.0
        %4696 = vmatprep.subr.mxu0 0.0
        %4697 = vmatpush1.msra.mxu0 0.0
        %4698 = vmatprep.subr.mxu0 0.0
        %4699 = vmatpush1.msra.mxu0 0.0
        %4700 = vmatprep.subr.mxu0 0.0
        %4701 = vmatpush1.msra.mxu0 0.0
        %4702 = vmatprep.subr.mxu0 0.0
        %4703 = vmatpush1.msra.mxu0 0.0
        %4704 = vmatprep.subr.mxu0 0.0
        %4705 = vmatpush1.msra.mxu0 0.0
        %4706 = vmatprep.subr.mxu0 0.0
        %4707 = vmatpush1.msra.mxu0 0.0
        %4708 = vmatprep.subr.mxu0 0.0
        %4709 = vmatpush1.msra.mxu0 0.0
        %4710 = vmatprep.subr.mxu0 0.0
        %4711 = vmatpush1.msra.mxu0 0.0
        %4712 = vmatprep.subr.mxu0 0.0
        %4713 = vmatpush1.msra.mxu0 0.0
        %4714 = vmatprep.subr.mxu0 0.0
        %4715 = vmatpush1.msra.mxu0 0.0
        %4716 = vmatprep.subr.mxu0 0.0
        %4717 = vmatpush1.msra.mxu0 0.0
        %4718 = vmatprep.subr.mxu0 0.0
        %4719 = vmatpush1.msra.mxu0 0.0
        %4720 = vmatprep.subr.mxu0 0.0
        %4721 = vmatpush1.msra.mxu0 0.0
        %4722 = vmatprep.subr.mxu0 0.0
        %4723 = vmatpush1.msra.mxu0 0.0
        %4724 = vmatprep.subr.mxu0 0.0
        %4725 = vmatpush1.msra.mxu0 0.0
        %4726 = vmatprep.subr.mxu0 0.0
        %4727 = vmatpush1.msra.mxu0 0.0
        %4728 = vmatprep.subr.mxu0 0.0
        %4729 = vmatpush1.msra.mxu0 0.0
        %4730 = vmatprep.subr.mxu0 0.0
        %4731 = vmatpush1.msra.mxu0 0.0
        %4732 = vmatprep.subr.mxu0 0.0
        %4733 = vmatpush1.msra.mxu0 0.0
        %4734 = vmatprep.subr.mxu0 0.0
        %4735 = vmatpush1.msra.mxu0 0.0
        %4736 = vmatprep.subr.mxu0 0.0
        %4737 = vmatpush1.msra.mxu0 0.0
        %4738 = vmatprep.subr.mxu0 0.0
        %4739 = vmatpush1.msra.mxu0 0.0
        %4740 = vmatprep.subr.mxu0 0.0
        %4741 = vmatpush1.msra.mxu0 0.0
        %4742 = vmatprep.subr.mxu0 0.0
        %4743 = vmatpush1.msra.mxu0 0.0
        %4744 = vmatprep.mubr.f32.mxu0 0.0
        %4745 = vmatmul.mubr.f32.gmra.mrb[0].mxu0 %v4675
        %v4746 = vpop.f32.mrb[0].mxu0
        %v4747 = vadd.f32 0.0, %v4746
        %v4748 = vpop.f32.mrb[0].mxu0
        %4749 = vmatprep.mubr.f32.mxu0 0.0
        %4750 = vmatmul.mubr.f32.gmra.mrb[0].mxu0 %v4678
        %v4751 = vpop.f32.mrb[0].mxu0
        %v4752 = vadd.f32 0.0, %v4751
        %v4753 = vpop.f32.mrb[0].mxu0
        %4754 = vdwg.mxu0
        %v4755 = vmul.f32 %v4747, 0.35355338
        %v4756 = vmul.f32 %v4752, 0.35355338
        %v4757 = vmul.f32 %v1471, %v1667
        %v4758 = vmul.f32 %v1474, %v1669
        %v4760 = vsel %vm1487, %v4757, 0
        %v4763 = vsel %vm1487, %v4758, 0
        %4765 = vmatprep.subr.mxu0 0.0
        %4766 = vmatpush1.msra.mxu0 %v873
        %4767 = vmatprep.subr.mxu0 0.0
        %4768 = vmatpush1.msra.mxu0 %v874
        %4769 = vmatprep.subr.mxu0 0.0
        %4770 = vmatpush1.msra.mxu0 0.0
        %4771 = vmatprep.subr.mxu0 0.0
        %4772 = vmatpush1.msra.mxu0 0.0
        %4773 = vmatprep.subr.mxu0 0.0
        %4774 = vmatpush1.msra.mxu0 0.0
        %4775 = vmatprep.subr.mxu0 0.0
        %4776 = vmatpush1.msra.mxu0 0.0
        %4777 = vmatprep.subr.mxu0 0.0
        %4778 = vmatpush1.msra.mxu0 0.0
        %4779 = vmatprep.subr.mxu0 0.0
        %4780 = vmatpush1.msra.mxu0 0.0
        %4781 = vmatprep.subr.mxu0 0.0
        %4782 = vmatpush1.msra.mxu0 0.0
        %4783 = vmatprep.subr.mxu0 0.0
        %4784 = vmatpush1.msra.mxu0 0.0
        %4785 = vmatprep.subr.mxu0 0.0
        %4786 = vmatpush1.msra.mxu0 0.0
        %4787 = vmatprep.subr.mxu0 0.0
        %4788 = vmatpush1.msra.mxu0 0.0
        %4789 = vmatprep.subr.mxu0 0.0
        %4790 = vmatpush1.msra.mxu0 0.0
        %4791 = vmatprep.subr.mxu0 0.0
        %4792 = vmatpush1.msra.mxu0 0.0
        %4793 = vmatprep.subr.mxu0 0.0
        %4794 = vmatpush1.msra.mxu0 0.0
        %4795 = vmatprep.subr.mxu0 0.0
        %4796 = vmatpush1.msra.mxu0 0.0
        %4797 = vmatprep.subr.mxu0 0.0
        %4798 = vmatpush1.msra.mxu0 0.0
        %4799 = vmatprep.subr.mxu0 0.0
        %4800 = vmatpush1.msra.mxu0 0.0
        %4801 = vmatprep.subr.mxu0 0.0
        %4802 = vmatpush1.msra.mxu0 0.0
        %4803 = vmatprep.subr.mxu0 0.0
        %4804 = vmatpush1.msra.mxu0 0.0
        %4805 = vmatprep.subr.mxu0 0.0
        %4806 = vmatpush1.msra.mxu0 0.0
        %4807 = vmatprep.subr.mxu0 0.0
        %4808 = vmatpush1.msra.mxu0 0.0
        %4809 = vmatprep.subr.mxu0 0.0
        %4810 = vmatpush1.msra.mxu0 0.0
        %4811 = vmatprep.subr.mxu0 0.0
        %4812 = vmatpush1.msra.mxu0 0.0
        %4813 = vmatprep.subr.mxu0 0.0
        %4814 = vmatpush1.msra.mxu0 0.0
        %4815 = vmatprep.subr.mxu0 0.0
        %4816 = vmatpush1.msra.mxu0 0.0
        %4817 = vmatprep.subr.mxu0 0.0
        %4818 = vmatpush1.msra.mxu0 0.0
        %4819 = vmatprep.subr.mxu0 0.0
        %4820 = vmatpush1.msra.mxu0 0.0
        %4821 = vmatprep.subr.mxu0 0.0
        %4822 = vmatpush1.msra.mxu0 0.0
        %4823 = vmatprep.subr.mxu0 0.0
        %4824 = vmatpush1.msra.mxu0 0.0
        %4825 = vmatprep.subr.mxu0 0.0
        %4826 = vmatpush1.msra.mxu0 0.0
        %4827 = vmatprep.subr.mxu0 0.0
        %4828 = vmatpush1.msra.mxu0 0.0
        %4829 = vmatprep.mubr.f32.mxu0 0.0
        %4830 = vmatmul.mubr.f32.gmra.mrb[0].mxu0 %v4760
        %v4831 = vpop.f32.mrb[0].mxu0
        %v4832 = vadd.f32 0.0, %v4831
        %v4833 = vpop.f32.mrb[0].mxu0
        %4834 = vmatprep.mubr.f32.mxu0 0.0
        %4835 = vmatmul.mubr.f32.gmra.mrb[0].mxu0 %v4763
        %v4836 = vpop.f32.mrb[0].mxu0
        %v4837 = vadd.f32 0.0, %v4836
        %v4838 = vpop.f32.mrb[0].mxu0
        %4839 = vdwg.mxu0
        %v4840 = vmul.f32 %v4832, 0.35355338
        %v4841 = vmul.f32 %v4837, 0.35355338
        %v4842 = vmul.f32 %v1471, %v1760
        %v4843 = vmul.f32 %v1474, %v1762
        %v4845 = vsel %vm1487, %v4842, 0
        %v4848 = vsel %vm1487, %v4843, 0
        %4850 = vmatprep.subr.mxu0 0.0
        %4851 = vmatpush1.msra.mxu0 %v873
        %4852 = vmatprep.subr.mxu0 0.0
        %4853 = vmatpush1.msra.mxu0 %v874
        %4854 = vmatprep.subr.mxu0 0.0
        %4855 = vmatpush1.msra.mxu0 0.0
        %4856 = vmatprep.subr.mxu0 0.0
        %4857 = vmatpush1.msra.mxu0 0.0
        %4858 = vmatprep.subr.mxu0 0.0
        %4859 = vmatpush1.msra.mxu0 0.0
        %4860 = vmatprep.subr.mxu0 0.0
        %4861 = vmatpush1.msra.mxu0 0.0
        %4862 = vmatprep.subr.mxu0 0.0
        %4863 = vmatpush1.msra.mxu0 0.0
        %4864 = vmatprep.subr.mxu0 0.0
        %4865 = vmatpush1.msra.mxu0 0.0
        %4866 = vmatprep.subr.mxu0 0.0
        %4867 = vmatpush1.msra.mxu0 0.0
        %4868 = vmatprep.subr.mxu0 0.0
        %4869 = vmatpush1.msra.mxu0 0.0
        %4870 = vmatprep.subr.mxu0 0.0
        %4871 = vmatpush1.msra.mxu0 0.0
        %4872 = vmatprep.subr.mxu0 0.0
        %4873 = vmatpush1.msra.mxu0 0.0
        %4874 = vmatprep.subr.mxu0 0.0
        %4875 = vmatpush1.msra.mxu0 0.0
        %4876 = vmatprep.subr.mxu0 0.0
        %4877 = vmatpush1.msra.mxu0 0.0
        %4878 = vmatprep.subr.mxu0 0.0
        %4879 = vmatpush1.msra.mxu0 0.0
        %4880 = vmatprep.subr.mxu0 0.0
        %4881 = vmatpush1.msra.mxu0 0.0
        %4882 = vmatprep.subr.mxu0 0.0
        %4883 = vmatpush1.msra.mxu0 0.0
        %4884 = vmatprep.subr.mxu0 0.0
        %4885 = vmatpush1.msra.mxu0 0.0
        %4886 = vmatprep.subr.mxu0 0.0
        %4887 = vmatpush1.msra.mxu0 0.0
        %4888 = vmatprep.subr.mxu0 0.0
        %4889 = vmatpush1.msra.mxu0 0.0
        %4890 = vmatprep.subr.mxu0 0.0
        %4891 = vmatpush1.msra.mxu0 0.0
        %4892 = vmatprep.subr.mxu0 0.0
        %4893 = vmatpush1.msra.mxu0 0.0
        %4894 = vmatprep.subr.mxu0 0.0
        %4895 = vmatpush1.msra.mxu0 0.0
        %4896 = vmatprep.subr.mxu0 0.0
        %4897 = vmatpush1.msra.mxu0 0.0
        %4898 = vmatprep.subr.mxu0 0.0
        %4899 = vmatpush1.msra.mxu0 0.0
        %4900 = vmatprep.subr.mxu0 0.0
        %4901 = vmatpush1.msra.mxu0 0.0
        %4902 = vmatprep.subr.mxu0 0.0
        %4903 = vmatpush1.msra.mxu0 0.0
        %4904 = vmatprep.subr.mxu0 0.0
        %4905 = vmatpush1.msra.mxu0 0.0
        %4906 = vmatprep.subr.mxu0 0.0
        %4907 = vmatpush1.msra.mxu0 0.0
        %4908 = vmatprep.subr.mxu0 0.0
        %4909 = vmatpush1.msra.mxu0 0.0
        %4910 = vmatprep.subr.mxu0 0.0
        %4911 = vmatpush1.msra.mxu0 0.0
        %4912 = vmatprep.subr.mxu0 0.0
        %4913 = vmatpush1.msra.mxu0 0.0
        %4914 = vmatprep.mubr.f32.mxu0 0.0
        %4915 = vmatmul.mubr.f32.gmra.mrb[0].mxu0 %v4845
        %v4916 = vpop.f32.mrb[0].mxu0
        %v4917 = vadd.f32 0.0, %v4916
        %v4918 = vpop.f32.mrb[0].mxu0
        %4919 = vmatprep.mubr.f32.mxu0 0.0
        %4920 = vmatmul.mubr.f32.gmra.mrb[0].mxu0 %v4848
        %v4921 = vpop.f32.mrb[0].mxu0
        %v4922 = vadd.f32 0.0, %v4921
        %v4923 = vpop.f32.mrb[0].mxu0
        %4924 = vdwg.mxu0
        %v4925 = vmul.f32 %v4917, 0.35355338
        %v4926 = vmul.f32 %v4922, 0.35355338
        %v4927 = vmax.f32 %v4670, %v4755
        %v4928 = vmax.f32 %v4671, %v4756
        %v4929 = vmax.f32 %v4927, %v4840
        %v4930 = vmax.f32 %v4928, %v4841
        %v4931 = vmax.f32 %v4929, %v4925
        %v4932 = vmax.f32 %v4930, %v4926
        %v4933 = vsub.f32 %v4670, %v4931
        %v4934 = vsub.f32 %v4671, %v4932
        %v4935 = vmul.f32 %v4933, 1.442695
        %v4936 = vpow.pop %v4935
        %v4937 = vmul.f32 %v4934, 1.442695
        %v4938 = vpow.pop %v4937
        %v4939 = vsub.f32 %v4755, %v4931
        %v4940 = vsub.f32 %v4756, %v4932
        %v4941 = vmul.f32 %v4939, 1.442695
        %v4942 = vpow.pop %v4941
        %v4943 = vmul.f32 %v4940, 1.442695
        %v4944 = vpow.pop %v4943
        %v4945 = vsub.f32 %v4840, %v4931
        %v4946 = vsub.f32 %v4841, %v4932
        %v4947 = vmul.f32 %v4945, 1.442695
        %v4948 = vpow.pop %v4947
        %v4949 = vmul.f32 %v4946, 1.442695
        %v4950 = vpow.pop %v4949
        %v4951 = vsub.f32 %v4925, %v4931
        %v4952 = vsub.f32 %v4926, %v4932
        %v4953 = vmul.f32 %v4951, 1.442695
        %v4954 = vpow.pop %v4953
        %v4955 = vmul.f32 %v4952, 1.442695
        %v4956 = vpow.pop %v4955
        %v4957 = vadd.f32 %v4936, %v4942
        %v4958 = vadd.f32 %v4938, %v4944
        %v4959 = vadd.f32 %v4957, %v4948
        %v4960 = vadd.f32 %v4958, %v4950
        %v4961 = vadd.f32 %v4959, %v4954
        %v4962 = vadd.f32 %v4960, %v4956
        %v4963 = vrcp.pop %v4961
        %v4964 = vmul.f32 1.0, %v4963
        %v4965 = vrcp.pop %v4962
        %v4966 = vmul.f32 1.0, %v4965
        %v4967 = vmul.f32 %v4936, %v4964
        %v4968 = vmul.f32 %v4938, %v4966
        %v4970 = vsel %vm1892, %v4967, 0
        %v4973 = vsel %vm1892, %v4968, 0
        %4975 = vmatprep.subr.mxu0 0.0
        %4976 = vmatpush1.msra.mxu0 %v1901
        %4977 = vmatprep.subr.mxu0 0.0
        %4978 = vmatpush1.msra.mxu0 0.0
        %4979 = vmatprep.subr.mxu0 0.0
        %4980 = vmatpush1.msra.mxu0 0.0
        %4981 = vmatprep.subr.mxu0 0.0
        %4982 = vmatpush1.msra.mxu0 0.0
        %4983 = vmatprep.subr.mxu0 0.0
        %4984 = vmatpush1.msra.mxu0 0.0
        %4985 = vmatprep.subr.mxu0 0.0
        %4986 = vmatpush1.msra.mxu0 0.0
        %4987 = vmatprep.subr.mxu0 0.0
        %4988 = vmatpush1.msra.mxu0 0.0
        %4989 = vmatprep.subr.mxu0 0.0
        %4990 = vmatpush1.msra.mxu0 0.0
        %4991 = vmatprep.subr.mxu0 0.0
        %4992 = vmatpush1.msra.mxu0 0.0
        %4993 = vmatprep.subr.mxu0 0.0
        %4994 = vmatpush1.msra.mxu0 0.0
        %4995 = vmatprep.subr.mxu0 0.0
        %4996 = vmatpush1.msra.mxu0 0.0
        %4997 = vmatprep.subr.mxu0 0.0
        %4998 = vmatpush1.msra.mxu0 0.0
        %4999 = vmatprep.subr.mxu0 0.0
        %5000 = vmatpush1.msra.mxu0 0.0
        %5001 = vmatprep.subr.mxu0 0.0
        %5002 = vmatpush1.msra.mxu0 0.0
        %5003 = vmatprep.subr.mxu0 0.0
        %5004 = vmatpush1.msra.mxu0 0.0
        %5005 = vmatprep.subr.mxu0 0.0
        %5006 = vmatpush1.msra.mxu0 0.0
        %5007 = vmatprep.subr.mxu0 0.0
        %5008 = vmatpush1.msra.mxu0 0.0
        %5009 = vmatprep.subr.mxu0 0.0
        %5010 = vmatpush1.msra.mxu0 0.0
        %5011 = vmatprep.subr.mxu0 0.0
        %5012 = vmatpush1.msra.mxu0 0.0
        %5013 = vmatprep.subr.mxu0 0.0
        %5014 = vmatpush1.msra.mxu0 0.0
        %5015 = vmatprep.subr.mxu0 0.0
        %5016 = vmatpush1.msra.mxu0 0.0
        %5017 = vmatprep.subr.mxu0 0.0
        %5018 = vmatpush1.msra.mxu0 0.0
        %5019 = vmatprep.subr.mxu0 0.0
        %5020 = vmatpush1.msra.mxu0 0.0
        %5021 = vmatprep.subr.mxu0 0.0
        %5022 = vmatpush1.msra.mxu0 0.0
        %5023 = vmatprep.subr.mxu0 0.0
        %5024 = vmatpush1.msra.mxu0 0.0
        %5025 = vmatprep.subr.mxu0 0.0
        %5026 = vmatpush1.msra.mxu0 0.0
        %5027 = vmatprep.subr.mxu0 0.0
        %5028 = vmatpush1.msra.mxu0 0.0
        %5029 = vmatprep.subr.mxu0 0.0
        %5030 = vmatpush1.msra.mxu0 0.0
        %5031 = vmatprep.subr.mxu0 0.0
        %5032 = vmatpush1.msra.mxu0 0.0
        %5033 = vmatprep.subr.mxu0 0.0
        %5034 = vmatpush1.msra.mxu0 0.0
        %5035 = vmatprep.subr.mxu0 0.0
        %5036 = vmatpush1.msra.mxu0 0.0
        %5037 = vmatprep.subr.mxu0 0.0
        %5038 = vmatpush1.msra.mxu0 0.0
        %5039 = vmatprep.mubr.f32.mxu0 0.0
        %5040 = vmatmul.mubr.f32.gmra.mrb[0].mxu0 %v4970
        %v5041 = vpop.f32.mrb[0].mxu0
        %v5042 = vadd.f32 0.0, %v5041
        %v5043 = vpop.f32.mrb[0].mxu0
        %5044 = vmatprep.mubr.f32.mxu0 0.0
        %5045 = vmatmul.mubr.f32.gmra.mrb[0].mxu0 %v4973
        %v5046 = vpop.f32.mrb[0].mxu0
        %v5047 = vadd.f32 0.0, %v5046
        %v5048 = vpop.f32.mrb[0].mxu0
        %5049 = vdwg.mxu0
        %v5050 = vmul.f32 %v5042, %v1979
        %v5051 = vmul.f32 %v5047, %v1981
        %v5052 = vadd.f32 %v5050, 0.0
        %v5053 = vadd.f32 %v5051, 0.0
        %v5054 = vmul.f32 %v4942, %v4964
        %v5055 = vmul.f32 %v4944, %v4966
        %v5057 = vsel %vm1892, %v5054, 0
        %v5060 = vsel %vm1892, %v5055, 0
        %5062 = vmatprep.subr.mxu0 0.0
        %5063 = vmatpush1.msra.mxu0 %v1901
        %5064 = vmatprep.subr.mxu0 0.0
        %5065 = vmatpush1.msra.mxu0 0.0
        %5066 = vmatprep.subr.mxu0 0.0
        %5067 = vmatpush1.msra.mxu0 0.0
        %5068 = vmatprep.subr.mxu0 0.0
        %5069 = vmatpush1.msra.mxu0 0.0
        %5070 = vmatprep.subr.mxu0 0.0
        %5071 = vmatpush1.msra.mxu0 0.0
        %5072 = vmatprep.subr.mxu0 0.0
        %5073 = vmatpush1.msra.mxu0 0.0
        %5074 = vmatprep.subr.mxu0 0.0
        %5075 = vmatpush1.msra.mxu0 0.0
        %5076 = vmatprep.subr.mxu0 0.0
        %5077 = vmatpush1.msra.mxu0 0.0
        %5078 = vmatprep.subr.mxu0 0.0
        %5079 = vmatpush1.msra.mxu0 0.0
        %5080 = vmatprep.subr.mxu0 0.0
        %5081 = vmatpush1.msra.mxu0 0.0
        %5082 = vmatprep.subr.mxu0 0.0
        %5083 = vmatpush1.msra.mxu0 0.0
        %5084 = vmatprep.subr.mxu0 0.0
        %5085 = vmatpush1.msra.mxu0 0.0
        %5086 = vmatprep.subr.mxu0 0.0
        %5087 = vmatpush1.msra.mxu0 0.0
        %5088 = vmatprep.subr.mxu0 0.0
        %5089 = vmatpush1.msra.mxu0 0.0
        %5090 = vmatprep.subr.mxu0 0.0
        %5091 = vmatpush1.msra.mxu0 0.0
        %5092 = vmatprep.subr.mxu0 0.0
        %5093 = vmatpush1.msra.mxu0 0.0
        %5094 = vmatprep.subr.mxu0 0.0
        %5095 = vmatpush1.msra.mxu0 0.0
        %5096 = vmatprep.subr.mxu0 0.0
        %5097 = vmatpush1.msra.mxu0 0.0
        %5098 = vmatprep.subr.mxu0 0.0
        %5099 = vmatpush1.msra.mxu0 0.0
        %5100 = vmatprep.subr.mxu0 0.0
        %5101 = vmatpush1.msra.mxu0 0.0
        %5102 = vmatprep.subr.mxu0 0.0
        %5103 = vmatpush1.msra.mxu0 0.0
        %5104 = vmatprep.subr.mxu0 0.0
        %5105 = vmatpush1.msra.mxu0 0.0
        %5106 = vmatprep.subr.mxu0 0.0
        %5107 = vmatpush1.msra.mxu0 0.0
        %5108 = vmatprep.subr.mxu0 0.0
        %5109 = vmatpush1.msra.mxu0 0.0
        %5110 = vmatprep.subr.mxu0 0.0
        %5111 = vmatpush1.msra.mxu0 0.0
        %5112 = vmatprep.subr.mxu0 0.0
        %5113 = vmatpush1.msra.mxu0 0.0
        %5114 = vmatprep.subr.mxu0 0.0
        %5115 = vmatpush1.msra.mxu0 0.0
        %5116 = vmatprep.subr.mxu0 0.0
        %5117 = vmatpush1.msra.mxu0 0.0
        %5118 = vmatprep.subr.mxu0 0.0
        %5119 = vmatpush1.msra.mxu0 0.0
        %5120 = vmatprep.subr.mxu0 0.0
        %5121 = vmatpush1.msra.mxu0 0.0
        %5122 = vmatprep.subr.mxu0 0.0
        %5123 = vmatpush1.msra.mxu0 0.0
        %5124 = vmatprep.subr.mxu0 0.0
        %5125 = vmatpush1.msra.mxu0 0.0
        %5126 = vmatprep.mubr.f32.mxu0 0.0
        %5127 = vmatmul.mubr.f32.gmra.mrb[0].mxu0 %v5057
        %v5128 = vpop.f32.mrb[0].mxu0
        %v5129 = vadd.f32 0.0, %v5128
        %v5130 = vpop.f32.mrb[0].mxu0
        %5131 = vmatprep.mubr.f32.mxu0 0.0
        %5132 = vmatmul.mubr.f32.gmra.mrb[0].mxu0 %v5060
        %v5133 = vpop.f32.mrb[0].mxu0
        %v5134 = vadd.f32 0.0, %v5133
        %v5135 = vpop.f32.mrb[0].mxu0
        %5136 = vdwg.mxu0
        %v5137 = vmul.f32 %v5129, %v2072
        %v5138 = vmul.f32 %v5134, %v2074
        %v5139 = vadd.f32 %v5052, %v5137
        %v5140 = vadd.f32 %v5053, %v5138
        %v5141 = vmul.f32 %v4948, %v4964
        %v5142 = vmul.f32 %v4950, %v4966
        %v5144 = vsel %vm1892, %v5141, 0
        %v5147 = vsel %vm1892, %v5142, 0
        %5149 = vmatprep.subr.mxu0 0.0
        %5150 = vmatpush1.msra.mxu0 %v1901
        %5151 = vmatprep.subr.mxu0 0.0
        %5152 = vmatpush1.msra.mxu0 0.0
        %5153 = vmatprep.subr.mxu0 0.0
        %5154 = vmatpush1.msra.mxu0 0.0
        %5155 = vmatprep.subr.mxu0 0.0
        %5156 = vmatpush1.msra.mxu0 0.0
        %5157 = vmatprep.subr.mxu0 0.0
        %5158 = vmatpush1.msra.mxu0 0.0
        %5159 = vmatprep.subr.mxu0 0.0
        %5160 = vmatpush1.msra.mxu0 0.0
        %5161 = vmatprep.subr.mxu0 0.0
        %5162 = vmatpush1.msra.mxu0 0.0
        %5163 = vmatprep.subr.mxu0 0.0
        %5164 = vmatpush1.msra.mxu0 0.0
        %5165 = vmatprep.subr.mxu0 0.0
        %5166 = vmatpush1.msra.mxu0 0.0
        %5167 = vmatprep.subr.mxu0 0.0
        %5168 = vmatpush1.msra.mxu0 0.0
        %5169 = vmatprep.subr.mxu0 0.0
        %5170 = vmatpush1.msra.mxu0 0.0
        %5171 = vmatprep.subr.mxu0 0.0
        %5172 = vmatpush1.msra.mxu0 0.0
        %5173 = vmatprep.subr.mxu0 0.0
        %5174 = vmatpush1.msra.mxu0 0.0
        %5175 = vmatprep.subr.mxu0 0.0
        %5176 = vmatpush1.msra.mxu0 0.0
        %5177 = vmatprep.subr.mxu0 0.0
        %5178 = vmatpush1.msra.mxu0 0.0
        %5179 = vmatprep.subr.mxu0 0.0
        %5180 = vmatpush1.msra.mxu0 0.0
        %5181 = vmatprep.subr.mxu0 0.0
        %5182 = vmatpush1.msra.mxu0 0.0
        %5183 = vmatprep.subr.mxu0 0.0
        %5184 = vmatpush1.msra.mxu0 0.0
        %5185 = vmatprep.subr.mxu0 0.0
        %5186 = vmatpush1.msra.mxu0 0.0
        %5187 = vmatprep.subr.mxu0 0.0
        %5188 = vmatpush1.msra.mxu0 0.0
        %5189 = vmatprep.subr.mxu0 0.0
        %5190 = vmatpush1.msra.mxu0 0.0
        %5191 = vmatprep.subr.mxu0 0.0
        %5192 = vmatpush1.msra.mxu0 0.0
        %5193 = vmatprep.subr.mxu0 0.0
        %5194 = vmatpush1.msra.mxu0 0.0
        %5195 = vmatprep.subr.mxu0 0.0
        %5196 = vmatpush1.msra.mxu0 0.0
        %5197 = vmatprep.subr.mxu0 0.0
        %5198 = vmatpush1.msra.mxu0 0.0
        %5199 = vmatprep.subr.mxu0 0.0
        %5200 = vmatpush1.msra.mxu0 0.0
        %5201 = vmatprep.subr.mxu0 0.0
        %5202 = vmatpush1.msra.mxu0 0.0
        %5203 = vmatprep.subr.mxu0 0.0
        %5204 = vmatpush1.msra.mxu0 0.0
        %5205 = vmatprep.subr.mxu0 0.0
        %5206 = vmatpush1.msra.mxu0 0.0
        %5207 = vmatprep.subr.mxu0 0.0
        %5208 = vmatpush1.msra.mxu0 0.0
        %5209 = vmatprep.subr.mxu0 0.0
        %5210 = vmatpush1.msra.mxu0 0.0
        %5211 = vmatprep.subr.mxu0 0.0
        %5212 = vmatpush1.msra.mxu0 0.0
        %5213 = vmatprep.mubr.f32.mxu0 0.0
        %5214 = vmatmul.mubr.f32.gmra.mrb[0].mxu0 %v5144
        %v5215 = vpop.f32.mrb[0].mxu0
        %v5216 = vadd.f32 0.0, %v5215
        %v5217 = vpop.f32.mrb[0].mxu0
        %5218 = vmatprep.mubr.f32.mxu0 0.0
        %5219 = vmatmul.mubr.f32.gmra.mrb[0].mxu0 %v5147
        %v5220 = vpop.f32.mrb[0].mxu0
        %v5221 = vadd.f32 0.0, %v5220
        %v5222 = vpop.f32.mrb[0].mxu0
        %5223 = vdwg.mxu0
        %v5224 = vmul.f32 %v5216, %v2165
        %v5225 = vmul.f32 %v5221, %v2167
        %v5226 = vadd.f32 %v5139, %v5224
        %v5227 = vadd.f32 %v5140, %v5225
        %v5228 = vmul.f32 %v4954, %v4964
        %v5229 = vmul.f32 %v4956, %v4966
        %v5231 = vsel %vm1892, %v5228, 0
        %v5234 = vsel %vm1892, %v5229, 0
        %5236 = vmatprep.subr.mxu0 0.0
        %5237 = vmatpush1.msra.mxu0 %v1901
        %5238 = vmatprep.subr.mxu0 0.0
        %5239 = vmatpush1.msra.mxu0 0.0
        %5240 = vmatprep.subr.mxu0 0.0
        %5241 = vmatpush1.msra.mxu0 0.0
        %5242 = vmatprep.subr.mxu0 0.0
        %5243 = vmatpush1.msra.mxu0 0.0
        %5244 = vmatprep.subr.mxu0 0.0
        %5245 = vmatpush1.msra.mxu0 0.0
        %5246 = vmatprep.subr.mxu0 0.0
        %5247 = vmatpush1.msra.mxu0 0.0
        %5248 = vmatprep.subr.mxu0 0.0
        %5249 = vmatpush1.msra.mxu0 0.0
        %5250 = vmatprep.subr.mxu0 0.0
        %5251 = vmatpush1.msra.mxu0 0.0
        %5252 = vmatprep.subr.mxu0 0.0
        %5253 = vmatpush1.msra.mxu0 0.0
        %5254 = vmatprep.subr.mxu0 0.0
        %5255 = vmatpush1.msra.mxu0 0.0
        %5256 = vmatprep.subr.mxu0 0.0
        %5257 = vmatpush1.msra.mxu0 0.0
        %5258 = vmatprep.subr.mxu0 0.0
        %5259 = vmatpush1.msra.mxu0 0.0
        %5260 = vmatprep.subr.mxu0 0.0
        %5261 = vmatpush1.msra.mxu0 0.0
        %5262 = vmatprep.subr.mxu0 0.0
        %5263 = vmatpush1.msra.mxu0 0.0
        %5264 = vmatprep.subr.mxu0 0.0
        %5265 = vmatpush1.msra.mxu0 0.0
        %5266 = vmatprep.subr.mxu0 0.0
        %5267 = vmatpush1.msra.mxu0 0.0
        %5268 = vmatprep.subr.mxu0 0.0
        %5269 = vmatpush1.msra.mxu0 0.0
        %5270 = vmatprep.subr.mxu0 0.0
        %5271 = vmatpush1.msra.mxu0 0.0
        %5272 = vmatprep.subr.mxu0 0.0
        %5273 = vmatpush1.msra.mxu0 0.0
        %5274 = vmatprep.subr.mxu0 0.0
        %5275 = vmatpush1.msra.mxu0 0.0
        %5276 = vmatprep.subr.mxu0 0.0
        %5277 = vmatpush1.msra.mxu0 0.0
        %5278 = vmatprep.subr.mxu0 0.0
        %5279 = vmatpush1.msra.mxu0 0.0
        %5280 = vmatprep.subr.mxu0 0.0
        %5281 = vmatpush1.msra.mxu0 0.0
        %5282 = vmatprep.subr.mxu0 0.0
        %5283 = vmatpush1.msra.mxu0 0.0
        %5284 = vmatprep.subr.mxu0 0.0
        %5285 = vmatpush1.msra.mxu0 0.0
        %5286 = vmatprep.subr.mxu0 0.0
        %5287 = vmatpush1.msra.mxu0 0.0
        %5288 = vmatprep.subr.mxu0 0.0
        %5289 = vmatpush1.msra.mxu0 0.0
        %5290 = vmatprep.subr.mxu0 0.0
        %5291 = vmatpush1.msra.mxu0 0.0
        %5292 = vmatprep.subr.mxu0 0.0
        %5293 = vmatpush1.msra.mxu0 0.0
        %5294 = vmatprep.subr.mxu0 0.0
        %5295 = vmatpush1.msra.mxu0 0.0
        %5296 = vmatprep.subr.mxu0 0.0
        %5297 = vmatpush1.msra.mxu0 0.0
        %5298 = vmatprep.subr.mxu0 0.0
        %5299 = vmatpush1.msra.mxu0 0.0
        %5300 = vmatprep.mubr.f32.mxu0 0.0
        %5301 = vmatmul.mubr.f32.gmra.mrb[0].mxu0 %v5231
        %v5302 = vpop.f32.mrb[0].mxu0
        %v5303 = vadd.f32 0.0, %v5302
        %v5304 = vpop.f32.mrb[0].mxu0
        %5305 = vmatprep.mubr.f32.mxu0 0.0
        %5306 = vmatmul.mubr.f32.gmra.mrb[0].mxu0 %v5234
        %v5307 = vpop.f32.mrb[0].mxu0
        %v5308 = vadd.f32 0.0, %v5307
        %v5309 = vpop.f32.mrb[0].mxu0
        %5310 = vdwg.mxu0
        %v5311 = vmul.f32 %v5303, %v2258
        %v5312 = vmul.f32 %v5308, %v2260
        %v5313 = vadd.f32 %v5226, %v5311
        %v5314 = vadd.f32 %v5227, %v5312
        %v5315 = vpack.c.bf16 %v5314, %v5313
        %v5316 = vld [vmem:[%s11] sm:$0xf]
        %v5317 = vld [vmem:[%s11 + $0x4] sm:$0xf]
        %v5318 = vld [vmem:[%s12] sm:$0x1]
        %v5320 = vlaneseq
        %v5321 = vshrl.u32 %v5320, 7
        %v5322 = vsub.s32 0, %v5321
        %v5323 = vrot.slane %v5318, %v5322
        %v5327 = vunpack.c.l.b16 %v5316
        %v5328 = vunpack.c.l.b16 %v5317
        %v5329 = vpack.c.b16 %v5328, %v5327
        %v5332 = vsel %vm1487, %v5315, 0
        %5334 = vmatprep.subr.bf16.mxu0 0
        %5335 = vmatpush1.bf16.msra.mxu0 %v5329
        %5336 = vmatprep.subr.bf16.mxu0 0
        %5337 = vmatpush1.bf16.msra.mxu0 0
        %5338 = vmatprep.subr.bf16.mxu0 0
        %5339 = vmatpush1.bf16.msra.mxu0 0
        %5340 = vmatprep.subr.bf16.mxu0 0
        %5341 = vmatpush1.bf16.msra.mxu0 0
        %5342 = vmatprep.subr.bf16.mxu0 0
        %5343 = vmatpush1.bf16.msra.mxu0 0
        %5344 = vmatprep.subr.bf16.mxu0 0
        %5345 = vmatpush1.bf16.msra.mxu0 0
        %5346 = vmatprep.subr.bf16.mxu0 0
        %5347 = vmatpush1.bf16.msra.mxu0 0
        %5348 = vmatprep.subr.bf16.mxu0 0
        %5349 = vmatpush1.bf16.msra.mxu0 0
        %5350 = vmatprep.subr.bf16.mxu0 0
        %5351 = vmatpush1.bf16.msra.mxu0 0
        %5352 = vmatprep.subr.bf16.mxu0 0
        %5353 = vmatpush1.bf16.msra.mxu0 0
        %5354 = vmatprep.subr.bf16.mxu0 0
        %5355 = vmatpush1.bf16.msra.mxu0 0
        %5356 = vmatprep.subr.bf16.mxu0 0
        %5357 = vmatpush1.bf16.msra.mxu0 0
        %5358 = vmatprep.subr.bf16.mxu0 0
        %5359 = vmatpush1.bf16.msra.mxu0 0
        %5360 = vmatprep.subr.bf16.mxu0 0
        %5361 = vmatpush1.bf16.msra.mxu0 0
        %5362 = vmatprep.subr.bf16.mxu0 0
        %5363 = vmatpush1.bf16.msra.mxu0 0
        %5364 = vmatprep.subr.bf16.mxu0 0
        %5365 = vmatpush1.bf16.msra.mxu0 0
        %5366 = vmatprep.mubr.bf16.mxu0 0
        %5367 = vmatmul.mubr.bf16.gmra.mrb[0].mxu0 %v5332
        %v5368 = vpop.f32.mrb[0].mxu0
        %v5369 = vadd.f32 %v5323, %v5368
        %v5370 = vpop.f32.mrb[0].mxu0
        %v5371 = vpop.f32.mrb[0].mxu0
        %v5372 = vadd.f32 %v5323, %v5371
        %v5373 = vpop.f32.mrb[0].mxu0
        %5374 = vdwg.mxu0
        %v5375 = vld [vmem:[%s13] sm:$0x1]
        %v5376 = vld [vmem:[%s14] sm:$0x1]
        %v5377 = vsel %vm1487, %v5369, 0.0
        %5378 = vadd.xlane.f32.xlu0 %v5377
        %v5379 = vpop.xlane.xlu0 %5378
        %v5380 = vsel %vm1487, %v5372, 0.0
        %5381 = vadd.xlane.f32.xlu0 %v5380
        %v5382 = vpop.xlane.xlu0 %5381
        %v5383 = vmul.f32 %v5379, %v2335
        %v5384 = vmul.f32 %v5382, %v2335
        %v5385 = vsub.f32 %v5369, %v5383
        %v5386 = vsub.f32 %v5372, %v5384
        %v5387 = vmul.f32 %v5385, %v5385
        %v5388 = vmul.f32 %v5386, %v5386
        %v5389 = vsel %vm1487, %v5387, 0.0
        %5390 = vadd.xlane.f32.xlu0 %v5389
        %v5391 = vpop.xlane.xlu0 %5390
        %v5392 = vsel %vm1487, %v5388, 0.0
        %5393 = vadd.xlane.f32.xlu0 %v5392
        %v5394 = vpop.xlane.xlu0 %5393
        %v5395 = vmul.f32 %v5391, %v2335
        %v5396 = vmul.f32 %v5394, %v2335
        %v5397 = vadd.f32 %v5395, 1e-05
        %v5398 = vadd.f32 %v5396, 1e-05
        %v5399 = vrsqrt.pop %v5397
        %v5400 = vrsqrt.pop %v5398
        %v5401 = vmul.f32 %v5385, %v5399
        %v5402 = vmul.f32 %v5386, %v5400
        %v5404 = vlaneseq
        %v5405 = vshrl.u32 %v5404, 7
        %v5406 = vsub.s32 0, %v5405
        %v5407 = vrot.slane %v5375, %v5406
        %v5409 = vmul.f32 %v5401, %v5407
        %v5410 = vmul.f32 %v5402, %v5407
        %v5412 = vlaneseq
        %v5413 = vshrl.u32 %v5412, 7
        %v5414 = vsub.s32 0, %v5413
        %v5415 = vrot.slane %v5376, %v5414
        %v5417 = vadd.f32 %v5409, %v5415
        %v5418 = vadd.f32 %v5410, %v5415
        %v5419 = vpack.c.bf16 %v5418, %v5417
        %v5420 = vld [vmem:[%s15] sm:$0xf]
        %v5421 = vld [vmem:[%s15 + $0x4] sm:$0xf]
        %v5422 = vld [vmem:[%s16] sm:$0x1]
        %v5424 = vlaneseq
        %v5425 = vshrl.u32 %v5424, 7
        %v5426 = vsub.s32 0, %v5425
        %v5427 = vrot.slane %v5422, %v5426
        %v5431 = vunpack.c.l.b16 %v5420
        %v5432 = vunpack.c.l.b16 %v5421
        %v5433 = vpack.c.b16 %v5432, %v5431
        %v5436 = vsel %vm1487, %v5419, 0
        %5438 = vmatprep.subr.bf16.mxu0 0
        %5439 = vmatpush1.bf16.msra.mxu0 %v5433
        %5440 = vmatprep.subr.bf16.mxu0 0
        %5441 = vmatpush1.bf16.msra.mxu0 0
        %5442 = vmatprep.subr.bf16.mxu0 0
        %5443 = vmatpush1.bf16.msra.mxu0 0
        %5444 = vmatprep.subr.bf16.mxu0 0
        %5445 = vmatpush1.bf16.msra.mxu0 0
        %5446 = vmatprep.subr.bf16.mxu0 0
        %5447 = vmatpush1.bf16.msra.mxu0 0
        %5448 = vmatprep.subr.bf16.mxu0 0
        %5449 = vmatpush1.bf16.msra.mxu0 0
        %5450 = vmatprep.subr.bf16.mxu0 0
        %5451 = vmatpush1.bf16.msra.mxu0 0
        %5452 = vmatprep.subr.bf16.mxu0 0
        %5453 = vmatpush1.bf16.msra.mxu0 0
        %5454 = vmatprep.subr.bf16.mxu0 0
        %5455 = vmatpush1.bf16.msra.mxu0 0
        %5456 = vmatprep.subr.bf16.mxu0 0
        %5457 = vmatpush1.bf16.msra.mxu0 0
        %5458 = vmatprep.subr.bf16.mxu0 0
        %5459 = vmatpush1.bf16.msra.mxu0 0
        %5460 = vmatprep.subr.bf16.mxu0 0
        %5461 = vmatpush1.bf16.msra.mxu0 0
        %5462 = vmatprep.subr.bf16.mxu0 0
        %5463 = vmatpush1.bf16.msra.mxu0 0
        %5464 = vmatprep.subr.bf16.mxu0 0
        %5465 = vmatpush1.bf16.msra.mxu0 0
        %5466 = vmatprep.subr.bf16.mxu0 0
        %5467 = vmatpush1.bf16.msra.mxu0 0
        %5468 = vmatprep.subr.bf16.mxu0 0
        %5469 = vmatpush1.bf16.msra.mxu0 0
        %5470 = vmatprep.mubr.bf16.mxu0 0
        %5471 = vmatmul.mubr.bf16.gmra.mrb[0].mxu0 %v5436
        %v5472 = vpop.f32.mrb[0].mxu0
        %v5473 = vadd.f32 %v5427, %v5472
        %v5474 = vpop.f32.mrb[0].mxu0
        %v5475 = vpop.f32.mrb[0].mxu0
        %v5476 = vadd.f32 %v5427, %v5475
        %v5477 = vpop.f32.mrb[0].mxu0
        %5478 = vdwg.mxu0
        %v5479 = vmax.f32 %v5473, 0.0
        %v5480 = vmax.f32 %v5476, 0.0
        %v5481 = vpack.c.bf16 %v5480, %v5479
        %v5482 = vld [vmem:[%s17] sm:$0xf]
        %v5483 = vld [vmem:[%s17 + $0x4] sm:$0xf]
        %v5484 = vld [vmem:[%s18] sm:$0x1]
        %v5486 = vlaneseq
        %v5487 = vshrl.u32 %v5486, 7
        %v5488 = vsub.s32 0, %v5487
        %v5489 = vrot.slane %v5484, %v5488
        %v5493 = vunpack.c.l.b16 %v5482
        %v5494 = vunpack.c.l.b16 %v5483
        %v5495 = vpack.c.b16 %v5494, %v5493
        %v5498 = vsel %vm1487, %v5481, 0
        %5500 = vmatprep.subr.bf16.mxu0 0
        %5501 = vmatpush1.bf16.msra.mxu0 %v5495
        %5502 = vmatprep.subr.bf16.mxu0 0
        %5503 = vmatpush1.bf16.msra.mxu0 0
        %5504 = vmatprep.subr.bf16.mxu0 0
        %5505 = vmatpush1.bf16.msra.mxu0 0
        %5506 = vmatprep.subr.bf16.mxu0 0
        %5507 = vmatpush1.bf16.msra.mxu0 0
        %5508 = vmatprep.subr.bf16.mxu0 0
        %5509 = vmatpush1.bf16.msra.mxu0 0
        %5510 = vmatprep.subr.bf16.mxu0 0
        %5511 = vmatpush1.bf16.msra.mxu0 0
        %5512 = vmatprep.subr.bf16.mxu0 0
        %5513 = vmatpush1.bf16.msra.mxu0 0
        %5514 = vmatprep.subr.bf16.mxu0 0
        %5515 = vmatpush1.bf16.msra.mxu0 0
        %5516 = vmatprep.subr.bf16.mxu0 0
        %5517 = vmatpush1.bf16.msra.mxu0 0
        %5518 = vmatprep.subr.bf16.mxu0 0
        %5519 = vmatpush1.bf16.msra.mxu0 0
        %5520 = vmatprep.subr.bf16.mxu0 0
        %5521 = vmatpush1.bf16.msra.mxu0 0
        %5522 = vmatprep.subr.bf16.mxu0 0
        %5523 = vmatpush1.bf16.msra.mxu0 0
        %5524 = vmatprep.subr.bf16.mxu0 0
        %5525 = vmatpush1.bf16.msra.mxu0 0
        %5526 = vmatprep.subr.bf16.mxu0 0
        %5527 = vmatpush1.bf16.msra.mxu0 0
        %5528 = vmatprep.subr.bf16.mxu0 0
        %5529 = vmatpush1.bf16.msra.mxu0 0
        %5530 = vmatprep.subr.bf16.mxu0 0
        %5531 = vmatpush1.bf16.msra.mxu0 0
        %5532 = vmatprep.mubr.bf16.mxu0 0
        %5533 = vmatmul.mubr.bf16.gmra.mrb[0].mxu0 %v5498
        %v5534 = vpop.f32.mrb[0].mxu0
        %v5535 = vadd.f32 %v5489, %v5534
        %v5536 = vpop.f32.mrb[0].mxu0
        %v5537 = vpop.f32.mrb[0].mxu0
        %v5538 = vadd.f32 %v5489, %v5537
        %v5539 = vpop.f32.mrb[0].mxu0
        %5540 = vdwg.mxu0
        %v5541 = vadd.f32 %v5369, %v5535
        %v5542 = vadd.f32 %v5372, %v5538
        %s5543 = scalar_lea.vmem %s848, 48 [#allocation5]
        %5544 = vst.msk [vmem:[%s5543] sm:$0xff] %vm1487, %v5541
        %5545 = vst.msk [vmem:[%s5543 + $0x8] sm:$0xff] %vm1487, %v5542
        %v5546 = vmax.f32 %v5541, 0.0
        %v5547 = vmax.f32 %v5542, 0.0
        %v5548 = vld [vmem:[%s19] sm:$0x1]
        %v5549 = vld [vmem:[%s20] sm:$0x1]
        %v5550 = vsel %vm1487, %v5546, 0.0
        %5551 = vadd.xlane.f32.xlu0 %v5550
        %v5552 = vpop.xlane.xlu0 %5551
        %v5553 = vsel %vm1487, %v5547, 0.0
        %5554 = vadd.xlane.f32.xlu0 %v5553
        %v5555 = vpop.xlane.xlu0 %5554
        %v5556 = vmul.f32 %v5552, %v2335
        %v5557 = vmul.f32 %v5555, %v2335
        %v5558 = vsub.f32 %v5546, %v5556
        %v5559 = vsub.f32 %v5547, %v5557
        %v5560 = vmul.f32 %v5558, %v5558
        %v5561 = vmul.f32 %v5559, %v5559
        %v5562 = vsel %vm1487, %v5560, 0.0
        %5563 = vadd.xlane.f32.xlu0 %v5562
        %v5564 = vpop.xlane.xlu0 %5563
        %v5565 = vsel %vm1487, %v5561, 0.0
        %5566 = vadd.xlane.f32.xlu0 %v5565
        %v5567 = vpop.xlane.xlu0 %5566
        %v5568 = vmul.f32 %v5564, %v2335
        %v5569 = vmul.f32 %v5567, %v2335
        %v5570 = vadd.f32 %v5568, 1e-05
        %v5571 = vadd.f32 %v5569, 1e-05
        %v5572 = vrsqrt.pop %v5570
        %v5573 = vrsqrt.pop %v5571
        %v5574 = vmul.f32 %v5558, %v5572
        %v5575 = vmul.f32 %v5559, %v5573
        %v5577 = vlaneseq
        %v5578 = vshrl.u32 %v5577, 7
        %v5579 = vsub.s32 0, %v5578
        %v5580 = vrot.slane %v5548, %v5579
        %v5582 = vmul.f32 %v5574, %v5580
        %v5583 = vmul.f32 %v5575, %v5580
        %v5585 = vlaneseq
        %v5586 = vshrl.u32 %v5585, 7
        %v5587 = vsub.s32 0, %v5586
        %v5588 = vrot.slane %v5549, %v5587
        %v5590 = vadd.f32 %v5582, %v5588
        %v5591 = vadd.f32 %v5583, %v5588
        %v5592 = vpack.c.bf16 %v5591, %v5590
        %v5594 = vunpack.c.l.b16 %v5592
        %v5595 = vunpack.c.h.b16 %v5592
        %v5596 = vpack.c.b16 %v5594, %v5594
        %v5597 = vpack.c.b16 %v5595, %v5595
        %s5600 = scalar_lea.vmem %s854, 24 [#allocation6]
        %5601 = vst.msk [vmem:[%s5600] sm:$0xf] %vm2552, %v5596
        %5602 = vst.msk [vmem:[%s5600 + $0x4] sm:$0xf] %vm2552, %v5597
        %s5603 = sand.u32 %s499, 1
        %s5604 = sand.u32 %s499, 1
        %s5605 = smul.addr %s5604, 64
        %s5606 = scalar_lea.vmem [#allocation5], %s5605
        %s5607 = sand.u32 %s525, 1
        %s5608 = sand.u32 %s525, 1
        %s5609 = smul.addr %s5608, 32
        %s5610 = scalar_lea.vmem [#allocation6], %s5609
        // Predicated region
        $region184: #{tpu_custom_call.1} parent=174 // pred_check
          %p5611 = pneg %p509
        $region185: #{tpu_custom_call.1} parent=174 // pred_check_branch
          %5613 = sbr.rel (%p5611) target = $region187
        $region186: #{tpu_custom_call.1} parent=174 // pred_region
          %s5614 = smul.u32 2, %s35
          %s5615 = smul.addr %s5614, 8
          %s5616 = scalar_lea.vmem %s21, %s5615
          // Predicated region
          $region188: #{tpu_custom_call.1} parent=186 // pred_check
            _
          $region189: #{tpu_custom_call.1} parent=186 // pred_check_branch
            %5618 = sbr.rel (0) target = $region191
          $region190: #{tpu_custom_call.1} parent=186 // pred_region
            // Predicated region
            $region192: #{tpu_custom_call.1} parent=190 // pred_check
              _
            $region193: #{tpu_custom_call.1} parent=190 // pred_check_branch
              %5620 = sbr.rel (0) target = $region195
            $region194: #{tpu_custom_call.1} parent=190 // pred_region
              // Predicated region
              $region207: #{tpu_custom_call.1} parent=194 // pred_check
                _
              $region208: #{tpu_custom_call.1} parent=194 // pred_check_branch
                %5649 = sbr.rel (0) target = $region210
              $region209: #{tpu_custom_call.1} parent=194 // pred_region
                loop: start=0, step=1, limit=1
                $region211: #{tpu_custom_call.1} parent=209 // loop_pre_header
                  _
                $region212: #{tpu_custom_call.1} parent=209 // loop_header
                  %s5651 = sphi 0, %s5655
                  %p5652 = scmp.ge.s32.totalorder %s5651, 1
                  %s5656 = sphi %s5606, %s5606
                  %s5657 = sphi %s5616, %s5616
                $region213: #{tpu_custom_call.1} parent=209 // loop_header_branch
                  %5654 = sbr.rel (%p5652) target = $region217
                $region214: #{tpu_custom_call.1} parent=209 // loop_body
                  %v5658 = vld [vmem:[%s5656] sm:$0xff]
                  %5659 = vst [vmem:[%s5657] sm:$0xff] %v5658
                  %v5660 = vld [vmem:[%s5656 + $0x8] sm:$0xff]
                  %5661 = vst [vmem:[%s5657 + $0x8] sm:$0xff] %v5660
                  %v5662 = vld [vmem:[%s5656 + $0x10] sm:$0xff]
                  %5663 = vst [vmem:[%s5657 + $0x20] sm:$0xff] %v5662
                  %v5664 = vld [vmem:[%s5656 + $0x18] sm:$0xff]
                  %5665 = vst [vmem:[%s5657 + $0x28] sm:$0xff] %v5664
                  %v5666 = vld [vmem:[%s5656 + $0x20] sm:$0xff]
                  %5667 = vst [vmem:[%s5657 + $0x40] sm:$0xff] %v5666
                  %v5668 = vld [vmem:[%s5656 + $0x28] sm:$0xff]
                  %5669 = vst [vmem:[%s5657 + $0x48] sm:$0xff] %v5668
                  %v5670 = vld [vmem:[%s5656 + $0x30] sm:$0xff]
                  %5671 = vst [vmem:[%s5657 + $0x60] sm:$0xff] %v5670
                  %v5672 = vld [vmem:[%s5656 + $0x38] sm:$0xff]
                  %5673 = vst [vmem:[%s5657 + $0x68] sm:$0xff] %v5672
                $region215: #{tpu_custom_call.1} parent=209 // loop_footer
                  %s5655 = sadd.s32 1, %s5651
                $region216: #{tpu_custom_call.1} parent=209 // loop_footer_branch
                  %5650 = sbr.rel target = $region212
                $region217: #{tpu_custom_call.1} parent=209 // loop_exit
                  _
              $region210: #{tpu_custom_call.1} parent=194 // pred_fallthru
                _
              // Predicated region
              $region218: #{tpu_custom_call.1} parent=194 // pred_check
                _
              $region219: #{tpu_custom_call.1} parent=194 // pred_check_branch
                %5675 = sbr.rel target = $region221
              $region220: #{tpu_custom_call.1} parent=194 // pred_region
                _
              $region221: #{tpu_custom_call.1} parent=194 // pred_fallthru
                _
            $region195: #{tpu_custom_call.1} parent=190 // pred_fallthru
              _
            // Predicated region
            $region196: #{tpu_custom_call.1} parent=190 // pred_check
              _
            $region197: #{tpu_custom_call.1} parent=190 // pred_check_branch
              %5622 = sbr.rel target = $region199
            $region198: #{tpu_custom_call.1} parent=190 // pred_region
              loop: start=0, step=1, limit=1
              $region200: #{tpu_custom_call.1} parent=198 // loop_pre_header
                _
              $region201: #{tpu_custom_call.1} parent=198 // loop_header
                %s5625 = sphi 0, %s5629
                %p5626 = scmp.ge.s32.totalorder %s5625, 1
                %s5630 = sphi %s5606, %s5606
                %s5631 = sphi %s5616, %s5616
              $region202: #{tpu_custom_call.1} parent=198 // loop_header_branch
                %5628 = sbr.rel (%p5626) target = $region206
              $region203: #{tpu_custom_call.1} parent=198 // loop_body
                %v5632 = vld [vmem:[%s5630] sm:$0xff]
                %5633 = vst [vmem:[%s5631] sm:$0xff] %v5632
                %v5634 = vld [vmem:[%s5630 + $0x8] sm:$0xff]
                %5635 = vst [vmem:[%s5631 + $0x8] sm:$0xff] %v5634
                %v5636 = vld [vmem:[%s5630 + $0x10] sm:$0xff]
                %5637 = vst [vmem:[%s5631 + $0x20] sm:$0xff] %v5636
                %v5638 = vld [vmem:[%s5630 + $0x18] sm:$0xff]
                %5639 = vst [vmem:[%s5631 + $0x28] sm:$0xff] %v5638
                %v5640 = vld [vmem:[%s5630 + $0x20] sm:$0xff]
                %5641 = vst [vmem:[%s5631 + $0x40] sm:$0xff] %v5640
                %v5642 = vld [vmem:[%s5630 + $0x28] sm:$0xff]
                %5643 = vst [vmem:[%s5631 + $0x48] sm:$0xff] %v5642
                %v5644 = vld [vmem:[%s5630 + $0x30] sm:$0xff]
                %5645 = vst [vmem:[%s5631 + $0x60] sm:$0xff] %v5644
                %v5646 = vld [vmem:[%s5630 + $0x38] sm:$0xff]
                %5647 = vst [vmem:[%s5631 + $0x68] sm:$0xff] %v5646
              $region204: #{tpu_custom_call.1} parent=198 // loop_footer
                %s5629 = sadd.s32 1, %s5625
              $region205: #{tpu_custom_call.1} parent=198 // loop_footer_branch
                %5624 = sbr.rel target = $region201
              $region206: #{tpu_custom_call.1} parent=198 // loop_exit
                _
            $region199: #{tpu_custom_call.1} parent=190 // pred_fallthru
              _
          $region191: #{tpu_custom_call.1} parent=186 // pred_fallthru
            _
          %5676 = vnop
        $region187: #{tpu_custom_call.1} parent=174 // pred_fallthru
          _
        // Predicated region
        $region222: #{tpu_custom_call.1} parent=174 // pred_check
          %p5677 = pneg %p535
        $region223: #{tpu_custom_call.1} parent=174 // pred_check_branch
          %5679 = sbr.rel (%p5677) target = $region225
        $region224: #{tpu_custom_call.1} parent=174 // pred_region
          %s5680 = smul.u32 2, %s35
          %s5681 = smul.addr %s5680, 4
          %s5682 = scalar_lea.vmem %s22, %s5681
          // Predicated region
          $region226: #{tpu_custom_call.1} parent=224 // pred_check
            _
          $region227: #{tpu_custom_call.1} parent=224 // pred_check_branch
            %5684 = sbr.rel (0) target = $region229
          $region228: #{tpu_custom_call.1} parent=224 // pred_region
            // Predicated region
            $region230: #{tpu_custom_call.1} parent=228 // pred_check
              _
            $region231: #{tpu_custom_call.1} parent=228 // pred_check_branch
              %5686 = sbr.rel target = $region233
            $region232: #{tpu_custom_call.1} parent=228 // pred_region
              // Predicated region
              $region245: #{tpu_custom_call.1} parent=232 // pred_check
                _
              $region246: #{tpu_custom_call.1} parent=232 // pred_check_branch
                %5715 = sbr.rel (0) target = $region248
              $region247: #{tpu_custom_call.1} parent=232 // pred_region
                loop: start=0, step=1, limit=1
                $region249: #{tpu_custom_call.1} parent=247 // loop_pre_header
                  _
                $region250: #{tpu_custom_call.1} parent=247 // loop_header
                  %s5717 = sphi 0, %s5721
                  %p5718 = scmp.ge.s32.totalorder %s5717, 1
                  %s5722 = sphi %s5610, %s5610
                  %s5723 = sphi %s5682, %s5682
                $region251: #{tpu_custom_call.1} parent=247 // loop_header_branch
                  %5720 = sbr.rel (%p5718) target = $region255
                $region252: #{tpu_custom_call.1} parent=247 // loop_body
                  _
                $region253: #{tpu_custom_call.1} parent=247 // loop_footer
                  %s5721 = sadd.s32 1, %s5717
                $region254: #{tpu_custom_call.1} parent=247 // loop_footer_branch
                  %5716 = sbr.rel target = $region250
                $region255: #{tpu_custom_call.1} parent=247 // loop_exit
                  _
                loop: start=0, step=1, limit=1
                $region256: #{tpu_custom_call.1} parent=247 // loop_pre_header
                  _
                $region257: #{tpu_custom_call.1} parent=247 // loop_header
                  %s5726 = sphi 0, %s5730
                  %p5727 = scmp.ge.s32.totalorder %s5726, 1
                  %s5731 = sphi %s5610, %s5610
                  %s5732 = sphi %s5682, %s5682
                $region258: #{tpu_custom_call.1} parent=247 // loop_header_branch
                  %5729 = sbr.rel (%p5727) target = $region262
                $region259: #{tpu_custom_call.1} parent=247 // loop_body
                  %v5733 = vld [vmem:[%s5731] sm:$0xf]
                  %5734 = vst [vmem:[%s5732] sm:$0xf] %v5733
                  %v5735 = vld [vmem:[%s5731 + $0x4] sm:$0xf]
                  %5736 = vst [vmem:[%s5732 + $0x4] sm:$0xf] %v5735
                  %v5737 = vld [vmem:[%s5731 + $0x8] sm:$0xf]
                  %5738 = vst [vmem:[%s5732 + $0x10] sm:$0xf] %v5737
                  %v5739 = vld [vmem:[%s5731 + $0xc] sm:$0xf]
                  %5740 = vst [vmem:[%s5732 + $0x14] sm:$0xf] %v5739
                  %v5741 = vld [vmem:[%s5731 + $0x10] sm:$0xf]
                  %5742 = vst [vmem:[%s5732 + $0x20] sm:$0xf] %v5741
                  %v5743 = vld [vmem:[%s5731 + $0x14] sm:$0xf]
                  %5744 = vst [vmem:[%s5732 + $0x24] sm:$0xf] %v5743
                  %v5745 = vld [vmem:[%s5731 + $0x18] sm:$0xf]
                  %5746 = vst [vmem:[%s5732 + $0x30] sm:$0xf] %v5745
                  %v5747 = vld [vmem:[%s5731 + $0x1c] sm:$0xf]
                  %5748 = vst [vmem:[%s5732 + $0x34] sm:$0xf] %v5747
                $region260: #{tpu_custom_call.1} parent=247 // loop_footer
                  %s5730 = sadd.s32 1, %s5726
                $region261: #{tpu_custom_call.1} parent=247 // loop_footer_branch
                  %5725 = sbr.rel target = $region257
                $region262: #{tpu_custom_call.1} parent=247 // loop_exit
                  _
              $region248: #{tpu_custom_call.1} parent=232 // pred_fallthru
                _
            $region233: #{tpu_custom_call.1} parent=228 // pred_fallthru
              _
            // Predicated region
            $region234: #{tpu_custom_call.1} parent=228 // pred_check
              _
            $region235: #{tpu_custom_call.1} parent=228 // pred_check_branch
              %5688 = sbr.rel (0) target = $region237
            $region236: #{tpu_custom_call.1} parent=228 // pred_region
              loop: start=0, step=1, limit=1
              $region238: #{tpu_custom_call.1} parent=236 // loop_pre_header
                _
              $region239: #{tpu_custom_call.1} parent=236 // loop_header
                %s5691 = sphi 0, %s5695
                %p5692 = scmp.ge.s32.totalorder %s5691, 1
                %s5696 = sphi %s5610, %s5610
                %s5697 = sphi %s5682, %s5682
              $region240: #{tpu_custom_call.1} parent=236 // loop_header_branch
                %5694 = sbr.rel (%p5692) target = $region244
              $region241: #{tpu_custom_call.1} parent=236 // loop_body
                %v5698 = vld [vmem:[%s5696] sm:$0xf]
                %5699 = vst [vmem:[%s5697] sm:$0xf] %v5698
                %v5700 = vld [vmem:[%s5696 + $0x4] sm:$0xf]
                %5701 = vst [vmem:[%s5697 + $0x4] sm:$0xf] %v5700
                %v5702 = vld [vmem:[%s5696 + $0x8] sm:$0xf]
                %5703 = vst [vmem:[%s5697 + $0x10] sm:$0xf] %v5702
                %v5704 = vld [vmem:[%s5696 + $0xc] sm:$0xf]
                %5705 = vst [vmem:[%s5697 + $0x14] sm:$0xf] %v5704
                %v5706 = vld [vmem:[%s5696 + $0x10] sm:$0xf]
                %5707 = vst [vmem:[%s5697 + $0x20] sm:$0xf] %v5706
                %v5708 = vld [vmem:[%s5696 + $0x14] sm:$0xf]
                %5709 = vst [vmem:[%s5697 + $0x24] sm:$0xf] %v5708
                %v5710 = vld [vmem:[%s5696 + $0x18] sm:$0xf]
                %5711 = vst [vmem:[%s5697 + $0x30] sm:$0xf] %v5710
                %v5712 = vld [vmem:[%s5696 + $0x1c] sm:$0xf]
                %5713 = vst [vmem:[%s5697 + $0x34] sm:$0xf] %v5712
              $region242: #{tpu_custom_call.1} parent=236 // loop_footer
                %s5695 = sadd.s32 1, %s5691
              $region243: #{tpu_custom_call.1} parent=236 // loop_footer_branch
                %5690 = sbr.rel target = $region239
              $region244: #{tpu_custom_call.1} parent=236 // loop_exit
                _
            $region237: #{tpu_custom_call.1} parent=228 // pred_fallthru
              _
          $region229: #{tpu_custom_call.1} parent=224 // pred_fallthru
            _
          %5749 = vnop
        $region225: #{tpu_custom_call.1} parent=174 // pred_fallthru
          _
      $region175: #{tpu_custom_call.1} parent=5 // pred_fallthru
        _
      %p5750 = scmp.le.s32.totalorder 2, %s30
      // Predicated region
      $region263: #{tpu_custom_call.1} parent=5 // pred_check
        %p5751 = pneg %p5750
      $region264: #{tpu_custom_call.1} parent=5 // pred_check_branch
        %5753 = sbr.rel (%p5751) target = $region266
      $region265: #{tpu_custom_call.1} parent=5 // pred_region
        %s5754 = ssub.s32 %s30, 2
        // Predicated region
        $region267: #{tpu_custom_call.1} parent=265 // pred_check
          %p5755 = pneg %p515
        $region268: #{tpu_custom_call.1} parent=265 // pred_check_branch
          %5757 = sbr.rel (%p5755) target = $region270
        $region269: #{tpu_custom_call.1} parent=265 // pred_region
          %s5758 = sand.u32 %s500, 1
          %s5759 = sand.u32 %s500, 1
          %s5760 = smul.addr %s5759, 64
          %s5761 = scalar_lea.vmem [#allocation5], %s5760
        $region270: #{tpu_custom_call.1} parent=265 // pred_fallthru
          _
        // Predicated region
        $region271: #{tpu_custom_call.1} parent=265 // pred_check
          %p5762 = pneg %p541
        $region272: #{tpu_custom_call.1} parent=265 // pred_check_branch
          %5764 = sbr.rel (%p5762) target = $region274
        $region273: #{tpu_custom_call.1} parent=265 // pred_region
          %s5765 = sand.u32 %s526, 1
          %s5766 = sand.u32 %s526, 1
          %s5767 = smul.addr %s5766, 32
          %s5768 = scalar_lea.vmem [#allocation6], %s5767
        $region274: #{tpu_custom_call.1} parent=265 // pred_fallthru
          _
      $region266: #{tpu_custom_call.1} parent=5 // pred_fallthru
        _
    $region6: #{tpu_custom_call.1} parent=1 // loop_footer
      %s34 = sadd.s32 1, %s30
    $region7: #{tpu_custom_call.1} parent=1 // loop_footer_branch
      %29 = sbr.rel target = $region3
    $region8: #{tpu_custom_call.1} parent=1 // loop_exit
      _

</llo_original>
